<compile_context>
chip_gen: v7x
topology: tpu7x:2x2x1
jax: 0.10.0
libtpu: 0.0.40
codegen_flags: <defaults>
</compile_context>

<pallas_src>
import functools

import jax
import jax.numpy as jnp
from jax.experimental import pallas as pl
from jax.experimental.pallas import tpu as pltpu

VMEM_LIMIT = 32 * 1024 * 1024  # safe on v5e/v6e (128 MiB phys) and v7x (64 MiB)


def _round_up(x: int, m: int) -> int:
    return (x + m - 1) // m * m


def _matvec_tiles(K: int, N: int):
    """Reduction tile TK (multiple of 256 for the 256-deep MXU on v6e/v7x)
    and output tile TN (large, lane-dense). M block <= 2 MiB (4 MiB dbl-buf)."""
    TK = min(512, _round_up(K, 256))
    TN = min(1024, _round_up(N, 128))
    return TK, TN


# ---------------------------------------------------------------------------
# row-vector @ M  (forward operator)
# ---------------------------------------------------------------------------
def _rowmat_kernel(TK, x_ref, m_ref, o_ref, acc_ref):
    k = pl.program_id(1)

    @pl.when(k == 0)
    def _():
        acc_ref[...] = jnp.zeros_like(acc_ref)

    xk = x_ref[:, pl.ds(pl.multiple_of(k * TK, TK), TK)]      # (1, TK), VMEM-resident x
    acc_ref[...] += jnp.dot(xk, m_ref[...], preferred_element_type=jnp.float32)

    @pl.when(k == pl.num_programs(1) - 1)
    def _():
        o_ref[...] = acc_ref[...].astype(o_ref.dtype)


def rowvec_matmul(x_row, M):
    """(1,K) @ (K,N) -> (1,N). Streams M once; x stays resident in VMEM."""
    x_row = x_row.astype(jnp.float32)
    M = M.astype(jnp.float32)
    K, N = M.shape
    TK, TN = _matvec_tiles(K, N)
    Kp, Np = _round_up(K, TK), _round_up(N, TN)
    if (Kp, Np) != (K, N):
        M = jnp.pad(M, ((0, Kp - K), (0, Np - N)))
    if Kp != K:
        x_row = jnp.pad(x_row, ((0, 0), (0, Kp - K)))

    out = pl.pallas_call(
        functools.partial(_rowmat_kernel, TK),
        out_shape=jax.ShapeDtypeStruct((1, Np), jnp.float32),
        grid_spec=pltpu.PrefetchScalarGridSpec(
            num_scalar_prefetch=0,
            grid=(Np // TN, Kp // TK),
            in_specs=[
                pl.BlockSpec((1, Kp), lambda j, k: (0, 0)),    # x: whole row, DMA'd once
                pl.BlockSpec((TK, TN), lambda j, k: (k, j)),   # M: streamed in big blocks
            ],
            out_specs=pl.BlockSpec((1, TN), lambda j, k: (0, j)),
            scratch_shapes=[pltpu.VMEM((1, TN), jnp.float32)],
        ),
        compiler_params=pltpu.CompilerParams(
            dimension_semantics=("parallel", "arbitrary"),
            vmem_limit_bytes=VMEM_LIMIT,
        ),
    )(x_row, M)
    return out[:, :N] if Np != N else out


# ---------------------------------------------------------------------------
# row-vector @ M.T  (adjoint operator, uses the SAME M buffer — no Mt in HBM)
# ---------------------------------------------------------------------------
def _rowmat_t_kernel(TK, y_ref, m_ref, o_ref, acc_ref):
    k = pl.program_id(1)

    @pl.when(k == 0)
    def _():
        acc_ref[...] = jnp.zeros_like(acc_ref)

    yk = y_ref[:, pl.ds(pl.multiple_of(k * TK, TK), TK)]      # (1, TK)
    # contract y's lane axis with M's lane (column) axis: (1,TK)x(TN,TK) -> (1,TN)
    acc_ref[...] += jax.lax.dot_general(
        yk, m_ref[...],
        dimension_numbers=(((1,), (1,)), ((), ())),
        preferred_element_type=jnp.float32,
    )

    @pl.when(k == pl.num_programs(1) - 1)
    def _():
        o_ref[...] = acc_ref[...].astype(o_ref.dtype)


def rowvec_matmul_t(y_row, M):
    """(1,S) @ M.T -> (1,V) with M of shape (V,S); M.T is never materialized."""
    y_row = y_row.astype(jnp.float32)
    M = M.astype(jnp.float32)
    V, S = M.shape
    TK, TN = _matvec_tiles(S, V)                 # reduce over S, output over V
    Sp, Vp = _round_up(S, TK), _round_up(V, TN)
    if (Vp, Sp) != (V, S):
        M = jnp.pad(M, ((0, Vp - V), (0, Sp - S)))
    if Sp != S:
        y_row = jnp.pad(y_row, ((0, 0), (0, Sp - S)))

    out = pl.pallas_call(
        functools.partial(_rowmat_t_kernel, TK),
        out_shape=jax.ShapeDtypeStruct((1, Vp), jnp.float32),
        grid_spec=pltpu.PrefetchScalarGridSpec(
            num_scalar_prefetch=0,
            grid=(Vp // TN, Sp // TK),
            in_specs=[
                pl.BlockSpec((1, Sp), lambda j, k: (0, 0)),    # y resident in VMEM
                pl.BlockSpec((TN, TK), lambda j, k: (j, k)),   # M streamed
            ],
            out_specs=pl.BlockSpec((1, TN), lambda j, k: (0, j)),
            scratch_shapes=[pltpu.VMEM((1, TN), jnp.float32)],
        ),
        compiler_params=pltpu.CompilerParams(
            dimension_semantics=("parallel", "arbitrary"),
            vmem_limit_bytes=VMEM_LIMIT,
        ),
    )(y_row, M)
    return out[:, :V] if Vp != V else out


# ---------------------------------------------------------------------------
# big-block 2D dot product and relu
# ---------------------------------------------------------------------------
def _to_2d(v, lanes=1024, max_block_rows=256):
    """Flatten, zero-pad and reshape to (R, C): C multiple of 128 (<=lanes),
    R multiple of the block-row count TR.  Returns (array, TR)."""
    flat = v.reshape(-1).astype(jnp.float32)
    L = flat.shape[0]
    C = min(lanes, _round_up(L, 128))
    R = _round_up((L + C - 1) // C, 8)
    TR = min(R, max_block_rows)
    R = _round_up(R, TR)
    pad = R * C - L
    if pad:
        flat = jnp.pad(flat, (0, pad))
    return flat.reshape(R, C), TR


def _dot_kernel(x_ref, y_ref, o_ref, acc_ref):
    @pl.when(pl.program_id(0) == 0)
    def _():
        acc_ref[...] = jnp.zeros_like(acc_ref)

    # per-step: elementwise product + lane-axis reduce only; cross-sublane
    # reduction happens once in the finalize branch.
    acc_ref[...] += jnp.sum(x_ref[...] * y_ref[...], axis=1, keepdims=True)

    @pl.when(pl.program_id(0) == pl.num_programs(0) - 1)
    def _():
        o_ref[...] = jnp.sum(acc_ref[...], keepdims=True)


def pallas_dot(x, y):
    """torch.dot(x.flatten(), y.flatten()) equivalent, returns a scalar."""
    x2d, TR = _to_2d(x)
    y2d, _ = _to_2d(y)
    R, C = x2d.shape
    out = pl.pallas_call(
        _dot_kernel,
        out_shape=jax.ShapeDtypeStruct((1, 1), jnp.float32),
        grid_spec=pltpu.PrefetchScalarGridSpec(
            num_scalar_prefetch=0,
            grid=(R // TR,),
            in_specs=[
                pl.BlockSpec((TR, C), lambda i: (i, 0)),
                pl.BlockSpec((TR, C), lambda i: (i, 0)),
            ],
            out_specs=pl.BlockSpec((1, 1), lambda i: (0, 0)),
            scratch_shapes=[pltpu.VMEM((TR, 1), jnp.float32)],
        ),
        compiler_params=pltpu.CompilerParams(
            dimension_semantics=("arbitrary",),
            vmem_limit_bytes=VMEM_LIMIT,
        ),
    )(x2d, y2d)
    return out[0, 0]


def _relu_kernel(x_ref, o_ref):
    o_ref[...] = jnp.maximum(x_ref[...], 0.0)


def pallas_relu(v):
    """ReLU over an arbitrarily shaped array using large 2D blocks."""
    shape, size = v.shape, v.size
    x2d, TR = _to_2d(v)
    R, C = x2d.shape
    out = pl.pallas_call(
        _relu_kernel,
        out_shape=jax.ShapeDtypeStruct((R, C), jnp.float32),
        grid_spec=pltpu.PrefetchScalarGridSpec(
            num_scalar_prefetch=0,
            grid=(R // TR,),
            in_specs=[pl.BlockSpec((TR, C), lambda i: (i, 0))],
            out_specs=pl.BlockSpec((TR, C), lambda i: (i, 0)),
        ),
        compiler_params=pltpu.CompilerParams(
            dimension_semantics=("parallel",),
            vmem_limit_bytes=VMEM_LIMIT,
        ),
    )(x2d)
    return out.reshape(-1)[:size].reshape(shape)


# ---------------------------------------------------------------------------
# CG solver (mirrors the PyTorch reference exactly; dot() -> pallas_dot)
# ---------------------------------------------------------------------------
def CG(A, b, x0, n_iter, dot_fn=pallas_dot):
    if x0 is None:
        x = 0
        r = b
    else:
        x = x0
        r = b - A(x0)
    p = r
    dot_r_r = dot_fn(r, r)
    i = 0
    while True:
        Ap = A(p)
        alpha = dot_r_r / dot_fn(p, Ap)
        x = x + alpha * p
        i += 1
        if i == n_iter:
            return x
        r = r - alpha * Ap
        dot_r_r_new = dot_fn(r, r)
        p = r + dot_r_r_new / dot_r_r * p
        dot_r_r = dot_r_r_new


# ---------------------------------------------------------------------------
# jitted SRR forward (CG loop unrolls at trace time; XLA fuses the AXPYs)
# ---------------------------------------------------------------------------
@functools.partial(jax.jit, static_argnames=("n_iter", "output_relu"))
def _srr_forward(slices, volume, M, p, n_iter, output_relu):
    vol_shape = volume.shape
    sl_shape = slices.shape

    def A(x):
        return rowvec_matmul(x.reshape(1, -1), M).reshape(sl_shape)

    def At(y):
        return rowvec_matmul_t(y.reshape(1, -1), M).reshape(vol_shape)

    def AtA(x):
        s = A(x)
        if p is not None:
            s = s * p
        return At(s)

    b = At(slices * p if p is not None else slices)
    vol = CG(AtA, b, volume.astype(jnp.float32), n_iter)
    if output_relu:
        vol = pallas_relu(vol)
    return vol


# ---------------------------------------------------------------------------
# SRR module
# ---------------------------------------------------------------------------
class SRR:
    def __init__(self, n_iter: int = 10, tol: float = 0.0, output_relu: bool = True):
        self.n_iter = n_iter
        self.tol = tol  # unused by the reference forward path as well
        self.output_relu = output_relu

    def __call__(self, transforms, slices, volume, params,
                 p=None, slices_mask=None, vol_mask=None):
        # TODO(synk): slice_acquisition / slice_acquisition_adjoint are external
        # CUDA resampling ops (rigid transforms + PSF splatting). They are
        # modeled here as a dense linear operator M (volume -> slices); the
        # adjoint is applied with the same M (no M.T materialized), preserving
        # the exact CG / adjoint structure.
        M = params["A_matrix"]  # (V, S)
        return _srr_forward(slices, volume, M, p,
                            n_iter=self.n_iter, output_relu=self.output_relu)


# ---------------------------------------------------------------------------
# Pure-JAX reference (same math, no Pallas) for a sanity check
# ---------------------------------------------------------------------------
def srr_reference(slices, volume, M, p, n_iter, output_relu=True):
    vol_shape = volume.shape
    sl_shape = slices.shape

    def A(x):
        return (x.reshape(1, -1) @ M).reshape(sl_shape)

    def At(y):
        return (y.reshape(1, -1) @ M.T).reshape(vol_shape)

    def AtA(x):
        s = A(x)
        if p is not None:
            s = s * p
        return At(s)

    def jdot(a, b):
        return jnp.dot(a.reshape(-1), b.reshape(-1))

    b = At(slices * p if p is not None else slices)
    vol = CG(AtA, b, volume, n_iter, dot_fn=jdot)
    return jnp.maximum(vol, 0.0) if output_relu else vol


# ---------------------------------------------------------------------------
if __name__ == "__main__":
    key = jax.random.PRNGKey(0)
    k_m, k_s, k_v, k_p, k_t = jax.random.split(key, 5)

    # Small shapes consistent with the module:
    #   volume (1,1,D,H,W), slices (n_slices,1,h,w), transforms (n_slices,3,4)
    D, H, W = 8, 16, 16
    n_slices, h, w = 4, 16, 16
    V = D * H * W          # 2048
    S = n_slices * h * w   # 1024

    transforms = jax.random.normal(k_t, (n_slices, 3, 4), jnp.float32)
    slices = jax.random.normal(k_s, (n_slices, 1, h, w), jnp.float32)
    volume = jax.random.normal(k_v, (1, 1, D, H, W), jnp.float32)
    p = jax.random.uniform(k_p, (n_slices, 1, h, w), jnp.float32, 0.5, 1.5)

    # Deterministic synthetic linear operator standing in for slice_acquisition.
    M = jax.random.normal(k_m, (V, S), jnp.float32) * 0.05

    # Gaussian PSF kept in params for interface fidelity (unused by the
    # synthetic operator).
    zz = jnp.arange(5, dtype=jnp.float32) - 2.0
    g = jnp.exp(-0.5 * zz**2)
    psf = g[:, None, None] * g[None, :, None] * g[None, None, :]
    psf = psf / jnp.sum(psf)

    params = {
        "psf": psf,
        "slice_shape": (h, w),
        "volume_shape": (D, H, W),
        "res_s": 1.0,
        "res_r": 0.8,
        "A_matrix": M,
    }

    model = SRR(n_iter=3, tol=0.0, output_relu=True)
    out = model(transforms, slices, volume, params, p=p)
    out = jax.block_until_ready(out)
    assert out.shape == volume.shape and out.dtype == jnp.float32

    ref = jax.block_until_ready(
        srr_reference(slices, volume, M, p, n_iter=3, output_relu=True)
    )
    assert jnp.allclose(out, ref, rtol=1e-2, atol=1e-2), (
        float(jnp.max(jnp.abs(out - ref)))
    )

    print("KERNEL_OK")
</pallas_src>

<mosaic_0001>
module attributes {stable_mosaic.version = 11 : i64} {
  func.func @_rowmat_t_kernel(%arg0: i32, %arg1: i32, %arg2: memref<1x1024xf32, #tpu.memory_space<vmem>>, %arg3: memref<1024x512xf32, #tpu.memory_space<vmem>>, %arg4: memref<1x1024xf32, #tpu.memory_space<vmem>>, %arg5: memref<1x1024xf32, #tpu.memory_space<vmem>>) attributes {dimension_semantics = [#tpu.dimension_semantics<parallel>, #tpu.dimension_semantics<arbitrary>], iteration_bounds = array<i64: 2, 2>, scalar_prefetch = 0 : i64, scratch_operands = 1 : i64, tpu.core_type = #tpu.core_type<tc>, window_params = [{pipeline_mode = #tpu.pipeline_mode<synchronous>, transform_indices = @transform_0, window_bounds = array<i64: 1, 1024>}, {transform_indices = @transform_1, window_bounds = array<i64: 1024, 512>}, {transform_indices = @transform_2, window_bounds = array<i64: 1, 1024>}]} {
    %c0_i32 = arith.constant 0 : i32
    %0 = arith.cmpi eq, %arg1, %c0_i32 : i32
    %1 = arith.extui %0 : i1 to i32
    %c0_i32_0 = arith.constant 0 : i32
    %2 = arith.cmpi ne, %1, %c0_i32_0 : i32
    scf.if %2 {
      %cst_8 = arith.constant 0.000000e+00 : f32
      %15 = vector.broadcast %cst_8 : f32 to vector<1x1024xf32>
      %c0_9 = arith.constant 0 : index
      %c0_10 = arith.constant 0 : index
      %16 = vector.load %arg5[%c0_9, %c0_10] : memref<1x1024xf32, #tpu.memory_space<vmem>>, vector<1x1024xf32>
      tpu.vector_store %arg5[%c0_9, %c0_10], %15 {strides = array<i32>} : memref<1x1024xf32, #tpu.memory_space<vmem>>, vector<1x1024xf32>,
    } else {
    }
    %c512_i32 = arith.constant 512 : i32
    %3 = arith.muli %arg1, %c512_i32 : i32
    %4 = tpu.assume_multiple %3, 512 : i32
    %c0 = arith.constant 0 : index
    %5 = arith.index_cast %4 : i32 to index
    %6 = vector.load %arg2[%c0, %5] : memref<1x1024xf32, #tpu.memory_space<vmem>>, vector<1x512xf32>
    %c0_1 = arith.constant 0 : index
    %c0_2 = arith.constant 0 : index
    %7 = vector.load %arg5[%c0_1, %c0_2] : memref<1x1024xf32, #tpu.memory_space<vmem>>, vector<1x1024xf32>
    %c0_3 = arith.constant 0 : index
    %c0_4 = arith.constant 0 : index
    %8 = vector.load %arg3[%c0_3, %c0_4] : memref<1024x512xf32, #tpu.memory_space<vmem>>, vector<1024x512xf32>
    %cst = arith.constant dense<0.000000e+00> : vector<1x1024xf32>
    %9 = tpu.matmul %6, %8, %cst {dimension_numbers = #tpu.dot_dimension_numbers<[1], [1], [0], [0], [0, 0, 1, 0], [], []>} : vector<1x512xf32>, vector<1024x512xf32>, vector<1x1024xf32> -> vector<1x1024xf32>
    %10 = arith.addf %7, %9 : vector<1x1024xf32>
    %c0_5 = arith.constant 0 : index
    %c0_6 = arith.constant 0 : index
    %11 = vector.load %arg5[%c0_5, %c0_6] : memref<1x1024xf32, #tpu.memory_space<vmem>>, vector<1x1024xf32>
    tpu.vector_store %arg5[%c0_5, %c0_6], %10 {strides = array<i32>} : memref<1x1024xf32, #tpu.memory_space<vmem>>, vector<1x1024xf32>,
    %c1_i32 = arith.constant 1 : i32
    %12 = arith.cmpi eq, %arg1, %c1_i32 : i32
    %13 = arith.extui %12 : i1 to i32
    %c0_i32_7 = arith.constant 0 : i32
    %14 = arith.cmpi ne, %13, %c0_i32_7 : i32
    scf.if %14 {
      %c0_8 = arith.constant 0 : index
      %c0_9 = arith.constant 0 : index
      %15 = vector.load %arg5[%c0_8, %c0_9] : memref<1x1024xf32, #tpu.memory_space<vmem>>, vector<1x1024xf32>
      %c0_10 = arith.constant 0 : index
      %c0_11 = arith.constant 0 : index
      %16 = vector.load %arg4[%c0_10, %c0_11] : memref<1x1024xf32, #tpu.memory_space<vmem>>, vector<1x1024xf32>
      tpu.vector_store %arg4[%c0_10, %c0_11], %15 {strides = array<i32>} : memref<1x1024xf32, #tpu.memory_space<vmem>>, vector<1x1024xf32>,
    } else {
    }
    return
  }
  func.func @transform_0(%arg0: i32, %arg1: i32) -> (i32, i32) {
    %c0_i32 = arith.constant 0 : i32
    %c0_i32_0 = arith.constant 0 : i32
    %c0_i32_1 = arith.constant 0 : i32
    return %c0_i32, %c0_i32_0 : i32, i32
  }
  func.func @transform_1(%arg0: i32, %arg1: i32) -> (i32, i32) {
    %c0_i32 = arith.constant 0 : i32
    return %arg0, %arg1 : i32, i32
  }
  func.func @transform_2(%arg0: i32, %arg1: i32) -> (i32, i32) {
    %c0_i32 = arith.constant 0 : i32
    %c0_i32_0 = arith.constant 0 : i32
    return %c0_i32, %arg0 : i32, i32
  }
}

module attributes {stable_mosaic.version = 11 : i64} {
  func.func @_rowmat_kernel(%arg0: i32, %arg1: i32, %arg2: memref<1x2048xf32, #tpu.memory_space<vmem>>, %arg3: memref<512x1024xf32, #tpu.memory_space<vmem>>, %arg4: memref<1x1024xf32, #tpu.memory_space<vmem>>, %arg5: memref<1x1024xf32, #tpu.memory_space<vmem>>) attributes {dimension_semantics = [#tpu.dimension_semantics<parallel>, #tpu.dimension_semantics<arbitrary>], iteration_bounds = array<i64: 1, 4>, scalar_prefetch = 0 : i64, scratch_operands = 1 : i64, tpu.core_type = #tpu.core_type<tc>, window_params = [{pipeline_mode = #tpu.pipeline_mode<synchronous>, transform_indices = @transform_0, window_bounds = array<i64: 1, 2048>}, {transform_indices = @transform_1, window_bounds = array<i64: 512, 1024>}, {transform_indices = @transform_2, window_bounds = array<i64: 1, 1024>}]} {
    %c0_i32 = arith.constant 0 : i32
    %0 = arith.cmpi eq, %arg1, %c0_i32 : i32
    %1 = arith.extui %0 : i1 to i32
    %c0_i32_0 = arith.constant 0 : i32
    %2 = arith.cmpi ne, %1, %c0_i32_0 : i32
    scf.if %2 {
      %cst_8 = arith.constant 0.000000e+00 : f32
      %15 = vector.broadcast %cst_8 : f32 to vector<1x1024xf32>
      %c0_9 = arith.constant 0 : index
      %c0_10 = arith.constant 0 : index
      %16 = vector.load %arg5[%c0_9, %c0_10] : memref<1x1024xf32, #tpu.memory_space<vmem>>, vector<1x1024xf32>
      tpu.vector_store %arg5[%c0_9, %c0_10], %15 {strides = array<i32>} : memref<1x1024xf32, #tpu.memory_space<vmem>>, vector<1x1024xf32>,
    } else {
    }
    %c512_i32 = arith.constant 512 : i32
    %3 = arith.muli %arg1, %c512_i32 : i32
    %4 = tpu.assume_multiple %3, 512 : i32
    %c0 = arith.constant 0 : index
    %5 = arith.index_cast %4 : i32 to index
    %6 = vector.load %arg2[%c0, %5] : memref<1x2048xf32, #tpu.memory_space<vmem>>, vector<1x512xf32>
    %c0_1 = arith.constant 0 : index
    %c0_2 = arith.constant 0 : index
    %7 = vector.load %arg5[%c0_1, %c0_2] : memref<1x1024xf32, #tpu.memory_space<vmem>>, vector<1x1024xf32>
    %c0_3 = arith.constant 0 : index
    %c0_4 = arith.constant 0 : index
    %8 = vector.load %arg3[%c0_3, %c0_4] : memref<512x1024xf32, #tpu.memory_space<vmem>>, vector<512x1024xf32>
    %cst = arith.constant dense<0.000000e+00> : vector<1x1024xf32>
    %9 = tpu.matmul %6, %8, %cst {dimension_numbers = #tpu.dot_dimension_numbers<[1], [0], [0], [1], [0, 0, 1, 1], [], []>} : vector<1x512xf32>, vector<512x1024xf32>, vector<1x1024xf32> -> vector<1x1024xf32>
    %10 = arith.addf %7, %9 : vector<1x1024xf32>
    %c0_5 = arith.constant 0 : index
    %c0_6 = arith.constant 0 : index
    %11 = vector.load %arg5[%c0_5, %c0_6] : memref<1x1024xf32, #tpu.memory_space<vmem>>, vector<1x1024xf32>
    tpu.vector_store %arg5[%c0_5, %c0_6], %10 {strides = array<i32>} : memref<1x1024xf32, #tpu.memory_space<vmem>>, vector<1x1024xf32>,
    %c3_i32 = arith.constant 3 : i32
    %12 = arith.cmpi eq, %arg1, %c3_i32 : i32
    %13 = arith.extui %12 : i1 to i32
    %c0_i32_7 = arith.constant 0 : i32
    %14 = arith.cmpi ne, %13, %c0_i32_7 : i32
    scf.if %14 {
      %c0_8 = arith.constant 0 : index
      %c0_9 = arith.constant 0 : index
      %15 = vector.load %arg5[%c0_8, %c0_9] : memref<1x1024xf32, #tpu.memory_space<vmem>>, vector<1x1024xf32>
      %c0_10 = arith.constant 0 : index
      %c0_11 = arith.constant 0 : index
      %16 = vector.load %arg4[%c0_10, %c0_11] : memref<1x1024xf32, #tpu.memory_space<vmem>>, vector<1x1024xf32>
      tpu.vector_store %arg4[%c0_10, %c0_11], %15 {strides = array<i32>} : memref<1x1024xf32, #tpu.memory_space<vmem>>, vector<1x1024xf32>,
    } else {
    }
    return
  }
  func.func @transform_0(%arg0: i32, %arg1: i32) -> (i32, i32) {
    %c0_i32 = arith.constant 0 : i32
    %c0_i32_0 = arith.constant 0 : i32
    %c0_i32_1 = arith.constant 0 : i32
    return %c0_i32, %c0_i32_0 : i32, i32
  }
  func.func @transform_1(%arg0: i32, %arg1: i32) -> (i32, i32) {
    %c0_i32 = arith.constant 0 : i32
    return %arg1, %arg0 : i32, i32
  }
  func.func @transform_2(%arg0: i32, %arg1: i32) -> (i32, i32) {
    %c0_i32 = arith.constant 0 : i32
    %c0_i32_0 = arith.constant 0 : i32
    return %c0_i32, %arg0 : i32, i32
  }
}

module attributes {stable_mosaic.version = 11 : i64} {
  func.func @_rowmat_kernel(%arg0: i32, %arg1: i32, %arg2: memref<1x2048xf32, #tpu.memory_space<vmem>>, %arg3: memref<512x1024xf32, #tpu.memory_space<vmem>>, %arg4: memref<1x1024xf32, #tpu.memory_space<vmem>>, %arg5: memref<1x1024xf32, #tpu.memory_space<vmem>>) attributes {dimension_semantics = [#tpu.dimension_semantics<parallel>, #tpu.dimension_semantics<arbitrary>], iteration_bounds = array<i64: 1, 4>, scalar_prefetch = 0 : i64, scratch_operands = 1 : i64, tpu.core_type = #tpu.core_type<tc>, window_params = [{pipeline_mode = #tpu.pipeline_mode<synchronous>, transform_indices = @transform_0, window_bounds = array<i64: 1, 2048>}, {transform_indices = @transform_1, window_bounds = array<i64: 512, 1024>}, {transform_indices = @transform_2, window_bounds = array<i64: 1, 1024>}]} {
    %c0_i32 = arith.constant 0 : i32
    %0 = arith.cmpi eq, %arg1, %c0_i32 : i32
    %1 = arith.extui %0 : i1 to i32
    %c0_i32_0 = arith.constant 0 : i32
    %2 = arith.cmpi ne, %1, %c0_i32_0 : i32
    scf.if %2 {
      %cst_8 = arith.constant 0.000000e+00 : f32
      %15 = vector.broadcast %cst_8 : f32 to vector<1x1024xf32>
      %c0_9 = arith.constant 0 : index
      %c0_10 = arith.constant 0 : index
      %16 = vector.load %arg5[%c0_9, %c0_10] : memref<1x1024xf32, #tpu.memory_space<vmem>>, vector<1x1024xf32>
      tpu.vector_store %arg5[%c0_9, %c0_10], %15 {strides = array<i32>} : memref<1x1024xf32, #tpu.memory_space<vmem>>, vector<1x1024xf32>,
    } else {
    }
    %c512_i32 = arith.constant 512 : i32
    %3 = arith.muli %arg1, %c512_i32 : i32
    %4 = tpu.assume_multiple %3, 512 : i32
    %c0 = arith.constant 0 : index
    %5 = arith.index_cast %4 : i32 to index
    %6 = vector.load %arg2[%c0, %5] : memref<1x2048xf32, #tpu.memory_space<vmem>>, vector<1x512xf32>
    %c0_1 = arith.constant 0 : index
    %c0_2 = arith.constant 0 : index
    %7 = vector.load %arg5[%c0_1, %c0_2] : memref<1x1024xf32, #tpu.memory_space<vmem>>, vector<1x1024xf32>
    %c0_3 = arith.constant 0 : index
    %c0_4 = arith.constant 0 : index
    %8 = vector.load %arg3[%c0_3, %c0_4] : memref<512x1024xf32, #tpu.memory_space<vmem>>, vector<512x1024xf32>
    %cst = arith.constant dense<0.000000e+00> : vector<1x1024xf32>
    %9 = tpu.matmul %6, %8, %cst {dimension_numbers = #tpu.dot_dimension_numbers<[1], [0], [0], [1], [0, 0, 1, 1], [], []>} : vector<1x512xf32>, vector<512x1024xf32>, vector<1x1024xf32> -> vector<1x1024xf32>
    %10 = arith.addf %7, %9 : vector<1x1024xf32>
    %c0_5 = arith.constant 0 : index
    %c0_6 = arith.constant 0 : index
    %11 = vector.load %arg5[%c0_5, %c0_6] : memref<1x1024xf32, #tpu.memory_space<vmem>>, vector<1x1024xf32>
    tpu.vector_store %arg5[%c0_5, %c0_6], %10 {strides = array<i32>} : memref<1x1024xf32, #tpu.memory_space<vmem>>, vector<1x1024xf32>,
    %c3_i32 = arith.constant 3 : i32
    %12 = arith.cmpi eq, %arg1, %c3_i32 : i32
    %13 = arith.extui %12 : i1 to i32
    %c0_i32_7 = arith.constant 0 : i32
    %14 = arith.cmpi ne, %13, %c0_i32_7 : i32
    scf.if %14 {
      %c0_8 = arith.constant 0 : index
      %c0_9 = arith.constant 0 : index
      %15 = vector.load %arg5[%c0_8, %c0_9] : memref<1x1024xf32, #tpu.memory_space<vmem>>, vector<1x1024xf32>
      %c0_10 = arith.constant 0 : index
      %c0_11 = arith.constant 0 : index
      %16 = vector.load %arg4[%c0_10, %c0_11] : memref<1x1024xf32, #tpu.memory_space<vmem>>, vector<1x1024xf32>
      tpu.vector_store %arg4[%c0_10, %c0_11], %15 {strides = array<i32>} : memref<1x1024xf32, #tpu.memory_space<vmem>>, vector<1x1024xf32>,
    } else {
    }
    return
  }
  func.func @transform_0(%arg0: i32, %arg1: i32) -> (i32, i32) {
    %c0_i32 = arith.constant 0 : i32
    %c0_i32_0 = arith.constant 0 : i32
    %c0_i32_1 = arith.constant 0 : i32
    return %c0_i32, %c0_i32_0 : i32, i32
  }
  func.func @transform_1(%arg0: i32, %arg1: i32) -> (i32, i32) {
    %c0_i32 = arith.constant 0 : i32
    return %arg1, %arg0 : i32, i32
  }
  func.func @transform_2(%arg0: i32, %arg1: i32) -> (i32, i32) {
    %c0_i32 = arith.constant 0 : i32
    %c0_i32_0 = arith.constant 0 : i32
    return %c0_i32, %arg0 : i32, i32
  }
}

module attributes {stable_mosaic.version = 11 : i64} {
  func.func @_dot_kernel(%arg0: i32, %arg1: memref<8x1024xf32, #tpu.memory_space<vmem>>, %arg2: memref<8x1024xf32, #tpu.memory_space<vmem>>, %arg3: memref<1x1xf32, #tpu.memory_space<vmem>>, %arg4: memref<8x1xf32, #tpu.memory_space<vmem>>) attributes {dimension_semantics = [#tpu.dimension_semantics<arbitrary>], iteration_bounds = array<i64: 1>, scalar_prefetch = 0 : i64, scratch_operands = 1 : i64, tpu.core_type = #tpu.core_type<tc>, window_params = [{transform_indices = @transform_0, window_bounds = array<i64: 8, 1024>}, {transform_indices = @transform_1, window_bounds = array<i64: 8, 1024>}, {pipeline_mode = #tpu.pipeline_mode<synchronous>, transform_indices = @transform_2, window_bounds = array<i64: 1, 1>}]} {
    %c0_i32 = arith.constant 0 : i32
    %0 = arith.cmpi eq, %arg0, %c0_i32 : i32
    %1 = arith.extui %0 : i1 to i32
    %c0_i32_0 = arith.constant 0 : i32
    %2 = arith.cmpi ne, %1, %c0_i32_0 : i32
    scf.if %2 {
      %cst_10 = arith.constant 0.000000e+00 : f32
      %14 = vector.broadcast %cst_10 : f32 to vector<8x1xf32>
      %c0_11 = arith.constant 0 : index
      %c0_12 = arith.constant 0 : index
      %15 = vector.load %arg4[%c0_11, %c0_12] : memref<8x1xf32, #tpu.memory_space<vmem>>, vector<8x1xf32>
      tpu.vector_store %arg4[%c0_11, %c0_12], %14 {strides = array<i32>} : memref<8x1xf32, #tpu.memory_space<vmem>>, vector<8x1xf32>,
    } else {
    }
    %c0 = arith.constant 0 : index
    %c0_1 = arith.constant 0 : index
    %3 = vector.load %arg4[%c0, %c0_1] : memref<8x1xf32, #tpu.memory_space<vmem>>, vector<8x1xf32>
    %c0_2 = arith.constant 0 : index
    %c0_3 = arith.constant 0 : index
    %4 = vector.load %arg1[%c0_2, %c0_3] : memref<8x1024xf32, #tpu.memory_space<vmem>>, vector<8x1024xf32>
    %c0_4 = arith.constant 0 : index
    %c0_5 = arith.constant 0 : index
    %5 = vector.load %arg2[%c0_4, %c0_5] : memref<8x1024xf32, #tpu.memory_space<vmem>>, vector<8x1024xf32>
    %6 = arith.mulf %4, %5 : vector<8x1024xf32>
    %cst = arith.constant dense<0.000000e+00> : vector<8xf32>
    %7 = vector.multi_reduction <add>, %6, %cst [1] : vector<8x1024xf32> to vector<8xf32>
    %8 = vector.shape_cast %7 : vector<8xf32> to vector<8x1xf32>
    %9 = arith.addf %3, %8 : vector<8x1xf32>
    %c0_6 = arith.constant 0 : index
    %c0_7 = arith.constant 0 : index
    %10 = vector.load %arg4[%c0_6, %c0_7] : memref<8x1xf32, #tpu.memory_space<vmem>>, vector<8x1xf32>
    tpu.vector_store %arg4[%c0_6, %c0_7], %9 {strides = array<i32>} : memref<8x1xf32, #tpu.memory_space<vmem>>, vector<8x1xf32>,
    %c0_i32_8 = arith.constant 0 : i32
    %11 = arith.cmpi eq, %arg0, %c0_i32_8 : i32
    %12 = arith.extui %11 : i1 to i32
    %c0_i32_9 = arith.constant 0 : i32
    %13 = arith.cmpi ne, %12, %c0_i32_9 : i32
    scf.if %13 {
      %c0_10 = arith.constant 0 : index
      %c0_11 = arith.constant 0 : index
      %14 = vector.load %arg4[%c0_10, %c0_11] : memref<8x1xf32, #tpu.memory_space<vmem>>, vector<8x1xf32>
      %15 = vector.shape_cast %14 : vector<8x1xf32> to vector<1x8x1xf32>
      %cst_12 = arith.constant dense<0.000000e+00> : vector<1xf32>
      %16 = vector.multi_reduction <add>, %15, %cst_12 [1, 2] : vector<1x8x1xf32> to vector<1xf32>
      %17 = vector.shape_cast %16 : vector<1xf32> to vector<1x1x1xf32>
      %18 = vector.extract %17[0, 0, 0] : f32 from vector<1x1x1xf32>
      %19 = vector.broadcast %18 : f32 to vector<1x1xf32>
      %c0_13 = arith.constant 0 : index
      %c0_14 = arith.constant 0 : index
      %20 = vector.load %arg3[%c0_13, %c0_14] : memref<1x1xf32, #tpu.memory_space<vmem>>, vector<1x1xf32>
      tpu.vector_store %arg3[%c0_13, %c0_14], %19 {strides = array<i32>} : memref<1x1xf32, #tpu.memory_space<vmem>>, vector<1x1xf32>,
    } else {
    }
    return
  }
  func.func @transform_0(%arg0: i32) -> (i32, i32) {
    %c0_i32 = arith.constant 0 : i32
    %c0_i32_0 = arith.constant 0 : i32
    return %arg0, %c0_i32 : i32, i32
  }
  func.func @transform_1(%arg0: i32) -> (i32, i32) {
    %c0_i32 = arith.constant 0 : i32
    %c0_i32_0 = arith.constant 0 : i32
    return %arg0, %c0_i32 : i32, i32
  }
  func.func @transform_2(%arg0: i32) -> (i32, i32) {
    %c0_i32 = arith.constant 0 : i32
    %c0_i32_0 = arith.constant 0 : i32
    %c0_i32_1 = arith.constant 0 : i32
    return %c0_i32, %c0_i32_0 : i32, i32
  }
}

module attributes {stable_mosaic.version = 11 : i64} {
  func.func @_relu_kernel(%arg0: i32, %arg1: memref<8x1024xf32, #tpu.memory_space<vmem>>, %arg2: memref<8x1024xf32, #tpu.memory_space<vmem>>) attributes {dimension_semantics = [#tpu.dimension_semantics<parallel>], iteration_bounds = array<i64: 1>, scalar_prefetch = 0 : i64, scratch_operands = 0 : i64, tpu.core_type = #tpu.core_type<tc>, window_params = [{transform_indices = @transform_0, window_bounds = array<i64: 8, 1024>}, {transform_indices = @transform_1, window_bounds = array<i64: 8, 1024>}]} {
    %c0 = arith.constant 0 : index
    %c0_0 = arith.constant 0 : index
    %0 = vector.load %arg1[%c0, %c0_0] : memref<8x1024xf32, #tpu.memory_space<vmem>>, vector<8x1024xf32>
    %cst = arith.constant 0.000000e+00 : f32
    %1 = vector.broadcast %cst : f32 to vector<8x1024xf32>
    %2 = arith.maximumf %0, %1 : vector<8x1024xf32>
    %c0_1 = arith.constant 0 : index
    %c0_2 = arith.constant 0 : index
    %3 = vector.load %arg2[%c0_1, %c0_2] : memref<8x1024xf32, #tpu.memory_space<vmem>>, vector<8x1024xf32>
    tpu.vector_store %arg2[%c0_1, %c0_2], %2 {strides = array<i32>} : memref<8x1024xf32, #tpu.memory_space<vmem>>, vector<8x1024xf32>,
    return
  }
  func.func @transform_0(%arg0: i32) -> (i32, i32) {
    %c0_i32 = arith.constant 0 : i32
    %c0_i32_0 = arith.constant 0 : i32
    return %arg0, %c0_i32 : i32, i32
  }
  func.func @transform_1(%arg0: i32) -> (i32, i32) {
    %c0_i32 = arith.constant 0 : i32
    %c0_i32_0 = arith.constant 0 : i32
    return %arg0, %c0_i32 : i32, i32
  }
}

</mosaic_0001>

<llo_original>
// kernel: sub.67
$region0: #{sub.67}
  #allocation0 [shape = 's32[1]{0}', space=sflag, size = 0x4, scoped, tag = 'scoped memory for sub.67']
  %s0 = inlined_call_operand.vmem [shape: f32[1,2048], index: 0, kind: input, shape index: {}]
  %s1 = inlined_call_operand.vmem [shape: f32[1,2048], index: 1, kind: input, shape index: {}]
  %s2 = inlined_call_operand.vmem [shape: f32[1,2048], index: 2, kind: output, shape index: {}]
  %v3 = vld [vmem:[%s0] sm:$0x1]
  %v4 = vld [vmem:[%s1] sm:$0x1]
  %5 = xla_tuple %v3, %v4
  %6 = xla_tuple %5
  %v7 = vsub.f32 %v3, %v4
  %8 = xla_tuple %v7
  %9 = vst [vmem:[%s2] sm:$0x1] %v7
  %s10 = scalar_lea.vmem %s0, 1
  %v11 = vld [vmem:[%s10] sm:$0x1]
  %s12 = scalar_lea.vmem %s1, 1
  %v13 = vld [vmem:[%s12] sm:$0x1]
  %14 = xla_tuple %v11, %v13
  %15 = xla_tuple %14
  %v16 = vsub.f32 %v11, %v13
  %17 = xla_tuple %v16
  %s18 = scalar_lea.vmem %s2, 1
  %19 = vst [vmem:[%s18] sm:$0x1] %v16
  %s20 = scalar_lea.vmem %s0, 2
  %v21 = vld [vmem:[%s20] sm:$0x1]
  %s22 = scalar_lea.vmem %s1, 2
  %v23 = vld [vmem:[%s22] sm:$0x1]
  %24 = xla_tuple %v21, %v23
  %25 = xla_tuple %24
  %v26 = vsub.f32 %v21, %v23
  %27 = xla_tuple %v26
  %s28 = scalar_lea.vmem %s2, 2
  %29 = vst [vmem:[%s28] sm:$0x1] %v26
  %s30 = scalar_lea.vmem %s0, 3
  %v31 = vld [vmem:[%s30] sm:$0x1]
  %s32 = scalar_lea.vmem %s1, 3
  %v33 = vld [vmem:[%s32] sm:$0x1]
  %34 = xla_tuple %v31, %v33
  %35 = xla_tuple %34
  %v36 = vsub.f32 %v31, %v33
  %37 = xla_tuple %v36
  %s38 = scalar_lea.vmem %s2, 3
  %39 = vst [vmem:[%s38] sm:$0x1] %v36
  %s40 = scalar_lea.vmem %s0, 4
  %v41 = vld [vmem:[%s40] sm:$0x1]
  %s42 = scalar_lea.vmem %s1, 4
  %v43 = vld [vmem:[%s42] sm:$0x1]
  %44 = xla_tuple %v41, %v43
  %45 = xla_tuple %44
  %v46 = vsub.f32 %v41, %v43
  %47 = xla_tuple %v46
  %s48 = scalar_lea.vmem %s2, 4
  %49 = vst [vmem:[%s48] sm:$0x1] %v46
  %s50 = scalar_lea.vmem %s0, 5
  %v51 = vld [vmem:[%s50] sm:$0x1]
  %s52 = scalar_lea.vmem %s1, 5
  %v53 = vld [vmem:[%s52] sm:$0x1]
  %54 = xla_tuple %v51, %v53
  %55 = xla_tuple %54
  %v56 = vsub.f32 %v51, %v53
  %57 = xla_tuple %v56
  %s58 = scalar_lea.vmem %s2, 5
  %59 = vst [vmem:[%s58] sm:$0x1] %v56
  %s60 = scalar_lea.vmem %s0, 6
  %v61 = vld [vmem:[%s60] sm:$0x1]
  %s62 = scalar_lea.vmem %s1, 6
  %v63 = vld [vmem:[%s62] sm:$0x1]
  %64 = xla_tuple %v61, %v63
  %65 = xla_tuple %64
  %v66 = vsub.f32 %v61, %v63
  %67 = xla_tuple %v66
  %s68 = scalar_lea.vmem %s2, 6
  %69 = vst [vmem:[%s68] sm:$0x1] %v66
  %s70 = scalar_lea.vmem %s0, 7
  %v71 = vld [vmem:[%s70] sm:$0x1]
  %s72 = scalar_lea.vmem %s1, 7
  %v73 = vld [vmem:[%s72] sm:$0x1]
  %74 = xla_tuple %v71, %v73
  %75 = xla_tuple %74
  %v76 = vsub.f32 %v71, %v73
  %77 = xla_tuple %v76
  %s78 = scalar_lea.vmem %s2, 7
  %79 = vst [vmem:[%s78] sm:$0x1] %v76
  %s80 = scalar_lea.vmem %s0, 8
  %v81 = vld [vmem:[%s80] sm:$0x1]
  %s82 = scalar_lea.vmem %s1, 8
  %v83 = vld [vmem:[%s82] sm:$0x1]
  %84 = xla_tuple %v81, %v83
  %85 = xla_tuple %84
  %v86 = vsub.f32 %v81, %v83
  %87 = xla_tuple %v86
  %s88 = scalar_lea.vmem %s2, 8
  %89 = vst [vmem:[%s88] sm:$0x1] %v86
  %s90 = scalar_lea.vmem %s0, 9
  %v91 = vld [vmem:[%s90] sm:$0x1]
  %s92 = scalar_lea.vmem %s1, 9
  %v93 = vld [vmem:[%s92] sm:$0x1]
  %94 = xla_tuple %v91, %v93
  %95 = xla_tuple %94
  %v96 = vsub.f32 %v91, %v93
  %97 = xla_tuple %v96
  %s98 = scalar_lea.vmem %s2, 9
  %99 = vst [vmem:[%s98] sm:$0x1] %v96
  %s100 = scalar_lea.vmem %s0, 10
  %v101 = vld [vmem:[%s100] sm:$0x1]
  %s102 = scalar_lea.vmem %s1, 10
  %v103 = vld [vmem:[%s102] sm:$0x1]
  %104 = xla_tuple %v101, %v103
  %105 = xla_tuple %104
  %v106 = vsub.f32 %v101, %v103
  %107 = xla_tuple %v106
  %s108 = scalar_lea.vmem %s2, 10
  %109 = vst [vmem:[%s108] sm:$0x1] %v106
  %s110 = scalar_lea.vmem %s0, 11
  %v111 = vld [vmem:[%s110] sm:$0x1]
  %s112 = scalar_lea.vmem %s1, 11
  %v113 = vld [vmem:[%s112] sm:$0x1]
  %114 = xla_tuple %v111, %v113
  %115 = xla_tuple %114
  %v116 = vsub.f32 %v111, %v113
  %117 = xla_tuple %v116
  %s118 = scalar_lea.vmem %s2, 11
  %119 = vst [vmem:[%s118] sm:$0x1] %v116
  %s120 = scalar_lea.vmem %s0, 12
  %v121 = vld [vmem:[%s120] sm:$0x1]
  %s122 = scalar_lea.vmem %s1, 12
  %v123 = vld [vmem:[%s122] sm:$0x1]
  %124 = xla_tuple %v121, %v123
  %125 = xla_tuple %124
  %v126 = vsub.f32 %v121, %v123
  %127 = xla_tuple %v126
  %s128 = scalar_lea.vmem %s2, 12
  %129 = vst [vmem:[%s128] sm:$0x1] %v126
  %s130 = scalar_lea.vmem %s0, 13
  %v131 = vld [vmem:[%s130] sm:$0x1]
  %s132 = scalar_lea.vmem %s1, 13
  %v133 = vld [vmem:[%s132] sm:$0x1]
  %134 = xla_tuple %v131, %v133
  %135 = xla_tuple %134
  %v136 = vsub.f32 %v131, %v133
  %137 = xla_tuple %v136
  %s138 = scalar_lea.vmem %s2, 13
  %139 = vst [vmem:[%s138] sm:$0x1] %v136
  %s140 = scalar_lea.vmem %s0, 14
  %v141 = vld [vmem:[%s140] sm:$0x1]
  %s142 = scalar_lea.vmem %s1, 14
  %v143 = vld [vmem:[%s142] sm:$0x1]
  %144 = xla_tuple %v141, %v143
  %145 = xla_tuple %144
  %v146 = vsub.f32 %v141, %v143
  %147 = xla_tuple %v146
  %s148 = scalar_lea.vmem %s2, 14
  %149 = vst [vmem:[%s148] sm:$0x1] %v146
  %s150 = scalar_lea.vmem %s0, 15
  %v151 = vld [vmem:[%s150] sm:$0x1]
  %s152 = scalar_lea.vmem %s1, 15
  %v153 = vld [vmem:[%s152] sm:$0x1]
  %154 = xla_tuple %v151, %v153
  %155 = xla_tuple %154
  %v156 = vsub.f32 %v151, %v153
  %157 = xla_tuple %v156
  %s158 = scalar_lea.vmem %s2, 15
  %159 = vst [vmem:[%s158] sm:$0x1] %v156

// kernel: _srr_forward.22
$region0: #{_srr_forward.22}
  #allocation0 [shape = 'u32[]', space=smem, size = 0x4, offset = 0x4, fixed_abs, tag = 'smem constant byte address 0x4 - core index']
  #allocation1 [shape = 'u32[144,128]{1,0:T(1,128)}', space=vmem, size = 0x12000, scoped, tag = 'internal scratch']
  #allocation2 [shape = 'f32[8,1]{1,0:T(8,128)}', space=vmem, size = 0x1000, scoped, tag = 'scratch operand']
  %s0 = inlined_call_operand.vmem [shape: f32[8,1024], index: 0, kind: input, shape index: {}, may-alias: {0,1}]
  %s1 = inlined_call_operand.vmem [shape: f32[8,1024], index: 1, kind: input, shape index: {}, may-alias: {0,1}]
  %s2 = inlined_call_operand.hbm [shape: f32[1,1], index: 2, kind: output, shape index: {}]
  %s3 = sld [smem:[#allocation0]]
  $region26: #{_srr_forward.22} parent=0
    _
  %s5 = ssub.s32 1, %s3
  %s6 = scalar_select 0, %s5, %s3
  $region1: #{_srr_forward.22} parent=0
    #allocation3 [shape = 'u8[512]{0}', space=vmem, size = 0x400, scoped, tag = 'output window, operand 0, single buffered']
    #allocation4 [shape = 's32[1]{0}', space=sflag, size = 0x4, scoped, tag = 'scoped memory for _srr_forward.22']
    %7 = vsyncpa [#allocation4], 0
    // Predicated region
    $region2: #{_srr_forward.22} parent=1 // pred_check
      _
    $region3: #{_srr_forward.22} parent=1 // pred_check_branch
      %9 = sbr.rel (0) target = $region5
    $region4: #{_srr_forward.22} parent=1 // pred_region
      _
    $region5: #{_srr_forward.22} parent=1 // pred_fallthru
      _
    // Predicated region
    $region6: #{_srr_forward.22} parent=1 // pred_check
      _
    $region7: #{_srr_forward.22} parent=1 // pred_check_branch
      %11 = sbr.rel (0) target = $region9
    $region8: #{_srr_forward.22} parent=1 // pred_region
      _
    $region9: #{_srr_forward.22} parent=1 // pred_fallthru
      _
    %p12 = scmp.eq.s32.totalorder 0, 0
    // Predicated region
    $region10: #{_srr_forward.22} parent=1 // pred_check
      %p13 = pneg %p12
    $region11: #{_srr_forward.22} parent=1 // pred_check_branch
      %15 = sbr.rel (%p13) target = $region13
    $region12: #{_srr_forward.22} parent=1 // pred_region
      %vm16 = vcmask 7168
      %17 = vst.msk [vmem:[#allocation2] sm:$0xff] %vm16, 0.0
    $region13: #{_srr_forward.22} parent=1 // pred_fallthru
      _
    %v18 = vld [vmem:[#allocation2] sm:$0xff]
    %v19 = vld [vmem:[%s0] sm:$0xff]
    %v20 = vld [vmem:[%s0 + $0x8] sm:$0xff]
    %v21 = vld [vmem:[%s0 + $0x10] sm:$0xff]
    %v22 = vld [vmem:[%s0 + $0x18] sm:$0xff]
    %v23 = vld [vmem:[%s0 + $0x20] sm:$0xff]
    %v24 = vld [vmem:[%s0 + $0x28] sm:$0xff]
    %v25 = vld [vmem:[%s0 + $0x30] sm:$0xff]
    %v26 = vld [vmem:[%s0 + $0x38] sm:$0xff]
    %v27 = vld [vmem:[%s1] sm:$0xff]
    %v28 = vld [vmem:[%s1 + $0x8] sm:$0xff]
    %v29 = vld [vmem:[%s1 + $0x10] sm:$0xff]
    %v30 = vld [vmem:[%s1 + $0x18] sm:$0xff]
    %v31 = vld [vmem:[%s1 + $0x20] sm:$0xff]
    %v32 = vld [vmem:[%s1 + $0x28] sm:$0xff]
    %v33 = vld [vmem:[%s1 + $0x30] sm:$0xff]
    %v34 = vld [vmem:[%s1 + $0x38] sm:$0xff]
    %v35 = vmul.f32 %v19, %v27
    %v36 = vmul.f32 %v20, %v28
    %v37 = vmul.f32 %v21, %v29
    %v38 = vmul.f32 %v22, %v30
    %v39 = vmul.f32 %v23, %v31
    %v40 = vmul.f32 %v24, %v32
    %v41 = vmul.f32 %v25, %v33
    %v42 = vmul.f32 %v26, %v34
    %v43 = vadd.f32 %v35, %v36
    %v44 = vadd.f32 %v43, %v37
    %v45 = vadd.f32 %v44, %v38
    %v46 = vadd.f32 %v45, %v39
    %v47 = vadd.f32 %v46, %v40
    %v48 = vadd.f32 %v47, %v41
    %v49 = vadd.f32 %v48, %v42
    %50 = vadd.xlane.f32.xlu0 %v49
    %v51 = vpop.xlane.xlu0 %50
    %v52 = vadd.f32 %v18, %v51
    %vm53 = vcmask 7168
    %54 = vst.msk [vmem:[#allocation2] sm:$0xff] %vm53, %v52
    // Predicated region
    $region14: #{_srr_forward.22} parent=1 // pred_check
      %p55 = pneg %p12
    $region15: #{_srr_forward.22} parent=1 // pred_check_branch
      %57 = sbr.rel (%p55) target = $region17
    $region16: #{_srr_forward.22} parent=1 // pred_region
      %v58 = vld [vmem:[#allocation2] sm:$0xff]
      %v59 = vsel %vm53, %v58, 0.0
      %60 = vadd.xlane.f32.xlu0 %v59
      %v61 = vpop.xlane.xlu0 %60
      %v62 = vrot.slane %v61, 4
      %v63 = vadd.f32 %v61, %v62
      %v64 = vrot.slane %v63, 2
      %v65 = vadd.f32 %v63, %v64
      %v66 = vrot.slane %v65, 1
      %v67 = vadd.f32 %v65, %v66
      %s68 = vtos %v67
      %v69 = vstv %s68
      %vm70 = vcmask 0
      %71 = vst.msk [vmem:[#allocation3] sm:$0x1] %vm70, %v69
    $region17: #{_srr_forward.22} parent=1 // pred_fallthru
      _
    // Predicated region
    $region18: #{_srr_forward.22} parent=1 // pred_check
      _
    $region19: #{_srr_forward.22} parent=1 // pred_check_branch
      %73 = sbr.rel (0) target = $region21
    $region20: #{_srr_forward.22} parent=1 // pred_region
      %s75 = ssub.s32 16, 16
      %76 = vsyncadd [#allocation4], %s75
      %s78 = sshll.u32 [#allocation3], 4
      %s79 = int_to_ptr.vmem [resolvable:$true] %s78
      %81 = dma.vmem_to_hbm [thread:$0]  %s79, 16, %s2, [#allocation4]
    $region21: #{_srr_forward.22} parent=1 // pred_fallthru
      _
    // Predicated region
    $region22: #{_srr_forward.22} parent=1 // pred_check
      _
    $region23: #{_srr_forward.22} parent=1 // pred_check_branch
      %83 = sbr.rel (0) target = $region25
    $region24: #{_srr_forward.22} parent=1 // pred_region
      %84 = dma.done [#allocation4], 16
    $region25: #{_srr_forward.22} parent=1 // pred_fallthru
      _
    %85 = vsyncpa [#allocation4], 1

// kernel: _srr_forward.17
$region0: #{_srr_forward.17}
  #allocation0 [shape = 'u32[]', space=smem, size = 0x4, offset = 0x4, fixed_abs, tag = 'smem constant byte address 0x4 - core index']
  #allocation1 [shape = 'u32[144,128]{1,0:T(1,128)}', space=vmem, size = 0x12000, scoped, tag = 'internal scratch']
  #allocation2 [shape = 'f32[1,1024]{1,0:T(1,128)}', space=vmem, size = 0x1000, scoped, tag = 'scratch operand']
  %s0 = inlined_call_operand.vmem [shape: f32[1,2048], index: 0, kind: input, shape index: {}]
  %s1 = inlined_call_operand.hbm [shape: f32[2048,1024], index: 1, kind: input, shape index: {}]
  %s2 = inlined_call_operand.vmem [shape: f32[1,1024], index: 2, kind: output, shape index: {}]
  %s3 = sld [smem:[#allocation0]]
  $region53: #{_srr_forward.17} parent=0
    _
  %s5 = ssub.s32 1, %s3
  %s6 = scalar_select 0, %s5, %s3
  $region1: #{_srr_forward.17} parent=0
    #allocation3 [shape = 'u8[4194304]{0}', space=vmem, size = 0x400000, scoped, tag = 'input window, operand 1']
    #allocation4 [shape = 's32[2]{0}', space=sflag, size = 0x8, scoped, tag = 'scoped memory for _srr_forward.17']
    %7 = vsyncpa [#allocation4], 0
    %s8 = scalar_lea.sflag [#allocation4], 1
    %9 = vsyncpa %s8, 0
    loop: start=0, step=1, limit=6
    $region2: #{_srr_forward.17} parent=1 // loop_pre_header
      _
    $region3: #{_srr_forward.17} parent=1 // loop_header
      %s11 = sphi 0, %s15
      %p12 = scmp.ge.s32.totalorder %s11, 6
      %s18 = sphi 0, %s30
      %s19 = sphi 0, %s26
      %s20 = sphi 0, %s18
      %s21 = sphi 0, %s19
      %s22 = sphi 0, %s20
      %s23 = sphi 0, %s21
      %s31 = sphi 0, %s31
      %s33 = sphi 0, %s31
      %s34 = sphi 0, %s33
      %s48 = sphi 0, %s34
      %s56 = sphi 0, %s58
      %s59 = sphi 0, %s56
      %s60 = sphi 0, %s59
      %s76 = sphi 0, %s60
      %s82 = sphi 0, %s84
      %s85 = sphi 0, %s82
      %s86 = sphi 0, %s85
      %s102 = sphi 0, %s86
    $region4: #{_srr_forward.17} parent=1 // loop_header_branch
      %14 = sbr.rel (%p12) target = $region8
    $region5: #{_srr_forward.17} parent=1 // loop_body
      %s16 = ssub.s32 %s11, 1
      %s17 = ssub.s32 %s11, 2
      %s24 = sadd.s32 1, %s19
      %p25 = scmp.ge.s32.totalorder %s24, 4
      %s26 = scalar_select %p25, 0, %s24
      %s27 = sadd.s32 1, %s18
      %s28 = scalar_select %p25, %s27, %s18
      %p29 = scmp.ge.s32.totalorder %s28, 1
      %s30 = scalar_select %p29, 0, %s28
      %s32 = sadd.s32 %s31, 1
      %p35 = scmp.eq.s32.totalorder %s11, 3
      %p36 = scmp.ne.s32.totalorder %s31, %s33
      %p37 = scmp.eq.s32.totalorder %s11, 0
      %p38 = por %p36, %p37
      %p39 = scmp.ne.s32.totalorder %s31, %s33
      %p40 = scmp.eq.s32.totalorder %s16, 3
      %p41 = por %p39, %p40
      %p42 = scmp.ne.s32.totalorder %s33, %s34
      %p43 = scmp.eq.s32.totalorder %s16, 0
      %p44 = por %p42, %p43
      %p45 = scmp.ne.s32.totalorder %s33, %s34
      %p46 = scmp.eq.s32.totalorder %s17, 3
      %p47 = por %p45, %p46
      %p49 = scmp.ne.s32.totalorder %s34, %s48
      %p50 = scmp.eq.s32.totalorder %s17, 0
      %p51 = por %p49, %p50
      %s52 = ssub.s32 %s19, %s26
      %s53 = ssub.s32 %s18, %s30
      %s54 = sor.u32 %s52, %s53
      %p55 = scmp.eq.s32.totalorder %s54, 0
      %s57 = sadd.s32 %s56, 1
      %s58 = scalar_select %p55, %s56, %s57
      %p61 = pneg %p55
      %p62 = scmp.eq.s32.totalorder %s11, 3
      %p63 = por %p61, %p62
      %p64 = scmp.ne.s32.totalorder %s56, %s59
      %p65 = scmp.eq.s32.totalorder %s11, 0
      %p66 = por %p64, %p65
      %p67 = scmp.ne.s32.totalorder %s56, %s59
      %p68 = scmp.eq.s32.totalorder %s16, 3
      %p69 = por %p67, %p68
      %p70 = scmp.ne.s32.totalorder %s59, %s60
      %p71 = scmp.eq.s32.totalorder %s16, 0
      %p72 = por %p70, %p71
      %p73 = scmp.ne.s32.totalorder %s59, %s60
      %p74 = scmp.eq.s32.totalorder %s17, 3
      %p75 = por %p73, %p74
      %p77 = scmp.ne.s32.totalorder %s60, %s76
      %p78 = scmp.eq.s32.totalorder %s17, 0
      %p79 = por %p77, %p78
      %s80 = ssub.s32 %s18, %s30
      %p81 = scmp.eq.s32.totalorder %s80, 0
      %s83 = sadd.s32 %s82, 1
      %s84 = scalar_select %p81, %s82, %s83
      %p87 = pneg %p81
      %p88 = scmp.eq.s32.totalorder %s11, 3
      %p89 = por %p87, %p88
      %p90 = scmp.ne.s32.totalorder %s82, %s85
      %p91 = scmp.eq.s32.totalorder %s11, 0
      %p92 = por %p90, %p91
      %p93 = scmp.ne.s32.totalorder %s82, %s85
      %p94 = scmp.eq.s32.totalorder %s16, 3
      %p95 = por %p93, %p94
      %p96 = scmp.ne.s32.totalorder %s85, %s86
      %p97 = scmp.eq.s32.totalorder %s16, 0
      %p98 = por %p96, %p97
      %p99 = scmp.ne.s32.totalorder %s85, %s86
      %p100 = scmp.eq.s32.totalorder %s17, 3
      %p101 = por %p99, %p100
      %p103 = scmp.ne.s32.totalorder %s86, %s102
      %p104 = scmp.eq.s32.totalorder %s17, 0
      %p105 = por %p103, %p104
      %p106 = scmp.le.s32.totalorder 1, %s11
      %p107 = scmp.lt.s32.totalorder %s11, 5
      %p108 = pnand %p106, %p107
      %p109 = pneg %p108
      // Predicated region
      $region9: #{_srr_forward.17} parent=5 // pred_check
        _
      $region10: #{_srr_forward.17} parent=5 // pred_check_branch
        %111 = sbr.rel (%p108) target = $region12
      $region11: #{_srr_forward.17} parent=5 // pred_region
        %s112 = ssub.s32 %s11, 1
        // Predicated region
        $region13: #{_srr_forward.17} parent=11 // pred_check
          %p113 = pneg %p44
        $region14: #{_srr_forward.17} parent=11 // pred_check_branch
          %115 = sbr.rel (%p113) target = $region16
        $region15: #{_srr_forward.17} parent=11 // pred_region
          _
        $region16: #{_srr_forward.17} parent=11 // pred_fallthru
          _
      $region12: #{_srr_forward.17} parent=5 // pred_fallthru
        _
      %p116 = scmp.lt.s32.totalorder %s11, 4
      // Predicated region
      $region17: #{_srr_forward.17} parent=5 // pred_check
        %p117 = pneg %p116
      $region18: #{_srr_forward.17} parent=5 // pred_check_branch
        %119 = sbr.rel (%p117) target = $region20
      $region19: #{_srr_forward.17} parent=5 // pred_region
        // Predicated region
        $region21: #{_srr_forward.17} parent=19 // pred_check
          %p120 = pneg %p66
        $region22: #{_srr_forward.17} parent=19 // pred_check_branch
          %122 = sbr.rel (%p120) target = $region24
        $region23: #{_srr_forward.17} parent=19 // pred_region
          %s123 = sand.u32 %s56, 1
          %s124 = scalar_lea.sflag [#allocation4], %s123
          %s125 = sand.u32 %s56, 1
          %s126 = smul.addr %s125, 4096
          %s127 = scalar_lea.vmem [#allocation3], %s126
          %s128 = smul.u32 64, %s19
          %s129 = smul.u32 8, %s18
          %s131 = ssub.s32 65536, 65536
          %132 = vsyncadd %s124, %s131
          %s133 = smul.addr %s128, 8
          %s134 = sadd.s32 %s129, %s133
          %s135 = smul.addr %s134, 128
          %s136 = scalar_lea.hbm %s1, %s135
          %s137 = sshll.u32 %s127, 4
          %s138 = int_to_ptr.vmem [resolvable:$true] %s137
          %143 = dma.hbm_to_vmem [thread:$0]  %s136, 65536, %s138, %s124, 1024, 1024, 64
        $region24: #{_srr_forward.17} parent=19 // pred_fallthru
          _
      $region20: #{_srr_forward.17} parent=5 // pred_fallthru
        _
      %p144 = scmp.le.s32.totalorder 1, %s11
      %p145 = scmp.lt.s32.totalorder %s11, 5
      %p146 = pnand %p144, %p145
      %p147 = pneg %p146
      // Predicated region
      $region25: #{_srr_forward.17} parent=5 // pred_check
        _
      $region26: #{_srr_forward.17} parent=5 // pred_check_branch
        %149 = sbr.rel (%p146) target = $region28
      $region27: #{_srr_forward.17} parent=5 // pred_region
        %s150 = ssub.s32 %s11, 1
        %s151 = sand.u32 %s59, 1
        %s152 = scalar_lea.sflag [#allocation4], %s151
        %s153 = sand.u32 %s59, 1
        %s154 = smul.addr %s153, 4096
        %s155 = scalar_lea.vmem [#allocation3], %s154
        // Predicated region
        $region29: #{_srr_forward.17} parent=27 // pred_check
          %p156 = pneg %p72
        $region30: #{_srr_forward.17} parent=27 // pred_check_branch
          %158 = sbr.rel (%p156) target = $region32
        $region31: #{_srr_forward.17} parent=27 // pred_region
          %159 = dma.done %s152, 65536
        $region32: #{_srr_forward.17} parent=27 // pred_fallthru
          _
        %p160 = pneg %p44
        %p161 = pneg %p41
        %s162 = sand.u32 %s59, 1
        %s163 = scalar_lea.sflag [#allocation4], %s162
        %s164 = sand.u32 %s59, 1
        %s165 = smul.addr %s164, 4096
        %s166 = scalar_lea.vmem [#allocation3], %s165
        %p167 = pneg %p72
        %p168 = pneg %p69
        %p169 = pneg %p98
        %p170 = pneg %p95
        %s171 = smul.u32 8, %s20
        %p172 = scmp.lt.s32.totalorder %s171, 7
        %s173 = scalar_select %p172, %s171, 7
        %s174 = scalar_lea.vmem %s2, %s173
        %s175 = smul.u32 64, %s21
        %s176 = smul.u32 8, %s20
        %s177 = smul.u32 8, %s20
        %p178 = scmp.lt.s32.totalorder %s177, 7
        %s179 = scalar_select %p178, %s177, 7
        %s180 = scalar_lea.vmem %s2, %s179
        %s181 = smul.u32 8, %s20
        %p182 = scmp.eq.s32.totalorder %s21, 0
        // Predicated region
        $region33: #{_srr_forward.17} parent=27 // pred_check
          %p183 = pneg %p182
        $region34: #{_srr_forward.17} parent=27 // pred_check_branch
          %185 = sbr.rel (%p183) target = $region36
        $region35: #{_srr_forward.17} parent=27 // pred_region
          %186 = vst [vmem:[#allocation2] sm:$0xff] 0.0
        $region36: #{_srr_forward.17} parent=27 // pred_fallthru
          _
        %s187 = smul.u32 %s21, 512
        %s188 = sshra.s32 %s187, 7
        %s189 = sand.u32 %s187, 127
        %s190 = scalar_lea.vmem %s0, %s188
        %v191 = vld [vmem:[%s190] sm:$0xf]
        %v192 = vld [vmem:[#allocation2] sm:$0xff]
        %v193 = vld [vmem:[%s155] sm:$0xff]
        %v194 = vld [vmem:[%s155 + $0x8] sm:$0xff]
        %v195 = vld [vmem:[%s155 + $0x10] sm:$0xff]
        %v196 = vld [vmem:[%s155 + $0x18] sm:$0xff]
        %v197 = vld [vmem:[%s155 + $0x20] sm:$0xff]
        %v198 = vld [vmem:[%s155 + $0x28] sm:$0xff]
        %v199 = vld [vmem:[%s155 + $0x30] sm:$0xff]
        %v200 = vld [vmem:[%s155 + $0x38] sm:$0xff]
        %v201 = vld [vmem:[%s155 + $0x40] sm:$0xff]
        %v202 = vld [vmem:[%s155 + $0x48] sm:$0xff]
        %v203 = vld [vmem:[%s155 + $0x50] sm:$0xff]
        %v204 = vld [vmem:[%s155 + $0x58] sm:$0xff]
        %v205 = vld [vmem:[%s155 + $0x60] sm:$0xff]
        %v206 = vld [vmem:[%s155 + $0x68] sm:$0xff]
        %v207 = vld [vmem:[%s155 + $0x70] sm:$0xff]
        %v208 = vld [vmem:[%s155 + $0x78] sm:$0xff]
        %v209 = vld [vmem:[%s155 + $0x80] sm:$0xff]
        %v210 = vld [vmem:[%s155 + $0x88] sm:$0xff]
        %v211 = vld [vmem:[%s155 + $0x90] sm:$0xff]
        %v212 = vld [vmem:[%s155 + $0x98] sm:$0xff]
        %v213 = vld [vmem:[%s155 + $0xa0] sm:$0xff]
        %v214 = vld [vmem:[%s155 + $0xa8] sm:$0xff]
        %v215 = vld [vmem:[%s155 + $0xb0] sm:$0xff]
        %v216 = vld [vmem:[%s155 + $0xb8] sm:$0xff]
        %v217 = vld [vmem:[%s155 + $0xc0] sm:$0xff]
        %v218 = vld [vmem:[%s155 + $0xc8] sm:$0xff]
        %v219 = vld [vmem:[%s155 + $0xd0] sm:$0xff]
        %v220 = vld [vmem:[%s155 + $0xd8] sm:$0xff]
        %v221 = vld [vmem:[%s155 + $0xe0] sm:$0xff]
        %v222 = vld [vmem:[%s155 + $0xe8] sm:$0xff]
        %v223 = vld [vmem:[%s155 + $0xf0] sm:$0xff]
        %v224 = vld [vmem:[%s155 + $0xf8] sm:$0xff]
        %v225 = vld [vmem:[%s155 + $0x100] sm:$0xff]
        %v226 = vld [vmem:[%s155 + $0x108] sm:$0xff]
        %v227 = vld [vmem:[%s155 + $0x110] sm:$0xff]
        %v228 = vld [vmem:[%s155 + $0x118] sm:$0xff]
        %v229 = vld [vmem:[%s155 + $0x120] sm:$0xff]
        %v230 = vld [vmem:[%s155 + $0x128] sm:$0xff]
        %v231 = vld [vmem:[%s155 + $0x130] sm:$0xff]
        %v232 = vld [vmem:[%s155 + $0x138] sm:$0xff]
        %v233 = vld [vmem:[%s155 + $0x140] sm:$0xff]
        %v234 = vld [vmem:[%s155 + $0x148] sm:$0xff]
        %v235 = vld [vmem:[%s155 + $0x150] sm:$0xff]
        %v236 = vld [vmem:[%s155 + $0x158] sm:$0xff]
        %v237 = vld [vmem:[%s155 + $0x160] sm:$0xff]
        %v238 = vld [vmem:[%s155 + $0x168] sm:$0xff]
        %v239 = vld [vmem:[%s155 + $0x170] sm:$0xff]
        %v240 = vld [vmem:[%s155 + $0x178] sm:$0xff]
        %v241 = vld [vmem:[%s155 + $0x180] sm:$0xff]
        %v242 = vld [vmem:[%s155 + $0x188] sm:$0xff]
        %v243 = vld [vmem:[%s155 + $0x190] sm:$0xff]
        %v244 = vld [vmem:[%s155 + $0x198] sm:$0xff]
        %v245 = vld [vmem:[%s155 + $0x1a0] sm:$0xff]
        %v246 = vld [vmem:[%s155 + $0x1a8] sm:$0xff]
        %v247 = vld [vmem:[%s155 + $0x1b0] sm:$0xff]
        %v248 = vld [vmem:[%s155 + $0x1b8] sm:$0xff]
        %v249 = vld [vmem:[%s155 + $0x1c0] sm:$0xff]
        %v250 = vld [vmem:[%s155 + $0x1c8] sm:$0xff]
        %v251 = vld [vmem:[%s155 + $0x1d0] sm:$0xff]
        %v252 = vld [vmem:[%s155 + $0x1d8] sm:$0xff]
        %v253 = vld [vmem:[%s155 + $0x1e0] sm:$0xff]
        %v254 = vld [vmem:[%s155 + $0x1e8] sm:$0xff]
        %v255 = vld [vmem:[%s155 + $0x1f0] sm:$0xff]
        %v256 = vld [vmem:[%s155 + $0x1f8] sm:$0xff]
        %v257 = vld [vmem:[%s155 + $0x200] sm:$0xff]
        %v258 = vld [vmem:[%s155 + $0x208] sm:$0xff]
        %v259 = vld [vmem:[%s155 + $0x210] sm:$0xff]
        %v260 = vld [vmem:[%s155 + $0x218] sm:$0xff]
        %v261 = vld [vmem:[%s155 + $0x220] sm:$0xff]
        %v262 = vld [vmem:[%s155 + $0x228] sm:$0xff]
        %v263 = vld [vmem:[%s155 + $0x230] sm:$0xff]
        %v264 = vld [vmem:[%s155 + $0x238] sm:$0xff]
        %v265 = vld [vmem:[%s155 + $0x240] sm:$0xff]
        %v266 = vld [vmem:[%s155 + $0x248] sm:$0xff]
        %v267 = vld [vmem:[%s155 + $0x250] sm:$0xff]
        %v268 = vld [vmem:[%s155 + $0x258] sm:$0xff]
        %v269 = vld [vmem:[%s155 + $0x260] sm:$0xff]
        %v270 = vld [vmem:[%s155 + $0x268] sm:$0xff]
        %v271 = vld [vmem:[%s155 + $0x270] sm:$0xff]
        %v272 = vld [vmem:[%s155 + $0x278] sm:$0xff]
        %v273 = vld [vmem:[%s155 + $0x280] sm:$0xff]
        %v274 = vld [vmem:[%s155 + $0x288] sm:$0xff]
        %v275 = vld [vmem:[%s155 + $0x290] sm:$0xff]
        %v276 = vld [vmem:[%s155 + $0x298] sm:$0xff]
        %v277 = vld [vmem:[%s155 + $0x2a0] sm:$0xff]
        %v278 = vld [vmem:[%s155 + $0x2a8] sm:$0xff]
        %v279 = vld [vmem:[%s155 + $0x2b0] sm:$0xff]
        %v280 = vld [vmem:[%s155 + $0x2b8] sm:$0xff]
        %v281 = vld [vmem:[%s155 + $0x2c0] sm:$0xff]
        %v282 = vld [vmem:[%s155 + $0x2c8] sm:$0xff]
        %v283 = vld [vmem:[%s155 + $0x2d0] sm:$0xff]
        %v284 = vld [vmem:[%s155 + $0x2d8] sm:$0xff]
        %v285 = vld [vmem:[%s155 + $0x2e0] sm:$0xff]
        %v286 = vld [vmem:[%s155 + $0x2e8] sm:$0xff]
        %v287 = vld [vmem:[%s155 + $0x2f0] sm:$0xff]
        %v288 = vld [vmem:[%s155 + $0x2f8] sm:$0xff]
        %v289 = vld [vmem:[%s155 + $0x300] sm:$0xff]
        %v290 = vld [vmem:[%s155 + $0x308] sm:$0xff]
        %v291 = vld [vmem:[%s155 + $0x310] sm:$0xff]
        %v292 = vld [vmem:[%s155 + $0x318] sm:$0xff]
        %v293 = vld [vmem:[%s155 + $0x320] sm:$0xff]
        %v294 = vld [vmem:[%s155 + $0x328] sm:$0xff]
        %v295 = vld [vmem:[%s155 + $0x330] sm:$0xff]
        %v296 = vld [vmem:[%s155 + $0x338] sm:$0xff]
        %v297 = vld [vmem:[%s155 + $0x340] sm:$0xff]
        %v298 = vld [vmem:[%s155 + $0x348] sm:$0xff]
        %v299 = vld [vmem:[%s155 + $0x350] sm:$0xff]
        %v300 = vld [vmem:[%s155 + $0x358] sm:$0xff]
        %v301 = vld [vmem:[%s155 + $0x360] sm:$0xff]
        %v302 = vld [vmem:[%s155 + $0x368] sm:$0xff]
        %v303 = vld [vmem:[%s155 + $0x370] sm:$0xff]
        %v304 = vld [vmem:[%s155 + $0x378] sm:$0xff]
        %v305 = vld [vmem:[%s155 + $0x380] sm:$0xff]
        %v306 = vld [vmem:[%s155 + $0x388] sm:$0xff]
        %v307 = vld [vmem:[%s155 + $0x390] sm:$0xff]
        %v308 = vld [vmem:[%s155 + $0x398] sm:$0xff]
        %v309 = vld [vmem:[%s155 + $0x3a0] sm:$0xff]
        %v310 = vld [vmem:[%s155 + $0x3a8] sm:$0xff]
        %v311 = vld [vmem:[%s155 + $0x3b0] sm:$0xff]
        %v312 = vld [vmem:[%s155 + $0x3b8] sm:$0xff]
        %v313 = vld [vmem:[%s155 + $0x3c0] sm:$0xff]
        %v314 = vld [vmem:[%s155 + $0x3c8] sm:$0xff]
        %v315 = vld [vmem:[%s155 + $0x3d0] sm:$0xff]
        %v316 = vld [vmem:[%s155 + $0x3d8] sm:$0xff]
        %v317 = vld [vmem:[%s155 + $0x3e0] sm:$0xff]
        %v318 = vld [vmem:[%s155 + $0x3e8] sm:$0xff]
        %v319 = vld [vmem:[%s155 + $0x3f0] sm:$0xff]
        %v320 = vld [vmem:[%s155 + $0x3f8] sm:$0xff]
        %v321 = vld [vmem:[%s155 + $0x400] sm:$0xff]
        %v322 = vld [vmem:[%s155 + $0x408] sm:$0xff]
        %v323 = vld [vmem:[%s155 + $0x410] sm:$0xff]
        %v324 = vld [vmem:[%s155 + $0x418] sm:$0xff]
        %v325 = vld [vmem:[%s155 + $0x420] sm:$0xff]
        %v326 = vld [vmem:[%s155 + $0x428] sm:$0xff]
        %v327 = vld [vmem:[%s155 + $0x430] sm:$0xff]
        %v328 = vld [vmem:[%s155 + $0x438] sm:$0xff]
        %v329 = vld [vmem:[%s155 + $0x440] sm:$0xff]
        %v330 = vld [vmem:[%s155 + $0x448] sm:$0xff]
        %v331 = vld [vmem:[%s155 + $0x450] sm:$0xff]
        %v332 = vld [vmem:[%s155 + $0x458] sm:$0xff]
        %v333 = vld [vmem:[%s155 + $0x460] sm:$0xff]
        %v334 = vld [vmem:[%s155 + $0x468] sm:$0xff]
        %v335 = vld [vmem:[%s155 + $0x470] sm:$0xff]
        %v336 = vld [vmem:[%s155 + $0x478] sm:$0xff]
        %v337 = vld [vmem:[%s155 + $0x480] sm:$0xff]
        %v338 = vld [vmem:[%s155 + $0x488] sm:$0xff]
        %v339 = vld [vmem:[%s155 + $0x490] sm:$0xff]
        %v340 = vld [vmem:[%s155 + $0x498] sm:$0xff]
        %v341 = vld [vmem:[%s155 + $0x4a0] sm:$0xff]
        %v342 = vld [vmem:[%s155 + $0x4a8] sm:$0xff]
        %v343 = vld [vmem:[%s155 + $0x4b0] sm:$0xff]
        %v344 = vld [vmem:[%s155 + $0x4b8] sm:$0xff]
        %v345 = vld [vmem:[%s155 + $0x4c0] sm:$0xff]
        %v346 = vld [vmem:[%s155 + $0x4c8] sm:$0xff]
        %v347 = vld [vmem:[%s155 + $0x4d0] sm:$0xff]
        %v348 = vld [vmem:[%s155 + $0x4d8] sm:$0xff]
        %v349 = vld [vmem:[%s155 + $0x4e0] sm:$0xff]
        %v350 = vld [vmem:[%s155 + $0x4e8] sm:$0xff]
        %v351 = vld [vmem:[%s155 + $0x4f0] sm:$0xff]
        %v352 = vld [vmem:[%s155 + $0x4f8] sm:$0xff]
        %v353 = vld [vmem:[%s155 + $0x500] sm:$0xff]
        %v354 = vld [vmem:[%s155 + $0x508] sm:$0xff]
        %v355 = vld [vmem:[%s155 + $0x510] sm:$0xff]
        %v356 = vld [vmem:[%s155 + $0x518] sm:$0xff]
        %v357 = vld [vmem:[%s155 + $0x520] sm:$0xff]
        %v358 = vld [vmem:[%s155 + $0x528] sm:$0xff]
        %v359 = vld [vmem:[%s155 + $0x530] sm:$0xff]
        %v360 = vld [vmem:[%s155 + $0x538] sm:$0xff]
        %v361 = vld [vmem:[%s155 + $0x540] sm:$0xff]
        %v362 = vld [vmem:[%s155 + $0x548] sm:$0xff]
        %v363 = vld [vmem:[%s155 + $0x550] sm:$0xff]
        %v364 = vld [vmem:[%s155 + $0x558] sm:$0xff]
        %v365 = vld [vmem:[%s155 + $0x560] sm:$0xff]
        %v366 = vld [vmem:[%s155 + $0x568] sm:$0xff]
        %v367 = vld [vmem:[%s155 + $0x570] sm:$0xff]
        %v368 = vld [vmem:[%s155 + $0x578] sm:$0xff]
        %v369 = vld [vmem:[%s155 + $0x580] sm:$0xff]
        %v370 = vld [vmem:[%s155 + $0x588] sm:$0xff]
        %v371 = vld [vmem:[%s155 + $0x590] sm:$0xff]
        %v372 = vld [vmem:[%s155 + $0x598] sm:$0xff]
        %v373 = vld [vmem:[%s155 + $0x5a0] sm:$0xff]
        %v374 = vld [vmem:[%s155 + $0x5a8] sm:$0xff]
        %v375 = vld [vmem:[%s155 + $0x5b0] sm:$0xff]
        %v376 = vld [vmem:[%s155 + $0x5b8] sm:$0xff]
        %v377 = vld [vmem:[%s155 + $0x5c0] sm:$0xff]
        %v378 = vld [vmem:[%s155 + $0x5c8] sm:$0xff]
        %v379 = vld [vmem:[%s155 + $0x5d0] sm:$0xff]
        %v380 = vld [vmem:[%s155 + $0x5d8] sm:$0xff]
        %v381 = vld [vmem:[%s155 + $0x5e0] sm:$0xff]
        %v382 = vld [vmem:[%s155 + $0x5e8] sm:$0xff]
        %v383 = vld [vmem:[%s155 + $0x5f0] sm:$0xff]
        %v384 = vld [vmem:[%s155 + $0x5f8] sm:$0xff]
        %v385 = vld [vmem:[%s155 + $0x600] sm:$0xff]
        %v386 = vld [vmem:[%s155 + $0x608] sm:$0xff]
        %v387 = vld [vmem:[%s155 + $0x610] sm:$0xff]
        %v388 = vld [vmem:[%s155 + $0x618] sm:$0xff]
        %v389 = vld [vmem:[%s155 + $0x620] sm:$0xff]
        %v390 = vld [vmem:[%s155 + $0x628] sm:$0xff]
        %v391 = vld [vmem:[%s155 + $0x630] sm:$0xff]
        %v392 = vld [vmem:[%s155 + $0x638] sm:$0xff]
        %v393 = vld [vmem:[%s155 + $0x640] sm:$0xff]
        %v394 = vld [vmem:[%s155 + $0x648] sm:$0xff]
        %v395 = vld [vmem:[%s155 + $0x650] sm:$0xff]
        %v396 = vld [vmem:[%s155 + $0x658] sm:$0xff]
        %v397 = vld [vmem:[%s155 + $0x660] sm:$0xff]
        %v398 = vld [vmem:[%s155 + $0x668] sm:$0xff]
        %v399 = vld [vmem:[%s155 + $0x670] sm:$0xff]
        %v400 = vld [vmem:[%s155 + $0x678] sm:$0xff]
        %v401 = vld [vmem:[%s155 + $0x680] sm:$0xff]
        %v402 = vld [vmem:[%s155 + $0x688] sm:$0xff]
        %v403 = vld [vmem:[%s155 + $0x690] sm:$0xff]
        %v404 = vld [vmem:[%s155 + $0x698] sm:$0xff]
        %v405 = vld [vmem:[%s155 + $0x6a0] sm:$0xff]
        %v406 = vld [vmem:[%s155 + $0x6a8] sm:$0xff]
        %v407 = vld [vmem:[%s155 + $0x6b0] sm:$0xff]
        %v408 = vld [vmem:[%s155 + $0x6b8] sm:$0xff]
        %v409 = vld [vmem:[%s155 + $0x6c0] sm:$0xff]
        %v410 = vld [vmem:[%s155 + $0x6c8] sm:$0xff]
        %v411 = vld [vmem:[%s155 + $0x6d0] sm:$0xff]
        %v412 = vld [vmem:[%s155 + $0x6d8] sm:$0xff]
        %v413 = vld [vmem:[%s155 + $0x6e0] sm:$0xff]
        %v414 = vld [vmem:[%s155 + $0x6e8] sm:$0xff]
        %v415 = vld [vmem:[%s155 + $0x6f0] sm:$0xff]
        %v416 = vld [vmem:[%s155 + $0x6f8] sm:$0xff]
        %v417 = vld [vmem:[%s155 + $0x700] sm:$0xff]
        %v418 = vld [vmem:[%s155 + $0x708] sm:$0xff]
        %v419 = vld [vmem:[%s155 + $0x710] sm:$0xff]
        %v420 = vld [vmem:[%s155 + $0x718] sm:$0xff]
        %v421 = vld [vmem:[%s155 + $0x720] sm:$0xff]
        %v422 = vld [vmem:[%s155 + $0x728] sm:$0xff]
        %v423 = vld [vmem:[%s155 + $0x730] sm:$0xff]
        %v424 = vld [vmem:[%s155 + $0x738] sm:$0xff]
        %v425 = vld [vmem:[%s155 + $0x740] sm:$0xff]
        %v426 = vld [vmem:[%s155 + $0x748] sm:$0xff]
        %v427 = vld [vmem:[%s155 + $0x750] sm:$0xff]
        %v428 = vld [vmem:[%s155 + $0x758] sm:$0xff]
        %v429 = vld [vmem:[%s155 + $0x760] sm:$0xff]
        %v430 = vld [vmem:[%s155 + $0x768] sm:$0xff]
        %v431 = vld [vmem:[%s155 + $0x770] sm:$0xff]
        %v432 = vld [vmem:[%s155 + $0x778] sm:$0xff]
        %v433 = vld [vmem:[%s155 + $0x780] sm:$0xff]
        %v434 = vld [vmem:[%s155 + $0x788] sm:$0xff]
        %v435 = vld [vmem:[%s155 + $0x790] sm:$0xff]
        %v436 = vld [vmem:[%s155 + $0x798] sm:$0xff]
        %v437 = vld [vmem:[%s155 + $0x7a0] sm:$0xff]
        %v438 = vld [vmem:[%s155 + $0x7a8] sm:$0xff]
        %v439 = vld [vmem:[%s155 + $0x7b0] sm:$0xff]
        %v440 = vld [vmem:[%s155 + $0x7b8] sm:$0xff]
        %v441 = vld [vmem:[%s155 + $0x7c0] sm:$0xff]
        %v442 = vld [vmem:[%s155 + $0x7c8] sm:$0xff]
        %v443 = vld [vmem:[%s155 + $0x7d0] sm:$0xff]
        %v444 = vld [vmem:[%s155 + $0x7d8] sm:$0xff]
        %v445 = vld [vmem:[%s155 + $0x7e0] sm:$0xff]
        %v446 = vld [vmem:[%s155 + $0x7e8] sm:$0xff]
        %v447 = vld [vmem:[%s155 + $0x7f0] sm:$0xff]
        %v448 = vld [vmem:[%s155 + $0x7f8] sm:$0xff]
        %v449 = vld [vmem:[%s155 + $0x800] sm:$0xff]
        %v450 = vld [vmem:[%s155 + $0x808] sm:$0xff]
        %v451 = vld [vmem:[%s155 + $0x810] sm:$0xff]
        %v452 = vld [vmem:[%s155 + $0x818] sm:$0xff]
        %v453 = vld [vmem:[%s155 + $0x820] sm:$0xff]
        %v454 = vld [vmem:[%s155 + $0x828] sm:$0xff]
        %v455 = vld [vmem:[%s155 + $0x830] sm:$0xff]
        %v456 = vld [vmem:[%s155 + $0x838] sm:$0xff]
        %v457 = vld [vmem:[%s155 + $0x840] sm:$0xff]
        %v458 = vld [vmem:[%s155 + $0x848] sm:$0xff]
        %v459 = vld [vmem:[%s155 + $0x850] sm:$0xff]
        %v460 = vld [vmem:[%s155 + $0x858] sm:$0xff]
        %v461 = vld [vmem:[%s155 + $0x860] sm:$0xff]
        %v462 = vld [vmem:[%s155 + $0x868] sm:$0xff]
        %v463 = vld [vmem:[%s155 + $0x870] sm:$0xff]
        %v464 = vld [vmem:[%s155 + $0x878] sm:$0xff]
        %v465 = vld [vmem:[%s155 + $0x880] sm:$0xff]
        %v466 = vld [vmem:[%s155 + $0x888] sm:$0xff]
        %v467 = vld [vmem:[%s155 + $0x890] sm:$0xff]
        %v468 = vld [vmem:[%s155 + $0x898] sm:$0xff]
        %v469 = vld [vmem:[%s155 + $0x8a0] sm:$0xff]
        %v470 = vld [vmem:[%s155 + $0x8a8] sm:$0xff]
        %v471 = vld [vmem:[%s155 + $0x8b0] sm:$0xff]
        %v472 = vld [vmem:[%s155 + $0x8b8] sm:$0xff]
        %v473 = vld [vmem:[%s155 + $0x8c0] sm:$0xff]
        %v474 = vld [vmem:[%s155 + $0x8c8] sm:$0xff]
        %v475 = vld [vmem:[%s155 + $0x8d0] sm:$0xff]
        %v476 = vld [vmem:[%s155 + $0x8d8] sm:$0xff]
        %v477 = vld [vmem:[%s155 + $0x8e0] sm:$0xff]
        %v478 = vld [vmem:[%s155 + $0x8e8] sm:$0xff]
        %v479 = vld [vmem:[%s155 + $0x8f0] sm:$0xff]
        %v480 = vld [vmem:[%s155 + $0x8f8] sm:$0xff]
        %v481 = vld [vmem:[%s155 + $0x900] sm:$0xff]
        %v482 = vld [vmem:[%s155 + $0x908] sm:$0xff]
        %v483 = vld [vmem:[%s155 + $0x910] sm:$0xff]
        %v484 = vld [vmem:[%s155 + $0x918] sm:$0xff]
        %v485 = vld [vmem:[%s155 + $0x920] sm:$0xff]
        %v486 = vld [vmem:[%s155 + $0x928] sm:$0xff]
        %v487 = vld [vmem:[%s155 + $0x930] sm:$0xff]
        %v488 = vld [vmem:[%s155 + $0x938] sm:$0xff]
        %v489 = vld [vmem:[%s155 + $0x940] sm:$0xff]
        %v490 = vld [vmem:[%s155 + $0x948] sm:$0xff]
        %v491 = vld [vmem:[%s155 + $0x950] sm:$0xff]
        %v492 = vld [vmem:[%s155 + $0x958] sm:$0xff]
        %v493 = vld [vmem:[%s155 + $0x960] sm:$0xff]
        %v494 = vld [vmem:[%s155 + $0x968] sm:$0xff]
        %v495 = vld [vmem:[%s155 + $0x970] sm:$0xff]
        %v496 = vld [vmem:[%s155 + $0x978] sm:$0xff]
        %v497 = vld [vmem:[%s155 + $0x980] sm:$0xff]
        %v498 = vld [vmem:[%s155 + $0x988] sm:$0xff]
        %v499 = vld [vmem:[%s155 + $0x990] sm:$0xff]
        %v500 = vld [vmem:[%s155 + $0x998] sm:$0xff]
        %v501 = vld [vmem:[%s155 + $0x9a0] sm:$0xff]
        %v502 = vld [vmem:[%s155 + $0x9a8] sm:$0xff]
        %v503 = vld [vmem:[%s155 + $0x9b0] sm:$0xff]
        %v504 = vld [vmem:[%s155 + $0x9b8] sm:$0xff]
        %v505 = vld [vmem:[%s155 + $0x9c0] sm:$0xff]
        %v506 = vld [vmem:[%s155 + $0x9c8] sm:$0xff]
        %v507 = vld [vmem:[%s155 + $0x9d0] sm:$0xff]
        %v508 = vld [vmem:[%s155 + $0x9d8] sm:$0xff]
        %v509 = vld [vmem:[%s155 + $0x9e0] sm:$0xff]
        %v510 = vld [vmem:[%s155 + $0x9e8] sm:$0xff]
        %v511 = vld [vmem:[%s155 + $0x9f0] sm:$0xff]
        %v512 = vld [vmem:[%s155 + $0x9f8] sm:$0xff]
        %v513 = vld [vmem:[%s155 + $0xa00] sm:$0xff]
        %v514 = vld [vmem:[%s155 + $0xa08] sm:$0xff]
        %v515 = vld [vmem:[%s155 + $0xa10] sm:$0xff]
        %v516 = vld [vmem:[%s155 + $0xa18] sm:$0xff]
        %v517 = vld [vmem:[%s155 + $0xa20] sm:$0xff]
        %v518 = vld [vmem:[%s155 + $0xa28] sm:$0xff]
        %v519 = vld [vmem:[%s155 + $0xa30] sm:$0xff]
        %v520 = vld [vmem:[%s155 + $0xa38] sm:$0xff]
        %v521 = vld [vmem:[%s155 + $0xa40] sm:$0xff]
        %v522 = vld [vmem:[%s155 + $0xa48] sm:$0xff]
        %v523 = vld [vmem:[%s155 + $0xa50] sm:$0xff]
        %v524 = vld [vmem:[%s155 + $0xa58] sm:$0xff]
        %v525 = vld [vmem:[%s155 + $0xa60] sm:$0xff]
        %v526 = vld [vmem:[%s155 + $0xa68] sm:$0xff]
        %v527 = vld [vmem:[%s155 + $0xa70] sm:$0xff]
        %v528 = vld [vmem:[%s155 + $0xa78] sm:$0xff]
        %v529 = vld [vmem:[%s155 + $0xa80] sm:$0xff]
        %v530 = vld [vmem:[%s155 + $0xa88] sm:$0xff]
        %v531 = vld [vmem:[%s155 + $0xa90] sm:$0xff]
        %v532 = vld [vmem:[%s155 + $0xa98] sm:$0xff]
        %v533 = vld [vmem:[%s155 + $0xaa0] sm:$0xff]
        %v534 = vld [vmem:[%s155 + $0xaa8] sm:$0xff]
        %v535 = vld [vmem:[%s155 + $0xab0] sm:$0xff]
        %v536 = vld [vmem:[%s155 + $0xab8] sm:$0xff]
        %v537 = vld [vmem:[%s155 + $0xac0] sm:$0xff]
        %v538 = vld [vmem:[%s155 + $0xac8] sm:$0xff]
        %v539 = vld [vmem:[%s155 + $0xad0] sm:$0xff]
        %v540 = vld [vmem:[%s155 + $0xad8] sm:$0xff]
        %v541 = vld [vmem:[%s155 + $0xae0] sm:$0xff]
        %v542 = vld [vmem:[%s155 + $0xae8] sm:$0xff]
        %v543 = vld [vmem:[%s155 + $0xaf0] sm:$0xff]
        %v544 = vld [vmem:[%s155 + $0xaf8] sm:$0xff]
        %v545 = vld [vmem:[%s155 + $0xb00] sm:$0xff]
        %v546 = vld [vmem:[%s155 + $0xb08] sm:$0xff]
        %v547 = vld [vmem:[%s155 + $0xb10] sm:$0xff]
        %v548 = vld [vmem:[%s155 + $0xb18] sm:$0xff]
        %v549 = vld [vmem:[%s155 + $0xb20] sm:$0xff]
        %v550 = vld [vmem:[%s155 + $0xb28] sm:$0xff]
        %v551 = vld [vmem:[%s155 + $0xb30] sm:$0xff]
        %v552 = vld [vmem:[%s155 + $0xb38] sm:$0xff]
        %v553 = vld [vmem:[%s155 + $0xb40] sm:$0xff]
        %v554 = vld [vmem:[%s155 + $0xb48] sm:$0xff]
        %v555 = vld [vmem:[%s155 + $0xb50] sm:$0xff]
        %v556 = vld [vmem:[%s155 + $0xb58] sm:$0xff]
        %v557 = vld [vmem:[%s155 + $0xb60] sm:$0xff]
        %v558 = vld [vmem:[%s155 + $0xb68] sm:$0xff]
        %v559 = vld [vmem:[%s155 + $0xb70] sm:$0xff]
        %v560 = vld [vmem:[%s155 + $0xb78] sm:$0xff]
        %v561 = vld [vmem:[%s155 + $0xb80] sm:$0xff]
        %v562 = vld [vmem:[%s155 + $0xb88] sm:$0xff]
        %v563 = vld [vmem:[%s155 + $0xb90] sm:$0xff]
        %v564 = vld [vmem:[%s155 + $0xb98] sm:$0xff]
        %v565 = vld [vmem:[%s155 + $0xba0] sm:$0xff]
        %v566 = vld [vmem:[%s155 + $0xba8] sm:$0xff]
        %v567 = vld [vmem:[%s155 + $0xbb0] sm:$0xff]
        %v568 = vld [vmem:[%s155 + $0xbb8] sm:$0xff]
        %v569 = vld [vmem:[%s155 + $0xbc0] sm:$0xff]
        %v570 = vld [vmem:[%s155 + $0xbc8] sm:$0xff]
        %v571 = vld [vmem:[%s155 + $0xbd0] sm:$0xff]
        %v572 = vld [vmem:[%s155 + $0xbd8] sm:$0xff]
        %v573 = vld [vmem:[%s155 + $0xbe0] sm:$0xff]
        %v574 = vld [vmem:[%s155 + $0xbe8] sm:$0xff]
        %v575 = vld [vmem:[%s155 + $0xbf0] sm:$0xff]
        %v576 = vld [vmem:[%s155 + $0xbf8] sm:$0xff]
        %v577 = vld [vmem:[%s155 + $0xc00] sm:$0xff]
        %v578 = vld [vmem:[%s155 + $0xc08] sm:$0xff]
        %v579 = vld [vmem:[%s155 + $0xc10] sm:$0xff]
        %v580 = vld [vmem:[%s155 + $0xc18] sm:$0xff]
        %v581 = vld [vmem:[%s155 + $0xc20] sm:$0xff]
        %v582 = vld [vmem:[%s155 + $0xc28] sm:$0xff]
        %v583 = vld [vmem:[%s155 + $0xc30] sm:$0xff]
        %v584 = vld [vmem:[%s155 + $0xc38] sm:$0xff]
        %v585 = vld [vmem:[%s155 + $0xc40] sm:$0xff]
        %v586 = vld [vmem:[%s155 + $0xc48] sm:$0xff]
        %v587 = vld [vmem:[%s155 + $0xc50] sm:$0xff]
        %v588 = vld [vmem:[%s155 + $0xc58] sm:$0xff]
        %v589 = vld [vmem:[%s155 + $0xc60] sm:$0xff]
        %v590 = vld [vmem:[%s155 + $0xc68] sm:$0xff]
        %v591 = vld [vmem:[%s155 + $0xc70] sm:$0xff]
        %v592 = vld [vmem:[%s155 + $0xc78] sm:$0xff]
        %v593 = vld [vmem:[%s155 + $0xc80] sm:$0xff]
        %v594 = vld [vmem:[%s155 + $0xc88] sm:$0xff]
        %v595 = vld [vmem:[%s155 + $0xc90] sm:$0xff]
        %v596 = vld [vmem:[%s155 + $0xc98] sm:$0xff]
        %v597 = vld [vmem:[%s155 + $0xca0] sm:$0xff]
        %v598 = vld [vmem:[%s155 + $0xca8] sm:$0xff]
        %v599 = vld [vmem:[%s155 + $0xcb0] sm:$0xff]
        %v600 = vld [vmem:[%s155 + $0xcb8] sm:$0xff]
        %v601 = vld [vmem:[%s155 + $0xcc0] sm:$0xff]
        %v602 = vld [vmem:[%s155 + $0xcc8] sm:$0xff]
        %v603 = vld [vmem:[%s155 + $0xcd0] sm:$0xff]
        %v604 = vld [vmem:[%s155 + $0xcd8] sm:$0xff]
        %v605 = vld [vmem:[%s155 + $0xce0] sm:$0xff]
        %v606 = vld [vmem:[%s155 + $0xce8] sm:$0xff]
        %v607 = vld [vmem:[%s155 + $0xcf0] sm:$0xff]
        %v608 = vld [vmem:[%s155 + $0xcf8] sm:$0xff]
        %v609 = vld [vmem:[%s155 + $0xd00] sm:$0xff]
        %v610 = vld [vmem:[%s155 + $0xd08] sm:$0xff]
        %v611 = vld [vmem:[%s155 + $0xd10] sm:$0xff]
        %v612 = vld [vmem:[%s155 + $0xd18] sm:$0xff]
        %v613 = vld [vmem:[%s155 + $0xd20] sm:$0xff]
        %v614 = vld [vmem:[%s155 + $0xd28] sm:$0xff]
        %v615 = vld [vmem:[%s155 + $0xd30] sm:$0xff]
        %v616 = vld [vmem:[%s155 + $0xd38] sm:$0xff]
        %v617 = vld [vmem:[%s155 + $0xd40] sm:$0xff]
        %v618 = vld [vmem:[%s155 + $0xd48] sm:$0xff]
        %v619 = vld [vmem:[%s155 + $0xd50] sm:$0xff]
        %v620 = vld [vmem:[%s155 + $0xd58] sm:$0xff]
        %v621 = vld [vmem:[%s155 + $0xd60] sm:$0xff]
        %v622 = vld [vmem:[%s155 + $0xd68] sm:$0xff]
        %v623 = vld [vmem:[%s155 + $0xd70] sm:$0xff]
        %v624 = vld [vmem:[%s155 + $0xd78] sm:$0xff]
        %v625 = vld [vmem:[%s155 + $0xd80] sm:$0xff]
        %v626 = vld [vmem:[%s155 + $0xd88] sm:$0xff]
        %v627 = vld [vmem:[%s155 + $0xd90] sm:$0xff]
        %v628 = vld [vmem:[%s155 + $0xd98] sm:$0xff]
        %v629 = vld [vmem:[%s155 + $0xda0] sm:$0xff]
        %v630 = vld [vmem:[%s155 + $0xda8] sm:$0xff]
        %v631 = vld [vmem:[%s155 + $0xdb0] sm:$0xff]
        %v632 = vld [vmem:[%s155 + $0xdb8] sm:$0xff]
        %v633 = vld [vmem:[%s155 + $0xdc0] sm:$0xff]
        %v634 = vld [vmem:[%s155 + $0xdc8] sm:$0xff]
        %v635 = vld [vmem:[%s155 + $0xdd0] sm:$0xff]
        %v636 = vld [vmem:[%s155 + $0xdd8] sm:$0xff]
        %v637 = vld [vmem:[%s155 + $0xde0] sm:$0xff]
        %v638 = vld [vmem:[%s155 + $0xde8] sm:$0xff]
        %v639 = vld [vmem:[%s155 + $0xdf0] sm:$0xff]
        %v640 = vld [vmem:[%s155 + $0xdf8] sm:$0xff]
        %v641 = vld [vmem:[%s155 + $0xe00] sm:$0xff]
        %v642 = vld [vmem:[%s155 + $0xe08] sm:$0xff]
        %v643 = vld [vmem:[%s155 + $0xe10] sm:$0xff]
        %v644 = vld [vmem:[%s155 + $0xe18] sm:$0xff]
        %v645 = vld [vmem:[%s155 + $0xe20] sm:$0xff]
        %v646 = vld [vmem:[%s155 + $0xe28] sm:$0xff]
        %v647 = vld [vmem:[%s155 + $0xe30] sm:$0xff]
        %v648 = vld [vmem:[%s155 + $0xe38] sm:$0xff]
        %v649 = vld [vmem:[%s155 + $0xe40] sm:$0xff]
        %v650 = vld [vmem:[%s155 + $0xe48] sm:$0xff]
        %v651 = vld [vmem:[%s155 + $0xe50] sm:$0xff]
        %v652 = vld [vmem:[%s155 + $0xe58] sm:$0xff]
        %v653 = vld [vmem:[%s155 + $0xe60] sm:$0xff]
        %v654 = vld [vmem:[%s155 + $0xe68] sm:$0xff]
        %v655 = vld [vmem:[%s155 + $0xe70] sm:$0xff]
        %v656 = vld [vmem:[%s155 + $0xe78] sm:$0xff]
        %v657 = vld [vmem:[%s155 + $0xe80] sm:$0xff]
        %v658 = vld [vmem:[%s155 + $0xe88] sm:$0xff]
        %v659 = vld [vmem:[%s155 + $0xe90] sm:$0xff]
        %v660 = vld [vmem:[%s155 + $0xe98] sm:$0xff]
        %v661 = vld [vmem:[%s155 + $0xea0] sm:$0xff]
        %v662 = vld [vmem:[%s155 + $0xea8] sm:$0xff]
        %v663 = vld [vmem:[%s155 + $0xeb0] sm:$0xff]
        %v664 = vld [vmem:[%s155 + $0xeb8] sm:$0xff]
        %v665 = vld [vmem:[%s155 + $0xec0] sm:$0xff]
        %v666 = vld [vmem:[%s155 + $0xec8] sm:$0xff]
        %v667 = vld [vmem:[%s155 + $0xed0] sm:$0xff]
        %v668 = vld [vmem:[%s155 + $0xed8] sm:$0xff]
        %v669 = vld [vmem:[%s155 + $0xee0] sm:$0xff]
        %v670 = vld [vmem:[%s155 + $0xee8] sm:$0xff]
        %v671 = vld [vmem:[%s155 + $0xef0] sm:$0xff]
        %v672 = vld [vmem:[%s155 + $0xef8] sm:$0xff]
        %v673 = vld [vmem:[%s155 + $0xf00] sm:$0xff]
        %v674 = vld [vmem:[%s155 + $0xf08] sm:$0xff]
        %v675 = vld [vmem:[%s155 + $0xf10] sm:$0xff]
        %v676 = vld [vmem:[%s155 + $0xf18] sm:$0xff]
        %v677 = vld [vmem:[%s155 + $0xf20] sm:$0xff]
        %v678 = vld [vmem:[%s155 + $0xf28] sm:$0xff]
        %v679 = vld [vmem:[%s155 + $0xf30] sm:$0xff]
        %v680 = vld [vmem:[%s155 + $0xf38] sm:$0xff]
        %v681 = vld [vmem:[%s155 + $0xf40] sm:$0xff]
        %v682 = vld [vmem:[%s155 + $0xf48] sm:$0xff]
        %v683 = vld [vmem:[%s155 + $0xf50] sm:$0xff]
        %v684 = vld [vmem:[%s155 + $0xf58] sm:$0xff]
        %v685 = vld [vmem:[%s155 + $0xf60] sm:$0xff]
        %v686 = vld [vmem:[%s155 + $0xf68] sm:$0xff]
        %v687 = vld [vmem:[%s155 + $0xf70] sm:$0xff]
        %v688 = vld [vmem:[%s155 + $0xf78] sm:$0xff]
        %v689 = vld [vmem:[%s155 + $0xf80] sm:$0xff]
        %v690 = vld [vmem:[%s155 + $0xf88] sm:$0xff]
        %v691 = vld [vmem:[%s155 + $0xf90] sm:$0xff]
        %v692 = vld [vmem:[%s155 + $0xf98] sm:$0xff]
        %v693 = vld [vmem:[%s155 + $0xfa0] sm:$0xff]
        %v694 = vld [vmem:[%s155 + $0xfa8] sm:$0xff]
        %v695 = vld [vmem:[%s155 + $0xfb0] sm:$0xff]
        %v696 = vld [vmem:[%s155 + $0xfb8] sm:$0xff]
        %v697 = vld [vmem:[%s155 + $0xfc0] sm:$0xff]
        %v698 = vld [vmem:[%s155 + $0xfc8] sm:$0xff]
        %v699 = vld [vmem:[%s155 + $0xfd0] sm:$0xff]
        %v700 = vld [vmem:[%s155 + $0xfd8] sm:$0xff]
        %v701 = vld [vmem:[%s155 + $0xfe0] sm:$0xff]
        %v702 = vld [vmem:[%s155 + $0xfe8] sm:$0xff]
        %v703 = vld [vmem:[%s155 + $0xff0] sm:$0xff]
        %v704 = vld [vmem:[%s155 + $0xff8] sm:$0xff]
        %v706 = vlaneseq
        %v707 = vshrl.u32 %v706, 7
        %v708 = vsub.s32 0, %v707
        %v709 = vrot.slane %v191, %v708
        %v710 = vlaneseq
        %v711 = vshrl.u32 %v710, 7
        %v712 = vsub.s32 1, %v711
        %v713 = vrot.slane %v191, %v712
        %v714 = vlaneseq
        %v715 = vshrl.u32 %v714, 7
        %v716 = vsub.s32 2, %v715
        %v717 = vrot.slane %v191, %v716
        %v718 = vlaneseq
        %v719 = vshrl.u32 %v718, 7
        %v720 = vsub.s32 3, %v719
        %v721 = vrot.slane %v191, %v720
        %726 = vmatprep.subr.mxu0 %v194
        %727 = vmatpush1.msra.mxu0 %v193
        %728 = vmatprep.subr.mxu0 %v202
        %729 = vmatpush1.msra.mxu0 %v201
        %730 = vmatprep.subr.mxu0 %v210
        %731 = vmatpush1.msra.mxu0 %v209
        %732 = vmatprep.subr.mxu0 %v218
        %733 = vmatpush1.msra.mxu0 %v217
        %734 = vmatprep.subr.mxu0 %v226
        %735 = vmatpush1.msra.mxu0 %v225
        %736 = vmatprep.subr.mxu0 %v234
        %737 = vmatpush1.msra.mxu0 %v233
        %738 = vmatprep.subr.mxu0 %v242
        %739 = vmatpush1.msra.mxu0 %v241
        %740 = vmatprep.subr.mxu0 %v250
        %741 = vmatpush1.msra.mxu0 %v249
        %742 = vmatprep.subr.mxu0 %v258
        %743 = vmatpush1.msra.mxu0 %v257
        %744 = vmatprep.subr.mxu0 %v266
        %745 = vmatpush1.msra.mxu0 %v265
        %746 = vmatprep.subr.mxu0 %v274
        %747 = vmatpush1.msra.mxu0 %v273
        %748 = vmatprep.subr.mxu0 %v282
        %749 = vmatpush1.msra.mxu0 %v281
        %750 = vmatprep.subr.mxu0 %v290
        %751 = vmatpush1.msra.mxu0 %v289
        %752 = vmatprep.subr.mxu0 %v298
        %753 = vmatpush1.msra.mxu0 %v297
        %754 = vmatprep.subr.mxu0 %v306
        %755 = vmatpush1.msra.mxu0 %v305
        %756 = vmatprep.subr.mxu0 %v314
        %757 = vmatpush1.msra.mxu0 %v313
        %758 = vmatprep.subr.mxu0 %v322
        %759 = vmatpush1.msra.mxu0 %v321
        %760 = vmatprep.subr.mxu0 %v330
        %761 = vmatpush1.msra.mxu0 %v329
        %762 = vmatprep.subr.mxu0 %v338
        %763 = vmatpush1.msra.mxu0 %v337
        %764 = vmatprep.subr.mxu0 %v346
        %765 = vmatpush1.msra.mxu0 %v345
        %766 = vmatprep.subr.mxu0 %v354
        %767 = vmatpush1.msra.mxu0 %v353
        %768 = vmatprep.subr.mxu0 %v362
        %769 = vmatpush1.msra.mxu0 %v361
        %770 = vmatprep.subr.mxu0 %v370
        %771 = vmatpush1.msra.mxu0 %v369
        %772 = vmatprep.subr.mxu0 %v378
        %773 = vmatpush1.msra.mxu0 %v377
        %774 = vmatprep.subr.mxu0 %v386
        %775 = vmatpush1.msra.mxu0 %v385
        %776 = vmatprep.subr.mxu0 %v394
        %777 = vmatpush1.msra.mxu0 %v393
        %778 = vmatprep.subr.mxu0 %v402
        %779 = vmatpush1.msra.mxu0 %v401
        %780 = vmatprep.subr.mxu0 %v410
        %781 = vmatpush1.msra.mxu0 %v409
        %782 = vmatprep.subr.mxu0 %v418
        %783 = vmatpush1.msra.mxu0 %v417
        %784 = vmatprep.subr.mxu0 %v426
        %785 = vmatpush1.msra.mxu0 %v425
        %786 = vmatprep.subr.mxu0 %v434
        %787 = vmatpush1.msra.mxu0 %v433
        %788 = vmatprep.subr.mxu0 %v442
        %789 = vmatpush1.msra.mxu0 %v441
        %790 = vmatprep.mubr.f32.mxu0 %v713
        %791 = vmatmul.mubr.f32.gmra.mrb[0].mxu0 %v709
        %v792 = vpop.f32.mrb[0].mxu0
        %v793 = vadd.f32 0.0, %v792
        %v794 = vpop.f32.mrb[0].mxu0
        %v795 = vadd.f32 0.0, %v794
        %796 = vdwg.mxu0
        %797 = vmatprep.subr.mxu0 %v450
        %798 = vmatpush1.msra.mxu0 %v449
        %799 = vmatprep.subr.mxu0 %v458
        %800 = vmatpush1.msra.mxu0 %v457
        %801 = vmatprep.subr.mxu0 %v466
        %802 = vmatpush1.msra.mxu0 %v465
        %803 = vmatprep.subr.mxu0 %v474
        %804 = vmatpush1.msra.mxu0 %v473
        %805 = vmatprep.subr.mxu0 %v482
        %806 = vmatpush1.msra.mxu0 %v481
        %807 = vmatprep.subr.mxu0 %v490
        %808 = vmatpush1.msra.mxu0 %v489
        %809 = vmatprep.subr.mxu0 %v498
        %810 = vmatpush1.msra.mxu0 %v497
        %811 = vmatprep.subr.mxu0 %v506
        %812 = vmatpush1.msra.mxu0 %v505
        %813 = vmatprep.subr.mxu0 %v514
        %814 = vmatpush1.msra.mxu0 %v513
        %815 = vmatprep.subr.mxu0 %v522
        %816 = vmatpush1.msra.mxu0 %v521
        %817 = vmatprep.subr.mxu0 %v530
        %818 = vmatpush1.msra.mxu0 %v529
        %819 = vmatprep.subr.mxu0 %v538
        %820 = vmatpush1.msra.mxu0 %v537
        %821 = vmatprep.subr.mxu0 %v546
        %822 = vmatpush1.msra.mxu0 %v545
        %823 = vmatprep.subr.mxu0 %v554
        %824 = vmatpush1.msra.mxu0 %v553
        %825 = vmatprep.subr.mxu0 %v562
        %826 = vmatpush1.msra.mxu0 %v561
        %827 = vmatprep.subr.mxu0 %v570
        %828 = vmatpush1.msra.mxu0 %v569
        %829 = vmatprep.subr.mxu0 %v578
        %830 = vmatpush1.msra.mxu0 %v577
        %831 = vmatprep.subr.mxu0 %v586
        %832 = vmatpush1.msra.mxu0 %v585
        %833 = vmatprep.subr.mxu0 %v594
        %834 = vmatpush1.msra.mxu0 %v593
        %835 = vmatprep.subr.mxu0 %v602
        %836 = vmatpush1.msra.mxu0 %v601
        %837 = vmatprep.subr.mxu0 %v610
        %838 = vmatpush1.msra.mxu0 %v609
        %839 = vmatprep.subr.mxu0 %v618
        %840 = vmatpush1.msra.mxu0 %v617
        %841 = vmatprep.subr.mxu0 %v626
        %842 = vmatpush1.msra.mxu0 %v625
        %843 = vmatprep.subr.mxu0 %v634
        %844 = vmatpush1.msra.mxu0 %v633
        %845 = vmatprep.subr.mxu0 %v642
        %846 = vmatpush1.msra.mxu0 %v641
        %847 = vmatprep.subr.mxu0 %v650
        %848 = vmatpush1.msra.mxu0 %v649
        %849 = vmatprep.subr.mxu0 %v658
        %850 = vmatpush1.msra.mxu0 %v657
        %851 = vmatprep.subr.mxu0 %v666
        %852 = vmatpush1.msra.mxu0 %v665
        %853 = vmatprep.subr.mxu0 %v674
        %854 = vmatpush1.msra.mxu0 %v673
        %855 = vmatprep.subr.mxu0 %v682
        %856 = vmatpush1.msra.mxu0 %v681
        %857 = vmatprep.subr.mxu0 %v690
        %858 = vmatpush1.msra.mxu0 %v689
        %859 = vmatprep.subr.mxu0 %v698
        %860 = vmatpush1.msra.mxu0 %v697
        %861 = vmatprep.mubr.f32.mxu0 %v721
        %862 = vmatmul.mubr.f32.gmra.mrb[0].mxu0 %v717
        %v863 = vpop.f32.mrb[0].mxu0
        %v864 = vadd.f32 %v793, %v863
        %v865 = vpop.f32.mrb[0].mxu0
        %v866 = vadd.f32 %v795, %v865
        %867 = vdwg.mxu0
        %868 = vmatprep.subr.mxu0 %v196
        %869 = vmatpush1.msra.mxu0 %v195
        %870 = vmatprep.subr.mxu0 %v204
        %871 = vmatpush1.msra.mxu0 %v203
        %872 = vmatprep.subr.mxu0 %v212
        %873 = vmatpush1.msra.mxu0 %v211
        %874 = vmatprep.subr.mxu0 %v220
        %875 = vmatpush1.msra.mxu0 %v219
        %876 = vmatprep.subr.mxu0 %v228
        %877 = vmatpush1.msra.mxu0 %v227
        %878 = vmatprep.subr.mxu0 %v236
        %879 = vmatpush1.msra.mxu0 %v235
        %880 = vmatprep.subr.mxu0 %v244
        %881 = vmatpush1.msra.mxu0 %v243
        %882 = vmatprep.subr.mxu0 %v252
        %883 = vmatpush1.msra.mxu0 %v251
        %884 = vmatprep.subr.mxu0 %v260
        %885 = vmatpush1.msra.mxu0 %v259
        %886 = vmatprep.subr.mxu0 %v268
        %887 = vmatpush1.msra.mxu0 %v267
        %888 = vmatprep.subr.mxu0 %v276
        %889 = vmatpush1.msra.mxu0 %v275
        %890 = vmatprep.subr.mxu0 %v284
        %891 = vmatpush1.msra.mxu0 %v283
        %892 = vmatprep.subr.mxu0 %v292
        %893 = vmatpush1.msra.mxu0 %v291
        %894 = vmatprep.subr.mxu0 %v300
        %895 = vmatpush1.msra.mxu0 %v299
        %896 = vmatprep.subr.mxu0 %v308
        %897 = vmatpush1.msra.mxu0 %v307
        %898 = vmatprep.subr.mxu0 %v316
        %899 = vmatpush1.msra.mxu0 %v315
        %900 = vmatprep.subr.mxu0 %v324
        %901 = vmatpush1.msra.mxu0 %v323
        %902 = vmatprep.subr.mxu0 %v332
        %903 = vmatpush1.msra.mxu0 %v331
        %904 = vmatprep.subr.mxu0 %v340
        %905 = vmatpush1.msra.mxu0 %v339
        %906 = vmatprep.subr.mxu0 %v348
        %907 = vmatpush1.msra.mxu0 %v347
        %908 = vmatprep.subr.mxu0 %v356
        %909 = vmatpush1.msra.mxu0 %v355
        %910 = vmatprep.subr.mxu0 %v364
        %911 = vmatpush1.msra.mxu0 %v363
        %912 = vmatprep.subr.mxu0 %v372
        %913 = vmatpush1.msra.mxu0 %v371
        %914 = vmatprep.subr.mxu0 %v380
        %915 = vmatpush1.msra.mxu0 %v379
        %916 = vmatprep.subr.mxu0 %v388
        %917 = vmatpush1.msra.mxu0 %v387
        %918 = vmatprep.subr.mxu0 %v396
        %919 = vmatpush1.msra.mxu0 %v395
        %920 = vmatprep.subr.mxu0 %v404
        %921 = vmatpush1.msra.mxu0 %v403
        %922 = vmatprep.subr.mxu0 %v412
        %923 = vmatpush1.msra.mxu0 %v411
        %924 = vmatprep.subr.mxu0 %v420
        %925 = vmatpush1.msra.mxu0 %v419
        %926 = vmatprep.subr.mxu0 %v428
        %927 = vmatpush1.msra.mxu0 %v427
        %928 = vmatprep.subr.mxu0 %v436
        %929 = vmatpush1.msra.mxu0 %v435
        %930 = vmatprep.subr.mxu0 %v444
        %931 = vmatpush1.msra.mxu0 %v443
        %932 = vmatprep.mubr.f32.mxu0 %v713
        %933 = vmatmul.mubr.f32.gmra.mrb[0].mxu0 %v709
        %v934 = vpop.f32.mrb[0].mxu0
        %v935 = vadd.f32 0.0, %v934
        %v936 = vpop.f32.mrb[0].mxu0
        %v937 = vadd.f32 0.0, %v936
        %938 = vdwg.mxu0
        %939 = vmatprep.subr.mxu0 %v452
        %940 = vmatpush1.msra.mxu0 %v451
        %941 = vmatprep.subr.mxu0 %v460
        %942 = vmatpush1.msra.mxu0 %v459
        %943 = vmatprep.subr.mxu0 %v468
        %944 = vmatpush1.msra.mxu0 %v467
        %945 = vmatprep.subr.mxu0 %v476
        %946 = vmatpush1.msra.mxu0 %v475
        %947 = vmatprep.subr.mxu0 %v484
        %948 = vmatpush1.msra.mxu0 %v483
        %949 = vmatprep.subr.mxu0 %v492
        %950 = vmatpush1.msra.mxu0 %v491
        %951 = vmatprep.subr.mxu0 %v500
        %952 = vmatpush1.msra.mxu0 %v499
        %953 = vmatprep.subr.mxu0 %v508
        %954 = vmatpush1.msra.mxu0 %v507
        %955 = vmatprep.subr.mxu0 %v516
        %956 = vmatpush1.msra.mxu0 %v515
        %957 = vmatprep.subr.mxu0 %v524
        %958 = vmatpush1.msra.mxu0 %v523
        %959 = vmatprep.subr.mxu0 %v532
        %960 = vmatpush1.msra.mxu0 %v531
        %961 = vmatprep.subr.mxu0 %v540
        %962 = vmatpush1.msra.mxu0 %v539
        %963 = vmatprep.subr.mxu0 %v548
        %964 = vmatpush1.msra.mxu0 %v547
        %965 = vmatprep.subr.mxu0 %v556
        %966 = vmatpush1.msra.mxu0 %v555
        %967 = vmatprep.subr.mxu0 %v564
        %968 = vmatpush1.msra.mxu0 %v563
        %969 = vmatprep.subr.mxu0 %v572
        %970 = vmatpush1.msra.mxu0 %v571
        %971 = vmatprep.subr.mxu0 %v580
        %972 = vmatpush1.msra.mxu0 %v579
        %973 = vmatprep.subr.mxu0 %v588
        %974 = vmatpush1.msra.mxu0 %v587
        %975 = vmatprep.subr.mxu0 %v596
        %976 = vmatpush1.msra.mxu0 %v595
        %977 = vmatprep.subr.mxu0 %v604
        %978 = vmatpush1.msra.mxu0 %v603
        %979 = vmatprep.subr.mxu0 %v612
        %980 = vmatpush1.msra.mxu0 %v611
        %981 = vmatprep.subr.mxu0 %v620
        %982 = vmatpush1.msra.mxu0 %v619
        %983 = vmatprep.subr.mxu0 %v628
        %984 = vmatpush1.msra.mxu0 %v627
        %985 = vmatprep.subr.mxu0 %v636
        %986 = vmatpush1.msra.mxu0 %v635
        %987 = vmatprep.subr.mxu0 %v644
        %988 = vmatpush1.msra.mxu0 %v643
        %989 = vmatprep.subr.mxu0 %v652
        %990 = vmatpush1.msra.mxu0 %v651
        %991 = vmatprep.subr.mxu0 %v660
        %992 = vmatpush1.msra.mxu0 %v659
        %993 = vmatprep.subr.mxu0 %v668
        %994 = vmatpush1.msra.mxu0 %v667
        %995 = vmatprep.subr.mxu0 %v676
        %996 = vmatpush1.msra.mxu0 %v675
        %997 = vmatprep.subr.mxu0 %v684
        %998 = vmatpush1.msra.mxu0 %v683
        %999 = vmatprep.subr.mxu0 %v692
        %1000 = vmatpush1.msra.mxu0 %v691
        %1001 = vmatprep.subr.mxu0 %v700
        %1002 = vmatpush1.msra.mxu0 %v699
        %1003 = vmatprep.mubr.f32.mxu0 %v721
        %1004 = vmatmul.mubr.f32.gmra.mrb[0].mxu0 %v717
        %v1005 = vpop.f32.mrb[0].mxu0
        %v1006 = vadd.f32 %v935, %v1005
        %v1007 = vpop.f32.mrb[0].mxu0
        %v1008 = vadd.f32 %v937, %v1007
        %1009 = vdwg.mxu0
        %1010 = vmatprep.subr.mxu0 %v198
        %1011 = vmatpush1.msra.mxu0 %v197
        %1012 = vmatprep.subr.mxu0 %v206
        %1013 = vmatpush1.msra.mxu0 %v205
        %1014 = vmatprep.subr.mxu0 %v214
        %1015 = vmatpush1.msra.mxu0 %v213
        %1016 = vmatprep.subr.mxu0 %v222
        %1017 = vmatpush1.msra.mxu0 %v221
        %1018 = vmatprep.subr.mxu0 %v230
        %1019 = vmatpush1.msra.mxu0 %v229
        %1020 = vmatprep.subr.mxu0 %v238
        %1021 = vmatpush1.msra.mxu0 %v237
        %1022 = vmatprep.subr.mxu0 %v246
        %1023 = vmatpush1.msra.mxu0 %v245
        %1024 = vmatprep.subr.mxu0 %v254
        %1025 = vmatpush1.msra.mxu0 %v253
        %1026 = vmatprep.subr.mxu0 %v262
        %1027 = vmatpush1.msra.mxu0 %v261
        %1028 = vmatprep.subr.mxu0 %v270
        %1029 = vmatpush1.msra.mxu0 %v269
        %1030 = vmatprep.subr.mxu0 %v278
        %1031 = vmatpush1.msra.mxu0 %v277
        %1032 = vmatprep.subr.mxu0 %v286
        %1033 = vmatpush1.msra.mxu0 %v285
        %1034 = vmatprep.subr.mxu0 %v294
        %1035 = vmatpush1.msra.mxu0 %v293
        %1036 = vmatprep.subr.mxu0 %v302
        %1037 = vmatpush1.msra.mxu0 %v301
        %1038 = vmatprep.subr.mxu0 %v310
        %1039 = vmatpush1.msra.mxu0 %v309
        %1040 = vmatprep.subr.mxu0 %v318
        %1041 = vmatpush1.msra.mxu0 %v317
        %1042 = vmatprep.subr.mxu0 %v326
        %1043 = vmatpush1.msra.mxu0 %v325
        %1044 = vmatprep.subr.mxu0 %v334
        %1045 = vmatpush1.msra.mxu0 %v333
        %1046 = vmatprep.subr.mxu0 %v342
        %1047 = vmatpush1.msra.mxu0 %v341
        %1048 = vmatprep.subr.mxu0 %v350
        %1049 = vmatpush1.msra.mxu0 %v349
        %1050 = vmatprep.subr.mxu0 %v358
        %1051 = vmatpush1.msra.mxu0 %v357
        %1052 = vmatprep.subr.mxu0 %v366
        %1053 = vmatpush1.msra.mxu0 %v365
        %1054 = vmatprep.subr.mxu0 %v374
        %1055 = vmatpush1.msra.mxu0 %v373
        %1056 = vmatprep.subr.mxu0 %v382
        %1057 = vmatpush1.msra.mxu0 %v381
        %1058 = vmatprep.subr.mxu0 %v390
        %1059 = vmatpush1.msra.mxu0 %v389
        %1060 = vmatprep.subr.mxu0 %v398
        %1061 = vmatpush1.msra.mxu0 %v397
        %1062 = vmatprep.subr.mxu0 %v406
        %1063 = vmatpush1.msra.mxu0 %v405
        %1064 = vmatprep.subr.mxu0 %v414
        %1065 = vmatpush1.msra.mxu0 %v413
        %1066 = vmatprep.subr.mxu0 %v422
        %1067 = vmatpush1.msra.mxu0 %v421
        %1068 = vmatprep.subr.mxu0 %v430
        %1069 = vmatpush1.msra.mxu0 %v429
        %1070 = vmatprep.subr.mxu0 %v438
        %1071 = vmatpush1.msra.mxu0 %v437
        %1072 = vmatprep.subr.mxu0 %v446
        %1073 = vmatpush1.msra.mxu0 %v445
        %1074 = vmatprep.mubr.f32.mxu0 %v713
        %1075 = vmatmul.mubr.f32.gmra.mrb[0].mxu0 %v709
        %v1076 = vpop.f32.mrb[0].mxu0
        %v1077 = vadd.f32 0.0, %v1076
        %v1078 = vpop.f32.mrb[0].mxu0
        %v1079 = vadd.f32 0.0, %v1078
        %1080 = vdwg.mxu0
        %1081 = vmatprep.subr.mxu0 %v454
        %1082 = vmatpush1.msra.mxu0 %v453
        %1083 = vmatprep.subr.mxu0 %v462
        %1084 = vmatpush1.msra.mxu0 %v461
        %1085 = vmatprep.subr.mxu0 %v470
        %1086 = vmatpush1.msra.mxu0 %v469
        %1087 = vmatprep.subr.mxu0 %v478
        %1088 = vmatpush1.msra.mxu0 %v477
        %1089 = vmatprep.subr.mxu0 %v486
        %1090 = vmatpush1.msra.mxu0 %v485
        %1091 = vmatprep.subr.mxu0 %v494
        %1092 = vmatpush1.msra.mxu0 %v493
        %1093 = vmatprep.subr.mxu0 %v502
        %1094 = vmatpush1.msra.mxu0 %v501
        %1095 = vmatprep.subr.mxu0 %v510
        %1096 = vmatpush1.msra.mxu0 %v509
        %1097 = vmatprep.subr.mxu0 %v518
        %1098 = vmatpush1.msra.mxu0 %v517
        %1099 = vmatprep.subr.mxu0 %v526
        %1100 = vmatpush1.msra.mxu0 %v525
        %1101 = vmatprep.subr.mxu0 %v534
        %1102 = vmatpush1.msra.mxu0 %v533
        %1103 = vmatprep.subr.mxu0 %v542
        %1104 = vmatpush1.msra.mxu0 %v541
        %1105 = vmatprep.subr.mxu0 %v550
        %1106 = vmatpush1.msra.mxu0 %v549
        %1107 = vmatprep.subr.mxu0 %v558
        %1108 = vmatpush1.msra.mxu0 %v557
        %1109 = vmatprep.subr.mxu0 %v566
        %1110 = vmatpush1.msra.mxu0 %v565
        %1111 = vmatprep.subr.mxu0 %v574
        %1112 = vmatpush1.msra.mxu0 %v573
        %1113 = vmatprep.subr.mxu0 %v582
        %1114 = vmatpush1.msra.mxu0 %v581
        %1115 = vmatprep.subr.mxu0 %v590
        %1116 = vmatpush1.msra.mxu0 %v589
        %1117 = vmatprep.subr.mxu0 %v598
        %1118 = vmatpush1.msra.mxu0 %v597
        %1119 = vmatprep.subr.mxu0 %v606
        %1120 = vmatpush1.msra.mxu0 %v605
        %1121 = vmatprep.subr.mxu0 %v614
        %1122 = vmatpush1.msra.mxu0 %v613
        %1123 = vmatprep.subr.mxu0 %v622
        %1124 = vmatpush1.msra.mxu0 %v621
        %1125 = vmatprep.subr.mxu0 %v630
        %1126 = vmatpush1.msra.mxu0 %v629
        %1127 = vmatprep.subr.mxu0 %v638
        %1128 = vmatpush1.msra.mxu0 %v637
        %1129 = vmatprep.subr.mxu0 %v646
        %1130 = vmatpush1.msra.mxu0 %v645
        %1131 = vmatprep.subr.mxu0 %v654
        %1132 = vmatpush1.msra.mxu0 %v653
        %1133 = vmatprep.subr.mxu0 %v662
        %1134 = vmatpush1.msra.mxu0 %v661
        %1135 = vmatprep.subr.mxu0 %v670
        %1136 = vmatpush1.msra.mxu0 %v669
        %1137 = vmatprep.subr.mxu0 %v678
        %1138 = vmatpush1.msra.mxu0 %v677
        %1139 = vmatprep.subr.mxu0 %v686
        %1140 = vmatpush1.msra.mxu0 %v685
        %1141 = vmatprep.subr.mxu0 %v694
        %1142 = vmatpush1.msra.mxu0 %v693
        %1143 = vmatprep.subr.mxu0 %v702
        %1144 = vmatpush1.msra.mxu0 %v701
        %1145 = vmatprep.mubr.f32.mxu0 %v721
        %1146 = vmatmul.mubr.f32.gmra.mrb[0].mxu0 %v717
        %v1147 = vpop.f32.mrb[0].mxu0
        %v1148 = vadd.f32 %v1077, %v1147
        %v1149 = vpop.f32.mrb[0].mxu0
        %v1150 = vadd.f32 %v1079, %v1149
        %1151 = vdwg.mxu0
        %1152 = vmatprep.subr.mxu0 %v200
        %1153 = vmatpush1.msra.mxu0 %v199
        %1154 = vmatprep.subr.mxu0 %v208
        %1155 = vmatpush1.msra.mxu0 %v207
        %1156 = vmatprep.subr.mxu0 %v216
        %1157 = vmatpush1.msra.mxu0 %v215
        %1158 = vmatprep.subr.mxu0 %v224
        %1159 = vmatpush1.msra.mxu0 %v223
        %1160 = vmatprep.subr.mxu0 %v232
        %1161 = vmatpush1.msra.mxu0 %v231
        %1162 = vmatprep.subr.mxu0 %v240
        %1163 = vmatpush1.msra.mxu0 %v239
        %1164 = vmatprep.subr.mxu0 %v248
        %1165 = vmatpush1.msra.mxu0 %v247
        %1166 = vmatprep.subr.mxu0 %v256
        %1167 = vmatpush1.msra.mxu0 %v255
        %1168 = vmatprep.subr.mxu0 %v264
        %1169 = vmatpush1.msra.mxu0 %v263
        %1170 = vmatprep.subr.mxu0 %v272
        %1171 = vmatpush1.msra.mxu0 %v271
        %1172 = vmatprep.subr.mxu0 %v280
        %1173 = vmatpush1.msra.mxu0 %v279
        %1174 = vmatprep.subr.mxu0 %v288
        %1175 = vmatpush1.msra.mxu0 %v287
        %1176 = vmatprep.subr.mxu0 %v296
        %1177 = vmatpush1.msra.mxu0 %v295
        %1178 = vmatprep.subr.mxu0 %v304
        %1179 = vmatpush1.msra.mxu0 %v303
        %1180 = vmatprep.subr.mxu0 %v312
        %1181 = vmatpush1.msra.mxu0 %v311
        %1182 = vmatprep.subr.mxu0 %v320
        %1183 = vmatpush1.msra.mxu0 %v319
        %1184 = vmatprep.subr.mxu0 %v328
        %1185 = vmatpush1.msra.mxu0 %v327
        %1186 = vmatprep.subr.mxu0 %v336
        %1187 = vmatpush1.msra.mxu0 %v335
        %1188 = vmatprep.subr.mxu0 %v344
        %1189 = vmatpush1.msra.mxu0 %v343
        %1190 = vmatprep.subr.mxu0 %v352
        %1191 = vmatpush1.msra.mxu0 %v351
        %1192 = vmatprep.subr.mxu0 %v360
        %1193 = vmatpush1.msra.mxu0 %v359
        %1194 = vmatprep.subr.mxu0 %v368
        %1195 = vmatpush1.msra.mxu0 %v367
        %1196 = vmatprep.subr.mxu0 %v376
        %1197 = vmatpush1.msra.mxu0 %v375
        %1198 = vmatprep.subr.mxu0 %v384
        %1199 = vmatpush1.msra.mxu0 %v383
        %1200 = vmatprep.subr.mxu0 %v392
        %1201 = vmatpush1.msra.mxu0 %v391
        %1202 = vmatprep.subr.mxu0 %v400
        %1203 = vmatpush1.msra.mxu0 %v399
        %1204 = vmatprep.subr.mxu0 %v408
        %1205 = vmatpush1.msra.mxu0 %v407
        %1206 = vmatprep.subr.mxu0 %v416
        %1207 = vmatpush1.msra.mxu0 %v415
        %1208 = vmatprep.subr.mxu0 %v424
        %1209 = vmatpush1.msra.mxu0 %v423
        %1210 = vmatprep.subr.mxu0 %v432
        %1211 = vmatpush1.msra.mxu0 %v431
        %1212 = vmatprep.subr.mxu0 %v440
        %1213 = vmatpush1.msra.mxu0 %v439
        %1214 = vmatprep.subr.mxu0 %v448
        %1215 = vmatpush1.msra.mxu0 %v447
        %1216 = vmatprep.mubr.f32.mxu0 %v713
        %1217 = vmatmul.mubr.f32.gmra.mrb[0].mxu0 %v709
        %v1218 = vpop.f32.mrb[0].mxu0
        %v1219 = vadd.f32 0.0, %v1218
        %v1220 = vpop.f32.mrb[0].mxu0
        %v1221 = vadd.f32 0.0, %v1220
        %1222 = vdwg.mxu0
        %1223 = vmatprep.subr.mxu0 %v456
        %1224 = vmatpush1.msra.mxu0 %v455
        %1225 = vmatprep.subr.mxu0 %v464
        %1226 = vmatpush1.msra.mxu0 %v463
        %1227 = vmatprep.subr.mxu0 %v472
        %1228 = vmatpush1.msra.mxu0 %v471
        %1229 = vmatprep.subr.mxu0 %v480
        %1230 = vmatpush1.msra.mxu0 %v479
        %1231 = vmatprep.subr.mxu0 %v488
        %1232 = vmatpush1.msra.mxu0 %v487
        %1233 = vmatprep.subr.mxu0 %v496
        %1234 = vmatpush1.msra.mxu0 %v495
        %1235 = vmatprep.subr.mxu0 %v504
        %1236 = vmatpush1.msra.mxu0 %v503
        %1237 = vmatprep.subr.mxu0 %v512
        %1238 = vmatpush1.msra.mxu0 %v511
        %1239 = vmatprep.subr.mxu0 %v520
        %1240 = vmatpush1.msra.mxu0 %v519
        %1241 = vmatprep.subr.mxu0 %v528
        %1242 = vmatpush1.msra.mxu0 %v527
        %1243 = vmatprep.subr.mxu0 %v536
        %1244 = vmatpush1.msra.mxu0 %v535
        %1245 = vmatprep.subr.mxu0 %v544
        %1246 = vmatpush1.msra.mxu0 %v543
        %1247 = vmatprep.subr.mxu0 %v552
        %1248 = vmatpush1.msra.mxu0 %v551
        %1249 = vmatprep.subr.mxu0 %v560
        %1250 = vmatpush1.msra.mxu0 %v559
        %1251 = vmatprep.subr.mxu0 %v568
        %1252 = vmatpush1.msra.mxu0 %v567
        %1253 = vmatprep.subr.mxu0 %v576
        %1254 = vmatpush1.msra.mxu0 %v575
        %1255 = vmatprep.subr.mxu0 %v584
        %1256 = vmatpush1.msra.mxu0 %v583
        %1257 = vmatprep.subr.mxu0 %v592
        %1258 = vmatpush1.msra.mxu0 %v591
        %1259 = vmatprep.subr.mxu0 %v600
        %1260 = vmatpush1.msra.mxu0 %v599
        %1261 = vmatprep.subr.mxu0 %v608
        %1262 = vmatpush1.msra.mxu0 %v607
        %1263 = vmatprep.subr.mxu0 %v616
        %1264 = vmatpush1.msra.mxu0 %v615
        %1265 = vmatprep.subr.mxu0 %v624
        %1266 = vmatpush1.msra.mxu0 %v623
        %1267 = vmatprep.subr.mxu0 %v632
        %1268 = vmatpush1.msra.mxu0 %v631
        %1269 = vmatprep.subr.mxu0 %v640
        %1270 = vmatpush1.msra.mxu0 %v639
        %1271 = vmatprep.subr.mxu0 %v648
        %1272 = vmatpush1.msra.mxu0 %v647
        %1273 = vmatprep.subr.mxu0 %v656
        %1274 = vmatpush1.msra.mxu0 %v655
        %1275 = vmatprep.subr.mxu0 %v664
        %1276 = vmatpush1.msra.mxu0 %v663
        %1277 = vmatprep.subr.mxu0 %v672
        %1278 = vmatpush1.msra.mxu0 %v671
        %1279 = vmatprep.subr.mxu0 %v680
        %1280 = vmatpush1.msra.mxu0 %v679
        %1281 = vmatprep.subr.mxu0 %v688
        %1282 = vmatpush1.msra.mxu0 %v687
        %1283 = vmatprep.subr.mxu0 %v696
        %1284 = vmatpush1.msra.mxu0 %v695
        %1285 = vmatprep.subr.mxu0 %v704
        %1286 = vmatpush1.msra.mxu0 %v703
        %1287 = vmatprep.mubr.f32.mxu0 %v721
        %1288 = vmatmul.mubr.f32.gmra.mrb[0].mxu0 %v717
        %v1289 = vpop.f32.mrb[0].mxu0
        %v1290 = vadd.f32 %v1219, %v1289
        %v1291 = vpop.f32.mrb[0].mxu0
        %v1292 = vadd.f32 %v1221, %v1291
        %1293 = vdwg.mxu0
        %v1302 = vcombine.low %v864, %v866
        %v1303 = vcombine.low %v1006, %v1008
        %v1304 = vcombine.low %v1148, %v1150
        %v1305 = vcombine.low %v1290, %v1292
        %v1307 = vunpack.c.l.s4 1966171168
        %v1308 = vunpack.c.0.s8 %v1307
        %v1309 = vlaneseq
        %v1310 = vshrl.u32 %v1309, 7
        %v1311 = vsub.s32 %v1308, %v1310
        %v1312 = vrot.slane %v1302, %v1311
        %v1314 = vunpack.c.l.s4 1966171168
        %v1315 = vunpack.c.0.s8 %v1314
        %v1316 = vlaneseq
        %v1317 = vshrl.u32 %v1316, 7
        %v1318 = vsub.s32 %v1315, %v1317
        %v1319 = vrot.slane %v1303, %v1318
        %v1321 = vunpack.c.l.s4 1966171168
        %v1322 = vunpack.c.0.s8 %v1321
        %v1323 = vlaneseq
        %v1324 = vshrl.u32 %v1323, 7
        %v1325 = vsub.s32 %v1322, %v1324
        %v1326 = vrot.slane %v1304, %v1325
        %v1328 = vunpack.c.l.s4 1966171168
        %v1329 = vunpack.c.0.s8 %v1328
        %v1330 = vlaneseq
        %v1331 = vshrl.u32 %v1330, 7
        %v1332 = vsub.s32 %v1329, %v1331
        %v1333 = vrot.slane %v1305, %v1332
        %v1334 = vcombine.low %v1312, %v1319
        %v1335 = vcombine.low %v1326, %v1333
        %v1337 = vunpack.c.l.s4 1966171168
        %v1338 = vunpack.c.0.s8 %v1337
        %v1339 = vlaneseq
        %v1340 = vshrl.u32 %v1339, 7
        %v1341 = vsub.s32 %v1338, %v1340
        %v1342 = vrot.slane %v1334, %v1341
        %v1344 = vunpack.c.l.s4 1966171168
        %v1345 = vunpack.c.0.s8 %v1344
        %v1346 = vlaneseq
        %v1347 = vshrl.u32 %v1346, 7
        %v1348 = vsub.s32 %v1345, %v1347
        %v1349 = vrot.slane %v1335, %v1348
        %v1350 = vcombine.low %v1342, %v1349
        %v1352 = vadd.f32 %v192, %v1350
        %1353 = vst [vmem:[#allocation2] sm:$0xff] %v1352
        %p1354 = scmp.eq.s32.totalorder %s21, 3
        // Predicated region
        $region37: #{_srr_forward.17} parent=27 // pred_check
          %p1355 = pneg %p1354
        $region38: #{_srr_forward.17} parent=27 // pred_check_branch
          %1357 = sbr.rel (%p1355) target = $region40
        $region39: #{_srr_forward.17} parent=27 // pred_region
          %v1358 = vld [vmem:[#allocation2] sm:$0xff]
          %1359 = vst [vmem:[%s180] sm:$0xff] %v1358
        $region40: #{_srr_forward.17} parent=27 // pred_fallthru
          _
        %s1360 = smul.u32 8, %s20
        %p1361 = scmp.lt.s32.totalorder %s1360, 7
        %s1362 = scalar_select %p1361, %s1360, 7
        %s1363 = scalar_lea.vmem %s2, %s1362
        // Predicated region
        $region41: #{_srr_forward.17} parent=27 // pred_check
          %p1364 = pneg %p95
        $region42: #{_srr_forward.17} parent=27 // pred_check_branch
          %1366 = sbr.rel (%p1364) target = $region44
        $region43: #{_srr_forward.17} parent=27 // pred_region
          %s1367 = smul.u32 8, %s20
        $region44: #{_srr_forward.17} parent=27 // pred_fallthru
          _
        // Predicated region
        $region45: #{_srr_forward.17} parent=27 // pred_check
          %p1368 = pneg %p95
        $region46: #{_srr_forward.17} parent=27 // pred_check_branch
          %1370 = sbr.rel (%p1368) target = $region48
        $region47: #{_srr_forward.17} parent=27 // pred_region
          %s1371 = smul.u32 8, %s20
          %p1372 = scmp.lt.s32.totalorder %s1371, 7
          %s1373 = scalar_select %p1372, %s1371, 7
          %s1374 = scalar_lea.vmem %s2, %s1373
        $region48: #{_srr_forward.17} parent=27 // pred_fallthru
          _
      $region28: #{_srr_forward.17} parent=5 // pred_fallthru
        _
      %p1375 = scmp.le.s32.totalorder 2, %s11
      // Predicated region
      $region49: #{_srr_forward.17} parent=5 // pred_check
        %p1376 = pneg %p1375
      $region50: #{_srr_forward.17} parent=5 // pred_check_branch
        %1378 = sbr.rel (%p1376) target = $region52
      $region51: #{_srr_forward.17} parent=5 // pred_region
        %s1379 = ssub.s32 %s11, 2
      $region52: #{_srr_forward.17} parent=5 // pred_fallthru
        _
    $region6: #{_srr_forward.17} parent=1 // loop_footer
      %s15 = sadd.s32 1, %s11
    $region7: #{_srr_forward.17} parent=1 // loop_footer_branch
      %10 = sbr.rel target = $region3
    $region8: #{_srr_forward.17} parent=1 // loop_exit
      _
    %1380 = vsyncpa [#allocation4], 1
    %s1381 = scalar_lea.sflag [#allocation4], 1
    %1382 = vsyncpa %s1381, 1

// kernel: _srr_forward.18
$region0: #{_srr_forward.18}
  #allocation0 [shape = 'u32[]', space=smem, size = 0x4, offset = 0x4, fixed_abs, tag = 'smem constant byte address 0x4 - core index']
  #allocation1 [shape = 'u32[144,128]{1,0:T(1,128)}', space=vmem, size = 0x12000, scoped, tag = 'internal scratch']
  #allocation2 [shape = 'f32[1,1024]{1,0:T(1,128)}', space=vmem, size = 0x1000, scoped, tag = 'scratch operand']
  %s0 = inlined_call_operand.vmem [shape: f32[1,1024], index: 0, kind: input, shape index: {}]
  %s1 = inlined_call_operand.vmem [shape: f32[2048,1024], index: 1, kind: input, shape index: {}]
  %s2 = inlined_call_operand.vmem [shape: f32[1,2048], index: 2, kind: output, shape index: {}]
  %s3 = sld [smem:[#allocation0]]
  $region72: #{_srr_forward.18} parent=0
    _
  %s5 = ssub.s32 1, %s3
  %s6 = scalar_select 0, %s5, %s3
  $region1: #{_srr_forward.18} parent=0
    #allocation3 [shape = 'u8[4194304]{0}', space=vmem, size = 0x400000, scoped, tag = 'input window, operand 1']
    loop: start=0, step=1, limit=6
    $region2: #{_srr_forward.18} parent=1 // loop_pre_header
      _
    $region3: #{_srr_forward.18} parent=1 // loop_header
      %s8 = sphi 0, %s12
      %p9 = scmp.ge.s32.totalorder %s8, 6
      %s15 = sphi 0, %s27
      %s16 = sphi 0, %s23
      %s17 = sphi 0, %s15
      %s18 = sphi 0, %s16
      %s19 = sphi 0, %s17
      %s20 = sphi 0, %s18
      %s28 = sphi 0, %s28
      %s30 = sphi 0, %s28
      %s31 = sphi 0, %s30
      %s45 = sphi 0, %s31
      %s53 = sphi 0, %s55
      %s56 = sphi 0, %s53
      %s57 = sphi 0, %s56
      %s73 = sphi 0, %s57
      %s79 = sphi 0, %s81
      %s82 = sphi 0, %s79
      %s83 = sphi 0, %s82
      %s99 = sphi 0, %s83
    $region4: #{_srr_forward.18} parent=1 // loop_header_branch
      %11 = sbr.rel (%p9) target = $region8
    $region5: #{_srr_forward.18} parent=1 // loop_body
      %s13 = ssub.s32 %s8, 1
      %s14 = ssub.s32 %s8, 2
      %s21 = sadd.s32 1, %s16
      %p22 = scmp.ge.s32.totalorder %s21, 2
      %s23 = scalar_select %p22, 0, %s21
      %s24 = sadd.s32 1, %s15
      %s25 = scalar_select %p22, %s24, %s15
      %p26 = scmp.ge.s32.totalorder %s25, 2
      %s27 = scalar_select %p26, 0, %s25
      %s29 = sadd.s32 %s28, 1
      %p32 = scmp.eq.s32.totalorder %s8, 3
      %p33 = scmp.ne.s32.totalorder %s28, %s30
      %p34 = scmp.eq.s32.totalorder %s8, 0
      %p35 = por %p33, %p34
      %p36 = scmp.ne.s32.totalorder %s28, %s30
      %p37 = scmp.eq.s32.totalorder %s13, 3
      %p38 = por %p36, %p37
      %p39 = scmp.ne.s32.totalorder %s30, %s31
      %p40 = scmp.eq.s32.totalorder %s13, 0
      %p41 = por %p39, %p40
      %p42 = scmp.ne.s32.totalorder %s30, %s31
      %p43 = scmp.eq.s32.totalorder %s14, 3
      %p44 = por %p42, %p43
      %p46 = scmp.ne.s32.totalorder %s31, %s45
      %p47 = scmp.eq.s32.totalorder %s14, 0
      %p48 = por %p46, %p47
      %s49 = ssub.s32 %s15, %s27
      %s50 = ssub.s32 %s16, %s23
      %s51 = sor.u32 %s49, %s50
      %p52 = scmp.eq.s32.totalorder %s51, 0
      %s54 = sadd.s32 %s53, 1
      %s55 = scalar_select %p52, %s53, %s54
      %p58 = pneg %p52
      %p59 = scmp.eq.s32.totalorder %s8, 3
      %p60 = por %p58, %p59
      %p61 = scmp.ne.s32.totalorder %s53, %s56
      %p62 = scmp.eq.s32.totalorder %s8, 0
      %p63 = por %p61, %p62
      %p64 = scmp.ne.s32.totalorder %s53, %s56
      %p65 = scmp.eq.s32.totalorder %s13, 3
      %p66 = por %p64, %p65
      %p67 = scmp.ne.s32.totalorder %s56, %s57
      %p68 = scmp.eq.s32.totalorder %s13, 0
      %p69 = por %p67, %p68
      %p70 = scmp.ne.s32.totalorder %s56, %s57
      %p71 = scmp.eq.s32.totalorder %s14, 3
      %p72 = por %p70, %p71
      %p74 = scmp.ne.s32.totalorder %s57, %s73
      %p75 = scmp.eq.s32.totalorder %s14, 0
      %p76 = por %p74, %p75
      %s77 = ssub.s32 %s15, %s27
      %p78 = scmp.eq.s32.totalorder %s77, 0
      %s80 = sadd.s32 %s79, 1
      %s81 = scalar_select %p78, %s79, %s80
      %p84 = pneg %p78
      %p85 = scmp.eq.s32.totalorder %s8, 3
      %p86 = por %p84, %p85
      %p87 = scmp.ne.s32.totalorder %s79, %s82
      %p88 = scmp.eq.s32.totalorder %s8, 0
      %p89 = por %p87, %p88
      %p90 = scmp.ne.s32.totalorder %s79, %s82
      %p91 = scmp.eq.s32.totalorder %s13, 3
      %p92 = por %p90, %p91
      %p93 = scmp.ne.s32.totalorder %s82, %s83
      %p94 = scmp.eq.s32.totalorder %s13, 0
      %p95 = por %p93, %p94
      %p96 = scmp.ne.s32.totalorder %s82, %s83
      %p97 = scmp.eq.s32.totalorder %s14, 3
      %p98 = por %p96, %p97
      %p100 = scmp.ne.s32.totalorder %s83, %s99
      %p101 = scmp.eq.s32.totalorder %s14, 0
      %p102 = por %p100, %p101
      %p103 = scmp.le.s32.totalorder 1, %s8
      %p104 = scmp.lt.s32.totalorder %s8, 5
      %p105 = pnand %p103, %p104
      %p106 = pneg %p105
      // Predicated region
      $region9: #{_srr_forward.18} parent=5 // pred_check
        _
      $region10: #{_srr_forward.18} parent=5 // pred_check_branch
        %108 = sbr.rel (%p105) target = $region12
      $region11: #{_srr_forward.18} parent=5 // pred_region
        %s109 = ssub.s32 %s8, 1
        // Predicated region
        $region13: #{_srr_forward.18} parent=11 // pred_check
          %p110 = pneg %p41
        $region14: #{_srr_forward.18} parent=11 // pred_check_branch
          %112 = sbr.rel (%p110) target = $region16
        $region15: #{_srr_forward.18} parent=11 // pred_region
          _
        $region16: #{_srr_forward.18} parent=11 // pred_fallthru
          _
      $region12: #{_srr_forward.18} parent=5 // pred_fallthru
        _
      %p113 = scmp.lt.s32.totalorder %s8, 4
      // Predicated region
      $region17: #{_srr_forward.18} parent=5 // pred_check
        %p114 = pneg %p113
      $region18: #{_srr_forward.18} parent=5 // pred_check_branch
        %116 = sbr.rel (%p114) target = $region20
      $region19: #{_srr_forward.18} parent=5 // pred_region
        // Predicated region
        $region21: #{_srr_forward.18} parent=19 // pred_check
          %p117 = pneg %p63
        $region22: #{_srr_forward.18} parent=19 // pred_check_branch
          %119 = sbr.rel (%p117) target = $region24
        $region23: #{_srr_forward.18} parent=19 // pred_region
          %s120 = sand.u32 %s53, 1
          %s121 = sand.u32 %s53, 1
          %s122 = smul.addr %s121, 4096
          %s123 = scalar_lea.vmem [#allocation3], %s122
          %s124 = smul.u32 128, %s15
          %s125 = smul.u32 4, %s16
          %s126 = smul.addr %s124, 8
          %s127 = sadd.s32 %s125, %s126
          %s128 = smul.addr %s127, 8
          %s129 = scalar_lea.vmem %s1, %s128
          // Predicated region
          $region25: #{_srr_forward.18} parent=23 // pred_check
            _
          $region26: #{_srr_forward.18} parent=23 // pred_check_branch
            %131 = sbr.rel (0) target = $region28
          $region27: #{_srr_forward.18} parent=23 // pred_region
            // Predicated region
            $region29: #{_srr_forward.18} parent=27 // pred_check
              _
            $region30: #{_srr_forward.18} parent=27 // pred_check_branch
              %133 = sbr.rel (0) target = $region32
            $region31: #{_srr_forward.18} parent=27 // pred_region
              loop: start=0, step=1, limit=1
              $region33: #{_srr_forward.18} parent=31 // loop_pre_header
                _
              $region34: #{_srr_forward.18} parent=31 // loop_header
                %s135 = sphi 0, %s139
                %p136 = scmp.ge.s32.totalorder %s135, 1
                %s140 = sphi %s129, %s129
                %s141 = sphi %s123, %s123
              $region35: #{_srr_forward.18} parent=31 // loop_header_branch
                %138 = sbr.rel (%p136) target = $region39
              $region36: #{_srr_forward.18} parent=31 // loop_body
                %v142 = vld [vmem:[%s140] sm:$0xff]
                %143 = vst [vmem:[%s141] sm:$0xff] %v142
                %v144 = vld [vmem:[%s140 + $0x8] sm:$0xff]
                %145 = vst [vmem:[%s141 + $0x8] sm:$0xff] %v144
                %v146 = vld [vmem:[%s140 + $0x10] sm:$0xff]
                %147 = vst [vmem:[%s141 + $0x10] sm:$0xff] %v146
                %v148 = vld [vmem:[%s140 + $0x18] sm:$0xff]
                %149 = vst [vmem:[%s141 + $0x18] sm:$0xff] %v148
                %v150 = vld [vmem:[%s140 + $0x40] sm:$0xff]
                %151 = vst [vmem:[%s141 + $0x20] sm:$0xff] %v150
                %v152 = vld [vmem:[%s140 + $0x48] sm:$0xff]
                %153 = vst [vmem:[%s141 + $0x28] sm:$0xff] %v152
                %v154 = vld [vmem:[%s140 + $0x50] sm:$0xff]
                %155 = vst [vmem:[%s141 + $0x30] sm:$0xff] %v154
                %v156 = vld [vmem:[%s140 + $0x58] sm:$0xff]
                %157 = vst [vmem:[%s141 + $0x38] sm:$0xff] %v156
                %v158 = vld [vmem:[%s140 + $0x80] sm:$0xff]
                %159 = vst [vmem:[%s141 + $0x40] sm:$0xff] %v158
                %v160 = vld [vmem:[%s140 + $0x88] sm:$0xff]
                %161 = vst [vmem:[%s141 + $0x48] sm:$0xff] %v160
                %v162 = vld [vmem:[%s140 + $0x90] sm:$0xff]
                %163 = vst [vmem:[%s141 + $0x50] sm:$0xff] %v162
                %v164 = vld [vmem:[%s140 + $0x98] sm:$0xff]
                %165 = vst [vmem:[%s141 + $0x58] sm:$0xff] %v164
                %v166 = vld [vmem:[%s140 + $0xc0] sm:$0xff]
                %167 = vst [vmem:[%s141 + $0x60] sm:$0xff] %v166
                %v168 = vld [vmem:[%s140 + $0xc8] sm:$0xff]
                %169 = vst [vmem:[%s141 + $0x68] sm:$0xff] %v168
                %v170 = vld [vmem:[%s140 + $0xd0] sm:$0xff]
                %171 = vst [vmem:[%s141 + $0x70] sm:$0xff] %v170
                %v172 = vld [vmem:[%s140 + $0xd8] sm:$0xff]
                %173 = vst [vmem:[%s141 + $0x78] sm:$0xff] %v172
                %v174 = vld [vmem:[%s140 + $0x100] sm:$0xff]
                %175 = vst [vmem:[%s141 + $0x80] sm:$0xff] %v174
                %v176 = vld [vmem:[%s140 + $0x108] sm:$0xff]
                %177 = vst [vmem:[%s141 + $0x88] sm:$0xff] %v176
                %v178 = vld [vmem:[%s140 + $0x110] sm:$0xff]
                %179 = vst [vmem:[%s141 + $0x90] sm:$0xff] %v178
                %v180 = vld [vmem:[%s140 + $0x118] sm:$0xff]
                %181 = vst [vmem:[%s141 + $0x98] sm:$0xff] %v180
                %v182 = vld [vmem:[%s140 + $0x140] sm:$0xff]
                %183 = vst [vmem:[%s141 + $0xa0] sm:$0xff] %v182
                %v184 = vld [vmem:[%s140 + $0x148] sm:$0xff]
                %185 = vst [vmem:[%s141 + $0xa8] sm:$0xff] %v184
                %v186 = vld [vmem:[%s140 + $0x150] sm:$0xff]
                %187 = vst [vmem:[%s141 + $0xb0] sm:$0xff] %v186
                %v188 = vld [vmem:[%s140 + $0x158] sm:$0xff]
                %189 = vst [vmem:[%s141 + $0xb8] sm:$0xff] %v188
                %v190 = vld [vmem:[%s140 + $0x180] sm:$0xff]
                %191 = vst [vmem:[%s141 + $0xc0] sm:$0xff] %v190
                %v192 = vld [vmem:[%s140 + $0x188] sm:$0xff]
                %193 = vst [vmem:[%s141 + $0xc8] sm:$0xff] %v192
                %v194 = vld [vmem:[%s140 + $0x190] sm:$0xff]
                %195 = vst [vmem:[%s141 + $0xd0] sm:$0xff] %v194
                %v196 = vld [vmem:[%s140 + $0x198] sm:$0xff]
                %197 = vst [vmem:[%s141 + $0xd8] sm:$0xff] %v196
                %v198 = vld [vmem:[%s140 + $0x1c0] sm:$0xff]
                %199 = vst [vmem:[%s141 + $0xe0] sm:$0xff] %v198
                %v200 = vld [vmem:[%s140 + $0x1c8] sm:$0xff]
                %201 = vst [vmem:[%s141 + $0xe8] sm:$0xff] %v200
                %v202 = vld [vmem:[%s140 + $0x1d0] sm:$0xff]
                %203 = vst [vmem:[%s141 + $0xf0] sm:$0xff] %v202
                %v204 = vld [vmem:[%s140 + $0x1d8] sm:$0xff]
                %205 = vst [vmem:[%s141 + $0xf8] sm:$0xff] %v204
                %v206 = vld [vmem:[%s140 + $0x200] sm:$0xff]
                %207 = vst [vmem:[%s141 + $0x100] sm:$0xff] %v206
                %v208 = vld [vmem:[%s140 + $0x208] sm:$0xff]
                %209 = vst [vmem:[%s141 + $0x108] sm:$0xff] %v208
                %v210 = vld [vmem:[%s140 + $0x210] sm:$0xff]
                %211 = vst [vmem:[%s141 + $0x110] sm:$0xff] %v210
                %v212 = vld [vmem:[%s140 + $0x218] sm:$0xff]
                %213 = vst [vmem:[%s141 + $0x118] sm:$0xff] %v212
                %v214 = vld [vmem:[%s140 + $0x240] sm:$0xff]
                %215 = vst [vmem:[%s141 + $0x120] sm:$0xff] %v214
                %v216 = vld [vmem:[%s140 + $0x248] sm:$0xff]
                %217 = vst [vmem:[%s141 + $0x128] sm:$0xff] %v216
                %v218 = vld [vmem:[%s140 + $0x250] sm:$0xff]
                %219 = vst [vmem:[%s141 + $0x130] sm:$0xff] %v218
                %v220 = vld [vmem:[%s140 + $0x258] sm:$0xff]
                %221 = vst [vmem:[%s141 + $0x138] sm:$0xff] %v220
                %v222 = vld [vmem:[%s140 + $0x280] sm:$0xff]
                %223 = vst [vmem:[%s141 + $0x140] sm:$0xff] %v222
                %v224 = vld [vmem:[%s140 + $0x288] sm:$0xff]
                %225 = vst [vmem:[%s141 + $0x148] sm:$0xff] %v224
                %v226 = vld [vmem:[%s140 + $0x290] sm:$0xff]
                %227 = vst [vmem:[%s141 + $0x150] sm:$0xff] %v226
                %v228 = vld [vmem:[%s140 + $0x298] sm:$0xff]
                %229 = vst [vmem:[%s141 + $0x158] sm:$0xff] %v228
                %v230 = vld [vmem:[%s140 + $0x2c0] sm:$0xff]
                %231 = vst [vmem:[%s141 + $0x160] sm:$0xff] %v230
                %v232 = vld [vmem:[%s140 + $0x2c8] sm:$0xff]
                %233 = vst [vmem:[%s141 + $0x168] sm:$0xff] %v232
                %v234 = vld [vmem:[%s140 + $0x2d0] sm:$0xff]
                %235 = vst [vmem:[%s141 + $0x170] sm:$0xff] %v234
                %v236 = vld [vmem:[%s140 + $0x2d8] sm:$0xff]
                %237 = vst [vmem:[%s141 + $0x178] sm:$0xff] %v236
                %v238 = vld [vmem:[%s140 + $0x300] sm:$0xff]
                %239 = vst [vmem:[%s141 + $0x180] sm:$0xff] %v238
                %v240 = vld [vmem:[%s140 + $0x308] sm:$0xff]
                %241 = vst [vmem:[%s141 + $0x188] sm:$0xff] %v240
                %v242 = vld [vmem:[%s140 + $0x310] sm:$0xff]
                %243 = vst [vmem:[%s141 + $0x190] sm:$0xff] %v242
                %v244 = vld [vmem:[%s140 + $0x318] sm:$0xff]
                %245 = vst [vmem:[%s141 + $0x198] sm:$0xff] %v244
                %v246 = vld [vmem:[%s140 + $0x340] sm:$0xff]
                %247 = vst [vmem:[%s141 + $0x1a0] sm:$0xff] %v246
                %v248 = vld [vmem:[%s140 + $0x348] sm:$0xff]
                %249 = vst [vmem:[%s141 + $0x1a8] sm:$0xff] %v248
                %v250 = vld [vmem:[%s140 + $0x350] sm:$0xff]
                %251 = vst [vmem:[%s141 + $0x1b0] sm:$0xff] %v250
                %v252 = vld [vmem:[%s140 + $0x358] sm:$0xff]
                %253 = vst [vmem:[%s141 + $0x1b8] sm:$0xff] %v252
                %v254 = vld [vmem:[%s140 + $0x380] sm:$0xff]
                %255 = vst [vmem:[%s141 + $0x1c0] sm:$0xff] %v254
                %v256 = vld [vmem:[%s140 + $0x388] sm:$0xff]
                %257 = vst [vmem:[%s141 + $0x1c8] sm:$0xff] %v256
                %v258 = vld [vmem:[%s140 + $0x390] sm:$0xff]
                %259 = vst [vmem:[%s141 + $0x1d0] sm:$0xff] %v258
                %v260 = vld [vmem:[%s140 + $0x398] sm:$0xff]
                %261 = vst [vmem:[%s141 + $0x1d8] sm:$0xff] %v260
                %v262 = vld [vmem:[%s140 + $0x3c0] sm:$0xff]
                %263 = vst [vmem:[%s141 + $0x1e0] sm:$0xff] %v262
                %v264 = vld [vmem:[%s140 + $0x3c8] sm:$0xff]
                %265 = vst [vmem:[%s141 + $0x1e8] sm:$0xff] %v264
                %v266 = vld [vmem:[%s140 + $0x3d0] sm:$0xff]
                %267 = vst [vmem:[%s141 + $0x1f0] sm:$0xff] %v266
                %v268 = vld [vmem:[%s140 + $0x3d8] sm:$0xff]
                %269 = vst [vmem:[%s141 + $0x1f8] sm:$0xff] %v268
                %v270 = vld [vmem:[%s140 + $0x400] sm:$0xff]
                %271 = vst [vmem:[%s141 + $0x200] sm:$0xff] %v270
                %v272 = vld [vmem:[%s140 + $0x408] sm:$0xff]
                %273 = vst [vmem:[%s141 + $0x208] sm:$0xff] %v272
                %v274 = vld [vmem:[%s140 + $0x410] sm:$0xff]
                %275 = vst [vmem:[%s141 + $0x210] sm:$0xff] %v274
                %v276 = vld [vmem:[%s140 + $0x418] sm:$0xff]
                %277 = vst [vmem:[%s141 + $0x218] sm:$0xff] %v276
                %v278 = vld [vmem:[%s140 + $0x440] sm:$0xff]
                %279 = vst [vmem:[%s141 + $0x220] sm:$0xff] %v278
                %v280 = vld [vmem:[%s140 + $0x448] sm:$0xff]
                %281 = vst [vmem:[%s141 + $0x228] sm:$0xff] %v280
                %v282 = vld [vmem:[%s140 + $0x450] sm:$0xff]
                %283 = vst [vmem:[%s141 + $0x230] sm:$0xff] %v282
                %v284 = vld [vmem:[%s140 + $0x458] sm:$0xff]
                %285 = vst [vmem:[%s141 + $0x238] sm:$0xff] %v284
                %v286 = vld [vmem:[%s140 + $0x480] sm:$0xff]
                %287 = vst [vmem:[%s141 + $0x240] sm:$0xff] %v286
                %v288 = vld [vmem:[%s140 + $0x488] sm:$0xff]
                %289 = vst [vmem:[%s141 + $0x248] sm:$0xff] %v288
                %v290 = vld [vmem:[%s140 + $0x490] sm:$0xff]
                %291 = vst [vmem:[%s141 + $0x250] sm:$0xff] %v290
                %v292 = vld [vmem:[%s140 + $0x498] sm:$0xff]
                %293 = vst [vmem:[%s141 + $0x258] sm:$0xff] %v292
                %v294 = vld [vmem:[%s140 + $0x4c0] sm:$0xff]
                %295 = vst [vmem:[%s141 + $0x260] sm:$0xff] %v294
                %v296 = vld [vmem:[%s140 + $0x4c8] sm:$0xff]
                %297 = vst [vmem:[%s141 + $0x268] sm:$0xff] %v296
                %v298 = vld [vmem:[%s140 + $0x4d0] sm:$0xff]
                %299 = vst [vmem:[%s141 + $0x270] sm:$0xff] %v298
                %v300 = vld [vmem:[%s140 + $0x4d8] sm:$0xff]
                %301 = vst [vmem:[%s141 + $0x278] sm:$0xff] %v300
                %v302 = vld [vmem:[%s140 + $0x500] sm:$0xff]
                %303 = vst [vmem:[%s141 + $0x280] sm:$0xff] %v302
                %v304 = vld [vmem:[%s140 + $0x508] sm:$0xff]
                %305 = vst [vmem:[%s141 + $0x288] sm:$0xff] %v304
                %v306 = vld [vmem:[%s140 + $0x510] sm:$0xff]
                %307 = vst [vmem:[%s141 + $0x290] sm:$0xff] %v306
                %v308 = vld [vmem:[%s140 + $0x518] sm:$0xff]
                %309 = vst [vmem:[%s141 + $0x298] sm:$0xff] %v308
                %v310 = vld [vmem:[%s140 + $0x540] sm:$0xff]
                %311 = vst [vmem:[%s141 + $0x2a0] sm:$0xff] %v310
                %v312 = vld [vmem:[%s140 + $0x548] sm:$0xff]
                %313 = vst [vmem:[%s141 + $0x2a8] sm:$0xff] %v312
                %v314 = vld [vmem:[%s140 + $0x550] sm:$0xff]
                %315 = vst [vmem:[%s141 + $0x2b0] sm:$0xff] %v314
                %v316 = vld [vmem:[%s140 + $0x558] sm:$0xff]
                %317 = vst [vmem:[%s141 + $0x2b8] sm:$0xff] %v316
                %v318 = vld [vmem:[%s140 + $0x580] sm:$0xff]
                %319 = vst [vmem:[%s141 + $0x2c0] sm:$0xff] %v318
                %v320 = vld [vmem:[%s140 + $0x588] sm:$0xff]
                %321 = vst [vmem:[%s141 + $0x2c8] sm:$0xff] %v320
                %v322 = vld [vmem:[%s140 + $0x590] sm:$0xff]
                %323 = vst [vmem:[%s141 + $0x2d0] sm:$0xff] %v322
                %v324 = vld [vmem:[%s140 + $0x598] sm:$0xff]
                %325 = vst [vmem:[%s141 + $0x2d8] sm:$0xff] %v324
                %v326 = vld [vmem:[%s140 + $0x5c0] sm:$0xff]
                %327 = vst [vmem:[%s141 + $0x2e0] sm:$0xff] %v326
                %v328 = vld [vmem:[%s140 + $0x5c8] sm:$0xff]
                %329 = vst [vmem:[%s141 + $0x2e8] sm:$0xff] %v328
                %v330 = vld [vmem:[%s140 + $0x5d0] sm:$0xff]
                %331 = vst [vmem:[%s141 + $0x2f0] sm:$0xff] %v330
                %v332 = vld [vmem:[%s140 + $0x5d8] sm:$0xff]
                %333 = vst [vmem:[%s141 + $0x2f8] sm:$0xff] %v332
                %v334 = vld [vmem:[%s140 + $0x600] sm:$0xff]
                %335 = vst [vmem:[%s141 + $0x300] sm:$0xff] %v334
                %v336 = vld [vmem:[%s140 + $0x608] sm:$0xff]
                %337 = vst [vmem:[%s141 + $0x308] sm:$0xff] %v336
                %v338 = vld [vmem:[%s140 + $0x610] sm:$0xff]
                %339 = vst [vmem:[%s141 + $0x310] sm:$0xff] %v338
                %v340 = vld [vmem:[%s140 + $0x618] sm:$0xff]
                %341 = vst [vmem:[%s141 + $0x318] sm:$0xff] %v340
                %v342 = vld [vmem:[%s140 + $0x640] sm:$0xff]
                %343 = vst [vmem:[%s141 + $0x320] sm:$0xff] %v342
                %v344 = vld [vmem:[%s140 + $0x648] sm:$0xff]
                %345 = vst [vmem:[%s141 + $0x328] sm:$0xff] %v344
                %v346 = vld [vmem:[%s140 + $0x650] sm:$0xff]
                %347 = vst [vmem:[%s141 + $0x330] sm:$0xff] %v346
                %v348 = vld [vmem:[%s140 + $0x658] sm:$0xff]
                %349 = vst [vmem:[%s141 + $0x338] sm:$0xff] %v348
                %v350 = vld [vmem:[%s140 + $0x680] sm:$0xff]
                %351 = vst [vmem:[%s141 + $0x340] sm:$0xff] %v350
                %v352 = vld [vmem:[%s140 + $0x688] sm:$0xff]
                %353 = vst [vmem:[%s141 + $0x348] sm:$0xff] %v352
                %v354 = vld [vmem:[%s140 + $0x690] sm:$0xff]
                %355 = vst [vmem:[%s141 + $0x350] sm:$0xff] %v354
                %v356 = vld [vmem:[%s140 + $0x698] sm:$0xff]
                %357 = vst [vmem:[%s141 + $0x358] sm:$0xff] %v356
                %v358 = vld [vmem:[%s140 + $0x6c0] sm:$0xff]
                %359 = vst [vmem:[%s141 + $0x360] sm:$0xff] %v358
                %v360 = vld [vmem:[%s140 + $0x6c8] sm:$0xff]
                %361 = vst [vmem:[%s141 + $0x368] sm:$0xff] %v360
                %v362 = vld [vmem:[%s140 + $0x6d0] sm:$0xff]
                %363 = vst [vmem:[%s141 + $0x370] sm:$0xff] %v362
                %v364 = vld [vmem:[%s140 + $0x6d8] sm:$0xff]
                %365 = vst [vmem:[%s141 + $0x378] sm:$0xff] %v364
                %v366 = vld [vmem:[%s140 + $0x700] sm:$0xff]
                %367 = vst [vmem:[%s141 + $0x380] sm:$0xff] %v366
                %v368 = vld [vmem:[%s140 + $0x708] sm:$0xff]
                %369 = vst [vmem:[%s141 + $0x388] sm:$0xff] %v368
                %v370 = vld [vmem:[%s140 + $0x710] sm:$0xff]
                %371 = vst [vmem:[%s141 + $0x390] sm:$0xff] %v370
                %v372 = vld [vmem:[%s140 + $0x718] sm:$0xff]
                %373 = vst [vmem:[%s141 + $0x398] sm:$0xff] %v372
                %v374 = vld [vmem:[%s140 + $0x740] sm:$0xff]
                %375 = vst [vmem:[%s141 + $0x3a0] sm:$0xff] %v374
                %v376 = vld [vmem:[%s140 + $0x748] sm:$0xff]
                %377 = vst [vmem:[%s141 + $0x3a8] sm:$0xff] %v376
                %v378 = vld [vmem:[%s140 + $0x750] sm:$0xff]
                %379 = vst [vmem:[%s141 + $0x3b0] sm:$0xff] %v378
                %v380 = vld [vmem:[%s140 + $0x758] sm:$0xff]
                %381 = vst [vmem:[%s141 + $0x3b8] sm:$0xff] %v380
                %v382 = vld [vmem:[%s140 + $0x780] sm:$0xff]
                %383 = vst [vmem:[%s141 + $0x3c0] sm:$0xff] %v382
                %v384 = vld [vmem:[%s140 + $0x788] sm:$0xff]
                %385 = vst [vmem:[%s141 + $0x3c8] sm:$0xff] %v384
                %v386 = vld [vmem:[%s140 + $0x790] sm:$0xff]
                %387 = vst [vmem:[%s141 + $0x3d0] sm:$0xff] %v386
                %v388 = vld [vmem:[%s140 + $0x798] sm:$0xff]
                %389 = vst [vmem:[%s141 + $0x3d8] sm:$0xff] %v388
                %v390 = vld [vmem:[%s140 + $0x7c0] sm:$0xff]
                %391 = vst [vmem:[%s141 + $0x3e0] sm:$0xff] %v390
                %v392 = vld [vmem:[%s140 + $0x7c8] sm:$0xff]
                %393 = vst [vmem:[%s141 + $0x3e8] sm:$0xff] %v392
                %v394 = vld [vmem:[%s140 + $0x7d0] sm:$0xff]
                %395 = vst [vmem:[%s141 + $0x3f0] sm:$0xff] %v394
                %v396 = vld [vmem:[%s140 + $0x7d8] sm:$0xff]
                %397 = vst [vmem:[%s141 + $0x3f8] sm:$0xff] %v396
                %v398 = vld [vmem:[%s140 + $0x800] sm:$0xff]
                %399 = vst [vmem:[%s141 + $0x400] sm:$0xff] %v398
                %v400 = vld [vmem:[%s140 + $0x808] sm:$0xff]
                %401 = vst [vmem:[%s141 + $0x408] sm:$0xff] %v400
                %v402 = vld [vmem:[%s140 + $0x810] sm:$0xff]
                %403 = vst [vmem:[%s141 + $0x410] sm:$0xff] %v402
                %v404 = vld [vmem:[%s140 + $0x818] sm:$0xff]
                %405 = vst [vmem:[%s141 + $0x418] sm:$0xff] %v404
                %v406 = vld [vmem:[%s140 + $0x840] sm:$0xff]
                %407 = vst [vmem:[%s141 + $0x420] sm:$0xff] %v406
                %v408 = vld [vmem:[%s140 + $0x848] sm:$0xff]
                %409 = vst [vmem:[%s141 + $0x428] sm:$0xff] %v408
                %v410 = vld [vmem:[%s140 + $0x850] sm:$0xff]
                %411 = vst [vmem:[%s141 + $0x430] sm:$0xff] %v410
                %v412 = vld [vmem:[%s140 + $0x858] sm:$0xff]
                %413 = vst [vmem:[%s141 + $0x438] sm:$0xff] %v412
                %v414 = vld [vmem:[%s140 + $0x880] sm:$0xff]
                %415 = vst [vmem:[%s141 + $0x440] sm:$0xff] %v414
                %v416 = vld [vmem:[%s140 + $0x888] sm:$0xff]
                %417 = vst [vmem:[%s141 + $0x448] sm:$0xff] %v416
                %v418 = vld [vmem:[%s140 + $0x890] sm:$0xff]
                %419 = vst [vmem:[%s141 + $0x450] sm:$0xff] %v418
                %v420 = vld [vmem:[%s140 + $0x898] sm:$0xff]
                %421 = vst [vmem:[%s141 + $0x458] sm:$0xff] %v420
                %v422 = vld [vmem:[%s140 + $0x8c0] sm:$0xff]
                %423 = vst [vmem:[%s141 + $0x460] sm:$0xff] %v422
                %v424 = vld [vmem:[%s140 + $0x8c8] sm:$0xff]
                %425 = vst [vmem:[%s141 + $0x468] sm:$0xff] %v424
                %v426 = vld [vmem:[%s140 + $0x8d0] sm:$0xff]
                %427 = vst [vmem:[%s141 + $0x470] sm:$0xff] %v426
                %v428 = vld [vmem:[%s140 + $0x8d8] sm:$0xff]
                %429 = vst [vmem:[%s141 + $0x478] sm:$0xff] %v428
                %v430 = vld [vmem:[%s140 + $0x900] sm:$0xff]
                %431 = vst [vmem:[%s141 + $0x480] sm:$0xff] %v430
                %v432 = vld [vmem:[%s140 + $0x908] sm:$0xff]
                %433 = vst [vmem:[%s141 + $0x488] sm:$0xff] %v432
                %v434 = vld [vmem:[%s140 + $0x910] sm:$0xff]
                %435 = vst [vmem:[%s141 + $0x490] sm:$0xff] %v434
                %v436 = vld [vmem:[%s140 + $0x918] sm:$0xff]
                %437 = vst [vmem:[%s141 + $0x498] sm:$0xff] %v436
                %v438 = vld [vmem:[%s140 + $0x940] sm:$0xff]
                %439 = vst [vmem:[%s141 + $0x4a0] sm:$0xff] %v438
                %v440 = vld [vmem:[%s140 + $0x948] sm:$0xff]
                %441 = vst [vmem:[%s141 + $0x4a8] sm:$0xff] %v440
                %v442 = vld [vmem:[%s140 + $0x950] sm:$0xff]
                %443 = vst [vmem:[%s141 + $0x4b0] sm:$0xff] %v442
                %v444 = vld [vmem:[%s140 + $0x958] sm:$0xff]
                %445 = vst [vmem:[%s141 + $0x4b8] sm:$0xff] %v444
                %v446 = vld [vmem:[%s140 + $0x980] sm:$0xff]
                %447 = vst [vmem:[%s141 + $0x4c0] sm:$0xff] %v446
                %v448 = vld [vmem:[%s140 + $0x988] sm:$0xff]
                %449 = vst [vmem:[%s141 + $0x4c8] sm:$0xff] %v448
                %v450 = vld [vmem:[%s140 + $0x990] sm:$0xff]
                %451 = vst [vmem:[%s141 + $0x4d0] sm:$0xff] %v450
                %v452 = vld [vmem:[%s140 + $0x998] sm:$0xff]
                %453 = vst [vmem:[%s141 + $0x4d8] sm:$0xff] %v452
                %v454 = vld [vmem:[%s140 + $0x9c0] sm:$0xff]
                %455 = vst [vmem:[%s141 + $0x4e0] sm:$0xff] %v454
                %v456 = vld [vmem:[%s140 + $0x9c8] sm:$0xff]
                %457 = vst [vmem:[%s141 + $0x4e8] sm:$0xff] %v456
                %v458 = vld [vmem:[%s140 + $0x9d0] sm:$0xff]
                %459 = vst [vmem:[%s141 + $0x4f0] sm:$0xff] %v458
                %v460 = vld [vmem:[%s140 + $0x9d8] sm:$0xff]
                %461 = vst [vmem:[%s141 + $0x4f8] sm:$0xff] %v460
                %v462 = vld [vmem:[%s140 + $0xa00] sm:$0xff]
                %463 = vst [vmem:[%s141 + $0x500] sm:$0xff] %v462
                %v464 = vld [vmem:[%s140 + $0xa08] sm:$0xff]
                %465 = vst [vmem:[%s141 + $0x508] sm:$0xff] %v464
                %v466 = vld [vmem:[%s140 + $0xa10] sm:$0xff]
                %467 = vst [vmem:[%s141 + $0x510] sm:$0xff] %v466
                %v468 = vld [vmem:[%s140 + $0xa18] sm:$0xff]
                %469 = vst [vmem:[%s141 + $0x518] sm:$0xff] %v468
                %v470 = vld [vmem:[%s140 + $0xa40] sm:$0xff]
                %471 = vst [vmem:[%s141 + $0x520] sm:$0xff] %v470
                %v472 = vld [vmem:[%s140 + $0xa48] sm:$0xff]
                %473 = vst [vmem:[%s141 + $0x528] sm:$0xff] %v472
                %v474 = vld [vmem:[%s140 + $0xa50] sm:$0xff]
                %475 = vst [vmem:[%s141 + $0x530] sm:$0xff] %v474
                %v476 = vld [vmem:[%s140 + $0xa58] sm:$0xff]
                %477 = vst [vmem:[%s141 + $0x538] sm:$0xff] %v476
                %v478 = vld [vmem:[%s140 + $0xa80] sm:$0xff]
                %479 = vst [vmem:[%s141 + $0x540] sm:$0xff] %v478
                %v480 = vld [vmem:[%s140 + $0xa88] sm:$0xff]
                %481 = vst [vmem:[%s141 + $0x548] sm:$0xff] %v480
                %v482 = vld [vmem:[%s140 + $0xa90] sm:$0xff]
                %483 = vst [vmem:[%s141 + $0x550] sm:$0xff] %v482
                %v484 = vld [vmem:[%s140 + $0xa98] sm:$0xff]
                %485 = vst [vmem:[%s141 + $0x558] sm:$0xff] %v484
                %v486 = vld [vmem:[%s140 + $0xac0] sm:$0xff]
                %487 = vst [vmem:[%s141 + $0x560] sm:$0xff] %v486
                %v488 = vld [vmem:[%s140 + $0xac8] sm:$0xff]
                %489 = vst [vmem:[%s141 + $0x568] sm:$0xff] %v488
                %v490 = vld [vmem:[%s140 + $0xad0] sm:$0xff]
                %491 = vst [vmem:[%s141 + $0x570] sm:$0xff] %v490
                %v492 = vld [vmem:[%s140 + $0xad8] sm:$0xff]
                %493 = vst [vmem:[%s141 + $0x578] sm:$0xff] %v492
                %v494 = vld [vmem:[%s140 + $0xb00] sm:$0xff]
                %495 = vst [vmem:[%s141 + $0x580] sm:$0xff] %v494
                %v496 = vld [vmem:[%s140 + $0xb08] sm:$0xff]
                %497 = vst [vmem:[%s141 + $0x588] sm:$0xff] %v496
                %v498 = vld [vmem:[%s140 + $0xb10] sm:$0xff]
                %499 = vst [vmem:[%s141 + $0x590] sm:$0xff] %v498
                %v500 = vld [vmem:[%s140 + $0xb18] sm:$0xff]
                %501 = vst [vmem:[%s141 + $0x598] sm:$0xff] %v500
                %v502 = vld [vmem:[%s140 + $0xb40] sm:$0xff]
                %503 = vst [vmem:[%s141 + $0x5a0] sm:$0xff] %v502
                %v504 = vld [vmem:[%s140 + $0xb48] sm:$0xff]
                %505 = vst [vmem:[%s141 + $0x5a8] sm:$0xff] %v504
                %v506 = vld [vmem:[%s140 + $0xb50] sm:$0xff]
                %507 = vst [vmem:[%s141 + $0x5b0] sm:$0xff] %v506
                %v508 = vld [vmem:[%s140 + $0xb58] sm:$0xff]
                %509 = vst [vmem:[%s141 + $0x5b8] sm:$0xff] %v508
                %v510 = vld [vmem:[%s140 + $0xb80] sm:$0xff]
                %511 = vst [vmem:[%s141 + $0x5c0] sm:$0xff] %v510
                %v512 = vld [vmem:[%s140 + $0xb88] sm:$0xff]
                %513 = vst [vmem:[%s141 + $0x5c8] sm:$0xff] %v512
                %v514 = vld [vmem:[%s140 + $0xb90] sm:$0xff]
                %515 = vst [vmem:[%s141 + $0x5d0] sm:$0xff] %v514
                %v516 = vld [vmem:[%s140 + $0xb98] sm:$0xff]
                %517 = vst [vmem:[%s141 + $0x5d8] sm:$0xff] %v516
                %v518 = vld [vmem:[%s140 + $0xbc0] sm:$0xff]
                %519 = vst [vmem:[%s141 + $0x5e0] sm:$0xff] %v518
                %v520 = vld [vmem:[%s140 + $0xbc8] sm:$0xff]
                %521 = vst [vmem:[%s141 + $0x5e8] sm:$0xff] %v520
                %v522 = vld [vmem:[%s140 + $0xbd0] sm:$0xff]
                %523 = vst [vmem:[%s141 + $0x5f0] sm:$0xff] %v522
                %v524 = vld [vmem:[%s140 + $0xbd8] sm:$0xff]
                %525 = vst [vmem:[%s141 + $0x5f8] sm:$0xff] %v524
                %v526 = vld [vmem:[%s140 + $0xc00] sm:$0xff]
                %527 = vst [vmem:[%s141 + $0x600] sm:$0xff] %v526
                %v528 = vld [vmem:[%s140 + $0xc08] sm:$0xff]
                %529 = vst [vmem:[%s141 + $0x608] sm:$0xff] %v528
                %v530 = vld [vmem:[%s140 + $0xc10] sm:$0xff]
                %531 = vst [vmem:[%s141 + $0x610] sm:$0xff] %v530
                %v532 = vld [vmem:[%s140 + $0xc18] sm:$0xff]
                %533 = vst [vmem:[%s141 + $0x618] sm:$0xff] %v532
                %v534 = vld [vmem:[%s140 + $0xc40] sm:$0xff]
                %535 = vst [vmem:[%s141 + $0x620] sm:$0xff] %v534
                %v536 = vld [vmem:[%s140 + $0xc48] sm:$0xff]
                %537 = vst [vmem:[%s141 + $0x628] sm:$0xff] %v536
                %v538 = vld [vmem:[%s140 + $0xc50] sm:$0xff]
                %539 = vst [vmem:[%s141 + $0x630] sm:$0xff] %v538
                %v540 = vld [vmem:[%s140 + $0xc58] sm:$0xff]
                %541 = vst [vmem:[%s141 + $0x638] sm:$0xff] %v540
                %v542 = vld [vmem:[%s140 + $0xc80] sm:$0xff]
                %543 = vst [vmem:[%s141 + $0x640] sm:$0xff] %v542
                %v544 = vld [vmem:[%s140 + $0xc88] sm:$0xff]
                %545 = vst [vmem:[%s141 + $0x648] sm:$0xff] %v544
                %v546 = vld [vmem:[%s140 + $0xc90] sm:$0xff]
                %547 = vst [vmem:[%s141 + $0x650] sm:$0xff] %v546
                %v548 = vld [vmem:[%s140 + $0xc98] sm:$0xff]
                %549 = vst [vmem:[%s141 + $0x658] sm:$0xff] %v548
                %v550 = vld [vmem:[%s140 + $0xcc0] sm:$0xff]
                %551 = vst [vmem:[%s141 + $0x660] sm:$0xff] %v550
                %v552 = vld [vmem:[%s140 + $0xcc8] sm:$0xff]
                %553 = vst [vmem:[%s141 + $0x668] sm:$0xff] %v552
                %v554 = vld [vmem:[%s140 + $0xcd0] sm:$0xff]
                %555 = vst [vmem:[%s141 + $0x670] sm:$0xff] %v554
                %v556 = vld [vmem:[%s140 + $0xcd8] sm:$0xff]
                %557 = vst [vmem:[%s141 + $0x678] sm:$0xff] %v556
                %v558 = vld [vmem:[%s140 + $0xd00] sm:$0xff]
                %559 = vst [vmem:[%s141 + $0x680] sm:$0xff] %v558
                %v560 = vld [vmem:[%s140 + $0xd08] sm:$0xff]
                %561 = vst [vmem:[%s141 + $0x688] sm:$0xff] %v560
                %v562 = vld [vmem:[%s140 + $0xd10] sm:$0xff]
                %563 = vst [vmem:[%s141 + $0x690] sm:$0xff] %v562
                %v564 = vld [vmem:[%s140 + $0xd18] sm:$0xff]
                %565 = vst [vmem:[%s141 + $0x698] sm:$0xff] %v564
                %v566 = vld [vmem:[%s140 + $0xd40] sm:$0xff]
                %567 = vst [vmem:[%s141 + $0x6a0] sm:$0xff] %v566
                %v568 = vld [vmem:[%s140 + $0xd48] sm:$0xff]
                %569 = vst [vmem:[%s141 + $0x6a8] sm:$0xff] %v568
                %v570 = vld [vmem:[%s140 + $0xd50] sm:$0xff]
                %571 = vst [vmem:[%s141 + $0x6b0] sm:$0xff] %v570
                %v572 = vld [vmem:[%s140 + $0xd58] sm:$0xff]
                %573 = vst [vmem:[%s141 + $0x6b8] sm:$0xff] %v572
                %v574 = vld [vmem:[%s140 + $0xd80] sm:$0xff]
                %575 = vst [vmem:[%s141 + $0x6c0] sm:$0xff] %v574
                %v576 = vld [vmem:[%s140 + $0xd88] sm:$0xff]
                %577 = vst [vmem:[%s141 + $0x6c8] sm:$0xff] %v576
                %v578 = vld [vmem:[%s140 + $0xd90] sm:$0xff]
                %579 = vst [vmem:[%s141 + $0x6d0] sm:$0xff] %v578
                %v580 = vld [vmem:[%s140 + $0xd98] sm:$0xff]
                %581 = vst [vmem:[%s141 + $0x6d8] sm:$0xff] %v580
                %v582 = vld [vmem:[%s140 + $0xdc0] sm:$0xff]
                %583 = vst [vmem:[%s141 + $0x6e0] sm:$0xff] %v582
                %v584 = vld [vmem:[%s140 + $0xdc8] sm:$0xff]
                %585 = vst [vmem:[%s141 + $0x6e8] sm:$0xff] %v584
                %v586 = vld [vmem:[%s140 + $0xdd0] sm:$0xff]
                %587 = vst [vmem:[%s141 + $0x6f0] sm:$0xff] %v586
                %v588 = vld [vmem:[%s140 + $0xdd8] sm:$0xff]
                %589 = vst [vmem:[%s141 + $0x6f8] sm:$0xff] %v588
                %v590 = vld [vmem:[%s140 + $0xe00] sm:$0xff]
                %591 = vst [vmem:[%s141 + $0x700] sm:$0xff] %v590
                %v592 = vld [vmem:[%s140 + $0xe08] sm:$0xff]
                %593 = vst [vmem:[%s141 + $0x708] sm:$0xff] %v592
                %v594 = vld [vmem:[%s140 + $0xe10] sm:$0xff]
                %595 = vst [vmem:[%s141 + $0x710] sm:$0xff] %v594
                %v596 = vld [vmem:[%s140 + $0xe18] sm:$0xff]
                %597 = vst [vmem:[%s141 + $0x718] sm:$0xff] %v596
                %v598 = vld [vmem:[%s140 + $0xe40] sm:$0xff]
                %599 = vst [vmem:[%s141 + $0x720] sm:$0xff] %v598
                %v600 = vld [vmem:[%s140 + $0xe48] sm:$0xff]
                %601 = vst [vmem:[%s141 + $0x728] sm:$0xff] %v600
                %v602 = vld [vmem:[%s140 + $0xe50] sm:$0xff]
                %603 = vst [vmem:[%s141 + $0x730] sm:$0xff] %v602
                %v604 = vld [vmem:[%s140 + $0xe58] sm:$0xff]
                %605 = vst [vmem:[%s141 + $0x738] sm:$0xff] %v604
                %v606 = vld [vmem:[%s140 + $0xe80] sm:$0xff]
                %607 = vst [vmem:[%s141 + $0x740] sm:$0xff] %v606
                %v608 = vld [vmem:[%s140 + $0xe88] sm:$0xff]
                %609 = vst [vmem:[%s141 + $0x748] sm:$0xff] %v608
                %v610 = vld [vmem:[%s140 + $0xe90] sm:$0xff]
                %611 = vst [vmem:[%s141 + $0x750] sm:$0xff] %v610
                %v612 = vld [vmem:[%s140 + $0xe98] sm:$0xff]
                %613 = vst [vmem:[%s141 + $0x758] sm:$0xff] %v612
                %v614 = vld [vmem:[%s140 + $0xec0] sm:$0xff]
                %615 = vst [vmem:[%s141 + $0x760] sm:$0xff] %v614
                %v616 = vld [vmem:[%s140 + $0xec8] sm:$0xff]
                %617 = vst [vmem:[%s141 + $0x768] sm:$0xff] %v616
                %v618 = vld [vmem:[%s140 + $0xed0] sm:$0xff]
                %619 = vst [vmem:[%s141 + $0x770] sm:$0xff] %v618
                %v620 = vld [vmem:[%s140 + $0xed8] sm:$0xff]
                %621 = vst [vmem:[%s141 + $0x778] sm:$0xff] %v620
                %v622 = vld [vmem:[%s140 + $0xf00] sm:$0xff]
                %623 = vst [vmem:[%s141 + $0x780] sm:$0xff] %v622
                %v624 = vld [vmem:[%s140 + $0xf08] sm:$0xff]
                %625 = vst [vmem:[%s141 + $0x788] sm:$0xff] %v624
                %v626 = vld [vmem:[%s140 + $0xf10] sm:$0xff]
                %627 = vst [vmem:[%s141 + $0x790] sm:$0xff] %v626
                %v628 = vld [vmem:[%s140 + $0xf18] sm:$0xff]
                %629 = vst [vmem:[%s141 + $0x798] sm:$0xff] %v628
                %v630 = vld [vmem:[%s140 + $0xf40] sm:$0xff]
                %631 = vst [vmem:[%s141 + $0x7a0] sm:$0xff] %v630
                %v632 = vld [vmem:[%s140 + $0xf48] sm:$0xff]
                %633 = vst [vmem:[%s141 + $0x7a8] sm:$0xff] %v632
                %v634 = vld [vmem:[%s140 + $0xf50] sm:$0xff]
                %635 = vst [vmem:[%s141 + $0x7b0] sm:$0xff] %v634
                %v636 = vld [vmem:[%s140 + $0xf58] sm:$0xff]
                %637 = vst [vmem:[%s141 + $0x7b8] sm:$0xff] %v636
                %v638 = vld [vmem:[%s140 + $0xf80] sm:$0xff]
                %639 = vst [vmem:[%s141 + $0x7c0] sm:$0xff] %v638
                %v640 = vld [vmem:[%s140 + $0xf88] sm:$0xff]
                %641 = vst [vmem:[%s141 + $0x7c8] sm:$0xff] %v640
                %v642 = vld [vmem:[%s140 + $0xf90] sm:$0xff]
                %643 = vst [vmem:[%s141 + $0x7d0] sm:$0xff] %v642
                %v644 = vld [vmem:[%s140 + $0xf98] sm:$0xff]
                %645 = vst [vmem:[%s141 + $0x7d8] sm:$0xff] %v644
                %v646 = vld [vmem:[%s140 + $0xfc0] sm:$0xff]
                %647 = vst [vmem:[%s141 + $0x7e0] sm:$0xff] %v646
                %v648 = vld [vmem:[%s140 + $0xfc8] sm:$0xff]
                %649 = vst [vmem:[%s141 + $0x7e8] sm:$0xff] %v648
                %v650 = vld [vmem:[%s140 + $0xfd0] sm:$0xff]
                %651 = vst [vmem:[%s141 + $0x7f0] sm:$0xff] %v650
                %v652 = vld [vmem:[%s140 + $0xfd8] sm:$0xff]
                %653 = vst [vmem:[%s141 + $0x7f8] sm:$0xff] %v652
                %v654 = vld [vmem:[%s140 + $0x1000] sm:$0xff]
                %655 = vst [vmem:[%s141 + $0x800] sm:$0xff] %v654
                %v656 = vld [vmem:[%s140 + $0x1008] sm:$0xff]
                %657 = vst [vmem:[%s141 + $0x808] sm:$0xff] %v656
                %v658 = vld [vmem:[%s140 + $0x1010] sm:$0xff]
                %659 = vst [vmem:[%s141 + $0x810] sm:$0xff] %v658
                %v660 = vld [vmem:[%s140 + $0x1018] sm:$0xff]
                %661 = vst [vmem:[%s141 + $0x818] sm:$0xff] %v660
                %v662 = vld [vmem:[%s140 + $0x1040] sm:$0xff]
                %663 = vst [vmem:[%s141 + $0x820] sm:$0xff] %v662
                %v664 = vld [vmem:[%s140 + $0x1048] sm:$0xff]
                %665 = vst [vmem:[%s141 + $0x828] sm:$0xff] %v664
                %v666 = vld [vmem:[%s140 + $0x1050] sm:$0xff]
                %667 = vst [vmem:[%s141 + $0x830] sm:$0xff] %v666
                %v668 = vld [vmem:[%s140 + $0x1058] sm:$0xff]
                %669 = vst [vmem:[%s141 + $0x838] sm:$0xff] %v668
                %v670 = vld [vmem:[%s140 + $0x1080] sm:$0xff]
                %671 = vst [vmem:[%s141 + $0x840] sm:$0xff] %v670
                %v672 = vld [vmem:[%s140 + $0x1088] sm:$0xff]
                %673 = vst [vmem:[%s141 + $0x848] sm:$0xff] %v672
                %v674 = vld [vmem:[%s140 + $0x1090] sm:$0xff]
                %675 = vst [vmem:[%s141 + $0x850] sm:$0xff] %v674
                %v676 = vld [vmem:[%s140 + $0x1098] sm:$0xff]
                %677 = vst [vmem:[%s141 + $0x858] sm:$0xff] %v676
                %v678 = vld [vmem:[%s140 + $0x10c0] sm:$0xff]
                %679 = vst [vmem:[%s141 + $0x860] sm:$0xff] %v678
                %v680 = vld [vmem:[%s140 + $0x10c8] sm:$0xff]
                %681 = vst [vmem:[%s141 + $0x868] sm:$0xff] %v680
                %v682 = vld [vmem:[%s140 + $0x10d0] sm:$0xff]
                %683 = vst [vmem:[%s141 + $0x870] sm:$0xff] %v682
                %v684 = vld [vmem:[%s140 + $0x10d8] sm:$0xff]
                %685 = vst [vmem:[%s141 + $0x878] sm:$0xff] %v684
                %v686 = vld [vmem:[%s140 + $0x1100] sm:$0xff]
                %687 = vst [vmem:[%s141 + $0x880] sm:$0xff] %v686
                %v688 = vld [vmem:[%s140 + $0x1108] sm:$0xff]
                %689 = vst [vmem:[%s141 + $0x888] sm:$0xff] %v688
                %v690 = vld [vmem:[%s140 + $0x1110] sm:$0xff]
                %691 = vst [vmem:[%s141 + $0x890] sm:$0xff] %v690
                %v692 = vld [vmem:[%s140 + $0x1118] sm:$0xff]
                %693 = vst [vmem:[%s141 + $0x898] sm:$0xff] %v692
                %v694 = vld [vmem:[%s140 + $0x1140] sm:$0xff]
                %695 = vst [vmem:[%s141 + $0x8a0] sm:$0xff] %v694
                %v696 = vld [vmem:[%s140 + $0x1148] sm:$0xff]
                %697 = vst [vmem:[%s141 + $0x8a8] sm:$0xff] %v696
                %v698 = vld [vmem:[%s140 + $0x1150] sm:$0xff]
                %699 = vst [vmem:[%s141 + $0x8b0] sm:$0xff] %v698
                %v700 = vld [vmem:[%s140 + $0x1158] sm:$0xff]
                %701 = vst [vmem:[%s141 + $0x8b8] sm:$0xff] %v700
                %v702 = vld [vmem:[%s140 + $0x1180] sm:$0xff]
                %703 = vst [vmem:[%s141 + $0x8c0] sm:$0xff] %v702
                %v704 = vld [vmem:[%s140 + $0x1188] sm:$0xff]
                %705 = vst [vmem:[%s141 + $0x8c8] sm:$0xff] %v704
                %v706 = vld [vmem:[%s140 + $0x1190] sm:$0xff]
                %707 = vst [vmem:[%s141 + $0x8d0] sm:$0xff] %v706
                %v708 = vld [vmem:[%s140 + $0x1198] sm:$0xff]
                %709 = vst [vmem:[%s141 + $0x8d8] sm:$0xff] %v708
                %v710 = vld [vmem:[%s140 + $0x11c0] sm:$0xff]
                %711 = vst [vmem:[%s141 + $0x8e0] sm:$0xff] %v710
                %v712 = vld [vmem:[%s140 + $0x11c8] sm:$0xff]
                %713 = vst [vmem:[%s141 + $0x8e8] sm:$0xff] %v712
                %v714 = vld [vmem:[%s140 + $0x11d0] sm:$0xff]
                %715 = vst [vmem:[%s141 + $0x8f0] sm:$0xff] %v714
                %v716 = vld [vmem:[%s140 + $0x11d8] sm:$0xff]
                %717 = vst [vmem:[%s141 + $0x8f8] sm:$0xff] %v716
                %v718 = vld [vmem:[%s140 + $0x1200] sm:$0xff]
                %719 = vst [vmem:[%s141 + $0x900] sm:$0xff] %v718
                %v720 = vld [vmem:[%s140 + $0x1208] sm:$0xff]
                %721 = vst [vmem:[%s141 + $0x908] sm:$0xff] %v720
                %v722 = vld [vmem:[%s140 + $0x1210] sm:$0xff]
                %723 = vst [vmem:[%s141 + $0x910] sm:$0xff] %v722
                %v724 = vld [vmem:[%s140 + $0x1218] sm:$0xff]
                %725 = vst [vmem:[%s141 + $0x918] sm:$0xff] %v724
                %v726 = vld [vmem:[%s140 + $0x1240] sm:$0xff]
                %727 = vst [vmem:[%s141 + $0x920] sm:$0xff] %v726
                %v728 = vld [vmem:[%s140 + $0x1248] sm:$0xff]
                %729 = vst [vmem:[%s141 + $0x928] sm:$0xff] %v728
                %v730 = vld [vmem:[%s140 + $0x1250] sm:$0xff]
                %731 = vst [vmem:[%s141 + $0x930] sm:$0xff] %v730
                %v732 = vld [vmem:[%s140 + $0x1258] sm:$0xff]
                %733 = vst [vmem:[%s141 + $0x938] sm:$0xff] %v732
                %v734 = vld [vmem:[%s140 + $0x1280] sm:$0xff]
                %735 = vst [vmem:[%s141 + $0x940] sm:$0xff] %v734
                %v736 = vld [vmem:[%s140 + $0x1288] sm:$0xff]
                %737 = vst [vmem:[%s141 + $0x948] sm:$0xff] %v736
                %v738 = vld [vmem:[%s140 + $0x1290] sm:$0xff]
                %739 = vst [vmem:[%s141 + $0x950] sm:$0xff] %v738
                %v740 = vld [vmem:[%s140 + $0x1298] sm:$0xff]
                %741 = vst [vmem:[%s141 + $0x958] sm:$0xff] %v740
                %v742 = vld [vmem:[%s140 + $0x12c0] sm:$0xff]
                %743 = vst [vmem:[%s141 + $0x960] sm:$0xff] %v742
                %v744 = vld [vmem:[%s140 + $0x12c8] sm:$0xff]
                %745 = vst [vmem:[%s141 + $0x968] sm:$0xff] %v744
                %v746 = vld [vmem:[%s140 + $0x12d0] sm:$0xff]
                %747 = vst [vmem:[%s141 + $0x970] sm:$0xff] %v746
                %v748 = vld [vmem:[%s140 + $0x12d8] sm:$0xff]
                %749 = vst [vmem:[%s141 + $0x978] sm:$0xff] %v748
                %v750 = vld [vmem:[%s140 + $0x1300] sm:$0xff]
                %751 = vst [vmem:[%s141 + $0x980] sm:$0xff] %v750
                %v752 = vld [vmem:[%s140 + $0x1308] sm:$0xff]
                %753 = vst [vmem:[%s141 + $0x988] sm:$0xff] %v752
                %v754 = vld [vmem:[%s140 + $0x1310] sm:$0xff]
                %755 = vst [vmem:[%s141 + $0x990] sm:$0xff] %v754
                %v756 = vld [vmem:[%s140 + $0x1318] sm:$0xff]
                %757 = vst [vmem:[%s141 + $0x998] sm:$0xff] %v756
                %v758 = vld [vmem:[%s140 + $0x1340] sm:$0xff]
                %759 = vst [vmem:[%s141 + $0x9a0] sm:$0xff] %v758
                %v760 = vld [vmem:[%s140 + $0x1348] sm:$0xff]
                %761 = vst [vmem:[%s141 + $0x9a8] sm:$0xff] %v760
                %v762 = vld [vmem:[%s140 + $0x1350] sm:$0xff]
                %763 = vst [vmem:[%s141 + $0x9b0] sm:$0xff] %v762
                %v764 = vld [vmem:[%s140 + $0x1358] sm:$0xff]
                %765 = vst [vmem:[%s141 + $0x9b8] sm:$0xff] %v764
                %v766 = vld [vmem:[%s140 + $0x1380] sm:$0xff]
                %767 = vst [vmem:[%s141 + $0x9c0] sm:$0xff] %v766
                %v768 = vld [vmem:[%s140 + $0x1388] sm:$0xff]
                %769 = vst [vmem:[%s141 + $0x9c8] sm:$0xff] %v768
                %v770 = vld [vmem:[%s140 + $0x1390] sm:$0xff]
                %771 = vst [vmem:[%s141 + $0x9d0] sm:$0xff] %v770
                %v772 = vld [vmem:[%s140 + $0x1398] sm:$0xff]
                %773 = vst [vmem:[%s141 + $0x9d8] sm:$0xff] %v772
                %v774 = vld [vmem:[%s140 + $0x13c0] sm:$0xff]
                %775 = vst [vmem:[%s141 + $0x9e0] sm:$0xff] %v774
                %v776 = vld [vmem:[%s140 + $0x13c8] sm:$0xff]
                %777 = vst [vmem:[%s141 + $0x9e8] sm:$0xff] %v776
                %v778 = vld [vmem:[%s140 + $0x13d0] sm:$0xff]
                %779 = vst [vmem:[%s141 + $0x9f0] sm:$0xff] %v778
                %v780 = vld [vmem:[%s140 + $0x13d8] sm:$0xff]
                %781 = vst [vmem:[%s141 + $0x9f8] sm:$0xff] %v780
                %v782 = vld [vmem:[%s140 + $0x1400] sm:$0xff]
                %783 = vst [vmem:[%s141 + $0xa00] sm:$0xff] %v782
                %v784 = vld [vmem:[%s140 + $0x1408] sm:$0xff]
                %785 = vst [vmem:[%s141 + $0xa08] sm:$0xff] %v784
                %v786 = vld [vmem:[%s140 + $0x1410] sm:$0xff]
                %787 = vst [vmem:[%s141 + $0xa10] sm:$0xff] %v786
                %v788 = vld [vmem:[%s140 + $0x1418] sm:$0xff]
                %789 = vst [vmem:[%s141 + $0xa18] sm:$0xff] %v788
                %v790 = vld [vmem:[%s140 + $0x1440] sm:$0xff]
                %791 = vst [vmem:[%s141 + $0xa20] sm:$0xff] %v790
                %v792 = vld [vmem:[%s140 + $0x1448] sm:$0xff]
                %793 = vst [vmem:[%s141 + $0xa28] sm:$0xff] %v792
                %v794 = vld [vmem:[%s140 + $0x1450] sm:$0xff]
                %795 = vst [vmem:[%s141 + $0xa30] sm:$0xff] %v794
                %v796 = vld [vmem:[%s140 + $0x1458] sm:$0xff]
                %797 = vst [vmem:[%s141 + $0xa38] sm:$0xff] %v796
                %v798 = vld [vmem:[%s140 + $0x1480] sm:$0xff]
                %799 = vst [vmem:[%s141 + $0xa40] sm:$0xff] %v798
                %v800 = vld [vmem:[%s140 + $0x1488] sm:$0xff]
                %801 = vst [vmem:[%s141 + $0xa48] sm:$0xff] %v800
                %v802 = vld [vmem:[%s140 + $0x1490] sm:$0xff]
                %803 = vst [vmem:[%s141 + $0xa50] sm:$0xff] %v802
                %v804 = vld [vmem:[%s140 + $0x1498] sm:$0xff]
                %805 = vst [vmem:[%s141 + $0xa58] sm:$0xff] %v804
                %v806 = vld [vmem:[%s140 + $0x14c0] sm:$0xff]
                %807 = vst [vmem:[%s141 + $0xa60] sm:$0xff] %v806
                %v808 = vld [vmem:[%s140 + $0x14c8] sm:$0xff]
                %809 = vst [vmem:[%s141 + $0xa68] sm:$0xff] %v808
                %v810 = vld [vmem:[%s140 + $0x14d0] sm:$0xff]
                %811 = vst [vmem:[%s141 + $0xa70] sm:$0xff] %v810
                %v812 = vld [vmem:[%s140 + $0x14d8] sm:$0xff]
                %813 = vst [vmem:[%s141 + $0xa78] sm:$0xff] %v812
                %v814 = vld [vmem:[%s140 + $0x1500] sm:$0xff]
                %815 = vst [vmem:[%s141 + $0xa80] sm:$0xff] %v814
                %v816 = vld [vmem:[%s140 + $0x1508] sm:$0xff]
                %817 = vst [vmem:[%s141 + $0xa88] sm:$0xff] %v816
                %v818 = vld [vmem:[%s140 + $0x1510] sm:$0xff]
                %819 = vst [vmem:[%s141 + $0xa90] sm:$0xff] %v818
                %v820 = vld [vmem:[%s140 + $0x1518] sm:$0xff]
                %821 = vst [vmem:[%s141 + $0xa98] sm:$0xff] %v820
                %v822 = vld [vmem:[%s140 + $0x1540] sm:$0xff]
                %823 = vst [vmem:[%s141 + $0xaa0] sm:$0xff] %v822
                %v824 = vld [vmem:[%s140 + $0x1548] sm:$0xff]
                %825 = vst [vmem:[%s141 + $0xaa8] sm:$0xff] %v824
                %v826 = vld [vmem:[%s140 + $0x1550] sm:$0xff]
                %827 = vst [vmem:[%s141 + $0xab0] sm:$0xff] %v826
                %v828 = vld [vmem:[%s140 + $0x1558] sm:$0xff]
                %829 = vst [vmem:[%s141 + $0xab8] sm:$0xff] %v828
                %v830 = vld [vmem:[%s140 + $0x1580] sm:$0xff]
                %831 = vst [vmem:[%s141 + $0xac0] sm:$0xff] %v830
                %v832 = vld [vmem:[%s140 + $0x1588] sm:$0xff]
                %833 = vst [vmem:[%s141 + $0xac8] sm:$0xff] %v832
                %v834 = vld [vmem:[%s140 + $0x1590] sm:$0xff]
                %835 = vst [vmem:[%s141 + $0xad0] sm:$0xff] %v834
                %v836 = vld [vmem:[%s140 + $0x1598] sm:$0xff]
                %837 = vst [vmem:[%s141 + $0xad8] sm:$0xff] %v836
                %v838 = vld [vmem:[%s140 + $0x15c0] sm:$0xff]
                %839 = vst [vmem:[%s141 + $0xae0] sm:$0xff] %v838
                %v840 = vld [vmem:[%s140 + $0x15c8] sm:$0xff]
                %841 = vst [vmem:[%s141 + $0xae8] sm:$0xff] %v840
                %v842 = vld [vmem:[%s140 + $0x15d0] sm:$0xff]
                %843 = vst [vmem:[%s141 + $0xaf0] sm:$0xff] %v842
                %v844 = vld [vmem:[%s140 + $0x15d8] sm:$0xff]
                %845 = vst [vmem:[%s141 + $0xaf8] sm:$0xff] %v844
                %v846 = vld [vmem:[%s140 + $0x1600] sm:$0xff]
                %847 = vst [vmem:[%s141 + $0xb00] sm:$0xff] %v846
                %v848 = vld [vmem:[%s140 + $0x1608] sm:$0xff]
                %849 = vst [vmem:[%s141 + $0xb08] sm:$0xff] %v848
                %v850 = vld [vmem:[%s140 + $0x1610] sm:$0xff]
                %851 = vst [vmem:[%s141 + $0xb10] sm:$0xff] %v850
                %v852 = vld [vmem:[%s140 + $0x1618] sm:$0xff]
                %853 = vst [vmem:[%s141 + $0xb18] sm:$0xff] %v852
                %v854 = vld [vmem:[%s140 + $0x1640] sm:$0xff]
                %855 = vst [vmem:[%s141 + $0xb20] sm:$0xff] %v854
                %v856 = vld [vmem:[%s140 + $0x1648] sm:$0xff]
                %857 = vst [vmem:[%s141 + $0xb28] sm:$0xff] %v856
                %v858 = vld [vmem:[%s140 + $0x1650] sm:$0xff]
                %859 = vst [vmem:[%s141 + $0xb30] sm:$0xff] %v858
                %v860 = vld [vmem:[%s140 + $0x1658] sm:$0xff]
                %861 = vst [vmem:[%s141 + $0xb38] sm:$0xff] %v860
                %v862 = vld [vmem:[%s140 + $0x1680] sm:$0xff]
                %863 = vst [vmem:[%s141 + $0xb40] sm:$0xff] %v862
                %v864 = vld [vmem:[%s140 + $0x1688] sm:$0xff]
                %865 = vst [vmem:[%s141 + $0xb48] sm:$0xff] %v864
                %v866 = vld [vmem:[%s140 + $0x1690] sm:$0xff]
                %867 = vst [vmem:[%s141 + $0xb50] sm:$0xff] %v866
                %v868 = vld [vmem:[%s140 + $0x1698] sm:$0xff]
                %869 = vst [vmem:[%s141 + $0xb58] sm:$0xff] %v868
                %v870 = vld [vmem:[%s140 + $0x16c0] sm:$0xff]
                %871 = vst [vmem:[%s141 + $0xb60] sm:$0xff] %v870
                %v872 = vld [vmem:[%s140 + $0x16c8] sm:$0xff]
                %873 = vst [vmem:[%s141 + $0xb68] sm:$0xff] %v872
                %v874 = vld [vmem:[%s140 + $0x16d0] sm:$0xff]
                %875 = vst [vmem:[%s141 + $0xb70] sm:$0xff] %v874
                %v876 = vld [vmem:[%s140 + $0x16d8] sm:$0xff]
                %877 = vst [vmem:[%s141 + $0xb78] sm:$0xff] %v876
                %v878 = vld [vmem:[%s140 + $0x1700] sm:$0xff]
                %879 = vst [vmem:[%s141 + $0xb80] sm:$0xff] %v878
                %v880 = vld [vmem:[%s140 + $0x1708] sm:$0xff]
                %881 = vst [vmem:[%s141 + $0xb88] sm:$0xff] %v880
                %v882 = vld [vmem:[%s140 + $0x1710] sm:$0xff]
                %883 = vst [vmem:[%s141 + $0xb90] sm:$0xff] %v882
                %v884 = vld [vmem:[%s140 + $0x1718] sm:$0xff]
                %885 = vst [vmem:[%s141 + $0xb98] sm:$0xff] %v884
                %v886 = vld [vmem:[%s140 + $0x1740] sm:$0xff]
                %887 = vst [vmem:[%s141 + $0xba0] sm:$0xff] %v886
                %v888 = vld [vmem:[%s140 + $0x1748] sm:$0xff]
                %889 = vst [vmem:[%s141 + $0xba8] sm:$0xff] %v888
                %v890 = vld [vmem:[%s140 + $0x1750] sm:$0xff]
                %891 = vst [vmem:[%s141 + $0xbb0] sm:$0xff] %v890
                %v892 = vld [vmem:[%s140 + $0x1758] sm:$0xff]
                %893 = vst [vmem:[%s141 + $0xbb8] sm:$0xff] %v892
                %v894 = vld [vmem:[%s140 + $0x1780] sm:$0xff]
                %895 = vst [vmem:[%s141 + $0xbc0] sm:$0xff] %v894
                %v896 = vld [vmem:[%s140 + $0x1788] sm:$0xff]
                %897 = vst [vmem:[%s141 + $0xbc8] sm:$0xff] %v896
                %v898 = vld [vmem:[%s140 + $0x1790] sm:$0xff]
                %899 = vst [vmem:[%s141 + $0xbd0] sm:$0xff] %v898
                %v900 = vld [vmem:[%s140 + $0x1798] sm:$0xff]
                %901 = vst [vmem:[%s141 + $0xbd8] sm:$0xff] %v900
                %v902 = vld [vmem:[%s140 + $0x17c0] sm:$0xff]
                %903 = vst [vmem:[%s141 + $0xbe0] sm:$0xff] %v902
                %v904 = vld [vmem:[%s140 + $0x17c8] sm:$0xff]
                %905 = vst [vmem:[%s141 + $0xbe8] sm:$0xff] %v904
                %v906 = vld [vmem:[%s140 + $0x17d0] sm:$0xff]
                %907 = vst [vmem:[%s141 + $0xbf0] sm:$0xff] %v906
                %v908 = vld [vmem:[%s140 + $0x17d8] sm:$0xff]
                %909 = vst [vmem:[%s141 + $0xbf8] sm:$0xff] %v908
                %v910 = vld [vmem:[%s140 + $0x1800] sm:$0xff]
                %911 = vst [vmem:[%s141 + $0xc00] sm:$0xff] %v910
                %v912 = vld [vmem:[%s140 + $0x1808] sm:$0xff]
                %913 = vst [vmem:[%s141 + $0xc08] sm:$0xff] %v912
                %v914 = vld [vmem:[%s140 + $0x1810] sm:$0xff]
                %915 = vst [vmem:[%s141 + $0xc10] sm:$0xff] %v914
                %v916 = vld [vmem:[%s140 + $0x1818] sm:$0xff]
                %917 = vst [vmem:[%s141 + $0xc18] sm:$0xff] %v916
                %v918 = vld [vmem:[%s140 + $0x1840] sm:$0xff]
                %919 = vst [vmem:[%s141 + $0xc20] sm:$0xff] %v918
                %v920 = vld [vmem:[%s140 + $0x1848] sm:$0xff]
                %921 = vst [vmem:[%s141 + $0xc28] sm:$0xff] %v920
                %v922 = vld [vmem:[%s140 + $0x1850] sm:$0xff]
                %923 = vst [vmem:[%s141 + $0xc30] sm:$0xff] %v922
                %v924 = vld [vmem:[%s140 + $0x1858] sm:$0xff]
                %925 = vst [vmem:[%s141 + $0xc38] sm:$0xff] %v924
                %v926 = vld [vmem:[%s140 + $0x1880] sm:$0xff]
                %927 = vst [vmem:[%s141 + $0xc40] sm:$0xff] %v926
                %v928 = vld [vmem:[%s140 + $0x1888] sm:$0xff]
                %929 = vst [vmem:[%s141 + $0xc48] sm:$0xff] %v928
                %v930 = vld [vmem:[%s140 + $0x1890] sm:$0xff]
                %931 = vst [vmem:[%s141 + $0xc50] sm:$0xff] %v930
                %v932 = vld [vmem:[%s140 + $0x1898] sm:$0xff]
                %933 = vst [vmem:[%s141 + $0xc58] sm:$0xff] %v932
                %v934 = vld [vmem:[%s140 + $0x18c0] sm:$0xff]
                %935 = vst [vmem:[%s141 + $0xc60] sm:$0xff] %v934
                %v936 = vld [vmem:[%s140 + $0x18c8] sm:$0xff]
                %937 = vst [vmem:[%s141 + $0xc68] sm:$0xff] %v936
                %v938 = vld [vmem:[%s140 + $0x18d0] sm:$0xff]
                %939 = vst [vmem:[%s141 + $0xc70] sm:$0xff] %v938
                %v940 = vld [vmem:[%s140 + $0x18d8] sm:$0xff]
                %941 = vst [vmem:[%s141 + $0xc78] sm:$0xff] %v940
                %v942 = vld [vmem:[%s140 + $0x1900] sm:$0xff]
                %943 = vst [vmem:[%s141 + $0xc80] sm:$0xff] %v942
                %v944 = vld [vmem:[%s140 + $0x1908] sm:$0xff]
                %945 = vst [vmem:[%s141 + $0xc88] sm:$0xff] %v944
                %v946 = vld [vmem:[%s140 + $0x1910] sm:$0xff]
                %947 = vst [vmem:[%s141 + $0xc90] sm:$0xff] %v946
                %v948 = vld [vmem:[%s140 + $0x1918] sm:$0xff]
                %949 = vst [vmem:[%s141 + $0xc98] sm:$0xff] %v948
                %v950 = vld [vmem:[%s140 + $0x1940] sm:$0xff]
                %951 = vst [vmem:[%s141 + $0xca0] sm:$0xff] %v950
                %v952 = vld [vmem:[%s140 + $0x1948] sm:$0xff]
                %953 = vst [vmem:[%s141 + $0xca8] sm:$0xff] %v952
                %v954 = vld [vmem:[%s140 + $0x1950] sm:$0xff]
                %955 = vst [vmem:[%s141 + $0xcb0] sm:$0xff] %v954
                %v956 = vld [vmem:[%s140 + $0x1958] sm:$0xff]
                %957 = vst [vmem:[%s141 + $0xcb8] sm:$0xff] %v956
                %v958 = vld [vmem:[%s140 + $0x1980] sm:$0xff]
                %959 = vst [vmem:[%s141 + $0xcc0] sm:$0xff] %v958
                %v960 = vld [vmem:[%s140 + $0x1988] sm:$0xff]
                %961 = vst [vmem:[%s141 + $0xcc8] sm:$0xff] %v960
                %v962 = vld [vmem:[%s140 + $0x1990] sm:$0xff]
                %963 = vst [vmem:[%s141 + $0xcd0] sm:$0xff] %v962
                %v964 = vld [vmem:[%s140 + $0x1998] sm:$0xff]
                %965 = vst [vmem:[%s141 + $0xcd8] sm:$0xff] %v964
                %v966 = vld [vmem:[%s140 + $0x19c0] sm:$0xff]
                %967 = vst [vmem:[%s141 + $0xce0] sm:$0xff] %v966
                %v968 = vld [vmem:[%s140 + $0x19c8] sm:$0xff]
                %969 = vst [vmem:[%s141 + $0xce8] sm:$0xff] %v968
                %v970 = vld [vmem:[%s140 + $0x19d0] sm:$0xff]
                %971 = vst [vmem:[%s141 + $0xcf0] sm:$0xff] %v970
                %v972 = vld [vmem:[%s140 + $0x19d8] sm:$0xff]
                %973 = vst [vmem:[%s141 + $0xcf8] sm:$0xff] %v972
                %v974 = vld [vmem:[%s140 + $0x1a00] sm:$0xff]
                %975 = vst [vmem:[%s141 + $0xd00] sm:$0xff] %v974
                %v976 = vld [vmem:[%s140 + $0x1a08] sm:$0xff]
                %977 = vst [vmem:[%s141 + $0xd08] sm:$0xff] %v976
                %v978 = vld [vmem:[%s140 + $0x1a10] sm:$0xff]
                %979 = vst [vmem:[%s141 + $0xd10] sm:$0xff] %v978
                %v980 = vld [vmem:[%s140 + $0x1a18] sm:$0xff]
                %981 = vst [vmem:[%s141 + $0xd18] sm:$0xff] %v980
                %v982 = vld [vmem:[%s140 + $0x1a40] sm:$0xff]
                %983 = vst [vmem:[%s141 + $0xd20] sm:$0xff] %v982
                %v984 = vld [vmem:[%s140 + $0x1a48] sm:$0xff]
                %985 = vst [vmem:[%s141 + $0xd28] sm:$0xff] %v984
                %v986 = vld [vmem:[%s140 + $0x1a50] sm:$0xff]
                %987 = vst [vmem:[%s141 + $0xd30] sm:$0xff] %v986
                %v988 = vld [vmem:[%s140 + $0x1a58] sm:$0xff]
                %989 = vst [vmem:[%s141 + $0xd38] sm:$0xff] %v988
                %v990 = vld [vmem:[%s140 + $0x1a80] sm:$0xff]
                %991 = vst [vmem:[%s141 + $0xd40] sm:$0xff] %v990
                %v992 = vld [vmem:[%s140 + $0x1a88] sm:$0xff]
                %993 = vst [vmem:[%s141 + $0xd48] sm:$0xff] %v992
                %v994 = vld [vmem:[%s140 + $0x1a90] sm:$0xff]
                %995 = vst [vmem:[%s141 + $0xd50] sm:$0xff] %v994
                %v996 = vld [vmem:[%s140 + $0x1a98] sm:$0xff]
                %997 = vst [vmem:[%s141 + $0xd58] sm:$0xff] %v996
                %v998 = vld [vmem:[%s140 + $0x1ac0] sm:$0xff]
                %999 = vst [vmem:[%s141 + $0xd60] sm:$0xff] %v998
                %v1000 = vld [vmem:[%s140 + $0x1ac8] sm:$0xff]
                %1001 = vst [vmem:[%s141 + $0xd68] sm:$0xff] %v1000
                %v1002 = vld [vmem:[%s140 + $0x1ad0] sm:$0xff]
                %1003 = vst [vmem:[%s141 + $0xd70] sm:$0xff] %v1002
                %v1004 = vld [vmem:[%s140 + $0x1ad8] sm:$0xff]
                %1005 = vst [vmem:[%s141 + $0xd78] sm:$0xff] %v1004
                %v1006 = vld [vmem:[%s140 + $0x1b00] sm:$0xff]
                %1007 = vst [vmem:[%s141 + $0xd80] sm:$0xff] %v1006
                %v1008 = vld [vmem:[%s140 + $0x1b08] sm:$0xff]
                %1009 = vst [vmem:[%s141 + $0xd88] sm:$0xff] %v1008
                %v1010 = vld [vmem:[%s140 + $0x1b10] sm:$0xff]
                %1011 = vst [vmem:[%s141 + $0xd90] sm:$0xff] %v1010
                %v1012 = vld [vmem:[%s140 + $0x1b18] sm:$0xff]
                %1013 = vst [vmem:[%s141 + $0xd98] sm:$0xff] %v1012
                %v1014 = vld [vmem:[%s140 + $0x1b40] sm:$0xff]
                %1015 = vst [vmem:[%s141 + $0xda0] sm:$0xff] %v1014
                %v1016 = vld [vmem:[%s140 + $0x1b48] sm:$0xff]
                %1017 = vst [vmem:[%s141 + $0xda8] sm:$0xff] %v1016
                %v1018 = vld [vmem:[%s140 + $0x1b50] sm:$0xff]
                %1019 = vst [vmem:[%s141 + $0xdb0] sm:$0xff] %v1018
                %v1020 = vld [vmem:[%s140 + $0x1b58] sm:$0xff]
                %1021 = vst [vmem:[%s141 + $0xdb8] sm:$0xff] %v1020
                %v1022 = vld [vmem:[%s140 + $0x1b80] sm:$0xff]
                %1023 = vst [vmem:[%s141 + $0xdc0] sm:$0xff] %v1022
                %v1024 = vld [vmem:[%s140 + $0x1b88] sm:$0xff]
                %1025 = vst [vmem:[%s141 + $0xdc8] sm:$0xff] %v1024
                %v1026 = vld [vmem:[%s140 + $0x1b90] sm:$0xff]
                %1027 = vst [vmem:[%s141 + $0xdd0] sm:$0xff] %v1026
                %v1028 = vld [vmem:[%s140 + $0x1b98] sm:$0xff]
                %1029 = vst [vmem:[%s141 + $0xdd8] sm:$0xff] %v1028
                %v1030 = vld [vmem:[%s140 + $0x1bc0] sm:$0xff]
                %1031 = vst [vmem:[%s141 + $0xde0] sm:$0xff] %v1030
                %v1032 = vld [vmem:[%s140 + $0x1bc8] sm:$0xff]
                %1033 = vst [vmem:[%s141 + $0xde8] sm:$0xff] %v1032
                %v1034 = vld [vmem:[%s140 + $0x1bd0] sm:$0xff]
                %1035 = vst [vmem:[%s141 + $0xdf0] sm:$0xff] %v1034
                %v1036 = vld [vmem:[%s140 + $0x1bd8] sm:$0xff]
                %1037 = vst [vmem:[%s141 + $0xdf8] sm:$0xff] %v1036
                %v1038 = vld [vmem:[%s140 + $0x1c00] sm:$0xff]
                %1039 = vst [vmem:[%s141 + $0xe00] sm:$0xff] %v1038
                %v1040 = vld [vmem:[%s140 + $0x1c08] sm:$0xff]
                %1041 = vst [vmem:[%s141 + $0xe08] sm:$0xff] %v1040
                %v1042 = vld [vmem:[%s140 + $0x1c10] sm:$0xff]
                %1043 = vst [vmem:[%s141 + $0xe10] sm:$0xff] %v1042
                %v1044 = vld [vmem:[%s140 + $0x1c18] sm:$0xff]
                %1045 = vst [vmem:[%s141 + $0xe18] sm:$0xff] %v1044
                %v1046 = vld [vmem:[%s140 + $0x1c40] sm:$0xff]
                %1047 = vst [vmem:[%s141 + $0xe20] sm:$0xff] %v1046
                %v1048 = vld [vmem:[%s140 + $0x1c48] sm:$0xff]
                %1049 = vst [vmem:[%s141 + $0xe28] sm:$0xff] %v1048
                %v1050 = vld [vmem:[%s140 + $0x1c50] sm:$0xff]
                %1051 = vst [vmem:[%s141 + $0xe30] sm:$0xff] %v1050
                %v1052 = vld [vmem:[%s140 + $0x1c58] sm:$0xff]
                %1053 = vst [vmem:[%s141 + $0xe38] sm:$0xff] %v1052
                %v1054 = vld [vmem:[%s140 + $0x1c80] sm:$0xff]
                %1055 = vst [vmem:[%s141 + $0xe40] sm:$0xff] %v1054
                %v1056 = vld [vmem:[%s140 + $0x1c88] sm:$0xff]
                %1057 = vst [vmem:[%s141 + $0xe48] sm:$0xff] %v1056
                %v1058 = vld [vmem:[%s140 + $0x1c90] sm:$0xff]
                %1059 = vst [vmem:[%s141 + $0xe50] sm:$0xff] %v1058
                %v1060 = vld [vmem:[%s140 + $0x1c98] sm:$0xff]
                %1061 = vst [vmem:[%s141 + $0xe58] sm:$0xff] %v1060
                %v1062 = vld [vmem:[%s140 + $0x1cc0] sm:$0xff]
                %1063 = vst [vmem:[%s141 + $0xe60] sm:$0xff] %v1062
                %v1064 = vld [vmem:[%s140 + $0x1cc8] sm:$0xff]
                %1065 = vst [vmem:[%s141 + $0xe68] sm:$0xff] %v1064
                %v1066 = vld [vmem:[%s140 + $0x1cd0] sm:$0xff]
                %1067 = vst [vmem:[%s141 + $0xe70] sm:$0xff] %v1066
                %v1068 = vld [vmem:[%s140 + $0x1cd8] sm:$0xff]
                %1069 = vst [vmem:[%s141 + $0xe78] sm:$0xff] %v1068
                %v1070 = vld [vmem:[%s140 + $0x1d00] sm:$0xff]
                %1071 = vst [vmem:[%s141 + $0xe80] sm:$0xff] %v1070
                %v1072 = vld [vmem:[%s140 + $0x1d08] sm:$0xff]
                %1073 = vst [vmem:[%s141 + $0xe88] sm:$0xff] %v1072
                %v1074 = vld [vmem:[%s140 + $0x1d10] sm:$0xff]
                %1075 = vst [vmem:[%s141 + $0xe90] sm:$0xff] %v1074
                %v1076 = vld [vmem:[%s140 + $0x1d18] sm:$0xff]
                %1077 = vst [vmem:[%s141 + $0xe98] sm:$0xff] %v1076
                %v1078 = vld [vmem:[%s140 + $0x1d40] sm:$0xff]
                %1079 = vst [vmem:[%s141 + $0xea0] sm:$0xff] %v1078
                %v1080 = vld [vmem:[%s140 + $0x1d48] sm:$0xff]
                %1081 = vst [vmem:[%s141 + $0xea8] sm:$0xff] %v1080
                %v1082 = vld [vmem:[%s140 + $0x1d50] sm:$0xff]
                %1083 = vst [vmem:[%s141 + $0xeb0] sm:$0xff] %v1082
                %v1084 = vld [vmem:[%s140 + $0x1d58] sm:$0xff]
                %1085 = vst [vmem:[%s141 + $0xeb8] sm:$0xff] %v1084
                %v1086 = vld [vmem:[%s140 + $0x1d80] sm:$0xff]
                %1087 = vst [vmem:[%s141 + $0xec0] sm:$0xff] %v1086
                %v1088 = vld [vmem:[%s140 + $0x1d88] sm:$0xff]
                %1089 = vst [vmem:[%s141 + $0xec8] sm:$0xff] %v1088
                %v1090 = vld [vmem:[%s140 + $0x1d90] sm:$0xff]
                %1091 = vst [vmem:[%s141 + $0xed0] sm:$0xff] %v1090
                %v1092 = vld [vmem:[%s140 + $0x1d98] sm:$0xff]
                %1093 = vst [vmem:[%s141 + $0xed8] sm:$0xff] %v1092
                %v1094 = vld [vmem:[%s140 + $0x1dc0] sm:$0xff]
                %1095 = vst [vmem:[%s141 + $0xee0] sm:$0xff] %v1094
                %v1096 = vld [vmem:[%s140 + $0x1dc8] sm:$0xff]
                %1097 = vst [vmem:[%s141 + $0xee8] sm:$0xff] %v1096
                %v1098 = vld [vmem:[%s140 + $0x1dd0] sm:$0xff]
                %1099 = vst [vmem:[%s141 + $0xef0] sm:$0xff] %v1098
                %v1100 = vld [vmem:[%s140 + $0x1dd8] sm:$0xff]
                %1101 = vst [vmem:[%s141 + $0xef8] sm:$0xff] %v1100
                %v1102 = vld [vmem:[%s140 + $0x1e00] sm:$0xff]
                %1103 = vst [vmem:[%s141 + $0xf00] sm:$0xff] %v1102
                %v1104 = vld [vmem:[%s140 + $0x1e08] sm:$0xff]
                %1105 = vst [vmem:[%s141 + $0xf08] sm:$0xff] %v1104
                %v1106 = vld [vmem:[%s140 + $0x1e10] sm:$0xff]
                %1107 = vst [vmem:[%s141 + $0xf10] sm:$0xff] %v1106
                %v1108 = vld [vmem:[%s140 + $0x1e18] sm:$0xff]
                %1109 = vst [vmem:[%s141 + $0xf18] sm:$0xff] %v1108
                %v1110 = vld [vmem:[%s140 + $0x1e40] sm:$0xff]
                %1111 = vst [vmem:[%s141 + $0xf20] sm:$0xff] %v1110
                %v1112 = vld [vmem:[%s140 + $0x1e48] sm:$0xff]
                %1113 = vst [vmem:[%s141 + $0xf28] sm:$0xff] %v1112
                %v1114 = vld [vmem:[%s140 + $0x1e50] sm:$0xff]
                %1115 = vst [vmem:[%s141 + $0xf30] sm:$0xff] %v1114
                %v1116 = vld [vmem:[%s140 + $0x1e58] sm:$0xff]
                %1117 = vst [vmem:[%s141 + $0xf38] sm:$0xff] %v1116
                %v1118 = vld [vmem:[%s140 + $0x1e80] sm:$0xff]
                %1119 = vst [vmem:[%s141 + $0xf40] sm:$0xff] %v1118
                %v1120 = vld [vmem:[%s140 + $0x1e88] sm:$0xff]
                %1121 = vst [vmem:[%s141 + $0xf48] sm:$0xff] %v1120
                %v1122 = vld [vmem:[%s140 + $0x1e90] sm:$0xff]
                %1123 = vst [vmem:[%s141 + $0xf50] sm:$0xff] %v1122
                %v1124 = vld [vmem:[%s140 + $0x1e98] sm:$0xff]
                %1125 = vst [vmem:[%s141 + $0xf58] sm:$0xff] %v1124
                %v1126 = vld [vmem:[%s140 + $0x1ec0] sm:$0xff]
                %1127 = vst [vmem:[%s141 + $0xf60] sm:$0xff] %v1126
                %v1128 = vld [vmem:[%s140 + $0x1ec8] sm:$0xff]
                %1129 = vst [vmem:[%s141 + $0xf68] sm:$0xff] %v1128
                %v1130 = vld [vmem:[%s140 + $0x1ed0] sm:$0xff]
                %1131 = vst [vmem:[%s141 + $0xf70] sm:$0xff] %v1130
                %v1132 = vld [vmem:[%s140 + $0x1ed8] sm:$0xff]
                %1133 = vst [vmem:[%s141 + $0xf78] sm:$0xff] %v1132
                %v1134 = vld [vmem:[%s140 + $0x1f00] sm:$0xff]
                %1135 = vst [vmem:[%s141 + $0xf80] sm:$0xff] %v1134
                %v1136 = vld [vmem:[%s140 + $0x1f08] sm:$0xff]
                %1137 = vst [vmem:[%s141 + $0xf88] sm:$0xff] %v1136
                %v1138 = vld [vmem:[%s140 + $0x1f10] sm:$0xff]
                %1139 = vst [vmem:[%s141 + $0xf90] sm:$0xff] %v1138
                %v1140 = vld [vmem:[%s140 + $0x1f18] sm:$0xff]
                %1141 = vst [vmem:[%s141 + $0xf98] sm:$0xff] %v1140
                %v1142 = vld [vmem:[%s140 + $0x1f40] sm:$0xff]
                %1143 = vst [vmem:[%s141 + $0xfa0] sm:$0xff] %v1142
                %v1144 = vld [vmem:[%s140 + $0x1f48] sm:$0xff]
                %1145 = vst [vmem:[%s141 + $0xfa8] sm:$0xff] %v1144
                %v1146 = vld [vmem:[%s140 + $0x1f50] sm:$0xff]
                %1147 = vst [vmem:[%s141 + $0xfb0] sm:$0xff] %v1146
                %v1148 = vld [vmem:[%s140 + $0x1f58] sm:$0xff]
                %1149 = vst [vmem:[%s141 + $0xfb8] sm:$0xff] %v1148
                %v1150 = vld [vmem:[%s140 + $0x1f80] sm:$0xff]
                %1151 = vst [vmem:[%s141 + $0xfc0] sm:$0xff] %v1150
                %v1152 = vld [vmem:[%s140 + $0x1f88] sm:$0xff]
                %1153 = vst [vmem:[%s141 + $0xfc8] sm:$0xff] %v1152
                %v1154 = vld [vmem:[%s140 + $0x1f90] sm:$0xff]
                %1155 = vst [vmem:[%s141 + $0xfd0] sm:$0xff] %v1154
                %v1156 = vld [vmem:[%s140 + $0x1f98] sm:$0xff]
                %1157 = vst [vmem:[%s141 + $0xfd8] sm:$0xff] %v1156
                %v1158 = vld [vmem:[%s140 + $0x1fc0] sm:$0xff]
                %1159 = vst [vmem:[%s141 + $0xfe0] sm:$0xff] %v1158
                %v1160 = vld [vmem:[%s140 + $0x1fc8] sm:$0xff]
                %1161 = vst [vmem:[%s141 + $0xfe8] sm:$0xff] %v1160
                %v1162 = vld [vmem:[%s140 + $0x1fd0] sm:$0xff]
                %1163 = vst [vmem:[%s141 + $0xff0] sm:$0xff] %v1162
                %v1164 = vld [vmem:[%s140 + $0x1fd8] sm:$0xff]
                %1165 = vst [vmem:[%s141 + $0xff8] sm:$0xff] %v1164
              $region37: #{_srr_forward.18} parent=31 // loop_footer
                %s139 = sadd.s32 1, %s135
              $region38: #{_srr_forward.18} parent=31 // loop_footer_branch
                %134 = sbr.rel target = $region34
              $region39: #{_srr_forward.18} parent=31 // loop_exit
                _
            $region32: #{_srr_forward.18} parent=27 // pred_fallthru
              _
            // Predicated region
            $region40: #{_srr_forward.18} parent=27 // pred_check
              _
            $region41: #{_srr_forward.18} parent=27 // pred_check_branch
              %1167 = sbr.rel target = $region43
            $region42: #{_srr_forward.18} parent=27 // pred_region
              _
            $region43: #{_srr_forward.18} parent=27 // pred_fallthru
              _
          $region28: #{_srr_forward.18} parent=23 // pred_fallthru
            _
          %1168 = vnop
        $region24: #{_srr_forward.18} parent=19 // pred_fallthru
          _
      $region20: #{_srr_forward.18} parent=5 // pred_fallthru
        _
      %p1169 = scmp.le.s32.totalorder 1, %s8
      %p1170 = scmp.lt.s32.totalorder %s8, 5
      %p1171 = pnand %p1169, %p1170
      %p1172 = pneg %p1171
      // Predicated region
      $region44: #{_srr_forward.18} parent=5 // pred_check
        _
      $region45: #{_srr_forward.18} parent=5 // pred_check_branch
        %1174 = sbr.rel (%p1171) target = $region47
      $region46: #{_srr_forward.18} parent=5 // pred_region
        %s1175 = ssub.s32 %s8, 1
        %s1176 = sand.u32 %s56, 1
        %s1177 = sand.u32 %s56, 1
        %s1178 = smul.addr %s1177, 4096
        %s1179 = scalar_lea.vmem [#allocation3], %s1178
        // Predicated region
        $region48: #{_srr_forward.18} parent=46 // pred_check
          %p1180 = pneg %p69
        $region49: #{_srr_forward.18} parent=46 // pred_check_branch
          %1182 = sbr.rel (%p1180) target = $region51
        $region50: #{_srr_forward.18} parent=46 // pred_region
          _
        $region51: #{_srr_forward.18} parent=46 // pred_fallthru
          _
        %p1183 = pneg %p41
        %p1184 = pneg %p38
        %s1185 = sand.u32 %s56, 1
        %s1186 = sand.u32 %s56, 1
        %s1187 = smul.addr %s1186, 4096
        %s1188 = scalar_lea.vmem [#allocation3], %s1187
        %p1189 = pneg %p69
        %p1190 = pneg %p66
        %p1191 = pneg %p95
        %p1192 = pneg %p92
        %s1193 = smul.u32 8, %s17
        %p1194 = scmp.lt.s32.totalorder %s1193, 15
        %s1195 = scalar_select %p1194, %s1193, 15
        %s1196 = scalar_lea.vmem %s2, %s1195
        %s1197 = smul.u32 128, %s17
        %s1198 = smul.u32 4, %s18
        %s1199 = smul.u32 8, %s17
        %p1200 = scmp.lt.s32.totalorder %s1199, 15
        %s1201 = scalar_select %p1200, %s1199, 15
        %s1202 = scalar_lea.vmem %s2, %s1201
        %s1203 = smul.u32 8, %s17
        %p1204 = scmp.eq.s32.totalorder %s18, 0
        // Predicated region
        $region52: #{_srr_forward.18} parent=46 // pred_check
          %p1205 = pneg %p1204
        $region53: #{_srr_forward.18} parent=46 // pred_check_branch
          %1207 = sbr.rel (%p1205) target = $region55
        $region54: #{_srr_forward.18} parent=46 // pred_region
          %1208 = vst [vmem:[#allocation2] sm:$0xff] 0.0
        $region55: #{_srr_forward.18} parent=46 // pred_fallthru
          _
        %s1209 = smul.u32 %s18, 512
        %s1210 = sshra.s32 %s1209, 7
        %s1211 = sand.u32 %s1209, 127
        %s1212 = scalar_lea.vmem %s0, %s1210
        %v1213 = vld [vmem:[%s1212] sm:$0xf]
        %v1214 = vld [vmem:[#allocation2] sm:$0xff]
        %v1215 = vld [vmem:[%s1179] sm:$0xff]
        %v1216 = vld [vmem:[%s1179 + $0x8] sm:$0xff]
        %v1217 = vld [vmem:[%s1179 + $0x10] sm:$0xff]
        %v1218 = vld [vmem:[%s1179 + $0x18] sm:$0xff]
        %v1219 = vld [vmem:[%s1179 + $0x20] sm:$0xff]
        %v1220 = vld [vmem:[%s1179 + $0x28] sm:$0xff]
        %v1221 = vld [vmem:[%s1179 + $0x30] sm:$0xff]
        %v1222 = vld [vmem:[%s1179 + $0x38] sm:$0xff]
        %v1223 = vld [vmem:[%s1179 + $0x40] sm:$0xff]
        %v1224 = vld [vmem:[%s1179 + $0x48] sm:$0xff]
        %v1225 = vld [vmem:[%s1179 + $0x50] sm:$0xff]
        %v1226 = vld [vmem:[%s1179 + $0x58] sm:$0xff]
        %v1227 = vld [vmem:[%s1179 + $0x60] sm:$0xff]
        %v1228 = vld [vmem:[%s1179 + $0x68] sm:$0xff]
        %v1229 = vld [vmem:[%s1179 + $0x70] sm:$0xff]
        %v1230 = vld [vmem:[%s1179 + $0x78] sm:$0xff]
        %v1231 = vld [vmem:[%s1179 + $0x80] sm:$0xff]
        %v1232 = vld [vmem:[%s1179 + $0x88] sm:$0xff]
        %v1233 = vld [vmem:[%s1179 + $0x90] sm:$0xff]
        %v1234 = vld [vmem:[%s1179 + $0x98] sm:$0xff]
        %v1235 = vld [vmem:[%s1179 + $0xa0] sm:$0xff]
        %v1236 = vld [vmem:[%s1179 + $0xa8] sm:$0xff]
        %v1237 = vld [vmem:[%s1179 + $0xb0] sm:$0xff]
        %v1238 = vld [vmem:[%s1179 + $0xb8] sm:$0xff]
        %v1239 = vld [vmem:[%s1179 + $0xc0] sm:$0xff]
        %v1240 = vld [vmem:[%s1179 + $0xc8] sm:$0xff]
        %v1241 = vld [vmem:[%s1179 + $0xd0] sm:$0xff]
        %v1242 = vld [vmem:[%s1179 + $0xd8] sm:$0xff]
        %v1243 = vld [vmem:[%s1179 + $0xe0] sm:$0xff]
        %v1244 = vld [vmem:[%s1179 + $0xe8] sm:$0xff]
        %v1245 = vld [vmem:[%s1179 + $0xf0] sm:$0xff]
        %v1246 = vld [vmem:[%s1179 + $0xf8] sm:$0xff]
        %v1247 = vld [vmem:[%s1179 + $0x100] sm:$0xff]
        %v1248 = vld [vmem:[%s1179 + $0x108] sm:$0xff]
        %v1249 = vld [vmem:[%s1179 + $0x110] sm:$0xff]
        %v1250 = vld [vmem:[%s1179 + $0x118] sm:$0xff]
        %v1251 = vld [vmem:[%s1179 + $0x120] sm:$0xff]
        %v1252 = vld [vmem:[%s1179 + $0x128] sm:$0xff]
        %v1253 = vld [vmem:[%s1179 + $0x130] sm:$0xff]
        %v1254 = vld [vmem:[%s1179 + $0x138] sm:$0xff]
        %v1255 = vld [vmem:[%s1179 + $0x140] sm:$0xff]
        %v1256 = vld [vmem:[%s1179 + $0x148] sm:$0xff]
        %v1257 = vld [vmem:[%s1179 + $0x150] sm:$0xff]
        %v1258 = vld [vmem:[%s1179 + $0x158] sm:$0xff]
        %v1259 = vld [vmem:[%s1179 + $0x160] sm:$0xff]
        %v1260 = vld [vmem:[%s1179 + $0x168] sm:$0xff]
        %v1261 = vld [vmem:[%s1179 + $0x170] sm:$0xff]
        %v1262 = vld [vmem:[%s1179 + $0x178] sm:$0xff]
        %v1263 = vld [vmem:[%s1179 + $0x180] sm:$0xff]
        %v1264 = vld [vmem:[%s1179 + $0x188] sm:$0xff]
        %v1265 = vld [vmem:[%s1179 + $0x190] sm:$0xff]
        %v1266 = vld [vmem:[%s1179 + $0x198] sm:$0xff]
        %v1267 = vld [vmem:[%s1179 + $0x1a0] sm:$0xff]
        %v1268 = vld [vmem:[%s1179 + $0x1a8] sm:$0xff]
        %v1269 = vld [vmem:[%s1179 + $0x1b0] sm:$0xff]
        %v1270 = vld [vmem:[%s1179 + $0x1b8] sm:$0xff]
        %v1271 = vld [vmem:[%s1179 + $0x1c0] sm:$0xff]
        %v1272 = vld [vmem:[%s1179 + $0x1c8] sm:$0xff]
        %v1273 = vld [vmem:[%s1179 + $0x1d0] sm:$0xff]
        %v1274 = vld [vmem:[%s1179 + $0x1d8] sm:$0xff]
        %v1275 = vld [vmem:[%s1179 + $0x1e0] sm:$0xff]
        %v1276 = vld [vmem:[%s1179 + $0x1e8] sm:$0xff]
        %v1277 = vld [vmem:[%s1179 + $0x1f0] sm:$0xff]
        %v1278 = vld [vmem:[%s1179 + $0x1f8] sm:$0xff]
        %v1279 = vld [vmem:[%s1179 + $0x200] sm:$0xff]
        %v1280 = vld [vmem:[%s1179 + $0x208] sm:$0xff]
        %v1281 = vld [vmem:[%s1179 + $0x210] sm:$0xff]
        %v1282 = vld [vmem:[%s1179 + $0x218] sm:$0xff]
        %v1283 = vld [vmem:[%s1179 + $0x220] sm:$0xff]
        %v1284 = vld [vmem:[%s1179 + $0x228] sm:$0xff]
        %v1285 = vld [vmem:[%s1179 + $0x230] sm:$0xff]
        %v1286 = vld [vmem:[%s1179 + $0x238] sm:$0xff]
        %v1287 = vld [vmem:[%s1179 + $0x240] sm:$0xff]
        %v1288 = vld [vmem:[%s1179 + $0x248] sm:$0xff]
        %v1289 = vld [vmem:[%s1179 + $0x250] sm:$0xff]
        %v1290 = vld [vmem:[%s1179 + $0x258] sm:$0xff]
        %v1291 = vld [vmem:[%s1179 + $0x260] sm:$0xff]
        %v1292 = vld [vmem:[%s1179 + $0x268] sm:$0xff]
        %v1293 = vld [vmem:[%s1179 + $0x270] sm:$0xff]
        %v1294 = vld [vmem:[%s1179 + $0x278] sm:$0xff]
        %v1295 = vld [vmem:[%s1179 + $0x280] sm:$0xff]
        %v1296 = vld [vmem:[%s1179 + $0x288] sm:$0xff]
        %v1297 = vld [vmem:[%s1179 + $0x290] sm:$0xff]
        %v1298 = vld [vmem:[%s1179 + $0x298] sm:$0xff]
        %v1299 = vld [vmem:[%s1179 + $0x2a0] sm:$0xff]
        %v1300 = vld [vmem:[%s1179 + $0x2a8] sm:$0xff]
        %v1301 = vld [vmem:[%s1179 + $0x2b0] sm:$0xff]
        %v1302 = vld [vmem:[%s1179 + $0x2b8] sm:$0xff]
        %v1303 = vld [vmem:[%s1179 + $0x2c0] sm:$0xff]
        %v1304 = vld [vmem:[%s1179 + $0x2c8] sm:$0xff]
        %v1305 = vld [vmem:[%s1179 + $0x2d0] sm:$0xff]
        %v1306 = vld [vmem:[%s1179 + $0x2d8] sm:$0xff]
        %v1307 = vld [vmem:[%s1179 + $0x2e0] sm:$0xff]
        %v1308 = vld [vmem:[%s1179 + $0x2e8] sm:$0xff]
        %v1309 = vld [vmem:[%s1179 + $0x2f0] sm:$0xff]
        %v1310 = vld [vmem:[%s1179 + $0x2f8] sm:$0xff]
        %v1311 = vld [vmem:[%s1179 + $0x300] sm:$0xff]
        %v1312 = vld [vmem:[%s1179 + $0x308] sm:$0xff]
        %v1313 = vld [vmem:[%s1179 + $0x310] sm:$0xff]
        %v1314 = vld [vmem:[%s1179 + $0x318] sm:$0xff]
        %v1315 = vld [vmem:[%s1179 + $0x320] sm:$0xff]
        %v1316 = vld [vmem:[%s1179 + $0x328] sm:$0xff]
        %v1317 = vld [vmem:[%s1179 + $0x330] sm:$0xff]
        %v1318 = vld [vmem:[%s1179 + $0x338] sm:$0xff]
        %v1319 = vld [vmem:[%s1179 + $0x340] sm:$0xff]
        %v1320 = vld [vmem:[%s1179 + $0x348] sm:$0xff]
        %v1321 = vld [vmem:[%s1179 + $0x350] sm:$0xff]
        %v1322 = vld [vmem:[%s1179 + $0x358] sm:$0xff]
        %v1323 = vld [vmem:[%s1179 + $0x360] sm:$0xff]
        %v1324 = vld [vmem:[%s1179 + $0x368] sm:$0xff]
        %v1325 = vld [vmem:[%s1179 + $0x370] sm:$0xff]
        %v1326 = vld [vmem:[%s1179 + $0x378] sm:$0xff]
        %v1327 = vld [vmem:[%s1179 + $0x380] sm:$0xff]
        %v1328 = vld [vmem:[%s1179 + $0x388] sm:$0xff]
        %v1329 = vld [vmem:[%s1179 + $0x390] sm:$0xff]
        %v1330 = vld [vmem:[%s1179 + $0x398] sm:$0xff]
        %v1331 = vld [vmem:[%s1179 + $0x3a0] sm:$0xff]
        %v1332 = vld [vmem:[%s1179 + $0x3a8] sm:$0xff]
        %v1333 = vld [vmem:[%s1179 + $0x3b0] sm:$0xff]
        %v1334 = vld [vmem:[%s1179 + $0x3b8] sm:$0xff]
        %v1335 = vld [vmem:[%s1179 + $0x3c0] sm:$0xff]
        %v1336 = vld [vmem:[%s1179 + $0x3c8] sm:$0xff]
        %v1337 = vld [vmem:[%s1179 + $0x3d0] sm:$0xff]
        %v1338 = vld [vmem:[%s1179 + $0x3d8] sm:$0xff]
        %v1339 = vld [vmem:[%s1179 + $0x3e0] sm:$0xff]
        %v1340 = vld [vmem:[%s1179 + $0x3e8] sm:$0xff]
        %v1341 = vld [vmem:[%s1179 + $0x3f0] sm:$0xff]
        %v1342 = vld [vmem:[%s1179 + $0x3f8] sm:$0xff]
        %v1343 = vld [vmem:[%s1179 + $0x400] sm:$0xff]
        %v1344 = vld [vmem:[%s1179 + $0x408] sm:$0xff]
        %v1345 = vld [vmem:[%s1179 + $0x410] sm:$0xff]
        %v1346 = vld [vmem:[%s1179 + $0x418] sm:$0xff]
        %v1347 = vld [vmem:[%s1179 + $0x420] sm:$0xff]
        %v1348 = vld [vmem:[%s1179 + $0x428] sm:$0xff]
        %v1349 = vld [vmem:[%s1179 + $0x430] sm:$0xff]
        %v1350 = vld [vmem:[%s1179 + $0x438] sm:$0xff]
        %v1351 = vld [vmem:[%s1179 + $0x440] sm:$0xff]
        %v1352 = vld [vmem:[%s1179 + $0x448] sm:$0xff]
        %v1353 = vld [vmem:[%s1179 + $0x450] sm:$0xff]
        %v1354 = vld [vmem:[%s1179 + $0x458] sm:$0xff]
        %v1355 = vld [vmem:[%s1179 + $0x460] sm:$0xff]
        %v1356 = vld [vmem:[%s1179 + $0x468] sm:$0xff]
        %v1357 = vld [vmem:[%s1179 + $0x470] sm:$0xff]
        %v1358 = vld [vmem:[%s1179 + $0x478] sm:$0xff]
        %v1359 = vld [vmem:[%s1179 + $0x480] sm:$0xff]
        %v1360 = vld [vmem:[%s1179 + $0x488] sm:$0xff]
        %v1361 = vld [vmem:[%s1179 + $0x490] sm:$0xff]
        %v1362 = vld [vmem:[%s1179 + $0x498] sm:$0xff]
        %v1363 = vld [vmem:[%s1179 + $0x4a0] sm:$0xff]
        %v1364 = vld [vmem:[%s1179 + $0x4a8] sm:$0xff]
        %v1365 = vld [vmem:[%s1179 + $0x4b0] sm:$0xff]
        %v1366 = vld [vmem:[%s1179 + $0x4b8] sm:$0xff]
        %v1367 = vld [vmem:[%s1179 + $0x4c0] sm:$0xff]
        %v1368 = vld [vmem:[%s1179 + $0x4c8] sm:$0xff]
        %v1369 = vld [vmem:[%s1179 + $0x4d0] sm:$0xff]
        %v1370 = vld [vmem:[%s1179 + $0x4d8] sm:$0xff]
        %v1371 = vld [vmem:[%s1179 + $0x4e0] sm:$0xff]
        %v1372 = vld [vmem:[%s1179 + $0x4e8] sm:$0xff]
        %v1373 = vld [vmem:[%s1179 + $0x4f0] sm:$0xff]
        %v1374 = vld [vmem:[%s1179 + $0x4f8] sm:$0xff]
        %v1375 = vld [vmem:[%s1179 + $0x500] sm:$0xff]
        %v1376 = vld [vmem:[%s1179 + $0x508] sm:$0xff]
        %v1377 = vld [vmem:[%s1179 + $0x510] sm:$0xff]
        %v1378 = vld [vmem:[%s1179 + $0x518] sm:$0xff]
        %v1379 = vld [vmem:[%s1179 + $0x520] sm:$0xff]
        %v1380 = vld [vmem:[%s1179 + $0x528] sm:$0xff]
        %v1381 = vld [vmem:[%s1179 + $0x530] sm:$0xff]
        %v1382 = vld [vmem:[%s1179 + $0x538] sm:$0xff]
        %v1383 = vld [vmem:[%s1179 + $0x540] sm:$0xff]
        %v1384 = vld [vmem:[%s1179 + $0x548] sm:$0xff]
        %v1385 = vld [vmem:[%s1179 + $0x550] sm:$0xff]
        %v1386 = vld [vmem:[%s1179 + $0x558] sm:$0xff]
        %v1387 = vld [vmem:[%s1179 + $0x560] sm:$0xff]
        %v1388 = vld [vmem:[%s1179 + $0x568] sm:$0xff]
        %v1389 = vld [vmem:[%s1179 + $0x570] sm:$0xff]
        %v1390 = vld [vmem:[%s1179 + $0x578] sm:$0xff]
        %v1391 = vld [vmem:[%s1179 + $0x580] sm:$0xff]
        %v1392 = vld [vmem:[%s1179 + $0x588] sm:$0xff]
        %v1393 = vld [vmem:[%s1179 + $0x590] sm:$0xff]
        %v1394 = vld [vmem:[%s1179 + $0x598] sm:$0xff]
        %v1395 = vld [vmem:[%s1179 + $0x5a0] sm:$0xff]
        %v1396 = vld [vmem:[%s1179 + $0x5a8] sm:$0xff]
        %v1397 = vld [vmem:[%s1179 + $0x5b0] sm:$0xff]
        %v1398 = vld [vmem:[%s1179 + $0x5b8] sm:$0xff]
        %v1399 = vld [vmem:[%s1179 + $0x5c0] sm:$0xff]
        %v1400 = vld [vmem:[%s1179 + $0x5c8] sm:$0xff]
        %v1401 = vld [vmem:[%s1179 + $0x5d0] sm:$0xff]
        %v1402 = vld [vmem:[%s1179 + $0x5d8] sm:$0xff]
        %v1403 = vld [vmem:[%s1179 + $0x5e0] sm:$0xff]
        %v1404 = vld [vmem:[%s1179 + $0x5e8] sm:$0xff]
        %v1405 = vld [vmem:[%s1179 + $0x5f0] sm:$0xff]
        %v1406 = vld [vmem:[%s1179 + $0x5f8] sm:$0xff]
        %v1407 = vld [vmem:[%s1179 + $0x600] sm:$0xff]
        %v1408 = vld [vmem:[%s1179 + $0x608] sm:$0xff]
        %v1409 = vld [vmem:[%s1179 + $0x610] sm:$0xff]
        %v1410 = vld [vmem:[%s1179 + $0x618] sm:$0xff]
        %v1411 = vld [vmem:[%s1179 + $0x620] sm:$0xff]
        %v1412 = vld [vmem:[%s1179 + $0x628] sm:$0xff]
        %v1413 = vld [vmem:[%s1179 + $0x630] sm:$0xff]
        %v1414 = vld [vmem:[%s1179 + $0x638] sm:$0xff]
        %v1415 = vld [vmem:[%s1179 + $0x640] sm:$0xff]
        %v1416 = vld [vmem:[%s1179 + $0x648] sm:$0xff]
        %v1417 = vld [vmem:[%s1179 + $0x650] sm:$0xff]
        %v1418 = vld [vmem:[%s1179 + $0x658] sm:$0xff]
        %v1419 = vld [vmem:[%s1179 + $0x660] sm:$0xff]
        %v1420 = vld [vmem:[%s1179 + $0x668] sm:$0xff]
        %v1421 = vld [vmem:[%s1179 + $0x670] sm:$0xff]
        %v1422 = vld [vmem:[%s1179 + $0x678] sm:$0xff]
        %v1423 = vld [vmem:[%s1179 + $0x680] sm:$0xff]
        %v1424 = vld [vmem:[%s1179 + $0x688] sm:$0xff]
        %v1425 = vld [vmem:[%s1179 + $0x690] sm:$0xff]
        %v1426 = vld [vmem:[%s1179 + $0x698] sm:$0xff]
        %v1427 = vld [vmem:[%s1179 + $0x6a0] sm:$0xff]
        %v1428 = vld [vmem:[%s1179 + $0x6a8] sm:$0xff]
        %v1429 = vld [vmem:[%s1179 + $0x6b0] sm:$0xff]
        %v1430 = vld [vmem:[%s1179 + $0x6b8] sm:$0xff]
        %v1431 = vld [vmem:[%s1179 + $0x6c0] sm:$0xff]
        %v1432 = vld [vmem:[%s1179 + $0x6c8] sm:$0xff]
        %v1433 = vld [vmem:[%s1179 + $0x6d0] sm:$0xff]
        %v1434 = vld [vmem:[%s1179 + $0x6d8] sm:$0xff]
        %v1435 = vld [vmem:[%s1179 + $0x6e0] sm:$0xff]
        %v1436 = vld [vmem:[%s1179 + $0x6e8] sm:$0xff]
        %v1437 = vld [vmem:[%s1179 + $0x6f0] sm:$0xff]
        %v1438 = vld [vmem:[%s1179 + $0x6f8] sm:$0xff]
        %v1439 = vld [vmem:[%s1179 + $0x700] sm:$0xff]
        %v1440 = vld [vmem:[%s1179 + $0x708] sm:$0xff]
        %v1441 = vld [vmem:[%s1179 + $0x710] sm:$0xff]
        %v1442 = vld [vmem:[%s1179 + $0x718] sm:$0xff]
        %v1443 = vld [vmem:[%s1179 + $0x720] sm:$0xff]
        %v1444 = vld [vmem:[%s1179 + $0x728] sm:$0xff]
        %v1445 = vld [vmem:[%s1179 + $0x730] sm:$0xff]
        %v1446 = vld [vmem:[%s1179 + $0x738] sm:$0xff]
        %v1447 = vld [vmem:[%s1179 + $0x740] sm:$0xff]
        %v1448 = vld [vmem:[%s1179 + $0x748] sm:$0xff]
        %v1449 = vld [vmem:[%s1179 + $0x750] sm:$0xff]
        %v1450 = vld [vmem:[%s1179 + $0x758] sm:$0xff]
        %v1451 = vld [vmem:[%s1179 + $0x760] sm:$0xff]
        %v1452 = vld [vmem:[%s1179 + $0x768] sm:$0xff]
        %v1453 = vld [vmem:[%s1179 + $0x770] sm:$0xff]
        %v1454 = vld [vmem:[%s1179 + $0x778] sm:$0xff]
        %v1455 = vld [vmem:[%s1179 + $0x780] sm:$0xff]
        %v1456 = vld [vmem:[%s1179 + $0x788] sm:$0xff]
        %v1457 = vld [vmem:[%s1179 + $0x790] sm:$0xff]
        %v1458 = vld [vmem:[%s1179 + $0x798] sm:$0xff]
        %v1459 = vld [vmem:[%s1179 + $0x7a0] sm:$0xff]
        %v1460 = vld [vmem:[%s1179 + $0x7a8] sm:$0xff]
        %v1461 = vld [vmem:[%s1179 + $0x7b0] sm:$0xff]
        %v1462 = vld [vmem:[%s1179 + $0x7b8] sm:$0xff]
        %v1463 = vld [vmem:[%s1179 + $0x7c0] sm:$0xff]
        %v1464 = vld [vmem:[%s1179 + $0x7c8] sm:$0xff]
        %v1465 = vld [vmem:[%s1179 + $0x7d0] sm:$0xff]
        %v1466 = vld [vmem:[%s1179 + $0x7d8] sm:$0xff]
        %v1467 = vld [vmem:[%s1179 + $0x7e0] sm:$0xff]
        %v1468 = vld [vmem:[%s1179 + $0x7e8] sm:$0xff]
        %v1469 = vld [vmem:[%s1179 + $0x7f0] sm:$0xff]
        %v1470 = vld [vmem:[%s1179 + $0x7f8] sm:$0xff]
        %v1471 = vld [vmem:[%s1179 + $0x800] sm:$0xff]
        %v1472 = vld [vmem:[%s1179 + $0x808] sm:$0xff]
        %v1473 = vld [vmem:[%s1179 + $0x810] sm:$0xff]
        %v1474 = vld [vmem:[%s1179 + $0x818] sm:$0xff]
        %v1475 = vld [vmem:[%s1179 + $0x820] sm:$0xff]
        %v1476 = vld [vmem:[%s1179 + $0x828] sm:$0xff]
        %v1477 = vld [vmem:[%s1179 + $0x830] sm:$0xff]
        %v1478 = vld [vmem:[%s1179 + $0x838] sm:$0xff]
        %v1479 = vld [vmem:[%s1179 + $0x840] sm:$0xff]
        %v1480 = vld [vmem:[%s1179 + $0x848] sm:$0xff]
        %v1481 = vld [vmem:[%s1179 + $0x850] sm:$0xff]
        %v1482 = vld [vmem:[%s1179 + $0x858] sm:$0xff]
        %v1483 = vld [vmem:[%s1179 + $0x860] sm:$0xff]
        %v1484 = vld [vmem:[%s1179 + $0x868] sm:$0xff]
        %v1485 = vld [vmem:[%s1179 + $0x870] sm:$0xff]
        %v1486 = vld [vmem:[%s1179 + $0x878] sm:$0xff]
        %v1487 = vld [vmem:[%s1179 + $0x880] sm:$0xff]
        %v1488 = vld [vmem:[%s1179 + $0x888] sm:$0xff]
        %v1489 = vld [vmem:[%s1179 + $0x890] sm:$0xff]
        %v1490 = vld [vmem:[%s1179 + $0x898] sm:$0xff]
        %v1491 = vld [vmem:[%s1179 + $0x8a0] sm:$0xff]
        %v1492 = vld [vmem:[%s1179 + $0x8a8] sm:$0xff]
        %v1493 = vld [vmem:[%s1179 + $0x8b0] sm:$0xff]
        %v1494 = vld [vmem:[%s1179 + $0x8b8] sm:$0xff]
        %v1495 = vld [vmem:[%s1179 + $0x8c0] sm:$0xff]
        %v1496 = vld [vmem:[%s1179 + $0x8c8] sm:$0xff]
        %v1497 = vld [vmem:[%s1179 + $0x8d0] sm:$0xff]
        %v1498 = vld [vmem:[%s1179 + $0x8d8] sm:$0xff]
        %v1499 = vld [vmem:[%s1179 + $0x8e0] sm:$0xff]
        %v1500 = vld [vmem:[%s1179 + $0x8e8] sm:$0xff]
        %v1501 = vld [vmem:[%s1179 + $0x8f0] sm:$0xff]
        %v1502 = vld [vmem:[%s1179 + $0x8f8] sm:$0xff]
        %v1503 = vld [vmem:[%s1179 + $0x900] sm:$0xff]
        %v1504 = vld [vmem:[%s1179 + $0x908] sm:$0xff]
        %v1505 = vld [vmem:[%s1179 + $0x910] sm:$0xff]
        %v1506 = vld [vmem:[%s1179 + $0x918] sm:$0xff]
        %v1507 = vld [vmem:[%s1179 + $0x920] sm:$0xff]
        %v1508 = vld [vmem:[%s1179 + $0x928] sm:$0xff]
        %v1509 = vld [vmem:[%s1179 + $0x930] sm:$0xff]
        %v1510 = vld [vmem:[%s1179 + $0x938] sm:$0xff]
        %v1511 = vld [vmem:[%s1179 + $0x940] sm:$0xff]
        %v1512 = vld [vmem:[%s1179 + $0x948] sm:$0xff]
        %v1513 = vld [vmem:[%s1179 + $0x950] sm:$0xff]
        %v1514 = vld [vmem:[%s1179 + $0x958] sm:$0xff]
        %v1515 = vld [vmem:[%s1179 + $0x960] sm:$0xff]
        %v1516 = vld [vmem:[%s1179 + $0x968] sm:$0xff]
        %v1517 = vld [vmem:[%s1179 + $0x970] sm:$0xff]
        %v1518 = vld [vmem:[%s1179 + $0x978] sm:$0xff]
        %v1519 = vld [vmem:[%s1179 + $0x980] sm:$0xff]
        %v1520 = vld [vmem:[%s1179 + $0x988] sm:$0xff]
        %v1521 = vld [vmem:[%s1179 + $0x990] sm:$0xff]
        %v1522 = vld [vmem:[%s1179 + $0x998] sm:$0xff]
        %v1523 = vld [vmem:[%s1179 + $0x9a0] sm:$0xff]
        %v1524 = vld [vmem:[%s1179 + $0x9a8] sm:$0xff]
        %v1525 = vld [vmem:[%s1179 + $0x9b0] sm:$0xff]
        %v1526 = vld [vmem:[%s1179 + $0x9b8] sm:$0xff]
        %v1527 = vld [vmem:[%s1179 + $0x9c0] sm:$0xff]
        %v1528 = vld [vmem:[%s1179 + $0x9c8] sm:$0xff]
        %v1529 = vld [vmem:[%s1179 + $0x9d0] sm:$0xff]
        %v1530 = vld [vmem:[%s1179 + $0x9d8] sm:$0xff]
        %v1531 = vld [vmem:[%s1179 + $0x9e0] sm:$0xff]
        %v1532 = vld [vmem:[%s1179 + $0x9e8] sm:$0xff]
        %v1533 = vld [vmem:[%s1179 + $0x9f0] sm:$0xff]
        %v1534 = vld [vmem:[%s1179 + $0x9f8] sm:$0xff]
        %v1535 = vld [vmem:[%s1179 + $0xa00] sm:$0xff]
        %v1536 = vld [vmem:[%s1179 + $0xa08] sm:$0xff]
        %v1537 = vld [vmem:[%s1179 + $0xa10] sm:$0xff]
        %v1538 = vld [vmem:[%s1179 + $0xa18] sm:$0xff]
        %v1539 = vld [vmem:[%s1179 + $0xa20] sm:$0xff]
        %v1540 = vld [vmem:[%s1179 + $0xa28] sm:$0xff]
        %v1541 = vld [vmem:[%s1179 + $0xa30] sm:$0xff]
        %v1542 = vld [vmem:[%s1179 + $0xa38] sm:$0xff]
        %v1543 = vld [vmem:[%s1179 + $0xa40] sm:$0xff]
        %v1544 = vld [vmem:[%s1179 + $0xa48] sm:$0xff]
        %v1545 = vld [vmem:[%s1179 + $0xa50] sm:$0xff]
        %v1546 = vld [vmem:[%s1179 + $0xa58] sm:$0xff]
        %v1547 = vld [vmem:[%s1179 + $0xa60] sm:$0xff]
        %v1548 = vld [vmem:[%s1179 + $0xa68] sm:$0xff]
        %v1549 = vld [vmem:[%s1179 + $0xa70] sm:$0xff]
        %v1550 = vld [vmem:[%s1179 + $0xa78] sm:$0xff]
        %v1551 = vld [vmem:[%s1179 + $0xa80] sm:$0xff]
        %v1552 = vld [vmem:[%s1179 + $0xa88] sm:$0xff]
        %v1553 = vld [vmem:[%s1179 + $0xa90] sm:$0xff]
        %v1554 = vld [vmem:[%s1179 + $0xa98] sm:$0xff]
        %v1555 = vld [vmem:[%s1179 + $0xaa0] sm:$0xff]
        %v1556 = vld [vmem:[%s1179 + $0xaa8] sm:$0xff]
        %v1557 = vld [vmem:[%s1179 + $0xab0] sm:$0xff]
        %v1558 = vld [vmem:[%s1179 + $0xab8] sm:$0xff]
        %v1559 = vld [vmem:[%s1179 + $0xac0] sm:$0xff]
        %v1560 = vld [vmem:[%s1179 + $0xac8] sm:$0xff]
        %v1561 = vld [vmem:[%s1179 + $0xad0] sm:$0xff]
        %v1562 = vld [vmem:[%s1179 + $0xad8] sm:$0xff]
        %v1563 = vld [vmem:[%s1179 + $0xae0] sm:$0xff]
        %v1564 = vld [vmem:[%s1179 + $0xae8] sm:$0xff]
        %v1565 = vld [vmem:[%s1179 + $0xaf0] sm:$0xff]
        %v1566 = vld [vmem:[%s1179 + $0xaf8] sm:$0xff]
        %v1567 = vld [vmem:[%s1179 + $0xb00] sm:$0xff]
        %v1568 = vld [vmem:[%s1179 + $0xb08] sm:$0xff]
        %v1569 = vld [vmem:[%s1179 + $0xb10] sm:$0xff]
        %v1570 = vld [vmem:[%s1179 + $0xb18] sm:$0xff]
        %v1571 = vld [vmem:[%s1179 + $0xb20] sm:$0xff]
        %v1572 = vld [vmem:[%s1179 + $0xb28] sm:$0xff]
        %v1573 = vld [vmem:[%s1179 + $0xb30] sm:$0xff]
        %v1574 = vld [vmem:[%s1179 + $0xb38] sm:$0xff]
        %v1575 = vld [vmem:[%s1179 + $0xb40] sm:$0xff]
        %v1576 = vld [vmem:[%s1179 + $0xb48] sm:$0xff]
        %v1577 = vld [vmem:[%s1179 + $0xb50] sm:$0xff]
        %v1578 = vld [vmem:[%s1179 + $0xb58] sm:$0xff]
        %v1579 = vld [vmem:[%s1179 + $0xb60] sm:$0xff]
        %v1580 = vld [vmem:[%s1179 + $0xb68] sm:$0xff]
        %v1581 = vld [vmem:[%s1179 + $0xb70] sm:$0xff]
        %v1582 = vld [vmem:[%s1179 + $0xb78] sm:$0xff]
        %v1583 = vld [vmem:[%s1179 + $0xb80] sm:$0xff]
        %v1584 = vld [vmem:[%s1179 + $0xb88] sm:$0xff]
        %v1585 = vld [vmem:[%s1179 + $0xb90] sm:$0xff]
        %v1586 = vld [vmem:[%s1179 + $0xb98] sm:$0xff]
        %v1587 = vld [vmem:[%s1179 + $0xba0] sm:$0xff]
        %v1588 = vld [vmem:[%s1179 + $0xba8] sm:$0xff]
        %v1589 = vld [vmem:[%s1179 + $0xbb0] sm:$0xff]
        %v1590 = vld [vmem:[%s1179 + $0xbb8] sm:$0xff]
        %v1591 = vld [vmem:[%s1179 + $0xbc0] sm:$0xff]
        %v1592 = vld [vmem:[%s1179 + $0xbc8] sm:$0xff]
        %v1593 = vld [vmem:[%s1179 + $0xbd0] sm:$0xff]
        %v1594 = vld [vmem:[%s1179 + $0xbd8] sm:$0xff]
        %v1595 = vld [vmem:[%s1179 + $0xbe0] sm:$0xff]
        %v1596 = vld [vmem:[%s1179 + $0xbe8] sm:$0xff]
        %v1597 = vld [vmem:[%s1179 + $0xbf0] sm:$0xff]
        %v1598 = vld [vmem:[%s1179 + $0xbf8] sm:$0xff]
        %v1599 = vld [vmem:[%s1179 + $0xc00] sm:$0xff]
        %v1600 = vld [vmem:[%s1179 + $0xc08] sm:$0xff]
        %v1601 = vld [vmem:[%s1179 + $0xc10] sm:$0xff]
        %v1602 = vld [vmem:[%s1179 + $0xc18] sm:$0xff]
        %v1603 = vld [vmem:[%s1179 + $0xc20] sm:$0xff]
        %v1604 = vld [vmem:[%s1179 + $0xc28] sm:$0xff]
        %v1605 = vld [vmem:[%s1179 + $0xc30] sm:$0xff]
        %v1606 = vld [vmem:[%s1179 + $0xc38] sm:$0xff]
        %v1607 = vld [vmem:[%s1179 + $0xc40] sm:$0xff]
        %v1608 = vld [vmem:[%s1179 + $0xc48] sm:$0xff]
        %v1609 = vld [vmem:[%s1179 + $0xc50] sm:$0xff]
        %v1610 = vld [vmem:[%s1179 + $0xc58] sm:$0xff]
        %v1611 = vld [vmem:[%s1179 + $0xc60] sm:$0xff]
        %v1612 = vld [vmem:[%s1179 + $0xc68] sm:$0xff]
        %v1613 = vld [vmem:[%s1179 + $0xc70] sm:$0xff]
        %v1614 = vld [vmem:[%s1179 + $0xc78] sm:$0xff]
        %v1615 = vld [vmem:[%s1179 + $0xc80] sm:$0xff]
        %v1616 = vld [vmem:[%s1179 + $0xc88] sm:$0xff]
        %v1617 = vld [vmem:[%s1179 + $0xc90] sm:$0xff]
        %v1618 = vld [vmem:[%s1179 + $0xc98] sm:$0xff]
        %v1619 = vld [vmem:[%s1179 + $0xca0] sm:$0xff]
        %v1620 = vld [vmem:[%s1179 + $0xca8] sm:$0xff]
        %v1621 = vld [vmem:[%s1179 + $0xcb0] sm:$0xff]
        %v1622 = vld [vmem:[%s1179 + $0xcb8] sm:$0xff]
        %v1623 = vld [vmem:[%s1179 + $0xcc0] sm:$0xff]
        %v1624 = vld [vmem:[%s1179 + $0xcc8] sm:$0xff]
        %v1625 = vld [vmem:[%s1179 + $0xcd0] sm:$0xff]
        %v1626 = vld [vmem:[%s1179 + $0xcd8] sm:$0xff]
        %v1627 = vld [vmem:[%s1179 + $0xce0] sm:$0xff]
        %v1628 = vld [vmem:[%s1179 + $0xce8] sm:$0xff]
        %v1629 = vld [vmem:[%s1179 + $0xcf0] sm:$0xff]
        %v1630 = vld [vmem:[%s1179 + $0xcf8] sm:$0xff]
        %v1631 = vld [vmem:[%s1179 + $0xd00] sm:$0xff]
        %v1632 = vld [vmem:[%s1179 + $0xd08] sm:$0xff]
        %v1633 = vld [vmem:[%s1179 + $0xd10] sm:$0xff]
        %v1634 = vld [vmem:[%s1179 + $0xd18] sm:$0xff]
        %v1635 = vld [vmem:[%s1179 + $0xd20] sm:$0xff]
        %v1636 = vld [vmem:[%s1179 + $0xd28] sm:$0xff]
        %v1637 = vld [vmem:[%s1179 + $0xd30] sm:$0xff]
        %v1638 = vld [vmem:[%s1179 + $0xd38] sm:$0xff]
        %v1639 = vld [vmem:[%s1179 + $0xd40] sm:$0xff]
        %v1640 = vld [vmem:[%s1179 + $0xd48] sm:$0xff]
        %v1641 = vld [vmem:[%s1179 + $0xd50] sm:$0xff]
        %v1642 = vld [vmem:[%s1179 + $0xd58] sm:$0xff]
        %v1643 = vld [vmem:[%s1179 + $0xd60] sm:$0xff]
        %v1644 = vld [vmem:[%s1179 + $0xd68] sm:$0xff]
        %v1645 = vld [vmem:[%s1179 + $0xd70] sm:$0xff]
        %v1646 = vld [vmem:[%s1179 + $0xd78] sm:$0xff]
        %v1647 = vld [vmem:[%s1179 + $0xd80] sm:$0xff]
        %v1648 = vld [vmem:[%s1179 + $0xd88] sm:$0xff]
        %v1649 = vld [vmem:[%s1179 + $0xd90] sm:$0xff]
        %v1650 = vld [vmem:[%s1179 + $0xd98] sm:$0xff]
        %v1651 = vld [vmem:[%s1179 + $0xda0] sm:$0xff]
        %v1652 = vld [vmem:[%s1179 + $0xda8] sm:$0xff]
        %v1653 = vld [vmem:[%s1179 + $0xdb0] sm:$0xff]
        %v1654 = vld [vmem:[%s1179 + $0xdb8] sm:$0xff]
        %v1655 = vld [vmem:[%s1179 + $0xdc0] sm:$0xff]
        %v1656 = vld [vmem:[%s1179 + $0xdc8] sm:$0xff]
        %v1657 = vld [vmem:[%s1179 + $0xdd0] sm:$0xff]
        %v1658 = vld [vmem:[%s1179 + $0xdd8] sm:$0xff]
        %v1659 = vld [vmem:[%s1179 + $0xde0] sm:$0xff]
        %v1660 = vld [vmem:[%s1179 + $0xde8] sm:$0xff]
        %v1661 = vld [vmem:[%s1179 + $0xdf0] sm:$0xff]
        %v1662 = vld [vmem:[%s1179 + $0xdf8] sm:$0xff]
        %v1663 = vld [vmem:[%s1179 + $0xe00] sm:$0xff]
        %v1664 = vld [vmem:[%s1179 + $0xe08] sm:$0xff]
        %v1665 = vld [vmem:[%s1179 + $0xe10] sm:$0xff]
        %v1666 = vld [vmem:[%s1179 + $0xe18] sm:$0xff]
        %v1667 = vld [vmem:[%s1179 + $0xe20] sm:$0xff]
        %v1668 = vld [vmem:[%s1179 + $0xe28] sm:$0xff]
        %v1669 = vld [vmem:[%s1179 + $0xe30] sm:$0xff]
        %v1670 = vld [vmem:[%s1179 + $0xe38] sm:$0xff]
        %v1671 = vld [vmem:[%s1179 + $0xe40] sm:$0xff]
        %v1672 = vld [vmem:[%s1179 + $0xe48] sm:$0xff]
        %v1673 = vld [vmem:[%s1179 + $0xe50] sm:$0xff]
        %v1674 = vld [vmem:[%s1179 + $0xe58] sm:$0xff]
        %v1675 = vld [vmem:[%s1179 + $0xe60] sm:$0xff]
        %v1676 = vld [vmem:[%s1179 + $0xe68] sm:$0xff]
        %v1677 = vld [vmem:[%s1179 + $0xe70] sm:$0xff]
        %v1678 = vld [vmem:[%s1179 + $0xe78] sm:$0xff]
        %v1679 = vld [vmem:[%s1179 + $0xe80] sm:$0xff]
        %v1680 = vld [vmem:[%s1179 + $0xe88] sm:$0xff]
        %v1681 = vld [vmem:[%s1179 + $0xe90] sm:$0xff]
        %v1682 = vld [vmem:[%s1179 + $0xe98] sm:$0xff]
        %v1683 = vld [vmem:[%s1179 + $0xea0] sm:$0xff]
        %v1684 = vld [vmem:[%s1179 + $0xea8] sm:$0xff]
        %v1685 = vld [vmem:[%s1179 + $0xeb0] sm:$0xff]
        %v1686 = vld [vmem:[%s1179 + $0xeb8] sm:$0xff]
        %v1687 = vld [vmem:[%s1179 + $0xec0] sm:$0xff]
        %v1688 = vld [vmem:[%s1179 + $0xec8] sm:$0xff]
        %v1689 = vld [vmem:[%s1179 + $0xed0] sm:$0xff]
        %v1690 = vld [vmem:[%s1179 + $0xed8] sm:$0xff]
        %v1691 = vld [vmem:[%s1179 + $0xee0] sm:$0xff]
        %v1692 = vld [vmem:[%s1179 + $0xee8] sm:$0xff]
        %v1693 = vld [vmem:[%s1179 + $0xef0] sm:$0xff]
        %v1694 = vld [vmem:[%s1179 + $0xef8] sm:$0xff]
        %v1695 = vld [vmem:[%s1179 + $0xf00] sm:$0xff]
        %v1696 = vld [vmem:[%s1179 + $0xf08] sm:$0xff]
        %v1697 = vld [vmem:[%s1179 + $0xf10] sm:$0xff]
        %v1698 = vld [vmem:[%s1179 + $0xf18] sm:$0xff]
        %v1699 = vld [vmem:[%s1179 + $0xf20] sm:$0xff]
        %v1700 = vld [vmem:[%s1179 + $0xf28] sm:$0xff]
        %v1701 = vld [vmem:[%s1179 + $0xf30] sm:$0xff]
        %v1702 = vld [vmem:[%s1179 + $0xf38] sm:$0xff]
        %v1703 = vld [vmem:[%s1179 + $0xf40] sm:$0xff]
        %v1704 = vld [vmem:[%s1179 + $0xf48] sm:$0xff]
        %v1705 = vld [vmem:[%s1179 + $0xf50] sm:$0xff]
        %v1706 = vld [vmem:[%s1179 + $0xf58] sm:$0xff]
        %v1707 = vld [vmem:[%s1179 + $0xf60] sm:$0xff]
        %v1708 = vld [vmem:[%s1179 + $0xf68] sm:$0xff]
        %v1709 = vld [vmem:[%s1179 + $0xf70] sm:$0xff]
        %v1710 = vld [vmem:[%s1179 + $0xf78] sm:$0xff]
        %v1711 = vld [vmem:[%s1179 + $0xf80] sm:$0xff]
        %v1712 = vld [vmem:[%s1179 + $0xf88] sm:$0xff]
        %v1713 = vld [vmem:[%s1179 + $0xf90] sm:$0xff]
        %v1714 = vld [vmem:[%s1179 + $0xf98] sm:$0xff]
        %v1715 = vld [vmem:[%s1179 + $0xfa0] sm:$0xff]
        %v1716 = vld [vmem:[%s1179 + $0xfa8] sm:$0xff]
        %v1717 = vld [vmem:[%s1179 + $0xfb0] sm:$0xff]
        %v1718 = vld [vmem:[%s1179 + $0xfb8] sm:$0xff]
        %v1719 = vld [vmem:[%s1179 + $0xfc0] sm:$0xff]
        %v1720 = vld [vmem:[%s1179 + $0xfc8] sm:$0xff]
        %v1721 = vld [vmem:[%s1179 + $0xfd0] sm:$0xff]
        %v1722 = vld [vmem:[%s1179 + $0xfd8] sm:$0xff]
        %v1723 = vld [vmem:[%s1179 + $0xfe0] sm:$0xff]
        %v1724 = vld [vmem:[%s1179 + $0xfe8] sm:$0xff]
        %v1725 = vld [vmem:[%s1179 + $0xff0] sm:$0xff]
        %v1726 = vld [vmem:[%s1179 + $0xff8] sm:$0xff]
        %v1728 = vlaneseq
        %v1729 = vshrl.u32 %v1728, 7
        %v1730 = vsub.s32 0, %v1729
        %v1731 = vrot.slane %v1213, %v1730
        %v1732 = vlaneseq
        %v1733 = vshrl.u32 %v1732, 7
        %v1734 = vsub.s32 1, %v1733
        %v1735 = vrot.slane %v1213, %v1734
        %v1736 = vlaneseq
        %v1737 = vshrl.u32 %v1736, 7
        %v1738 = vsub.s32 2, %v1737
        %v1739 = vrot.slane %v1213, %v1738
        %v1740 = vlaneseq
        %v1741 = vshrl.u32 %v1740, 7
        %v1742 = vsub.s32 3, %v1741
        %v1743 = vrot.slane %v1213, %v1742
        %1748 = vmatprep.subr.mxu0 %v1216
        %1749 = vmatpush1.xpose.msra.mxu0 %v1215
        %1750 = vmatprep.subr.mxu0 %v1220
        %1751 = vmatpush1.xpose.msra.mxu0 %v1219
        %1752 = vmatprep.subr.mxu0 %v1224
        %1753 = vmatpush1.xpose.msra.mxu0 %v1223
        %1754 = vmatprep.subr.mxu0 %v1228
        %1755 = vmatpush1.xpose.msra.mxu0 %v1227
        %1756 = vmatprep.subr.mxu0 %v1232
        %1757 = vmatpush1.xpose.msra.mxu0 %v1231
        %1758 = vmatprep.subr.mxu0 %v1236
        %1759 = vmatpush1.xpose.msra.mxu0 %v1235
        %1760 = vmatprep.subr.mxu0 %v1240
        %1761 = vmatpush1.xpose.msra.mxu0 %v1239
        %1762 = vmatprep.subr.mxu0 %v1244
        %1763 = vmatpush1.xpose.msra.mxu0 %v1243
        %1764 = vmatprep.subr.mxu0 %v1248
        %1765 = vmatpush1.xpose.msra.mxu0 %v1247
        %1766 = vmatprep.subr.mxu0 %v1252
        %1767 = vmatpush1.xpose.msra.mxu0 %v1251
        %1768 = vmatprep.subr.mxu0 %v1256
        %1769 = vmatpush1.xpose.msra.mxu0 %v1255
        %1770 = vmatprep.subr.mxu0 %v1260
        %1771 = vmatpush1.xpose.msra.mxu0 %v1259
        %1772 = vmatprep.subr.mxu0 %v1264
        %1773 = vmatpush1.xpose.msra.mxu0 %v1263
        %1774 = vmatprep.subr.mxu0 %v1268
        %1775 = vmatpush1.xpose.msra.mxu0 %v1267
        %1776 = vmatprep.subr.mxu0 %v1272
        %1777 = vmatpush1.xpose.msra.mxu0 %v1271
        %1778 = vmatprep.subr.mxu0 %v1276
        %1779 = vmatpush1.xpose.msra.mxu0 %v1275
        %1780 = vmatprep.subr.mxu0 %v1280
        %1781 = vmatpush1.xpose.msra.mxu0 %v1279
        %1782 = vmatprep.subr.mxu0 %v1284
        %1783 = vmatpush1.xpose.msra.mxu0 %v1283
        %1784 = vmatprep.subr.mxu0 %v1288
        %1785 = vmatpush1.xpose.msra.mxu0 %v1287
        %1786 = vmatprep.subr.mxu0 %v1292
        %1787 = vmatpush1.xpose.msra.mxu0 %v1291
        %1788 = vmatprep.subr.mxu0 %v1296
        %1789 = vmatpush1.xpose.msra.mxu0 %v1295
        %1790 = vmatprep.subr.mxu0 %v1300
        %1791 = vmatpush1.xpose.msra.mxu0 %v1299
        %1792 = vmatprep.subr.mxu0 %v1304
        %1793 = vmatpush1.xpose.msra.mxu0 %v1303
        %1794 = vmatprep.subr.mxu0 %v1308
        %1795 = vmatpush1.xpose.msra.mxu0 %v1307
        %1796 = vmatprep.subr.mxu0 %v1312
        %1797 = vmatpush1.xpose.msra.mxu0 %v1311
        %1798 = vmatprep.subr.mxu0 %v1316
        %1799 = vmatpush1.xpose.msra.mxu0 %v1315
        %1800 = vmatprep.subr.mxu0 %v1320
        %1801 = vmatpush1.xpose.msra.mxu0 %v1319
        %1802 = vmatprep.subr.mxu0 %v1324
        %1803 = vmatpush1.xpose.msra.mxu0 %v1323
        %1804 = vmatprep.subr.mxu0 %v1328
        %1805 = vmatpush1.xpose.msra.mxu0 %v1327
        %1806 = vmatprep.subr.mxu0 %v1332
        %1807 = vmatpush1.xpose.msra.mxu0 %v1331
        %1808 = vmatprep.subr.mxu0 %v1336
        %1809 = vmatpush1.xpose.msra.mxu0 %v1335
        %1810 = vmatprep.subr.mxu0 %v1340
        %1811 = vmatpush1.xpose.msra.mxu0 %v1339
        %1812 = vmatprep.mubr.f32.mxu0 %v1735
        %1813 = vmatmul.mubr.f32.gmra.mrb[0].mxu0 %v1731
        %v1814 = vpop.f32.mrb[0].mxu0
        %v1815 = vadd.f32 0.0, %v1814
        %v1816 = vpop.f32.mrb[0].mxu0
        %v1817 = vadd.f32 0.0, %v1816
        %1818 = vdwg.mxu0
        %1819 = vmatprep.subr.mxu0 %v1218
        %1820 = vmatpush1.xpose.msra.mxu0 %v1217
        %1821 = vmatprep.subr.mxu0 %v1222
        %1822 = vmatpush1.xpose.msra.mxu0 %v1221
        %1823 = vmatprep.subr.mxu0 %v1226
        %1824 = vmatpush1.xpose.msra.mxu0 %v1225
        %1825 = vmatprep.subr.mxu0 %v1230
        %1826 = vmatpush1.xpose.msra.mxu0 %v1229
        %1827 = vmatprep.subr.mxu0 %v1234
        %1828 = vmatpush1.xpose.msra.mxu0 %v1233
        %1829 = vmatprep.subr.mxu0 %v1238
        %1830 = vmatpush1.xpose.msra.mxu0 %v1237
        %1831 = vmatprep.subr.mxu0 %v1242
        %1832 = vmatpush1.xpose.msra.mxu0 %v1241
        %1833 = vmatprep.subr.mxu0 %v1246
        %1834 = vmatpush1.xpose.msra.mxu0 %v1245
        %1835 = vmatprep.subr.mxu0 %v1250
        %1836 = vmatpush1.xpose.msra.mxu0 %v1249
        %1837 = vmatprep.subr.mxu0 %v1254
        %1838 = vmatpush1.xpose.msra.mxu0 %v1253
        %1839 = vmatprep.subr.mxu0 %v1258
        %1840 = vmatpush1.xpose.msra.mxu0 %v1257
        %1841 = vmatprep.subr.mxu0 %v1262
        %1842 = vmatpush1.xpose.msra.mxu0 %v1261
        %1843 = vmatprep.subr.mxu0 %v1266
        %1844 = vmatpush1.xpose.msra.mxu0 %v1265
        %1845 = vmatprep.subr.mxu0 %v1270
        %1846 = vmatpush1.xpose.msra.mxu0 %v1269
        %1847 = vmatprep.subr.mxu0 %v1274
        %1848 = vmatpush1.xpose.msra.mxu0 %v1273
        %1849 = vmatprep.subr.mxu0 %v1278
        %1850 = vmatpush1.xpose.msra.mxu0 %v1277
        %1851 = vmatprep.subr.mxu0 %v1282
        %1852 = vmatpush1.xpose.msra.mxu0 %v1281
        %1853 = vmatprep.subr.mxu0 %v1286
        %1854 = vmatpush1.xpose.msra.mxu0 %v1285
        %1855 = vmatprep.subr.mxu0 %v1290
        %1856 = vmatpush1.xpose.msra.mxu0 %v1289
        %1857 = vmatprep.subr.mxu0 %v1294
        %1858 = vmatpush1.xpose.msra.mxu0 %v1293
        %1859 = vmatprep.subr.mxu0 %v1298
        %1860 = vmatpush1.xpose.msra.mxu0 %v1297
        %1861 = vmatprep.subr.mxu0 %v1302
        %1862 = vmatpush1.xpose.msra.mxu0 %v1301
        %1863 = vmatprep.subr.mxu0 %v1306
        %1864 = vmatpush1.xpose.msra.mxu0 %v1305
        %1865 = vmatprep.subr.mxu0 %v1310
        %1866 = vmatpush1.xpose.msra.mxu0 %v1309
        %1867 = vmatprep.subr.mxu0 %v1314
        %1868 = vmatpush1.xpose.msra.mxu0 %v1313
        %1869 = vmatprep.subr.mxu0 %v1318
        %1870 = vmatpush1.xpose.msra.mxu0 %v1317
        %1871 = vmatprep.subr.mxu0 %v1322
        %1872 = vmatpush1.xpose.msra.mxu0 %v1321
        %1873 = vmatprep.subr.mxu0 %v1326
        %1874 = vmatpush1.xpose.msra.mxu0 %v1325
        %1875 = vmatprep.subr.mxu0 %v1330
        %1876 = vmatpush1.xpose.msra.mxu0 %v1329
        %1877 = vmatprep.subr.mxu0 %v1334
        %1878 = vmatpush1.xpose.msra.mxu0 %v1333
        %1879 = vmatprep.subr.mxu0 %v1338
        %1880 = vmatpush1.xpose.msra.mxu0 %v1337
        %1881 = vmatprep.subr.mxu0 %v1342
        %1882 = vmatpush1.xpose.msra.mxu0 %v1341
        %1883 = vmatprep.mubr.f32.mxu0 %v1743
        %1884 = vmatmul.mubr.f32.gmra.mrb[0].mxu0 %v1739
        %v1885 = vpop.f32.mrb[0].mxu0
        %v1886 = vadd.f32 %v1815, %v1885
        %v1887 = vpop.f32.mrb[0].mxu0
        %v1888 = vadd.f32 %v1817, %v1887
        %1889 = vdwg.mxu0
        %1890 = vmatprep.subr.mxu0 %v1344
        %1891 = vmatpush1.xpose.msra.mxu0 %v1343
        %1892 = vmatprep.subr.mxu0 %v1348
        %1893 = vmatpush1.xpose.msra.mxu0 %v1347
        %1894 = vmatprep.subr.mxu0 %v1352
        %1895 = vmatpush1.xpose.msra.mxu0 %v1351
        %1896 = vmatprep.subr.mxu0 %v1356
        %1897 = vmatpush1.xpose.msra.mxu0 %v1355
        %1898 = vmatprep.subr.mxu0 %v1360
        %1899 = vmatpush1.xpose.msra.mxu0 %v1359
        %1900 = vmatprep.subr.mxu0 %v1364
        %1901 = vmatpush1.xpose.msra.mxu0 %v1363
        %1902 = vmatprep.subr.mxu0 %v1368
        %1903 = vmatpush1.xpose.msra.mxu0 %v1367
        %1904 = vmatprep.subr.mxu0 %v1372
        %1905 = vmatpush1.xpose.msra.mxu0 %v1371
        %1906 = vmatprep.subr.mxu0 %v1376
        %1907 = vmatpush1.xpose.msra.mxu0 %v1375
        %1908 = vmatprep.subr.mxu0 %v1380
        %1909 = vmatpush1.xpose.msra.mxu0 %v1379
        %1910 = vmatprep.subr.mxu0 %v1384
        %1911 = vmatpush1.xpose.msra.mxu0 %v1383
        %1912 = vmatprep.subr.mxu0 %v1388
        %1913 = vmatpush1.xpose.msra.mxu0 %v1387
        %1914 = vmatprep.subr.mxu0 %v1392
        %1915 = vmatpush1.xpose.msra.mxu0 %v1391
        %1916 = vmatprep.subr.mxu0 %v1396
        %1917 = vmatpush1.xpose.msra.mxu0 %v1395
        %1918 = vmatprep.subr.mxu0 %v1400
        %1919 = vmatpush1.xpose.msra.mxu0 %v1399
        %1920 = vmatprep.subr.mxu0 %v1404
        %1921 = vmatpush1.xpose.msra.mxu0 %v1403
        %1922 = vmatprep.subr.mxu0 %v1408
        %1923 = vmatpush1.xpose.msra.mxu0 %v1407
        %1924 = vmatprep.subr.mxu0 %v1412
        %1925 = vmatpush1.xpose.msra.mxu0 %v1411
        %1926 = vmatprep.subr.mxu0 %v1416
        %1927 = vmatpush1.xpose.msra.mxu0 %v1415
        %1928 = vmatprep.subr.mxu0 %v1420
        %1929 = vmatpush1.xpose.msra.mxu0 %v1419
        %1930 = vmatprep.subr.mxu0 %v1424
        %1931 = vmatpush1.xpose.msra.mxu0 %v1423
        %1932 = vmatprep.subr.mxu0 %v1428
        %1933 = vmatpush1.xpose.msra.mxu0 %v1427
        %1934 = vmatprep.subr.mxu0 %v1432
        %1935 = vmatpush1.xpose.msra.mxu0 %v1431
        %1936 = vmatprep.subr.mxu0 %v1436
        %1937 = vmatpush1.xpose.msra.mxu0 %v1435
        %1938 = vmatprep.subr.mxu0 %v1440
        %1939 = vmatpush1.xpose.msra.mxu0 %v1439
        %1940 = vmatprep.subr.mxu0 %v1444
        %1941 = vmatpush1.xpose.msra.mxu0 %v1443
        %1942 = vmatprep.subr.mxu0 %v1448
        %1943 = vmatpush1.xpose.msra.mxu0 %v1447
        %1944 = vmatprep.subr.mxu0 %v1452
        %1945 = vmatpush1.xpose.msra.mxu0 %v1451
        %1946 = vmatprep.subr.mxu0 %v1456
        %1947 = vmatpush1.xpose.msra.mxu0 %v1455
        %1948 = vmatprep.subr.mxu0 %v1460
        %1949 = vmatpush1.xpose.msra.mxu0 %v1459
        %1950 = vmatprep.subr.mxu0 %v1464
        %1951 = vmatpush1.xpose.msra.mxu0 %v1463
        %1952 = vmatprep.subr.mxu0 %v1468
        %1953 = vmatpush1.xpose.msra.mxu0 %v1467
        %1954 = vmatprep.mubr.f32.mxu0 %v1735
        %1955 = vmatmul.mubr.f32.gmra.mrb[0].mxu0 %v1731
        %v1956 = vpop.f32.mrb[0].mxu0
        %v1957 = vadd.f32 0.0, %v1956
        %v1958 = vpop.f32.mrb[0].mxu0
        %v1959 = vadd.f32 0.0, %v1958
        %1960 = vdwg.mxu0
        %1961 = vmatprep.subr.mxu0 %v1346
        %1962 = vmatpush1.xpose.msra.mxu0 %v1345
        %1963 = vmatprep.subr.mxu0 %v1350
        %1964 = vmatpush1.xpose.msra.mxu0 %v1349
        %1965 = vmatprep.subr.mxu0 %v1354
        %1966 = vmatpush1.xpose.msra.mxu0 %v1353
        %1967 = vmatprep.subr.mxu0 %v1358
        %1968 = vmatpush1.xpose.msra.mxu0 %v1357
        %1969 = vmatprep.subr.mxu0 %v1362
        %1970 = vmatpush1.xpose.msra.mxu0 %v1361
        %1971 = vmatprep.subr.mxu0 %v1366
        %1972 = vmatpush1.xpose.msra.mxu0 %v1365
        %1973 = vmatprep.subr.mxu0 %v1370
        %1974 = vmatpush1.xpose.msra.mxu0 %v1369
        %1975 = vmatprep.subr.mxu0 %v1374
        %1976 = vmatpush1.xpose.msra.mxu0 %v1373
        %1977 = vmatprep.subr.mxu0 %v1378
        %1978 = vmatpush1.xpose.msra.mxu0 %v1377
        %1979 = vmatprep.subr.mxu0 %v1382
        %1980 = vmatpush1.xpose.msra.mxu0 %v1381
        %1981 = vmatprep.subr.mxu0 %v1386
        %1982 = vmatpush1.xpose.msra.mxu0 %v1385
        %1983 = vmatprep.subr.mxu0 %v1390
        %1984 = vmatpush1.xpose.msra.mxu0 %v1389
        %1985 = vmatprep.subr.mxu0 %v1394
        %1986 = vmatpush1.xpose.msra.mxu0 %v1393
        %1987 = vmatprep.subr.mxu0 %v1398
        %1988 = vmatpush1.xpose.msra.mxu0 %v1397
        %1989 = vmatprep.subr.mxu0 %v1402
        %1990 = vmatpush1.xpose.msra.mxu0 %v1401
        %1991 = vmatprep.subr.mxu0 %v1406
        %1992 = vmatpush1.xpose.msra.mxu0 %v1405
        %1993 = vmatprep.subr.mxu0 %v1410
        %1994 = vmatpush1.xpose.msra.mxu0 %v1409
        %1995 = vmatprep.subr.mxu0 %v1414
        %1996 = vmatpush1.xpose.msra.mxu0 %v1413
        %1997 = vmatprep.subr.mxu0 %v1418
        %1998 = vmatpush1.xpose.msra.mxu0 %v1417
        %1999 = vmatprep.subr.mxu0 %v1422
        %2000 = vmatpush1.xpose.msra.mxu0 %v1421
        %2001 = vmatprep.subr.mxu0 %v1426
        %2002 = vmatpush1.xpose.msra.mxu0 %v1425
        %2003 = vmatprep.subr.mxu0 %v1430
        %2004 = vmatpush1.xpose.msra.mxu0 %v1429
        %2005 = vmatprep.subr.mxu0 %v1434
        %2006 = vmatpush1.xpose.msra.mxu0 %v1433
        %2007 = vmatprep.subr.mxu0 %v1438
        %2008 = vmatpush1.xpose.msra.mxu0 %v1437
        %2009 = vmatprep.subr.mxu0 %v1442
        %2010 = vmatpush1.xpose.msra.mxu0 %v1441
        %2011 = vmatprep.subr.mxu0 %v1446
        %2012 = vmatpush1.xpose.msra.mxu0 %v1445
        %2013 = vmatprep.subr.mxu0 %v1450
        %2014 = vmatpush1.xpose.msra.mxu0 %v1449
        %2015 = vmatprep.subr.mxu0 %v1454
        %2016 = vmatpush1.xpose.msra.mxu0 %v1453
        %2017 = vmatprep.subr.mxu0 %v1458
        %2018 = vmatpush1.xpose.msra.mxu0 %v1457
        %2019 = vmatprep.subr.mxu0 %v1462
        %2020 = vmatpush1.xpose.msra.mxu0 %v1461
        %2021 = vmatprep.subr.mxu0 %v1466
        %2022 = vmatpush1.xpose.msra.mxu0 %v1465
        %2023 = vmatprep.subr.mxu0 %v1470
        %2024 = vmatpush1.xpose.msra.mxu0 %v1469
        %2025 = vmatprep.mubr.f32.mxu0 %v1743
        %2026 = vmatmul.mubr.f32.gmra.mrb[0].mxu0 %v1739
        %v2027 = vpop.f32.mrb[0].mxu0
        %v2028 = vadd.f32 %v1957, %v2027
        %v2029 = vpop.f32.mrb[0].mxu0
        %v2030 = vadd.f32 %v1959, %v2029
        %2031 = vdwg.mxu0
        %2032 = vmatprep.subr.mxu0 %v1472
        %2033 = vmatpush1.xpose.msra.mxu0 %v1471
        %2034 = vmatprep.subr.mxu0 %v1476
        %2035 = vmatpush1.xpose.msra.mxu0 %v1475
        %2036 = vmatprep.subr.mxu0 %v1480
        %2037 = vmatpush1.xpose.msra.mxu0 %v1479
        %2038 = vmatprep.subr.mxu0 %v1484
        %2039 = vmatpush1.xpose.msra.mxu0 %v1483
        %2040 = vmatprep.subr.mxu0 %v1488
        %2041 = vmatpush1.xpose.msra.mxu0 %v1487
        %2042 = vmatprep.subr.mxu0 %v1492
        %2043 = vmatpush1.xpose.msra.mxu0 %v1491
        %2044 = vmatprep.subr.mxu0 %v1496
        %2045 = vmatpush1.xpose.msra.mxu0 %v1495
        %2046 = vmatprep.subr.mxu0 %v1500
        %2047 = vmatpush1.xpose.msra.mxu0 %v1499
        %2048 = vmatprep.subr.mxu0 %v1504
        %2049 = vmatpush1.xpose.msra.mxu0 %v1503
        %2050 = vmatprep.subr.mxu0 %v1508
        %2051 = vmatpush1.xpose.msra.mxu0 %v1507
        %2052 = vmatprep.subr.mxu0 %v1512
        %2053 = vmatpush1.xpose.msra.mxu0 %v1511
        %2054 = vmatprep.subr.mxu0 %v1516
        %2055 = vmatpush1.xpose.msra.mxu0 %v1515
        %2056 = vmatprep.subr.mxu0 %v1520
        %2057 = vmatpush1.xpose.msra.mxu0 %v1519
        %2058 = vmatprep.subr.mxu0 %v1524
        %2059 = vmatpush1.xpose.msra.mxu0 %v1523
        %2060 = vmatprep.subr.mxu0 %v1528
        %2061 = vmatpush1.xpose.msra.mxu0 %v1527
        %2062 = vmatprep.subr.mxu0 %v1532
        %2063 = vmatpush1.xpose.msra.mxu0 %v1531
        %2064 = vmatprep.subr.mxu0 %v1536
        %2065 = vmatpush1.xpose.msra.mxu0 %v1535
        %2066 = vmatprep.subr.mxu0 %v1540
        %2067 = vmatpush1.xpose.msra.mxu0 %v1539
        %2068 = vmatprep.subr.mxu0 %v1544
        %2069 = vmatpush1.xpose.msra.mxu0 %v1543
        %2070 = vmatprep.subr.mxu0 %v1548
        %2071 = vmatpush1.xpose.msra.mxu0 %v1547
        %2072 = vmatprep.subr.mxu0 %v1552
        %2073 = vmatpush1.xpose.msra.mxu0 %v1551
        %2074 = vmatprep.subr.mxu0 %v1556
        %2075 = vmatpush1.xpose.msra.mxu0 %v1555
        %2076 = vmatprep.subr.mxu0 %v1560
        %2077 = vmatpush1.xpose.msra.mxu0 %v1559
        %2078 = vmatprep.subr.mxu0 %v1564
        %2079 = vmatpush1.xpose.msra.mxu0 %v1563
        %2080 = vmatprep.subr.mxu0 %v1568
        %2081 = vmatpush1.xpose.msra.mxu0 %v1567
        %2082 = vmatprep.subr.mxu0 %v1572
        %2083 = vmatpush1.xpose.msra.mxu0 %v1571
        %2084 = vmatprep.subr.mxu0 %v1576
        %2085 = vmatpush1.xpose.msra.mxu0 %v1575
        %2086 = vmatprep.subr.mxu0 %v1580
        %2087 = vmatpush1.xpose.msra.mxu0 %v1579
        %2088 = vmatprep.subr.mxu0 %v1584
        %2089 = vmatpush1.xpose.msra.mxu0 %v1583
        %2090 = vmatprep.subr.mxu0 %v1588
        %2091 = vmatpush1.xpose.msra.mxu0 %v1587
        %2092 = vmatprep.subr.mxu0 %v1592
        %2093 = vmatpush1.xpose.msra.mxu0 %v1591
        %2094 = vmatprep.subr.mxu0 %v1596
        %2095 = vmatpush1.xpose.msra.mxu0 %v1595
        %2096 = vmatprep.mubr.f32.mxu0 %v1735
        %2097 = vmatmul.mubr.f32.gmra.mrb[0].mxu0 %v1731
        %v2098 = vpop.f32.mrb[0].mxu0
        %v2099 = vadd.f32 0.0, %v2098
        %v2100 = vpop.f32.mrb[0].mxu0
        %v2101 = vadd.f32 0.0, %v2100
        %2102 = vdwg.mxu0
        %2103 = vmatprep.subr.mxu0 %v1474
        %2104 = vmatpush1.xpose.msra.mxu0 %v1473
        %2105 = vmatprep.subr.mxu0 %v1478
        %2106 = vmatpush1.xpose.msra.mxu0 %v1477
        %2107 = vmatprep.subr.mxu0 %v1482
        %2108 = vmatpush1.xpose.msra.mxu0 %v1481
        %2109 = vmatprep.subr.mxu0 %v1486
        %2110 = vmatpush1.xpose.msra.mxu0 %v1485
        %2111 = vmatprep.subr.mxu0 %v1490
        %2112 = vmatpush1.xpose.msra.mxu0 %v1489
        %2113 = vmatprep.subr.mxu0 %v1494
        %2114 = vmatpush1.xpose.msra.mxu0 %v1493
        %2115 = vmatprep.subr.mxu0 %v1498
        %2116 = vmatpush1.xpose.msra.mxu0 %v1497
        %2117 = vmatprep.subr.mxu0 %v1502
        %2118 = vmatpush1.xpose.msra.mxu0 %v1501
        %2119 = vmatprep.subr.mxu0 %v1506
        %2120 = vmatpush1.xpose.msra.mxu0 %v1505
        %2121 = vmatprep.subr.mxu0 %v1510
        %2122 = vmatpush1.xpose.msra.mxu0 %v1509
        %2123 = vmatprep.subr.mxu0 %v1514
        %2124 = vmatpush1.xpose.msra.mxu0 %v1513
        %2125 = vmatprep.subr.mxu0 %v1518
        %2126 = vmatpush1.xpose.msra.mxu0 %v1517
        %2127 = vmatprep.subr.mxu0 %v1522
        %2128 = vmatpush1.xpose.msra.mxu0 %v1521
        %2129 = vmatprep.subr.mxu0 %v1526
        %2130 = vmatpush1.xpose.msra.mxu0 %v1525
        %2131 = vmatprep.subr.mxu0 %v1530
        %2132 = vmatpush1.xpose.msra.mxu0 %v1529
        %2133 = vmatprep.subr.mxu0 %v1534
        %2134 = vmatpush1.xpose.msra.mxu0 %v1533
        %2135 = vmatprep.subr.mxu0 %v1538
        %2136 = vmatpush1.xpose.msra.mxu0 %v1537
        %2137 = vmatprep.subr.mxu0 %v1542
        %2138 = vmatpush1.xpose.msra.mxu0 %v1541
        %2139 = vmatprep.subr.mxu0 %v1546
        %2140 = vmatpush1.xpose.msra.mxu0 %v1545
        %2141 = vmatprep.subr.mxu0 %v1550
        %2142 = vmatpush1.xpose.msra.mxu0 %v1549
        %2143 = vmatprep.subr.mxu0 %v1554
        %2144 = vmatpush1.xpose.msra.mxu0 %v1553
        %2145 = vmatprep.subr.mxu0 %v1558
        %2146 = vmatpush1.xpose.msra.mxu0 %v1557
        %2147 = vmatprep.subr.mxu0 %v1562
        %2148 = vmatpush1.xpose.msra.mxu0 %v1561
        %2149 = vmatprep.subr.mxu0 %v1566
        %2150 = vmatpush1.xpose.msra.mxu0 %v1565
        %2151 = vmatprep.subr.mxu0 %v1570
        %2152 = vmatpush1.xpose.msra.mxu0 %v1569
        %2153 = vmatprep.subr.mxu0 %v1574
        %2154 = vmatpush1.xpose.msra.mxu0 %v1573
        %2155 = vmatprep.subr.mxu0 %v1578
        %2156 = vmatpush1.xpose.msra.mxu0 %v1577
        %2157 = vmatprep.subr.mxu0 %v1582
        %2158 = vmatpush1.xpose.msra.mxu0 %v1581
        %2159 = vmatprep.subr.mxu0 %v1586
        %2160 = vmatpush1.xpose.msra.mxu0 %v1585
        %2161 = vmatprep.subr.mxu0 %v1590
        %2162 = vmatpush1.xpose.msra.mxu0 %v1589
        %2163 = vmatprep.subr.mxu0 %v1594
        %2164 = vmatpush1.xpose.msra.mxu0 %v1593
        %2165 = vmatprep.subr.mxu0 %v1598
        %2166 = vmatpush1.xpose.msra.mxu0 %v1597
        %2167 = vmatprep.mubr.f32.mxu0 %v1743
        %2168 = vmatmul.mubr.f32.gmra.mrb[0].mxu0 %v1739
        %v2169 = vpop.f32.mrb[0].mxu0
        %v2170 = vadd.f32 %v2099, %v2169
        %v2171 = vpop.f32.mrb[0].mxu0
        %v2172 = vadd.f32 %v2101, %v2171
        %2173 = vdwg.mxu0
        %2174 = vmatprep.subr.mxu0 %v1600
        %2175 = vmatpush1.xpose.msra.mxu0 %v1599
        %2176 = vmatprep.subr.mxu0 %v1604
        %2177 = vmatpush1.xpose.msra.mxu0 %v1603
        %2178 = vmatprep.subr.mxu0 %v1608
        %2179 = vmatpush1.xpose.msra.mxu0 %v1607
        %2180 = vmatprep.subr.mxu0 %v1612
        %2181 = vmatpush1.xpose.msra.mxu0 %v1611
        %2182 = vmatprep.subr.mxu0 %v1616
        %2183 = vmatpush1.xpose.msra.mxu0 %v1615
        %2184 = vmatprep.subr.mxu0 %v1620
        %2185 = vmatpush1.xpose.msra.mxu0 %v1619
        %2186 = vmatprep.subr.mxu0 %v1624
        %2187 = vmatpush1.xpose.msra.mxu0 %v1623
        %2188 = vmatprep.subr.mxu0 %v1628
        %2189 = vmatpush1.xpose.msra.mxu0 %v1627
        %2190 = vmatprep.subr.mxu0 %v1632
        %2191 = vmatpush1.xpose.msra.mxu0 %v1631
        %2192 = vmatprep.subr.mxu0 %v1636
        %2193 = vmatpush1.xpose.msra.mxu0 %v1635
        %2194 = vmatprep.subr.mxu0 %v1640
        %2195 = vmatpush1.xpose.msra.mxu0 %v1639
        %2196 = vmatprep.subr.mxu0 %v1644
        %2197 = vmatpush1.xpose.msra.mxu0 %v1643
        %2198 = vmatprep.subr.mxu0 %v1648
        %2199 = vmatpush1.xpose.msra.mxu0 %v1647
        %2200 = vmatprep.subr.mxu0 %v1652
        %2201 = vmatpush1.xpose.msra.mxu0 %v1651
        %2202 = vmatprep.subr.mxu0 %v1656
        %2203 = vmatpush1.xpose.msra.mxu0 %v1655
        %2204 = vmatprep.subr.mxu0 %v1660
        %2205 = vmatpush1.xpose.msra.mxu0 %v1659
        %2206 = vmatprep.subr.mxu0 %v1664
        %2207 = vmatpush1.xpose.msra.mxu0 %v1663
        %2208 = vmatprep.subr.mxu0 %v1668
        %2209 = vmatpush1.xpose.msra.mxu0 %v1667
        %2210 = vmatprep.subr.mxu0 %v1672
        %2211 = vmatpush1.xpose.msra.mxu0 %v1671
        %2212 = vmatprep.subr.mxu0 %v1676
        %2213 = vmatpush1.xpose.msra.mxu0 %v1675
        %2214 = vmatprep.subr.mxu0 %v1680
        %2215 = vmatpush1.xpose.msra.mxu0 %v1679
        %2216 = vmatprep.subr.mxu0 %v1684
        %2217 = vmatpush1.xpose.msra.mxu0 %v1683
        %2218 = vmatprep.subr.mxu0 %v1688
        %2219 = vmatpush1.xpose.msra.mxu0 %v1687
        %2220 = vmatprep.subr.mxu0 %v1692
        %2221 = vmatpush1.xpose.msra.mxu0 %v1691
        %2222 = vmatprep.subr.mxu0 %v1696
        %2223 = vmatpush1.xpose.msra.mxu0 %v1695
        %2224 = vmatprep.subr.mxu0 %v1700
        %2225 = vmatpush1.xpose.msra.mxu0 %v1699
        %2226 = vmatprep.subr.mxu0 %v1704
        %2227 = vmatpush1.xpose.msra.mxu0 %v1703
        %2228 = vmatprep.subr.mxu0 %v1708
        %2229 = vmatpush1.xpose.msra.mxu0 %v1707
        %2230 = vmatprep.subr.mxu0 %v1712
        %2231 = vmatpush1.xpose.msra.mxu0 %v1711
        %2232 = vmatprep.subr.mxu0 %v1716
        %2233 = vmatpush1.xpose.msra.mxu0 %v1715
        %2234 = vmatprep.subr.mxu0 %v1720
        %2235 = vmatpush1.xpose.msra.mxu0 %v1719
        %2236 = vmatprep.subr.mxu0 %v1724
        %2237 = vmatpush1.xpose.msra.mxu0 %v1723
        %2238 = vmatprep.mubr.f32.mxu0 %v1735
        %2239 = vmatmul.mubr.f32.gmra.mrb[0].mxu0 %v1731
        %v2240 = vpop.f32.mrb[0].mxu0
        %v2241 = vadd.f32 0.0, %v2240
        %v2242 = vpop.f32.mrb[0].mxu0
        %v2243 = vadd.f32 0.0, %v2242
        %2244 = vdwg.mxu0
        %2245 = vmatprep.subr.mxu0 %v1602
        %2246 = vmatpush1.xpose.msra.mxu0 %v1601
        %2247 = vmatprep.subr.mxu0 %v1606
        %2248 = vmatpush1.xpose.msra.mxu0 %v1605
        %2249 = vmatprep.subr.mxu0 %v1610
        %2250 = vmatpush1.xpose.msra.mxu0 %v1609
        %2251 = vmatprep.subr.mxu0 %v1614
        %2252 = vmatpush1.xpose.msra.mxu0 %v1613
        %2253 = vmatprep.subr.mxu0 %v1618
        %2254 = vmatpush1.xpose.msra.mxu0 %v1617
        %2255 = vmatprep.subr.mxu0 %v1622
        %2256 = vmatpush1.xpose.msra.mxu0 %v1621
        %2257 = vmatprep.subr.mxu0 %v1626
        %2258 = vmatpush1.xpose.msra.mxu0 %v1625
        %2259 = vmatprep.subr.mxu0 %v1630
        %2260 = vmatpush1.xpose.msra.mxu0 %v1629
        %2261 = vmatprep.subr.mxu0 %v1634
        %2262 = vmatpush1.xpose.msra.mxu0 %v1633
        %2263 = vmatprep.subr.mxu0 %v1638
        %2264 = vmatpush1.xpose.msra.mxu0 %v1637
        %2265 = vmatprep.subr.mxu0 %v1642
        %2266 = vmatpush1.xpose.msra.mxu0 %v1641
        %2267 = vmatprep.subr.mxu0 %v1646
        %2268 = vmatpush1.xpose.msra.mxu0 %v1645
        %2269 = vmatprep.subr.mxu0 %v1650
        %2270 = vmatpush1.xpose.msra.mxu0 %v1649
        %2271 = vmatprep.subr.mxu0 %v1654
        %2272 = vmatpush1.xpose.msra.mxu0 %v1653
        %2273 = vmatprep.subr.mxu0 %v1658
        %2274 = vmatpush1.xpose.msra.mxu0 %v1657
        %2275 = vmatprep.subr.mxu0 %v1662
        %2276 = vmatpush1.xpose.msra.mxu0 %v1661
        %2277 = vmatprep.subr.mxu0 %v1666
        %2278 = vmatpush1.xpose.msra.mxu0 %v1665
        %2279 = vmatprep.subr.mxu0 %v1670
        %2280 = vmatpush1.xpose.msra.mxu0 %v1669
        %2281 = vmatprep.subr.mxu0 %v1674
        %2282 = vmatpush1.xpose.msra.mxu0 %v1673
        %2283 = vmatprep.subr.mxu0 %v1678
        %2284 = vmatpush1.xpose.msra.mxu0 %v1677
        %2285 = vmatprep.subr.mxu0 %v1682
        %2286 = vmatpush1.xpose.msra.mxu0 %v1681
        %2287 = vmatprep.subr.mxu0 %v1686
        %2288 = vmatpush1.xpose.msra.mxu0 %v1685
        %2289 = vmatprep.subr.mxu0 %v1690
        %2290 = vmatpush1.xpose.msra.mxu0 %v1689
        %2291 = vmatprep.subr.mxu0 %v1694
        %2292 = vmatpush1.xpose.msra.mxu0 %v1693
        %2293 = vmatprep.subr.mxu0 %v1698
        %2294 = vmatpush1.xpose.msra.mxu0 %v1697
        %2295 = vmatprep.subr.mxu0 %v1702
        %2296 = vmatpush1.xpose.msra.mxu0 %v1701
        %2297 = vmatprep.subr.mxu0 %v1706
        %2298 = vmatpush1.xpose.msra.mxu0 %v1705
        %2299 = vmatprep.subr.mxu0 %v1710
        %2300 = vmatpush1.xpose.msra.mxu0 %v1709
        %2301 = vmatprep.subr.mxu0 %v1714
        %2302 = vmatpush1.xpose.msra.mxu0 %v1713
        %2303 = vmatprep.subr.mxu0 %v1718
        %2304 = vmatpush1.xpose.msra.mxu0 %v1717
        %2305 = vmatprep.subr.mxu0 %v1722
        %2306 = vmatpush1.xpose.msra.mxu0 %v1721
        %2307 = vmatprep.subr.mxu0 %v1726
        %2308 = vmatpush1.xpose.msra.mxu0 %v1725
        %2309 = vmatprep.mubr.f32.mxu0 %v1743
        %2310 = vmatmul.mubr.f32.gmra.mrb[0].mxu0 %v1739
        %v2311 = vpop.f32.mrb[0].mxu0
        %v2312 = vadd.f32 %v2241, %v2311
        %v2313 = vpop.f32.mrb[0].mxu0
        %v2314 = vadd.f32 %v2243, %v2313
        %2315 = vdwg.mxu0
        %v2324 = vcombine.low %v1886, %v1888
        %v2325 = vcombine.low %v2028, %v2030
        %v2326 = vcombine.low %v2170, %v2172
        %v2327 = vcombine.low %v2312, %v2314
        %v2329 = vunpack.c.l.s4 1966171168
        %v2330 = vunpack.c.0.s8 %v2329
        %v2331 = vlaneseq
        %v2332 = vshrl.u32 %v2331, 7
        %v2333 = vsub.s32 %v2330, %v2332
        %v2334 = vrot.slane %v2324, %v2333
        %v2336 = vunpack.c.l.s4 1966171168
        %v2337 = vunpack.c.0.s8 %v2336
        %v2338 = vlaneseq
        %v2339 = vshrl.u32 %v2338, 7
        %v2340 = vsub.s32 %v2337, %v2339
        %v2341 = vrot.slane %v2325, %v2340
        %v2343 = vunpack.c.l.s4 1966171168
        %v2344 = vunpack.c.0.s8 %v2343
        %v2345 = vlaneseq
        %v2346 = vshrl.u32 %v2345, 7
        %v2347 = vsub.s32 %v2344, %v2346
        %v2348 = vrot.slane %v2326, %v2347
        %v2350 = vunpack.c.l.s4 1966171168
        %v2351 = vunpack.c.0.s8 %v2350
        %v2352 = vlaneseq
        %v2353 = vshrl.u32 %v2352, 7
        %v2354 = vsub.s32 %v2351, %v2353
        %v2355 = vrot.slane %v2327, %v2354
        %v2356 = vcombine.low %v2334, %v2341
        %v2357 = vcombine.low %v2348, %v2355
        %v2359 = vunpack.c.l.s4 1966171168
        %v2360 = vunpack.c.0.s8 %v2359
        %v2361 = vlaneseq
        %v2362 = vshrl.u32 %v2361, 7
        %v2363 = vsub.s32 %v2360, %v2362
        %v2364 = vrot.slane %v2356, %v2363
        %v2366 = vunpack.c.l.s4 1966171168
        %v2367 = vunpack.c.0.s8 %v2366
        %v2368 = vlaneseq
        %v2369 = vshrl.u32 %v2368, 7
        %v2370 = vsub.s32 %v2367, %v2369
        %v2371 = vrot.slane %v2357, %v2370
        %v2372 = vcombine.low %v2364, %v2371
        %v2374 = vadd.f32 %v1214, %v2372
        %2375 = vst [vmem:[#allocation2] sm:$0xff] %v2374
        %p2376 = scmp.eq.s32.totalorder %s18, 1
        // Predicated region
        $region56: #{_srr_forward.18} parent=46 // pred_check
          %p2377 = pneg %p2376
        $region57: #{_srr_forward.18} parent=46 // pred_check_branch
          %2379 = sbr.rel (%p2377) target = $region59
        $region58: #{_srr_forward.18} parent=46 // pred_region
          %v2380 = vld [vmem:[#allocation2] sm:$0xff]
          %2381 = vst [vmem:[%s1202] sm:$0xff] %v2380
        $region59: #{_srr_forward.18} parent=46 // pred_fallthru
          _
        %s2382 = smul.u32 8, %s17
        %p2383 = scmp.lt.s32.totalorder %s2382, 15
        %s2384 = scalar_select %p2383, %s2382, 15
        %s2385 = scalar_lea.vmem %s2, %s2384
        // Predicated region
        $region60: #{_srr_forward.18} parent=46 // pred_check
          %p2386 = pneg %p92
        $region61: #{_srr_forward.18} parent=46 // pred_check_branch
          %2388 = sbr.rel (%p2386) target = $region63
        $region62: #{_srr_forward.18} parent=46 // pred_region
          %s2389 = smul.u32 8, %s17
        $region63: #{_srr_forward.18} parent=46 // pred_fallthru
          _
      $region47: #{_srr_forward.18} parent=5 // pred_fallthru
        _
      %p2390 = scmp.le.s32.totalorder 2, %s8
      // Predicated region
      $region64: #{_srr_forward.18} parent=5 // pred_check
        %p2391 = pneg %p2390
      $region65: #{_srr_forward.18} parent=5 // pred_check_branch
        %2393 = sbr.rel (%p2391) target = $region67
      $region66: #{_srr_forward.18} parent=5 // pred_region
        %s2394 = ssub.s32 %s8, 2
        // Predicated region
        $region68: #{_srr_forward.18} parent=66 // pred_check
          %p2395 = pneg %p98
        $region69: #{_srr_forward.18} parent=66 // pred_check_branch
          %2397 = sbr.rel (%p2395) target = $region71
        $region70: #{_srr_forward.18} parent=66 // pred_region
          %s2398 = smul.u32 8, %s19
          %p2399 = scmp.lt.s32.totalorder %s2398, 15
          %s2400 = scalar_select %p2399, %s2398, 15
          %s2401 = scalar_lea.vmem %s2, %s2400
        $region71: #{_srr_forward.18} parent=66 // pred_fallthru
          _
      $region67: #{_srr_forward.18} parent=5 // pred_fallthru
        _
    $region6: #{_srr_forward.18} parent=1 // loop_footer
      %s12 = sadd.s32 1, %s8
    $region7: #{_srr_forward.18} parent=1 // loop_footer_branch
      %7 = sbr.rel target = $region3
    $region8: #{_srr_forward.18} parent=1 // loop_exit
      _

// kernel: _srr_forward.20
$region0: #{_srr_forward.20}
  #allocation0 [shape = 'u32[]', space=smem, size = 0x4, offset = 0x4, fixed_abs, tag = 'smem constant byte address 0x4 - core index']
  #allocation1 [shape = 'u32[144,128]{1,0:T(1,128)}', space=vmem, size = 0x12000, scoped, tag = 'internal scratch']
  #allocation2 [shape = 'f32[1,1024]{1,0:T(1,128)}', space=vmem, size = 0x1000, scoped, tag = 'scratch operand']
  %s0 = inlined_call_operand.vmem [shape: f32[1,2048], index: 0, kind: input, shape index: {}]
  %s1 = inlined_call_operand.vmem [shape: f32[2048,1024], index: 1, kind: input, shape index: {}]
  %s2 = inlined_call_operand.vmem [shape: f32[1,1024], index: 2, kind: output, shape index: {}]
  %s3 = sld [smem:[#allocation0]]
  $region49: #{_srr_forward.20} parent=0
    _
  %s5 = ssub.s32 1, %s3
  %s6 = scalar_select 0, %s5, %s3
  loop: start=0, step=1, limit=6
  $region2: #{_srr_forward.20} parent=0 // loop_pre_header
    _
  $region3: #{_srr_forward.20} parent=0 // loop_header
    %s8 = sphi 0, %s12
    %p9 = scmp.ge.s32.totalorder %s8, 6
    %s15 = sphi 0, %s27
    %s16 = sphi 0, %s23
    %s17 = sphi 0, %s15
    %s18 = sphi 0, %s16
    %s19 = sphi 0, %s17
    %s20 = sphi 0, %s18
    %s28 = sphi 0, %s28
    %s30 = sphi 0, %s28
    %s31 = sphi 0, %s30
    %s45 = sphi 0, %s31
    %s53 = sphi 0, %s55
    %s56 = sphi 0, %s53
    %s57 = sphi 0, %s56
    %s73 = sphi 0, %s57
    %s79 = sphi 0, %s81
    %s82 = sphi 0, %s79
    %s83 = sphi 0, %s82
    %s99 = sphi 0, %s83
  $region4: #{_srr_forward.20} parent=0 // loop_header_branch
    %11 = sbr.rel (%p9) target = $region8
  $region5: #{_srr_forward.20} parent=0 // loop_body
    %s13 = ssub.s32 %s8, 1
    %s14 = ssub.s32 %s8, 2
    %s21 = sadd.s32 1, %s16
    %p22 = scmp.ge.s32.totalorder %s21, 4
    %s23 = scalar_select %p22, 0, %s21
    %s24 = sadd.s32 1, %s15
    %s25 = scalar_select %p22, %s24, %s15
    %p26 = scmp.ge.s32.totalorder %s25, 1
    %s27 = scalar_select %p26, 0, %s25
    %s29 = sadd.s32 %s28, 1
    %p32 = scmp.eq.s32.totalorder %s8, 3
    %p33 = scmp.ne.s32.totalorder %s28, %s30
    %p34 = scmp.eq.s32.totalorder %s8, 0
    %p35 = por %p33, %p34
    %p36 = scmp.ne.s32.totalorder %s28, %s30
    %p37 = scmp.eq.s32.totalorder %s13, 3
    %p38 = por %p36, %p37
    %p39 = scmp.ne.s32.totalorder %s30, %s31
    %p40 = scmp.eq.s32.totalorder %s13, 0
    %p41 = por %p39, %p40
    %p42 = scmp.ne.s32.totalorder %s30, %s31
    %p43 = scmp.eq.s32.totalorder %s14, 3
    %p44 = por %p42, %p43
    %p46 = scmp.ne.s32.totalorder %s31, %s45
    %p47 = scmp.eq.s32.totalorder %s14, 0
    %p48 = por %p46, %p47
    %s49 = ssub.s32 %s16, %s23
    %s50 = ssub.s32 %s15, %s27
    %s51 = sor.u32 %s49, %s50
    %p52 = scmp.eq.s32.totalorder %s51, 0
    %s54 = sadd.s32 %s53, 1
    %s55 = scalar_select %p52, %s53, %s54
    %p58 = pneg %p52
    %p59 = scmp.eq.s32.totalorder %s8, 3
    %p60 = por %p58, %p59
    %p61 = scmp.ne.s32.totalorder %s53, %s56
    %p62 = scmp.eq.s32.totalorder %s8, 0
    %p63 = por %p61, %p62
    %p64 = scmp.ne.s32.totalorder %s53, %s56
    %p65 = scmp.eq.s32.totalorder %s13, 3
    %p66 = por %p64, %p65
    %p67 = scmp.ne.s32.totalorder %s56, %s57
    %p68 = scmp.eq.s32.totalorder %s13, 0
    %p69 = por %p67, %p68
    %p70 = scmp.ne.s32.totalorder %s56, %s57
    %p71 = scmp.eq.s32.totalorder %s14, 3
    %p72 = por %p70, %p71
    %p74 = scmp.ne.s32.totalorder %s57, %s73
    %p75 = scmp.eq.s32.totalorder %s14, 0
    %p76 = por %p74, %p75
    %s77 = ssub.s32 %s15, %s27
    %p78 = scmp.eq.s32.totalorder %s77, 0
    %s80 = sadd.s32 %s79, 1
    %s81 = scalar_select %p78, %s79, %s80
    %p84 = pneg %p78
    %p85 = scmp.eq.s32.totalorder %s8, 3
    %p86 = por %p84, %p85
    %p87 = scmp.ne.s32.totalorder %s79, %s82
    %p88 = scmp.eq.s32.totalorder %s8, 0
    %p89 = por %p87, %p88
    %p90 = scmp.ne.s32.totalorder %s79, %s82
    %p91 = scmp.eq.s32.totalorder %s13, 3
    %p92 = por %p90, %p91
    %p93 = scmp.ne.s32.totalorder %s82, %s83
    %p94 = scmp.eq.s32.totalorder %s13, 0
    %p95 = por %p93, %p94
    %p96 = scmp.ne.s32.totalorder %s82, %s83
    %p97 = scmp.eq.s32.totalorder %s14, 3
    %p98 = por %p96, %p97
    %p100 = scmp.ne.s32.totalorder %s83, %s99
    %p101 = scmp.eq.s32.totalorder %s14, 0
    %p102 = por %p100, %p101
    %p103 = scmp.le.s32.totalorder 1, %s8
    %p104 = scmp.lt.s32.totalorder %s8, 5
    %p105 = pnand %p103, %p104
    %p106 = pneg %p105
    // Predicated region
    $region9: #{_srr_forward.20} parent=5 // pred_check
      _
    $region10: #{_srr_forward.20} parent=5 // pred_check_branch
      %108 = sbr.rel (%p105) target = $region12
    $region11: #{_srr_forward.20} parent=5 // pred_region
      %s109 = ssub.s32 %s8, 1
      // Predicated region
      $region13: #{_srr_forward.20} parent=11 // pred_check
        %p110 = pneg %p41
      $region14: #{_srr_forward.20} parent=11 // pred_check_branch
        %112 = sbr.rel (%p110) target = $region16
      $region15: #{_srr_forward.20} parent=11 // pred_region
        _
      $region16: #{_srr_forward.20} parent=11 // pred_fallthru
        _
    $region12: #{_srr_forward.20} parent=5 // pred_fallthru
      _
    %p113 = scmp.lt.s32.totalorder %s8, 4
    // Predicated region
    $region17: #{_srr_forward.20} parent=5 // pred_check
      %p114 = pneg %p113
    $region18: #{_srr_forward.20} parent=5 // pred_check_branch
      %116 = sbr.rel (%p114) target = $region20
    $region19: #{_srr_forward.20} parent=5 // pred_region
      // Predicated region
      $region21: #{_srr_forward.20} parent=19 // pred_check
        %p117 = pneg %p63
      $region22: #{_srr_forward.20} parent=19 // pred_check_branch
        %119 = sbr.rel (%p117) target = $region24
      $region23: #{_srr_forward.20} parent=19 // pred_region
        %s120 = smul.u32 64, %s16
        %s121 = smul.u32 8, %s15
        %p122 = scmp.lt.s32.totalorder %s120, 255
        %s123 = scalar_select %p122, %s120, 255
        %p124 = scmp.lt.s32.totalorder %s121, 7
        %s125 = scalar_select %p124, %s121, 7
        %s126 = smul.addr %s123, 8
        %s127 = sadd.s32 %s125, %s126
        %s128 = smul.addr %s127, 8
        %s129 = scalar_lea.vmem %s1, %s128
        %s130 = smul.u32 64, %s16
        %s131 = smul.u32 8, %s15
      $region24: #{_srr_forward.20} parent=19 // pred_fallthru
        _
    $region20: #{_srr_forward.20} parent=5 // pred_fallthru
      _
    %p132 = scmp.le.s32.totalorder 1, %s8
    %p133 = scmp.lt.s32.totalorder %s8, 5
    %p134 = pnand %p132, %p133
    %p135 = pneg %p134
    // Predicated region
    $region25: #{_srr_forward.20} parent=5 // pred_check
      _
    $region26: #{_srr_forward.20} parent=5 // pred_check_branch
      %137 = sbr.rel (%p134) target = $region28
    $region27: #{_srr_forward.20} parent=5 // pred_region
      %s138 = ssub.s32 %s8, 1
      %p139 = pneg %p41
      %p140 = pneg %p38
      %s141 = smul.u32 64, %s18
      %s142 = smul.u32 8, %s17
      %p143 = scmp.lt.s32.totalorder %s141, 255
      %s144 = scalar_select %p143, %s141, 255
      %p145 = scmp.lt.s32.totalorder %s142, 7
      %s146 = scalar_select %p145, %s142, 7
      %s147 = smul.addr %s144, 8
      %s148 = sadd.s32 %s146, %s147
      %s149 = smul.addr %s148, 8
      %s150 = scalar_lea.vmem %s1, %s149
      %p151 = pneg %p69
      %p152 = pneg %p66
      %p153 = pneg %p95
      %p154 = pneg %p92
      %s155 = smul.u32 8, %s17
      %p156 = scmp.lt.s32.totalorder %s155, 7
      %s157 = scalar_select %p156, %s155, 7
      %s158 = scalar_lea.vmem %s2, %s157
      %s159 = smul.u32 64, %s18
      %s160 = smul.u32 8, %s17
      %p161 = scmp.lt.s32.totalorder %s159, 255
      %s162 = scalar_select %p161, %s159, 255
      %p163 = scmp.lt.s32.totalorder %s160, 7
      %s164 = scalar_select %p163, %s160, 7
      %s165 = smul.addr %s162, 8
      %s166 = sadd.s32 %s164, %s165
      %s167 = smul.addr %s166, 8
      %s168 = scalar_lea.vmem %s1, %s167
      %s169 = smul.u32 64, %s18
      %s170 = smul.u32 8, %s17
      %s171 = smul.u32 8, %s17
      %p172 = scmp.lt.s32.totalorder %s171, 7
      %s173 = scalar_select %p172, %s171, 7
      %s174 = scalar_lea.vmem %s2, %s173
      %s175 = smul.u32 8, %s17
      %p176 = scmp.eq.s32.totalorder %s18, 0
      // Predicated region
      $region29: #{_srr_forward.20} parent=27 // pred_check
        %p177 = pneg %p176
      $region30: #{_srr_forward.20} parent=27 // pred_check_branch
        %179 = sbr.rel (%p177) target = $region32
      $region31: #{_srr_forward.20} parent=27 // pred_region
        %180 = vst [vmem:[#allocation2] sm:$0xff] 0.0
      $region32: #{_srr_forward.20} parent=27 // pred_fallthru
        _
      %s181 = smul.u32 %s18, 512
      %s182 = sshra.s32 %s181, 7
      %s183 = sand.u32 %s181, 127
      %s184 = scalar_lea.vmem %s0, %s182
      %v185 = vld [vmem:[%s184] sm:$0xf]
      %v186 = vld [vmem:[#allocation2] sm:$0xff]
      %v187 = vld [vmem:[%s168] sm:$0xff]
      %v188 = vld [vmem:[%s168 + $0x8] sm:$0xff]
      %v189 = vld [vmem:[%s168 + $0x10] sm:$0xff]
      %v190 = vld [vmem:[%s168 + $0x18] sm:$0xff]
      %v191 = vld [vmem:[%s168 + $0x20] sm:$0xff]
      %v192 = vld [vmem:[%s168 + $0x28] sm:$0xff]
      %v193 = vld [vmem:[%s168 + $0x30] sm:$0xff]
      %v194 = vld [vmem:[%s168 + $0x38] sm:$0xff]
      %v195 = vld [vmem:[%s168 + $0x40] sm:$0xff]
      %v196 = vld [vmem:[%s168 + $0x48] sm:$0xff]
      %v197 = vld [vmem:[%s168 + $0x50] sm:$0xff]
      %v198 = vld [vmem:[%s168 + $0x58] sm:$0xff]
      %v199 = vld [vmem:[%s168 + $0x60] sm:$0xff]
      %v200 = vld [vmem:[%s168 + $0x68] sm:$0xff]
      %v201 = vld [vmem:[%s168 + $0x70] sm:$0xff]
      %v202 = vld [vmem:[%s168 + $0x78] sm:$0xff]
      %v203 = vld [vmem:[%s168 + $0x80] sm:$0xff]
      %v204 = vld [vmem:[%s168 + $0x88] sm:$0xff]
      %v205 = vld [vmem:[%s168 + $0x90] sm:$0xff]
      %v206 = vld [vmem:[%s168 + $0x98] sm:$0xff]
      %v207 = vld [vmem:[%s168 + $0xa0] sm:$0xff]
      %v208 = vld [vmem:[%s168 + $0xa8] sm:$0xff]
      %v209 = vld [vmem:[%s168 + $0xb0] sm:$0xff]
      %v210 = vld [vmem:[%s168 + $0xb8] sm:$0xff]
      %v211 = vld [vmem:[%s168 + $0xc0] sm:$0xff]
      %v212 = vld [vmem:[%s168 + $0xc8] sm:$0xff]
      %v213 = vld [vmem:[%s168 + $0xd0] sm:$0xff]
      %v214 = vld [vmem:[%s168 + $0xd8] sm:$0xff]
      %v215 = vld [vmem:[%s168 + $0xe0] sm:$0xff]
      %v216 = vld [vmem:[%s168 + $0xe8] sm:$0xff]
      %v217 = vld [vmem:[%s168 + $0xf0] sm:$0xff]
      %v218 = vld [vmem:[%s168 + $0xf8] sm:$0xff]
      %v219 = vld [vmem:[%s168 + $0x100] sm:$0xff]
      %v220 = vld [vmem:[%s168 + $0x108] sm:$0xff]
      %v221 = vld [vmem:[%s168 + $0x110] sm:$0xff]
      %v222 = vld [vmem:[%s168 + $0x118] sm:$0xff]
      %v223 = vld [vmem:[%s168 + $0x120] sm:$0xff]
      %v224 = vld [vmem:[%s168 + $0x128] sm:$0xff]
      %v225 = vld [vmem:[%s168 + $0x130] sm:$0xff]
      %v226 = vld [vmem:[%s168 + $0x138] sm:$0xff]
      %v227 = vld [vmem:[%s168 + $0x140] sm:$0xff]
      %v228 = vld [vmem:[%s168 + $0x148] sm:$0xff]
      %v229 = vld [vmem:[%s168 + $0x150] sm:$0xff]
      %v230 = vld [vmem:[%s168 + $0x158] sm:$0xff]
      %v231 = vld [vmem:[%s168 + $0x160] sm:$0xff]
      %v232 = vld [vmem:[%s168 + $0x168] sm:$0xff]
      %v233 = vld [vmem:[%s168 + $0x170] sm:$0xff]
      %v234 = vld [vmem:[%s168 + $0x178] sm:$0xff]
      %v235 = vld [vmem:[%s168 + $0x180] sm:$0xff]
      %v236 = vld [vmem:[%s168 + $0x188] sm:$0xff]
      %v237 = vld [vmem:[%s168 + $0x190] sm:$0xff]
      %v238 = vld [vmem:[%s168 + $0x198] sm:$0xff]
      %v239 = vld [vmem:[%s168 + $0x1a0] sm:$0xff]
      %v240 = vld [vmem:[%s168 + $0x1a8] sm:$0xff]
      %v241 = vld [vmem:[%s168 + $0x1b0] sm:$0xff]
      %v242 = vld [vmem:[%s168 + $0x1b8] sm:$0xff]
      %v243 = vld [vmem:[%s168 + $0x1c0] sm:$0xff]
      %v244 = vld [vmem:[%s168 + $0x1c8] sm:$0xff]
      %v245 = vld [vmem:[%s168 + $0x1d0] sm:$0xff]
      %v246 = vld [vmem:[%s168 + $0x1d8] sm:$0xff]
      %v247 = vld [vmem:[%s168 + $0x1e0] sm:$0xff]
      %v248 = vld [vmem:[%s168 + $0x1e8] sm:$0xff]
      %v249 = vld [vmem:[%s168 + $0x1f0] sm:$0xff]
      %v250 = vld [vmem:[%s168 + $0x1f8] sm:$0xff]
      %v251 = vld [vmem:[%s168 + $0x200] sm:$0xff]
      %v252 = vld [vmem:[%s168 + $0x208] sm:$0xff]
      %v253 = vld [vmem:[%s168 + $0x210] sm:$0xff]
      %v254 = vld [vmem:[%s168 + $0x218] sm:$0xff]
      %v255 = vld [vmem:[%s168 + $0x220] sm:$0xff]
      %v256 = vld [vmem:[%s168 + $0x228] sm:$0xff]
      %v257 = vld [vmem:[%s168 + $0x230] sm:$0xff]
      %v258 = vld [vmem:[%s168 + $0x238] sm:$0xff]
      %v259 = vld [vmem:[%s168 + $0x240] sm:$0xff]
      %v260 = vld [vmem:[%s168 + $0x248] sm:$0xff]
      %v261 = vld [vmem:[%s168 + $0x250] sm:$0xff]
      %v262 = vld [vmem:[%s168 + $0x258] sm:$0xff]
      %v263 = vld [vmem:[%s168 + $0x260] sm:$0xff]
      %v264 = vld [vmem:[%s168 + $0x268] sm:$0xff]
      %v265 = vld [vmem:[%s168 + $0x270] sm:$0xff]
      %v266 = vld [vmem:[%s168 + $0x278] sm:$0xff]
      %v267 = vld [vmem:[%s168 + $0x280] sm:$0xff]
      %v268 = vld [vmem:[%s168 + $0x288] sm:$0xff]
      %v269 = vld [vmem:[%s168 + $0x290] sm:$0xff]
      %v270 = vld [vmem:[%s168 + $0x298] sm:$0xff]
      %v271 = vld [vmem:[%s168 + $0x2a0] sm:$0xff]
      %v272 = vld [vmem:[%s168 + $0x2a8] sm:$0xff]
      %v273 = vld [vmem:[%s168 + $0x2b0] sm:$0xff]
      %v274 = vld [vmem:[%s168 + $0x2b8] sm:$0xff]
      %v275 = vld [vmem:[%s168 + $0x2c0] sm:$0xff]
      %v276 = vld [vmem:[%s168 + $0x2c8] sm:$0xff]
      %v277 = vld [vmem:[%s168 + $0x2d0] sm:$0xff]
      %v278 = vld [vmem:[%s168 + $0x2d8] sm:$0xff]
      %v279 = vld [vmem:[%s168 + $0x2e0] sm:$0xff]
      %v280 = vld [vmem:[%s168 + $0x2e8] sm:$0xff]
      %v281 = vld [vmem:[%s168 + $0x2f0] sm:$0xff]
      %v282 = vld [vmem:[%s168 + $0x2f8] sm:$0xff]
      %v283 = vld [vmem:[%s168 + $0x300] sm:$0xff]
      %v284 = vld [vmem:[%s168 + $0x308] sm:$0xff]
      %v285 = vld [vmem:[%s168 + $0x310] sm:$0xff]
      %v286 = vld [vmem:[%s168 + $0x318] sm:$0xff]
      %v287 = vld [vmem:[%s168 + $0x320] sm:$0xff]
      %v288 = vld [vmem:[%s168 + $0x328] sm:$0xff]
      %v289 = vld [vmem:[%s168 + $0x330] sm:$0xff]
      %v290 = vld [vmem:[%s168 + $0x338] sm:$0xff]
      %v291 = vld [vmem:[%s168 + $0x340] sm:$0xff]
      %v292 = vld [vmem:[%s168 + $0x348] sm:$0xff]
      %v293 = vld [vmem:[%s168 + $0x350] sm:$0xff]
      %v294 = vld [vmem:[%s168 + $0x358] sm:$0xff]
      %v295 = vld [vmem:[%s168 + $0x360] sm:$0xff]
      %v296 = vld [vmem:[%s168 + $0x368] sm:$0xff]
      %v297 = vld [vmem:[%s168 + $0x370] sm:$0xff]
      %v298 = vld [vmem:[%s168 + $0x378] sm:$0xff]
      %v299 = vld [vmem:[%s168 + $0x380] sm:$0xff]
      %v300 = vld [vmem:[%s168 + $0x388] sm:$0xff]
      %v301 = vld [vmem:[%s168 + $0x390] sm:$0xff]
      %v302 = vld [vmem:[%s168 + $0x398] sm:$0xff]
      %v303 = vld [vmem:[%s168 + $0x3a0] sm:$0xff]
      %v304 = vld [vmem:[%s168 + $0x3a8] sm:$0xff]
      %v305 = vld [vmem:[%s168 + $0x3b0] sm:$0xff]
      %v306 = vld [vmem:[%s168 + $0x3b8] sm:$0xff]
      %v307 = vld [vmem:[%s168 + $0x3c0] sm:$0xff]
      %v308 = vld [vmem:[%s168 + $0x3c8] sm:$0xff]
      %v309 = vld [vmem:[%s168 + $0x3d0] sm:$0xff]
      %v310 = vld [vmem:[%s168 + $0x3d8] sm:$0xff]
      %v311 = vld [vmem:[%s168 + $0x3e0] sm:$0xff]
      %v312 = vld [vmem:[%s168 + $0x3e8] sm:$0xff]
      %v313 = vld [vmem:[%s168 + $0x3f0] sm:$0xff]
      %v314 = vld [vmem:[%s168 + $0x3f8] sm:$0xff]
      %v315 = vld [vmem:[%s168 + $0x400] sm:$0xff]
      %v316 = vld [vmem:[%s168 + $0x408] sm:$0xff]
      %v317 = vld [vmem:[%s168 + $0x410] sm:$0xff]
      %v318 = vld [vmem:[%s168 + $0x418] sm:$0xff]
      %v319 = vld [vmem:[%s168 + $0x420] sm:$0xff]
      %v320 = vld [vmem:[%s168 + $0x428] sm:$0xff]
      %v321 = vld [vmem:[%s168 + $0x430] sm:$0xff]
      %v322 = vld [vmem:[%s168 + $0x438] sm:$0xff]
      %v323 = vld [vmem:[%s168 + $0x440] sm:$0xff]
      %v324 = vld [vmem:[%s168 + $0x448] sm:$0xff]
      %v325 = vld [vmem:[%s168 + $0x450] sm:$0xff]
      %v326 = vld [vmem:[%s168 + $0x458] sm:$0xff]
      %v327 = vld [vmem:[%s168 + $0x460] sm:$0xff]
      %v328 = vld [vmem:[%s168 + $0x468] sm:$0xff]
      %v329 = vld [vmem:[%s168 + $0x470] sm:$0xff]
      %v330 = vld [vmem:[%s168 + $0x478] sm:$0xff]
      %v331 = vld [vmem:[%s168 + $0x480] sm:$0xff]
      %v332 = vld [vmem:[%s168 + $0x488] sm:$0xff]
      %v333 = vld [vmem:[%s168 + $0x490] sm:$0xff]
      %v334 = vld [vmem:[%s168 + $0x498] sm:$0xff]
      %v335 = vld [vmem:[%s168 + $0x4a0] sm:$0xff]
      %v336 = vld [vmem:[%s168 + $0x4a8] sm:$0xff]
      %v337 = vld [vmem:[%s168 + $0x4b0] sm:$0xff]
      %v338 = vld [vmem:[%s168 + $0x4b8] sm:$0xff]
      %v339 = vld [vmem:[%s168 + $0x4c0] sm:$0xff]
      %v340 = vld [vmem:[%s168 + $0x4c8] sm:$0xff]
      %v341 = vld [vmem:[%s168 + $0x4d0] sm:$0xff]
      %v342 = vld [vmem:[%s168 + $0x4d8] sm:$0xff]
      %v343 = vld [vmem:[%s168 + $0x4e0] sm:$0xff]
      %v344 = vld [vmem:[%s168 + $0x4e8] sm:$0xff]
      %v345 = vld [vmem:[%s168 + $0x4f0] sm:$0xff]
      %v346 = vld [vmem:[%s168 + $0x4f8] sm:$0xff]
      %v347 = vld [vmem:[%s168 + $0x500] sm:$0xff]
      %v348 = vld [vmem:[%s168 + $0x508] sm:$0xff]
      %v349 = vld [vmem:[%s168 + $0x510] sm:$0xff]
      %v350 = vld [vmem:[%s168 + $0x518] sm:$0xff]
      %v351 = vld [vmem:[%s168 + $0x520] sm:$0xff]
      %v352 = vld [vmem:[%s168 + $0x528] sm:$0xff]
      %v353 = vld [vmem:[%s168 + $0x530] sm:$0xff]
      %v354 = vld [vmem:[%s168 + $0x538] sm:$0xff]
      %v355 = vld [vmem:[%s168 + $0x540] sm:$0xff]
      %v356 = vld [vmem:[%s168 + $0x548] sm:$0xff]
      %v357 = vld [vmem:[%s168 + $0x550] sm:$0xff]
      %v358 = vld [vmem:[%s168 + $0x558] sm:$0xff]
      %v359 = vld [vmem:[%s168 + $0x560] sm:$0xff]
      %v360 = vld [vmem:[%s168 + $0x568] sm:$0xff]
      %v361 = vld [vmem:[%s168 + $0x570] sm:$0xff]
      %v362 = vld [vmem:[%s168 + $0x578] sm:$0xff]
      %v363 = vld [vmem:[%s168 + $0x580] sm:$0xff]
      %v364 = vld [vmem:[%s168 + $0x588] sm:$0xff]
      %v365 = vld [vmem:[%s168 + $0x590] sm:$0xff]
      %v366 = vld [vmem:[%s168 + $0x598] sm:$0xff]
      %v367 = vld [vmem:[%s168 + $0x5a0] sm:$0xff]
      %v368 = vld [vmem:[%s168 + $0x5a8] sm:$0xff]
      %v369 = vld [vmem:[%s168 + $0x5b0] sm:$0xff]
      %v370 = vld [vmem:[%s168 + $0x5b8] sm:$0xff]
      %v371 = vld [vmem:[%s168 + $0x5c0] sm:$0xff]
      %v372 = vld [vmem:[%s168 + $0x5c8] sm:$0xff]
      %v373 = vld [vmem:[%s168 + $0x5d0] sm:$0xff]
      %v374 = vld [vmem:[%s168 + $0x5d8] sm:$0xff]
      %v375 = vld [vmem:[%s168 + $0x5e0] sm:$0xff]
      %v376 = vld [vmem:[%s168 + $0x5e8] sm:$0xff]
      %v377 = vld [vmem:[%s168 + $0x5f0] sm:$0xff]
      %v378 = vld [vmem:[%s168 + $0x5f8] sm:$0xff]
      %v379 = vld [vmem:[%s168 + $0x600] sm:$0xff]
      %v380 = vld [vmem:[%s168 + $0x608] sm:$0xff]
      %v381 = vld [vmem:[%s168 + $0x610] sm:$0xff]
      %v382 = vld [vmem:[%s168 + $0x618] sm:$0xff]
      %v383 = vld [vmem:[%s168 + $0x620] sm:$0xff]
      %v384 = vld [vmem:[%s168 + $0x628] sm:$0xff]
      %v385 = vld [vmem:[%s168 + $0x630] sm:$0xff]
      %v386 = vld [vmem:[%s168 + $0x638] sm:$0xff]
      %v387 = vld [vmem:[%s168 + $0x640] sm:$0xff]
      %v388 = vld [vmem:[%s168 + $0x648] sm:$0xff]
      %v389 = vld [vmem:[%s168 + $0x650] sm:$0xff]
      %v390 = vld [vmem:[%s168 + $0x658] sm:$0xff]
      %v391 = vld [vmem:[%s168 + $0x660] sm:$0xff]
      %v392 = vld [vmem:[%s168 + $0x668] sm:$0xff]
      %v393 = vld [vmem:[%s168 + $0x670] sm:$0xff]
      %v394 = vld [vmem:[%s168 + $0x678] sm:$0xff]
      %v395 = vld [vmem:[%s168 + $0x680] sm:$0xff]
      %v396 = vld [vmem:[%s168 + $0x688] sm:$0xff]
      %v397 = vld [vmem:[%s168 + $0x690] sm:$0xff]
      %v398 = vld [vmem:[%s168 + $0x698] sm:$0xff]
      %v399 = vld [vmem:[%s168 + $0x6a0] sm:$0xff]
      %v400 = vld [vmem:[%s168 + $0x6a8] sm:$0xff]
      %v401 = vld [vmem:[%s168 + $0x6b0] sm:$0xff]
      %v402 = vld [vmem:[%s168 + $0x6b8] sm:$0xff]
      %v403 = vld [vmem:[%s168 + $0x6c0] sm:$0xff]
      %v404 = vld [vmem:[%s168 + $0x6c8] sm:$0xff]
      %v405 = vld [vmem:[%s168 + $0x6d0] sm:$0xff]
      %v406 = vld [vmem:[%s168 + $0x6d8] sm:$0xff]
      %v407 = vld [vmem:[%s168 + $0x6e0] sm:$0xff]
      %v408 = vld [vmem:[%s168 + $0x6e8] sm:$0xff]
      %v409 = vld [vmem:[%s168 + $0x6f0] sm:$0xff]
      %v410 = vld [vmem:[%s168 + $0x6f8] sm:$0xff]
      %v411 = vld [vmem:[%s168 + $0x700] sm:$0xff]
      %v412 = vld [vmem:[%s168 + $0x708] sm:$0xff]
      %v413 = vld [vmem:[%s168 + $0x710] sm:$0xff]
      %v414 = vld [vmem:[%s168 + $0x718] sm:$0xff]
      %v415 = vld [vmem:[%s168 + $0x720] sm:$0xff]
      %v416 = vld [vmem:[%s168 + $0x728] sm:$0xff]
      %v417 = vld [vmem:[%s168 + $0x730] sm:$0xff]
      %v418 = vld [vmem:[%s168 + $0x738] sm:$0xff]
      %v419 = vld [vmem:[%s168 + $0x740] sm:$0xff]
      %v420 = vld [vmem:[%s168 + $0x748] sm:$0xff]
      %v421 = vld [vmem:[%s168 + $0x750] sm:$0xff]
      %v422 = vld [vmem:[%s168 + $0x758] sm:$0xff]
      %v423 = vld [vmem:[%s168 + $0x760] sm:$0xff]
      %v424 = vld [vmem:[%s168 + $0x768] sm:$0xff]
      %v425 = vld [vmem:[%s168 + $0x770] sm:$0xff]
      %v426 = vld [vmem:[%s168 + $0x778] sm:$0xff]
      %v427 = vld [vmem:[%s168 + $0x780] sm:$0xff]
      %v428 = vld [vmem:[%s168 + $0x788] sm:$0xff]
      %v429 = vld [vmem:[%s168 + $0x790] sm:$0xff]
      %v430 = vld [vmem:[%s168 + $0x798] sm:$0xff]
      %v431 = vld [vmem:[%s168 + $0x7a0] sm:$0xff]
      %v432 = vld [vmem:[%s168 + $0x7a8] sm:$0xff]
      %v433 = vld [vmem:[%s168 + $0x7b0] sm:$0xff]
      %v434 = vld [vmem:[%s168 + $0x7b8] sm:$0xff]
      %v435 = vld [vmem:[%s168 + $0x7c0] sm:$0xff]
      %v436 = vld [vmem:[%s168 + $0x7c8] sm:$0xff]
      %v437 = vld [vmem:[%s168 + $0x7d0] sm:$0xff]
      %v438 = vld [vmem:[%s168 + $0x7d8] sm:$0xff]
      %v439 = vld [vmem:[%s168 + $0x7e0] sm:$0xff]
      %v440 = vld [vmem:[%s168 + $0x7e8] sm:$0xff]
      %v441 = vld [vmem:[%s168 + $0x7f0] sm:$0xff]
      %v442 = vld [vmem:[%s168 + $0x7f8] sm:$0xff]
      %v443 = vld [vmem:[%s168 + $0x800] sm:$0xff]
      %v444 = vld [vmem:[%s168 + $0x808] sm:$0xff]
      %v445 = vld [vmem:[%s168 + $0x810] sm:$0xff]
      %v446 = vld [vmem:[%s168 + $0x818] sm:$0xff]
      %v447 = vld [vmem:[%s168 + $0x820] sm:$0xff]
      %v448 = vld [vmem:[%s168 + $0x828] sm:$0xff]
      %v449 = vld [vmem:[%s168 + $0x830] sm:$0xff]
      %v450 = vld [vmem:[%s168 + $0x838] sm:$0xff]
      %v451 = vld [vmem:[%s168 + $0x840] sm:$0xff]
      %v452 = vld [vmem:[%s168 + $0x848] sm:$0xff]
      %v453 = vld [vmem:[%s168 + $0x850] sm:$0xff]
      %v454 = vld [vmem:[%s168 + $0x858] sm:$0xff]
      %v455 = vld [vmem:[%s168 + $0x860] sm:$0xff]
      %v456 = vld [vmem:[%s168 + $0x868] sm:$0xff]
      %v457 = vld [vmem:[%s168 + $0x870] sm:$0xff]
      %v458 = vld [vmem:[%s168 + $0x878] sm:$0xff]
      %v459 = vld [vmem:[%s168 + $0x880] sm:$0xff]
      %v460 = vld [vmem:[%s168 + $0x888] sm:$0xff]
      %v461 = vld [vmem:[%s168 + $0x890] sm:$0xff]
      %v462 = vld [vmem:[%s168 + $0x898] sm:$0xff]
      %v463 = vld [vmem:[%s168 + $0x8a0] sm:$0xff]
      %v464 = vld [vmem:[%s168 + $0x8a8] sm:$0xff]
      %v465 = vld [vmem:[%s168 + $0x8b0] sm:$0xff]
      %v466 = vld [vmem:[%s168 + $0x8b8] sm:$0xff]
      %v467 = vld [vmem:[%s168 + $0x8c0] sm:$0xff]
      %v468 = vld [vmem:[%s168 + $0x8c8] sm:$0xff]
      %v469 = vld [vmem:[%s168 + $0x8d0] sm:$0xff]
      %v470 = vld [vmem:[%s168 + $0x8d8] sm:$0xff]
      %v471 = vld [vmem:[%s168 + $0x8e0] sm:$0xff]
      %v472 = vld [vmem:[%s168 + $0x8e8] sm:$0xff]
      %v473 = vld [vmem:[%s168 + $0x8f0] sm:$0xff]
      %v474 = vld [vmem:[%s168 + $0x8f8] sm:$0xff]
      %v475 = vld [vmem:[%s168 + $0x900] sm:$0xff]
      %v476 = vld [vmem:[%s168 + $0x908] sm:$0xff]
      %v477 = vld [vmem:[%s168 + $0x910] sm:$0xff]
      %v478 = vld [vmem:[%s168 + $0x918] sm:$0xff]
      %v479 = vld [vmem:[%s168 + $0x920] sm:$0xff]
      %v480 = vld [vmem:[%s168 + $0x928] sm:$0xff]
      %v481 = vld [vmem:[%s168 + $0x930] sm:$0xff]
      %v482 = vld [vmem:[%s168 + $0x938] sm:$0xff]
      %v483 = vld [vmem:[%s168 + $0x940] sm:$0xff]
      %v484 = vld [vmem:[%s168 + $0x948] sm:$0xff]
      %v485 = vld [vmem:[%s168 + $0x950] sm:$0xff]
      %v486 = vld [vmem:[%s168 + $0x958] sm:$0xff]
      %v487 = vld [vmem:[%s168 + $0x960] sm:$0xff]
      %v488 = vld [vmem:[%s168 + $0x968] sm:$0xff]
      %v489 = vld [vmem:[%s168 + $0x970] sm:$0xff]
      %v490 = vld [vmem:[%s168 + $0x978] sm:$0xff]
      %v491 = vld [vmem:[%s168 + $0x980] sm:$0xff]
      %v492 = vld [vmem:[%s168 + $0x988] sm:$0xff]
      %v493 = vld [vmem:[%s168 + $0x990] sm:$0xff]
      %v494 = vld [vmem:[%s168 + $0x998] sm:$0xff]
      %v495 = vld [vmem:[%s168 + $0x9a0] sm:$0xff]
      %v496 = vld [vmem:[%s168 + $0x9a8] sm:$0xff]
      %v497 = vld [vmem:[%s168 + $0x9b0] sm:$0xff]
      %v498 = vld [vmem:[%s168 + $0x9b8] sm:$0xff]
      %v499 = vld [vmem:[%s168 + $0x9c0] sm:$0xff]
      %v500 = vld [vmem:[%s168 + $0x9c8] sm:$0xff]
      %v501 = vld [vmem:[%s168 + $0x9d0] sm:$0xff]
      %v502 = vld [vmem:[%s168 + $0x9d8] sm:$0xff]
      %v503 = vld [vmem:[%s168 + $0x9e0] sm:$0xff]
      %v504 = vld [vmem:[%s168 + $0x9e8] sm:$0xff]
      %v505 = vld [vmem:[%s168 + $0x9f0] sm:$0xff]
      %v506 = vld [vmem:[%s168 + $0x9f8] sm:$0xff]
      %v507 = vld [vmem:[%s168 + $0xa00] sm:$0xff]
      %v508 = vld [vmem:[%s168 + $0xa08] sm:$0xff]
      %v509 = vld [vmem:[%s168 + $0xa10] sm:$0xff]
      %v510 = vld [vmem:[%s168 + $0xa18] sm:$0xff]
      %v511 = vld [vmem:[%s168 + $0xa20] sm:$0xff]
      %v512 = vld [vmem:[%s168 + $0xa28] sm:$0xff]
      %v513 = vld [vmem:[%s168 + $0xa30] sm:$0xff]
      %v514 = vld [vmem:[%s168 + $0xa38] sm:$0xff]
      %v515 = vld [vmem:[%s168 + $0xa40] sm:$0xff]
      %v516 = vld [vmem:[%s168 + $0xa48] sm:$0xff]
      %v517 = vld [vmem:[%s168 + $0xa50] sm:$0xff]
      %v518 = vld [vmem:[%s168 + $0xa58] sm:$0xff]
      %v519 = vld [vmem:[%s168 + $0xa60] sm:$0xff]
      %v520 = vld [vmem:[%s168 + $0xa68] sm:$0xff]
      %v521 = vld [vmem:[%s168 + $0xa70] sm:$0xff]
      %v522 = vld [vmem:[%s168 + $0xa78] sm:$0xff]
      %v523 = vld [vmem:[%s168 + $0xa80] sm:$0xff]
      %v524 = vld [vmem:[%s168 + $0xa88] sm:$0xff]
      %v525 = vld [vmem:[%s168 + $0xa90] sm:$0xff]
      %v526 = vld [vmem:[%s168 + $0xa98] sm:$0xff]
      %v527 = vld [vmem:[%s168 + $0xaa0] sm:$0xff]
      %v528 = vld [vmem:[%s168 + $0xaa8] sm:$0xff]
      %v529 = vld [vmem:[%s168 + $0xab0] sm:$0xff]
      %v530 = vld [vmem:[%s168 + $0xab8] sm:$0xff]
      %v531 = vld [vmem:[%s168 + $0xac0] sm:$0xff]
      %v532 = vld [vmem:[%s168 + $0xac8] sm:$0xff]
      %v533 = vld [vmem:[%s168 + $0xad0] sm:$0xff]
      %v534 = vld [vmem:[%s168 + $0xad8] sm:$0xff]
      %v535 = vld [vmem:[%s168 + $0xae0] sm:$0xff]
      %v536 = vld [vmem:[%s168 + $0xae8] sm:$0xff]
      %v537 = vld [vmem:[%s168 + $0xaf0] sm:$0xff]
      %v538 = vld [vmem:[%s168 + $0xaf8] sm:$0xff]
      %v539 = vld [vmem:[%s168 + $0xb00] sm:$0xff]
      %v540 = vld [vmem:[%s168 + $0xb08] sm:$0xff]
      %v541 = vld [vmem:[%s168 + $0xb10] sm:$0xff]
      %v542 = vld [vmem:[%s168 + $0xb18] sm:$0xff]
      %v543 = vld [vmem:[%s168 + $0xb20] sm:$0xff]
      %v544 = vld [vmem:[%s168 + $0xb28] sm:$0xff]
      %v545 = vld [vmem:[%s168 + $0xb30] sm:$0xff]
      %v546 = vld [vmem:[%s168 + $0xb38] sm:$0xff]
      %v547 = vld [vmem:[%s168 + $0xb40] sm:$0xff]
      %v548 = vld [vmem:[%s168 + $0xb48] sm:$0xff]
      %v549 = vld [vmem:[%s168 + $0xb50] sm:$0xff]
      %v550 = vld [vmem:[%s168 + $0xb58] sm:$0xff]
      %v551 = vld [vmem:[%s168 + $0xb60] sm:$0xff]
      %v552 = vld [vmem:[%s168 + $0xb68] sm:$0xff]
      %v553 = vld [vmem:[%s168 + $0xb70] sm:$0xff]
      %v554 = vld [vmem:[%s168 + $0xb78] sm:$0xff]
      %v555 = vld [vmem:[%s168 + $0xb80] sm:$0xff]
      %v556 = vld [vmem:[%s168 + $0xb88] sm:$0xff]
      %v557 = vld [vmem:[%s168 + $0xb90] sm:$0xff]
      %v558 = vld [vmem:[%s168 + $0xb98] sm:$0xff]
      %v559 = vld [vmem:[%s168 + $0xba0] sm:$0xff]
      %v560 = vld [vmem:[%s168 + $0xba8] sm:$0xff]
      %v561 = vld [vmem:[%s168 + $0xbb0] sm:$0xff]
      %v562 = vld [vmem:[%s168 + $0xbb8] sm:$0xff]
      %v563 = vld [vmem:[%s168 + $0xbc0] sm:$0xff]
      %v564 = vld [vmem:[%s168 + $0xbc8] sm:$0xff]
      %v565 = vld [vmem:[%s168 + $0xbd0] sm:$0xff]
      %v566 = vld [vmem:[%s168 + $0xbd8] sm:$0xff]
      %v567 = vld [vmem:[%s168 + $0xbe0] sm:$0xff]
      %v568 = vld [vmem:[%s168 + $0xbe8] sm:$0xff]
      %v569 = vld [vmem:[%s168 + $0xbf0] sm:$0xff]
      %v570 = vld [vmem:[%s168 + $0xbf8] sm:$0xff]
      %v571 = vld [vmem:[%s168 + $0xc00] sm:$0xff]
      %v572 = vld [vmem:[%s168 + $0xc08] sm:$0xff]
      %v573 = vld [vmem:[%s168 + $0xc10] sm:$0xff]
      %v574 = vld [vmem:[%s168 + $0xc18] sm:$0xff]
      %v575 = vld [vmem:[%s168 + $0xc20] sm:$0xff]
      %v576 = vld [vmem:[%s168 + $0xc28] sm:$0xff]
      %v577 = vld [vmem:[%s168 + $0xc30] sm:$0xff]
      %v578 = vld [vmem:[%s168 + $0xc38] sm:$0xff]
      %v579 = vld [vmem:[%s168 + $0xc40] sm:$0xff]
      %v580 = vld [vmem:[%s168 + $0xc48] sm:$0xff]
      %v581 = vld [vmem:[%s168 + $0xc50] sm:$0xff]
      %v582 = vld [vmem:[%s168 + $0xc58] sm:$0xff]
      %v583 = vld [vmem:[%s168 + $0xc60] sm:$0xff]
      %v584 = vld [vmem:[%s168 + $0xc68] sm:$0xff]
      %v585 = vld [vmem:[%s168 + $0xc70] sm:$0xff]
      %v586 = vld [vmem:[%s168 + $0xc78] sm:$0xff]
      %v587 = vld [vmem:[%s168 + $0xc80] sm:$0xff]
      %v588 = vld [vmem:[%s168 + $0xc88] sm:$0xff]
      %v589 = vld [vmem:[%s168 + $0xc90] sm:$0xff]
      %v590 = vld [vmem:[%s168 + $0xc98] sm:$0xff]
      %v591 = vld [vmem:[%s168 + $0xca0] sm:$0xff]
      %v592 = vld [vmem:[%s168 + $0xca8] sm:$0xff]
      %v593 = vld [vmem:[%s168 + $0xcb0] sm:$0xff]
      %v594 = vld [vmem:[%s168 + $0xcb8] sm:$0xff]
      %v595 = vld [vmem:[%s168 + $0xcc0] sm:$0xff]
      %v596 = vld [vmem:[%s168 + $0xcc8] sm:$0xff]
      %v597 = vld [vmem:[%s168 + $0xcd0] sm:$0xff]
      %v598 = vld [vmem:[%s168 + $0xcd8] sm:$0xff]
      %v599 = vld [vmem:[%s168 + $0xce0] sm:$0xff]
      %v600 = vld [vmem:[%s168 + $0xce8] sm:$0xff]
      %v601 = vld [vmem:[%s168 + $0xcf0] sm:$0xff]
      %v602 = vld [vmem:[%s168 + $0xcf8] sm:$0xff]
      %v603 = vld [vmem:[%s168 + $0xd00] sm:$0xff]
      %v604 = vld [vmem:[%s168 + $0xd08] sm:$0xff]
      %v605 = vld [vmem:[%s168 + $0xd10] sm:$0xff]
      %v606 = vld [vmem:[%s168 + $0xd18] sm:$0xff]
      %v607 = vld [vmem:[%s168 + $0xd20] sm:$0xff]
      %v608 = vld [vmem:[%s168 + $0xd28] sm:$0xff]
      %v609 = vld [vmem:[%s168 + $0xd30] sm:$0xff]
      %v610 = vld [vmem:[%s168 + $0xd38] sm:$0xff]
      %v611 = vld [vmem:[%s168 + $0xd40] sm:$0xff]
      %v612 = vld [vmem:[%s168 + $0xd48] sm:$0xff]
      %v613 = vld [vmem:[%s168 + $0xd50] sm:$0xff]
      %v614 = vld [vmem:[%s168 + $0xd58] sm:$0xff]
      %v615 = vld [vmem:[%s168 + $0xd60] sm:$0xff]
      %v616 = vld [vmem:[%s168 + $0xd68] sm:$0xff]
      %v617 = vld [vmem:[%s168 + $0xd70] sm:$0xff]
      %v618 = vld [vmem:[%s168 + $0xd78] sm:$0xff]
      %v619 = vld [vmem:[%s168 + $0xd80] sm:$0xff]
      %v620 = vld [vmem:[%s168 + $0xd88] sm:$0xff]
      %v621 = vld [vmem:[%s168 + $0xd90] sm:$0xff]
      %v622 = vld [vmem:[%s168 + $0xd98] sm:$0xff]
      %v623 = vld [vmem:[%s168 + $0xda0] sm:$0xff]
      %v624 = vld [vmem:[%s168 + $0xda8] sm:$0xff]
      %v625 = vld [vmem:[%s168 + $0xdb0] sm:$0xff]
      %v626 = vld [vmem:[%s168 + $0xdb8] sm:$0xff]
      %v627 = vld [vmem:[%s168 + $0xdc0] sm:$0xff]
      %v628 = vld [vmem:[%s168 + $0xdc8] sm:$0xff]
      %v629 = vld [vmem:[%s168 + $0xdd0] sm:$0xff]
      %v630 = vld [vmem:[%s168 + $0xdd8] sm:$0xff]
      %v631 = vld [vmem:[%s168 + $0xde0] sm:$0xff]
      %v632 = vld [vmem:[%s168 + $0xde8] sm:$0xff]
      %v633 = vld [vmem:[%s168 + $0xdf0] sm:$0xff]
      %v634 = vld [vmem:[%s168 + $0xdf8] sm:$0xff]
      %v635 = vld [vmem:[%s168 + $0xe00] sm:$0xff]
      %v636 = vld [vmem:[%s168 + $0xe08] sm:$0xff]
      %v637 = vld [vmem:[%s168 + $0xe10] sm:$0xff]
      %v638 = vld [vmem:[%s168 + $0xe18] sm:$0xff]
      %v639 = vld [vmem:[%s168 + $0xe20] sm:$0xff]
      %v640 = vld [vmem:[%s168 + $0xe28] sm:$0xff]
      %v641 = vld [vmem:[%s168 + $0xe30] sm:$0xff]
      %v642 = vld [vmem:[%s168 + $0xe38] sm:$0xff]
      %v643 = vld [vmem:[%s168 + $0xe40] sm:$0xff]
      %v644 = vld [vmem:[%s168 + $0xe48] sm:$0xff]
      %v645 = vld [vmem:[%s168 + $0xe50] sm:$0xff]
      %v646 = vld [vmem:[%s168 + $0xe58] sm:$0xff]
      %v647 = vld [vmem:[%s168 + $0xe60] sm:$0xff]
      %v648 = vld [vmem:[%s168 + $0xe68] sm:$0xff]
      %v649 = vld [vmem:[%s168 + $0xe70] sm:$0xff]
      %v650 = vld [vmem:[%s168 + $0xe78] sm:$0xff]
      %v651 = vld [vmem:[%s168 + $0xe80] sm:$0xff]
      %v652 = vld [vmem:[%s168 + $0xe88] sm:$0xff]
      %v653 = vld [vmem:[%s168 + $0xe90] sm:$0xff]
      %v654 = vld [vmem:[%s168 + $0xe98] sm:$0xff]
      %v655 = vld [vmem:[%s168 + $0xea0] sm:$0xff]
      %v656 = vld [vmem:[%s168 + $0xea8] sm:$0xff]
      %v657 = vld [vmem:[%s168 + $0xeb0] sm:$0xff]
      %v658 = vld [vmem:[%s168 + $0xeb8] sm:$0xff]
      %v659 = vld [vmem:[%s168 + $0xec0] sm:$0xff]
      %v660 = vld [vmem:[%s168 + $0xec8] sm:$0xff]
      %v661 = vld [vmem:[%s168 + $0xed0] sm:$0xff]
      %v662 = vld [vmem:[%s168 + $0xed8] sm:$0xff]
      %v663 = vld [vmem:[%s168 + $0xee0] sm:$0xff]
      %v664 = vld [vmem:[%s168 + $0xee8] sm:$0xff]
      %v665 = vld [vmem:[%s168 + $0xef0] sm:$0xff]
      %v666 = vld [vmem:[%s168 + $0xef8] sm:$0xff]
      %v667 = vld [vmem:[%s168 + $0xf00] sm:$0xff]
      %v668 = vld [vmem:[%s168 + $0xf08] sm:$0xff]
      %v669 = vld [vmem:[%s168 + $0xf10] sm:$0xff]
      %v670 = vld [vmem:[%s168 + $0xf18] sm:$0xff]
      %v671 = vld [vmem:[%s168 + $0xf20] sm:$0xff]
      %v672 = vld [vmem:[%s168 + $0xf28] sm:$0xff]
      %v673 = vld [vmem:[%s168 + $0xf30] sm:$0xff]
      %v674 = vld [vmem:[%s168 + $0xf38] sm:$0xff]
      %v675 = vld [vmem:[%s168 + $0xf40] sm:$0xff]
      %v676 = vld [vmem:[%s168 + $0xf48] sm:$0xff]
      %v677 = vld [vmem:[%s168 + $0xf50] sm:$0xff]
      %v678 = vld [vmem:[%s168 + $0xf58] sm:$0xff]
      %v679 = vld [vmem:[%s168 + $0xf60] sm:$0xff]
      %v680 = vld [vmem:[%s168 + $0xf68] sm:$0xff]
      %v681 = vld [vmem:[%s168 + $0xf70] sm:$0xff]
      %v682 = vld [vmem:[%s168 + $0xf78] sm:$0xff]
      %v683 = vld [vmem:[%s168 + $0xf80] sm:$0xff]
      %v684 = vld [vmem:[%s168 + $0xf88] sm:$0xff]
      %v685 = vld [vmem:[%s168 + $0xf90] sm:$0xff]
      %v686 = vld [vmem:[%s168 + $0xf98] sm:$0xff]
      %v687 = vld [vmem:[%s168 + $0xfa0] sm:$0xff]
      %v688 = vld [vmem:[%s168 + $0xfa8] sm:$0xff]
      %v689 = vld [vmem:[%s168 + $0xfb0] sm:$0xff]
      %v690 = vld [vmem:[%s168 + $0xfb8] sm:$0xff]
      %v691 = vld [vmem:[%s168 + $0xfc0] sm:$0xff]
      %v692 = vld [vmem:[%s168 + $0xfc8] sm:$0xff]
      %v693 = vld [vmem:[%s168 + $0xfd0] sm:$0xff]
      %v694 = vld [vmem:[%s168 + $0xfd8] sm:$0xff]
      %v695 = vld [vmem:[%s168 + $0xfe0] sm:$0xff]
      %v696 = vld [vmem:[%s168 + $0xfe8] sm:$0xff]
      %v697 = vld [vmem:[%s168 + $0xff0] sm:$0xff]
      %v698 = vld [vmem:[%s168 + $0xff8] sm:$0xff]
      %v700 = vlaneseq
      %v701 = vshrl.u32 %v700, 7
      %v702 = vsub.s32 0, %v701
      %v703 = vrot.slane %v185, %v702
      %v704 = vlaneseq
      %v705 = vshrl.u32 %v704, 7
      %v706 = vsub.s32 1, %v705
      %v707 = vrot.slane %v185, %v706
      %v708 = vlaneseq
      %v709 = vshrl.u32 %v708, 7
      %v710 = vsub.s32 2, %v709
      %v711 = vrot.slane %v185, %v710
      %v712 = vlaneseq
      %v713 = vshrl.u32 %v712, 7
      %v714 = vsub.s32 3, %v713
      %v715 = vrot.slane %v185, %v714
      %720 = vmatprep.subr.mxu0 %v188
      %721 = vmatpush1.msra.mxu0 %v187
      %722 = vmatprep.subr.mxu0 %v196
      %723 = vmatpush1.msra.mxu0 %v195
      %724 = vmatprep.subr.mxu0 %v204
      %725 = vmatpush1.msra.mxu0 %v203
      %726 = vmatprep.subr.mxu0 %v212
      %727 = vmatpush1.msra.mxu0 %v211
      %728 = vmatprep.subr.mxu0 %v220
      %729 = vmatpush1.msra.mxu0 %v219
      %730 = vmatprep.subr.mxu0 %v228
      %731 = vmatpush1.msra.mxu0 %v227
      %732 = vmatprep.subr.mxu0 %v236
      %733 = vmatpush1.msra.mxu0 %v235
      %734 = vmatprep.subr.mxu0 %v244
      %735 = vmatpush1.msra.mxu0 %v243
      %736 = vmatprep.subr.mxu0 %v252
      %737 = vmatpush1.msra.mxu0 %v251
      %738 = vmatprep.subr.mxu0 %v260
      %739 = vmatpush1.msra.mxu0 %v259
      %740 = vmatprep.subr.mxu0 %v268
      %741 = vmatpush1.msra.mxu0 %v267
      %742 = vmatprep.subr.mxu0 %v276
      %743 = vmatpush1.msra.mxu0 %v275
      %744 = vmatprep.subr.mxu0 %v284
      %745 = vmatpush1.msra.mxu0 %v283
      %746 = vmatprep.subr.mxu0 %v292
      %747 = vmatpush1.msra.mxu0 %v291
      %748 = vmatprep.subr.mxu0 %v300
      %749 = vmatpush1.msra.mxu0 %v299
      %750 = vmatprep.subr.mxu0 %v308
      %751 = vmatpush1.msra.mxu0 %v307
      %752 = vmatprep.subr.mxu0 %v316
      %753 = vmatpush1.msra.mxu0 %v315
      %754 = vmatprep.subr.mxu0 %v324
      %755 = vmatpush1.msra.mxu0 %v323
      %756 = vmatprep.subr.mxu0 %v332
      %757 = vmatpush1.msra.mxu0 %v331
      %758 = vmatprep.subr.mxu0 %v340
      %759 = vmatpush1.msra.mxu0 %v339
      %760 = vmatprep.subr.mxu0 %v348
      %761 = vmatpush1.msra.mxu0 %v347
      %762 = vmatprep.subr.mxu0 %v356
      %763 = vmatpush1.msra.mxu0 %v355
      %764 = vmatprep.subr.mxu0 %v364
      %765 = vmatpush1.msra.mxu0 %v363
      %766 = vmatprep.subr.mxu0 %v372
      %767 = vmatpush1.msra.mxu0 %v371
      %768 = vmatprep.subr.mxu0 %v380
      %769 = vmatpush1.msra.mxu0 %v379
      %770 = vmatprep.subr.mxu0 %v388
      %771 = vmatpush1.msra.mxu0 %v387
      %772 = vmatprep.subr.mxu0 %v396
      %773 = vmatpush1.msra.mxu0 %v395
      %774 = vmatprep.subr.mxu0 %v404
      %775 = vmatpush1.msra.mxu0 %v403
      %776 = vmatprep.subr.mxu0 %v412
      %777 = vmatpush1.msra.mxu0 %v411
      %778 = vmatprep.subr.mxu0 %v420
      %779 = vmatpush1.msra.mxu0 %v419
      %780 = vmatprep.subr.mxu0 %v428
      %781 = vmatpush1.msra.mxu0 %v427
      %782 = vmatprep.subr.mxu0 %v436
      %783 = vmatpush1.msra.mxu0 %v435
      %784 = vmatprep.mubr.f32.mxu0 %v707
      %785 = vmatmul.mubr.f32.gmra.mrb[0].mxu0 %v703
      %v786 = vpop.f32.mrb[0].mxu0
      %v787 = vadd.f32 0.0, %v786
      %v788 = vpop.f32.mrb[0].mxu0
      %v789 = vadd.f32 0.0, %v788
      %790 = vdwg.mxu0
      %791 = vmatprep.subr.mxu0 %v444
      %792 = vmatpush1.msra.mxu0 %v443
      %793 = vmatprep.subr.mxu0 %v452
      %794 = vmatpush1.msra.mxu0 %v451
      %795 = vmatprep.subr.mxu0 %v460
      %796 = vmatpush1.msra.mxu0 %v459
      %797 = vmatprep.subr.mxu0 %v468
      %798 = vmatpush1.msra.mxu0 %v467
      %799 = vmatprep.subr.mxu0 %v476
      %800 = vmatpush1.msra.mxu0 %v475
      %801 = vmatprep.subr.mxu0 %v484
      %802 = vmatpush1.msra.mxu0 %v483
      %803 = vmatprep.subr.mxu0 %v492
      %804 = vmatpush1.msra.mxu0 %v491
      %805 = vmatprep.subr.mxu0 %v500
      %806 = vmatpush1.msra.mxu0 %v499
      %807 = vmatprep.subr.mxu0 %v508
      %808 = vmatpush1.msra.mxu0 %v507
      %809 = vmatprep.subr.mxu0 %v516
      %810 = vmatpush1.msra.mxu0 %v515
      %811 = vmatprep.subr.mxu0 %v524
      %812 = vmatpush1.msra.mxu0 %v523
      %813 = vmatprep.subr.mxu0 %v532
      %814 = vmatpush1.msra.mxu0 %v531
      %815 = vmatprep.subr.mxu0 %v540
      %816 = vmatpush1.msra.mxu0 %v539
      %817 = vmatprep.subr.mxu0 %v548
      %818 = vmatpush1.msra.mxu0 %v547
      %819 = vmatprep.subr.mxu0 %v556
      %820 = vmatpush1.msra.mxu0 %v555
      %821 = vmatprep.subr.mxu0 %v564
      %822 = vmatpush1.msra.mxu0 %v563
      %823 = vmatprep.subr.mxu0 %v572
      %824 = vmatpush1.msra.mxu0 %v571
      %825 = vmatprep.subr.mxu0 %v580
      %826 = vmatpush1.msra.mxu0 %v579
      %827 = vmatprep.subr.mxu0 %v588
      %828 = vmatpush1.msra.mxu0 %v587
      %829 = vmatprep.subr.mxu0 %v596
      %830 = vmatpush1.msra.mxu0 %v595
      %831 = vmatprep.subr.mxu0 %v604
      %832 = vmatpush1.msra.mxu0 %v603
      %833 = vmatprep.subr.mxu0 %v612
      %834 = vmatpush1.msra.mxu0 %v611
      %835 = vmatprep.subr.mxu0 %v620
      %836 = vmatpush1.msra.mxu0 %v619
      %837 = vmatprep.subr.mxu0 %v628
      %838 = vmatpush1.msra.mxu0 %v627
      %839 = vmatprep.subr.mxu0 %v636
      %840 = vmatpush1.msra.mxu0 %v635
      %841 = vmatprep.subr.mxu0 %v644
      %842 = vmatpush1.msra.mxu0 %v643
      %843 = vmatprep.subr.mxu0 %v652
      %844 = vmatpush1.msra.mxu0 %v651
      %845 = vmatprep.subr.mxu0 %v660
      %846 = vmatpush1.msra.mxu0 %v659
      %847 = vmatprep.subr.mxu0 %v668
      %848 = vmatpush1.msra.mxu0 %v667
      %849 = vmatprep.subr.mxu0 %v676
      %850 = vmatpush1.msra.mxu0 %v675
      %851 = vmatprep.subr.mxu0 %v684
      %852 = vmatpush1.msra.mxu0 %v683
      %853 = vmatprep.subr.mxu0 %v692
      %854 = vmatpush1.msra.mxu0 %v691
      %855 = vmatprep.mubr.f32.mxu0 %v715
      %856 = vmatmul.mubr.f32.gmra.mrb[0].mxu0 %v711
      %v857 = vpop.f32.mrb[0].mxu0
      %v858 = vadd.f32 %v787, %v857
      %v859 = vpop.f32.mrb[0].mxu0
      %v860 = vadd.f32 %v789, %v859
      %861 = vdwg.mxu0
      %862 = vmatprep.subr.mxu0 %v190
      %863 = vmatpush1.msra.mxu0 %v189
      %864 = vmatprep.subr.mxu0 %v198
      %865 = vmatpush1.msra.mxu0 %v197
      %866 = vmatprep.subr.mxu0 %v206
      %867 = vmatpush1.msra.mxu0 %v205
      %868 = vmatprep.subr.mxu0 %v214
      %869 = vmatpush1.msra.mxu0 %v213
      %870 = vmatprep.subr.mxu0 %v222
      %871 = vmatpush1.msra.mxu0 %v221
      %872 = vmatprep.subr.mxu0 %v230
      %873 = vmatpush1.msra.mxu0 %v229
      %874 = vmatprep.subr.mxu0 %v238
      %875 = vmatpush1.msra.mxu0 %v237
      %876 = vmatprep.subr.mxu0 %v246
      %877 = vmatpush1.msra.mxu0 %v245
      %878 = vmatprep.subr.mxu0 %v254
      %879 = vmatpush1.msra.mxu0 %v253
      %880 = vmatprep.subr.mxu0 %v262
      %881 = vmatpush1.msra.mxu0 %v261
      %882 = vmatprep.subr.mxu0 %v270
      %883 = vmatpush1.msra.mxu0 %v269
      %884 = vmatprep.subr.mxu0 %v278
      %885 = vmatpush1.msra.mxu0 %v277
      %886 = vmatprep.subr.mxu0 %v286
      %887 = vmatpush1.msra.mxu0 %v285
      %888 = vmatprep.subr.mxu0 %v294
      %889 = vmatpush1.msra.mxu0 %v293
      %890 = vmatprep.subr.mxu0 %v302
      %891 = vmatpush1.msra.mxu0 %v301
      %892 = vmatprep.subr.mxu0 %v310
      %893 = vmatpush1.msra.mxu0 %v309
      %894 = vmatprep.subr.mxu0 %v318
      %895 = vmatpush1.msra.mxu0 %v317
      %896 = vmatprep.subr.mxu0 %v326
      %897 = vmatpush1.msra.mxu0 %v325
      %898 = vmatprep.subr.mxu0 %v334
      %899 = vmatpush1.msra.mxu0 %v333
      %900 = vmatprep.subr.mxu0 %v342
      %901 = vmatpush1.msra.mxu0 %v341
      %902 = vmatprep.subr.mxu0 %v350
      %903 = vmatpush1.msra.mxu0 %v349
      %904 = vmatprep.subr.mxu0 %v358
      %905 = vmatpush1.msra.mxu0 %v357
      %906 = vmatprep.subr.mxu0 %v366
      %907 = vmatpush1.msra.mxu0 %v365
      %908 = vmatprep.subr.mxu0 %v374
      %909 = vmatpush1.msra.mxu0 %v373
      %910 = vmatprep.subr.mxu0 %v382
      %911 = vmatpush1.msra.mxu0 %v381
      %912 = vmatprep.subr.mxu0 %v390
      %913 = vmatpush1.msra.mxu0 %v389
      %914 = vmatprep.subr.mxu0 %v398
      %915 = vmatpush1.msra.mxu0 %v397
      %916 = vmatprep.subr.mxu0 %v406
      %917 = vmatpush1.msra.mxu0 %v405
      %918 = vmatprep.subr.mxu0 %v414
      %919 = vmatpush1.msra.mxu0 %v413
      %920 = vmatprep.subr.mxu0 %v422
      %921 = vmatpush1.msra.mxu0 %v421
      %922 = vmatprep.subr.mxu0 %v430
      %923 = vmatpush1.msra.mxu0 %v429
      %924 = vmatprep.subr.mxu0 %v438
      %925 = vmatpush1.msra.mxu0 %v437
      %926 = vmatprep.mubr.f32.mxu0 %v707
      %927 = vmatmul.mubr.f32.gmra.mrb[0].mxu0 %v703
      %v928 = vpop.f32.mrb[0].mxu0
      %v929 = vadd.f32 0.0, %v928
      %v930 = vpop.f32.mrb[0].mxu0
      %v931 = vadd.f32 0.0, %v930
      %932 = vdwg.mxu0
      %933 = vmatprep.subr.mxu0 %v446
      %934 = vmatpush1.msra.mxu0 %v445
      %935 = vmatprep.subr.mxu0 %v454
      %936 = vmatpush1.msra.mxu0 %v453
      %937 = vmatprep.subr.mxu0 %v462
      %938 = vmatpush1.msra.mxu0 %v461
      %939 = vmatprep.subr.mxu0 %v470
      %940 = vmatpush1.msra.mxu0 %v469
      %941 = vmatprep.subr.mxu0 %v478
      %942 = vmatpush1.msra.mxu0 %v477
      %943 = vmatprep.subr.mxu0 %v486
      %944 = vmatpush1.msra.mxu0 %v485
      %945 = vmatprep.subr.mxu0 %v494
      %946 = vmatpush1.msra.mxu0 %v493
      %947 = vmatprep.subr.mxu0 %v502
      %948 = vmatpush1.msra.mxu0 %v501
      %949 = vmatprep.subr.mxu0 %v510
      %950 = vmatpush1.msra.mxu0 %v509
      %951 = vmatprep.subr.mxu0 %v518
      %952 = vmatpush1.msra.mxu0 %v517
      %953 = vmatprep.subr.mxu0 %v526
      %954 = vmatpush1.msra.mxu0 %v525
      %955 = vmatprep.subr.mxu0 %v534
      %956 = vmatpush1.msra.mxu0 %v533
      %957 = vmatprep.subr.mxu0 %v542
      %958 = vmatpush1.msra.mxu0 %v541
      %959 = vmatprep.subr.mxu0 %v550
      %960 = vmatpush1.msra.mxu0 %v549
      %961 = vmatprep.subr.mxu0 %v558
      %962 = vmatpush1.msra.mxu0 %v557
      %963 = vmatprep.subr.mxu0 %v566
      %964 = vmatpush1.msra.mxu0 %v565
      %965 = vmatprep.subr.mxu0 %v574
      %966 = vmatpush1.msra.mxu0 %v573
      %967 = vmatprep.subr.mxu0 %v582
      %968 = vmatpush1.msra.mxu0 %v581
      %969 = vmatprep.subr.mxu0 %v590
      %970 = vmatpush1.msra.mxu0 %v589
      %971 = vmatprep.subr.mxu0 %v598
      %972 = vmatpush1.msra.mxu0 %v597
      %973 = vmatprep.subr.mxu0 %v606
      %974 = vmatpush1.msra.mxu0 %v605
      %975 = vmatprep.subr.mxu0 %v614
      %976 = vmatpush1.msra.mxu0 %v613
      %977 = vmatprep.subr.mxu0 %v622
      %978 = vmatpush1.msra.mxu0 %v621
      %979 = vmatprep.subr.mxu0 %v630
      %980 = vmatpush1.msra.mxu0 %v629
      %981 = vmatprep.subr.mxu0 %v638
      %982 = vmatpush1.msra.mxu0 %v637
      %983 = vmatprep.subr.mxu0 %v646
      %984 = vmatpush1.msra.mxu0 %v645
      %985 = vmatprep.subr.mxu0 %v654
      %986 = vmatpush1.msra.mxu0 %v653
      %987 = vmatprep.subr.mxu0 %v662
      %988 = vmatpush1.msra.mxu0 %v661
      %989 = vmatprep.subr.mxu0 %v670
      %990 = vmatpush1.msra.mxu0 %v669
      %991 = vmatprep.subr.mxu0 %v678
      %992 = vmatpush1.msra.mxu0 %v677
      %993 = vmatprep.subr.mxu0 %v686
      %994 = vmatpush1.msra.mxu0 %v685
      %995 = vmatprep.subr.mxu0 %v694
      %996 = vmatpush1.msra.mxu0 %v693
      %997 = vmatprep.mubr.f32.mxu0 %v715
      %998 = vmatmul.mubr.f32.gmra.mrb[0].mxu0 %v711
      %v999 = vpop.f32.mrb[0].mxu0
      %v1000 = vadd.f32 %v929, %v999
      %v1001 = vpop.f32.mrb[0].mxu0
      %v1002 = vadd.f32 %v931, %v1001
      %1003 = vdwg.mxu0
      %1004 = vmatprep.subr.mxu0 %v192
      %1005 = vmatpush1.msra.mxu0 %v191
      %1006 = vmatprep.subr.mxu0 %v200
      %1007 = vmatpush1.msra.mxu0 %v199
      %1008 = vmatprep.subr.mxu0 %v208
      %1009 = vmatpush1.msra.mxu0 %v207
      %1010 = vmatprep.subr.mxu0 %v216
      %1011 = vmatpush1.msra.mxu0 %v215
      %1012 = vmatprep.subr.mxu0 %v224
      %1013 = vmatpush1.msra.mxu0 %v223
      %1014 = vmatprep.subr.mxu0 %v232
      %1015 = vmatpush1.msra.mxu0 %v231
      %1016 = vmatprep.subr.mxu0 %v240
      %1017 = vmatpush1.msra.mxu0 %v239
      %1018 = vmatprep.subr.mxu0 %v248
      %1019 = vmatpush1.msra.mxu0 %v247
      %1020 = vmatprep.subr.mxu0 %v256
      %1021 = vmatpush1.msra.mxu0 %v255
      %1022 = vmatprep.subr.mxu0 %v264
      %1023 = vmatpush1.msra.mxu0 %v263
      %1024 = vmatprep.subr.mxu0 %v272
      %1025 = vmatpush1.msra.mxu0 %v271
      %1026 = vmatprep.subr.mxu0 %v280
      %1027 = vmatpush1.msra.mxu0 %v279
      %1028 = vmatprep.subr.mxu0 %v288
      %1029 = vmatpush1.msra.mxu0 %v287
      %1030 = vmatprep.subr.mxu0 %v296
      %1031 = vmatpush1.msra.mxu0 %v295
      %1032 = vmatprep.subr.mxu0 %v304
      %1033 = vmatpush1.msra.mxu0 %v303
      %1034 = vmatprep.subr.mxu0 %v312
      %1035 = vmatpush1.msra.mxu0 %v311
      %1036 = vmatprep.subr.mxu0 %v320
      %1037 = vmatpush1.msra.mxu0 %v319
      %1038 = vmatprep.subr.mxu0 %v328
      %1039 = vmatpush1.msra.mxu0 %v327
      %1040 = vmatprep.subr.mxu0 %v336
      %1041 = vmatpush1.msra.mxu0 %v335
      %1042 = vmatprep.subr.mxu0 %v344
      %1043 = vmatpush1.msra.mxu0 %v343
      %1044 = vmatprep.subr.mxu0 %v352
      %1045 = vmatpush1.msra.mxu0 %v351
      %1046 = vmatprep.subr.mxu0 %v360
      %1047 = vmatpush1.msra.mxu0 %v359
      %1048 = vmatprep.subr.mxu0 %v368
      %1049 = vmatpush1.msra.mxu0 %v367
      %1050 = vmatprep.subr.mxu0 %v376
      %1051 = vmatpush1.msra.mxu0 %v375
      %1052 = vmatprep.subr.mxu0 %v384
      %1053 = vmatpush1.msra.mxu0 %v383
      %1054 = vmatprep.subr.mxu0 %v392
      %1055 = vmatpush1.msra.mxu0 %v391
      %1056 = vmatprep.subr.mxu0 %v400
      %1057 = vmatpush1.msra.mxu0 %v399
      %1058 = vmatprep.subr.mxu0 %v408
      %1059 = vmatpush1.msra.mxu0 %v407
      %1060 = vmatprep.subr.mxu0 %v416
      %1061 = vmatpush1.msra.mxu0 %v415
      %1062 = vmatprep.subr.mxu0 %v424
      %1063 = vmatpush1.msra.mxu0 %v423
      %1064 = vmatprep.subr.mxu0 %v432
      %1065 = vmatpush1.msra.mxu0 %v431
      %1066 = vmatprep.subr.mxu0 %v440
      %1067 = vmatpush1.msra.mxu0 %v439
      %1068 = vmatprep.mubr.f32.mxu0 %v707
      %1069 = vmatmul.mubr.f32.gmra.mrb[0].mxu0 %v703
      %v1070 = vpop.f32.mrb[0].mxu0
      %v1071 = vadd.f32 0.0, %v1070
      %v1072 = vpop.f32.mrb[0].mxu0
      %v1073 = vadd.f32 0.0, %v1072
      %1074 = vdwg.mxu0
      %1075 = vmatprep.subr.mxu0 %v448
      %1076 = vmatpush1.msra.mxu0 %v447
      %1077 = vmatprep.subr.mxu0 %v456
      %1078 = vmatpush1.msra.mxu0 %v455
      %1079 = vmatprep.subr.mxu0 %v464
      %1080 = vmatpush1.msra.mxu0 %v463
      %1081 = vmatprep.subr.mxu0 %v472
      %1082 = vmatpush1.msra.mxu0 %v471
      %1083 = vmatprep.subr.mxu0 %v480
      %1084 = vmatpush1.msra.mxu0 %v479
      %1085 = vmatprep.subr.mxu0 %v488
      %1086 = vmatpush1.msra.mxu0 %v487
      %1087 = vmatprep.subr.mxu0 %v496
      %1088 = vmatpush1.msra.mxu0 %v495
      %1089 = vmatprep.subr.mxu0 %v504
      %1090 = vmatpush1.msra.mxu0 %v503
      %1091 = vmatprep.subr.mxu0 %v512
      %1092 = vmatpush1.msra.mxu0 %v511
      %1093 = vmatprep.subr.mxu0 %v520
      %1094 = vmatpush1.msra.mxu0 %v519
      %1095 = vmatprep.subr.mxu0 %v528
      %1096 = vmatpush1.msra.mxu0 %v527
      %1097 = vmatprep.subr.mxu0 %v536
      %1098 = vmatpush1.msra.mxu0 %v535
      %1099 = vmatprep.subr.mxu0 %v544
      %1100 = vmatpush1.msra.mxu0 %v543
      %1101 = vmatprep.subr.mxu0 %v552
      %1102 = vmatpush1.msra.mxu0 %v551
      %1103 = vmatprep.subr.mxu0 %v560
      %1104 = vmatpush1.msra.mxu0 %v559
      %1105 = vmatprep.subr.mxu0 %v568
      %1106 = vmatpush1.msra.mxu0 %v567
      %1107 = vmatprep.subr.mxu0 %v576
      %1108 = vmatpush1.msra.mxu0 %v575
      %1109 = vmatprep.subr.mxu0 %v584
      %1110 = vmatpush1.msra.mxu0 %v583
      %1111 = vmatprep.subr.mxu0 %v592
      %1112 = vmatpush1.msra.mxu0 %v591
      %1113 = vmatprep.subr.mxu0 %v600
      %1114 = vmatpush1.msra.mxu0 %v599
      %1115 = vmatprep.subr.mxu0 %v608
      %1116 = vmatpush1.msra.mxu0 %v607
      %1117 = vmatprep.subr.mxu0 %v616
      %1118 = vmatpush1.msra.mxu0 %v615
      %1119 = vmatprep.subr.mxu0 %v624
      %1120 = vmatpush1.msra.mxu0 %v623
      %1121 = vmatprep.subr.mxu0 %v632
      %1122 = vmatpush1.msra.mxu0 %v631
      %1123 = vmatprep.subr.mxu0 %v640
      %1124 = vmatpush1.msra.mxu0 %v639
      %1125 = vmatprep.subr.mxu0 %v648
      %1126 = vmatpush1.msra.mxu0 %v647
      %1127 = vmatprep.subr.mxu0 %v656
      %1128 = vmatpush1.msra.mxu0 %v655
      %1129 = vmatprep.subr.mxu0 %v664
      %1130 = vmatpush1.msra.mxu0 %v663
      %1131 = vmatprep.subr.mxu0 %v672
      %1132 = vmatpush1.msra.mxu0 %v671
      %1133 = vmatprep.subr.mxu0 %v680
      %1134 = vmatpush1.msra.mxu0 %v679
      %1135 = vmatprep.subr.mxu0 %v688
      %1136 = vmatpush1.msra.mxu0 %v687
      %1137 = vmatprep.subr.mxu0 %v696
      %1138 = vmatpush1.msra.mxu0 %v695
      %1139 = vmatprep.mubr.f32.mxu0 %v715
      %1140 = vmatmul.mubr.f32.gmra.mrb[0].mxu0 %v711
      %v1141 = vpop.f32.mrb[0].mxu0
      %v1142 = vadd.f32 %v1071, %v1141
      %v1143 = vpop.f32.mrb[0].mxu0
      %v1144 = vadd.f32 %v1073, %v1143
      %1145 = vdwg.mxu0
      %1146 = vmatprep.subr.mxu0 %v194
      %1147 = vmatpush1.msra.mxu0 %v193
      %1148 = vmatprep.subr.mxu0 %v202
      %1149 = vmatpush1.msra.mxu0 %v201
      %1150 = vmatprep.subr.mxu0 %v210
      %1151 = vmatpush1.msra.mxu0 %v209
      %1152 = vmatprep.subr.mxu0 %v218
      %1153 = vmatpush1.msra.mxu0 %v217
      %1154 = vmatprep.subr.mxu0 %v226
      %1155 = vmatpush1.msra.mxu0 %v225
      %1156 = vmatprep.subr.mxu0 %v234
      %1157 = vmatpush1.msra.mxu0 %v233
      %1158 = vmatprep.subr.mxu0 %v242
      %1159 = vmatpush1.msra.mxu0 %v241
      %1160 = vmatprep.subr.mxu0 %v250
      %1161 = vmatpush1.msra.mxu0 %v249
      %1162 = vmatprep.subr.mxu0 %v258
      %1163 = vmatpush1.msra.mxu0 %v257
      %1164 = vmatprep.subr.mxu0 %v266
      %1165 = vmatpush1.msra.mxu0 %v265
      %1166 = vmatprep.subr.mxu0 %v274
      %1167 = vmatpush1.msra.mxu0 %v273
      %1168 = vmatprep.subr.mxu0 %v282
      %1169 = vmatpush1.msra.mxu0 %v281
      %1170 = vmatprep.subr.mxu0 %v290
      %1171 = vmatpush1.msra.mxu0 %v289
      %1172 = vmatprep.subr.mxu0 %v298
      %1173 = vmatpush1.msra.mxu0 %v297
      %1174 = vmatprep.subr.mxu0 %v306
      %1175 = vmatpush1.msra.mxu0 %v305
      %1176 = vmatprep.subr.mxu0 %v314
      %1177 = vmatpush1.msra.mxu0 %v313
      %1178 = vmatprep.subr.mxu0 %v322
      %1179 = vmatpush1.msra.mxu0 %v321
      %1180 = vmatprep.subr.mxu0 %v330
      %1181 = vmatpush1.msra.mxu0 %v329
      %1182 = vmatprep.subr.mxu0 %v338
      %1183 = vmatpush1.msra.mxu0 %v337
      %1184 = vmatprep.subr.mxu0 %v346
      %1185 = vmatpush1.msra.mxu0 %v345
      %1186 = vmatprep.subr.mxu0 %v354
      %1187 = vmatpush1.msra.mxu0 %v353
      %1188 = vmatprep.subr.mxu0 %v362
      %1189 = vmatpush1.msra.mxu0 %v361
      %1190 = vmatprep.subr.mxu0 %v370
      %1191 = vmatpush1.msra.mxu0 %v369
      %1192 = vmatprep.subr.mxu0 %v378
      %1193 = vmatpush1.msra.mxu0 %v377
      %1194 = vmatprep.subr.mxu0 %v386
      %1195 = vmatpush1.msra.mxu0 %v385
      %1196 = vmatprep.subr.mxu0 %v394
      %1197 = vmatpush1.msra.mxu0 %v393
      %1198 = vmatprep.subr.mxu0 %v402
      %1199 = vmatpush1.msra.mxu0 %v401
      %1200 = vmatprep.subr.mxu0 %v410
      %1201 = vmatpush1.msra.mxu0 %v409
      %1202 = vmatprep.subr.mxu0 %v418
      %1203 = vmatpush1.msra.mxu0 %v417
      %1204 = vmatprep.subr.mxu0 %v426
      %1205 = vmatpush1.msra.mxu0 %v425
      %1206 = vmatprep.subr.mxu0 %v434
      %1207 = vmatpush1.msra.mxu0 %v433
      %1208 = vmatprep.subr.mxu0 %v442
      %1209 = vmatpush1.msra.mxu0 %v441
      %1210 = vmatprep.mubr.f32.mxu0 %v707
      %1211 = vmatmul.mubr.f32.gmra.mrb[0].mxu0 %v703
      %v1212 = vpop.f32.mrb[0].mxu0
      %v1213 = vadd.f32 0.0, %v1212
      %v1214 = vpop.f32.mrb[0].mxu0
      %v1215 = vadd.f32 0.0, %v1214
      %1216 = vdwg.mxu0
      %1217 = vmatprep.subr.mxu0 %v450
      %1218 = vmatpush1.msra.mxu0 %v449
      %1219 = vmatprep.subr.mxu0 %v458
      %1220 = vmatpush1.msra.mxu0 %v457
      %1221 = vmatprep.subr.mxu0 %v466
      %1222 = vmatpush1.msra.mxu0 %v465
      %1223 = vmatprep.subr.mxu0 %v474
      %1224 = vmatpush1.msra.mxu0 %v473
      %1225 = vmatprep.subr.mxu0 %v482
      %1226 = vmatpush1.msra.mxu0 %v481
      %1227 = vmatprep.subr.mxu0 %v490
      %1228 = vmatpush1.msra.mxu0 %v489
      %1229 = vmatprep.subr.mxu0 %v498
      %1230 = vmatpush1.msra.mxu0 %v497
      %1231 = vmatprep.subr.mxu0 %v506
      %1232 = vmatpush1.msra.mxu0 %v505
      %1233 = vmatprep.subr.mxu0 %v514
      %1234 = vmatpush1.msra.mxu0 %v513
      %1235 = vmatprep.subr.mxu0 %v522
      %1236 = vmatpush1.msra.mxu0 %v521
      %1237 = vmatprep.subr.mxu0 %v530
      %1238 = vmatpush1.msra.mxu0 %v529
      %1239 = vmatprep.subr.mxu0 %v538
      %1240 = vmatpush1.msra.mxu0 %v537
      %1241 = vmatprep.subr.mxu0 %v546
      %1242 = vmatpush1.msra.mxu0 %v545
      %1243 = vmatprep.subr.mxu0 %v554
      %1244 = vmatpush1.msra.mxu0 %v553
      %1245 = vmatprep.subr.mxu0 %v562
      %1246 = vmatpush1.msra.mxu0 %v561
      %1247 = vmatprep.subr.mxu0 %v570
      %1248 = vmatpush1.msra.mxu0 %v569
      %1249 = vmatprep.subr.mxu0 %v578
      %1250 = vmatpush1.msra.mxu0 %v577
      %1251 = vmatprep.subr.mxu0 %v586
      %1252 = vmatpush1.msra.mxu0 %v585
      %1253 = vmatprep.subr.mxu0 %v594
      %1254 = vmatpush1.msra.mxu0 %v593
      %1255 = vmatprep.subr.mxu0 %v602
      %1256 = vmatpush1.msra.mxu0 %v601
      %1257 = vmatprep.subr.mxu0 %v610
      %1258 = vmatpush1.msra.mxu0 %v609
      %1259 = vmatprep.subr.mxu0 %v618
      %1260 = vmatpush1.msra.mxu0 %v617
      %1261 = vmatprep.subr.mxu0 %v626
      %1262 = vmatpush1.msra.mxu0 %v625
      %1263 = vmatprep.subr.mxu0 %v634
      %1264 = vmatpush1.msra.mxu0 %v633
      %1265 = vmatprep.subr.mxu0 %v642
      %1266 = vmatpush1.msra.mxu0 %v641
      %1267 = vmatprep.subr.mxu0 %v650
      %1268 = vmatpush1.msra.mxu0 %v649
      %1269 = vmatprep.subr.mxu0 %v658
      %1270 = vmatpush1.msra.mxu0 %v657
      %1271 = vmatprep.subr.mxu0 %v666
      %1272 = vmatpush1.msra.mxu0 %v665
      %1273 = vmatprep.subr.mxu0 %v674
      %1274 = vmatpush1.msra.mxu0 %v673
      %1275 = vmatprep.subr.mxu0 %v682
      %1276 = vmatpush1.msra.mxu0 %v681
      %1277 = vmatprep.subr.mxu0 %v690
      %1278 = vmatpush1.msra.mxu0 %v689
      %1279 = vmatprep.subr.mxu0 %v698
      %1280 = vmatpush1.msra.mxu0 %v697
      %1281 = vmatprep.mubr.f32.mxu0 %v715
      %1282 = vmatmul.mubr.f32.gmra.mrb[0].mxu0 %v711
      %v1283 = vpop.f32.mrb[0].mxu0
      %v1284 = vadd.f32 %v1213, %v1283
      %v1285 = vpop.f32.mrb[0].mxu0
      %v1286 = vadd.f32 %v1215, %v1285
      %1287 = vdwg.mxu0
      %v1296 = vcombine.low %v858, %v860
      %v1297 = vcombine.low %v1000, %v1002
      %v1298 = vcombine.low %v1142, %v1144
      %v1299 = vcombine.low %v1284, %v1286
      %v1301 = vunpack.c.l.s4 1966171168
      %v1302 = vunpack.c.0.s8 %v1301
      %v1303 = vlaneseq
      %v1304 = vshrl.u32 %v1303, 7
      %v1305 = vsub.s32 %v1302, %v1304
      %v1306 = vrot.slane %v1296, %v1305
      %v1308 = vunpack.c.l.s4 1966171168
      %v1309 = vunpack.c.0.s8 %v1308
      %v1310 = vlaneseq
      %v1311 = vshrl.u32 %v1310, 7
      %v1312 = vsub.s32 %v1309, %v1311
      %v1313 = vrot.slane %v1297, %v1312
      %v1315 = vunpack.c.l.s4 1966171168
      %v1316 = vunpack.c.0.s8 %v1315
      %v1317 = vlaneseq
      %v1318 = vshrl.u32 %v1317, 7
      %v1319 = vsub.s32 %v1316, %v1318
      %v1320 = vrot.slane %v1298, %v1319
      %v1322 = vunpack.c.l.s4 1966171168
      %v1323 = vunpack.c.0.s8 %v1322
      %v1324 = vlaneseq
      %v1325 = vshrl.u32 %v1324, 7
      %v1326 = vsub.s32 %v1323, %v1325
      %v1327 = vrot.slane %v1299, %v1326
      %v1328 = vcombine.low %v1306, %v1313
      %v1329 = vcombine.low %v1320, %v1327
      %v1331 = vunpack.c.l.s4 1966171168
      %v1332 = vunpack.c.0.s8 %v1331
      %v1333 = vlaneseq
      %v1334 = vshrl.u32 %v1333, 7
      %v1335 = vsub.s32 %v1332, %v1334
      %v1336 = vrot.slane %v1328, %v1335
      %v1338 = vunpack.c.l.s4 1966171168
      %v1339 = vunpack.c.0.s8 %v1338
      %v1340 = vlaneseq
      %v1341 = vshrl.u32 %v1340, 7
      %v1342 = vsub.s32 %v1339, %v1341
      %v1343 = vrot.slane %v1329, %v1342
      %v1344 = vcombine.low %v1336, %v1343
      %v1346 = vadd.f32 %v186, %v1344
      %1347 = vst [vmem:[#allocation2] sm:$0xff] %v1346
      %p1348 = scmp.eq.s32.totalorder %s18, 3
      // Predicated region
      $region33: #{_srr_forward.20} parent=27 // pred_check
        %p1349 = pneg %p1348
      $region34: #{_srr_forward.20} parent=27 // pred_check_branch
        %1351 = sbr.rel (%p1349) target = $region36
      $region35: #{_srr_forward.20} parent=27 // pred_region
        %v1352 = vld [vmem:[#allocation2] sm:$0xff]
        %1353 = vst [vmem:[%s174] sm:$0xff] %v1352
      $region36: #{_srr_forward.20} parent=27 // pred_fallthru
        _
      %s1354 = smul.u32 8, %s17
      %p1355 = scmp.lt.s32.totalorder %s1354, 7
      %s1356 = scalar_select %p1355, %s1354, 7
      %s1357 = scalar_lea.vmem %s2, %s1356
      // Predicated region
      $region37: #{_srr_forward.20} parent=27 // pred_check
        %p1358 = pneg %p92
      $region38: #{_srr_forward.20} parent=27 // pred_check_branch
        %1360 = sbr.rel (%p1358) target = $region40
      $region39: #{_srr_forward.20} parent=27 // pred_region
        %s1361 = smul.u32 8, %s17
      $region40: #{_srr_forward.20} parent=27 // pred_fallthru
        _
      // Predicated region
      $region41: #{_srr_forward.20} parent=27 // pred_check
        %p1362 = pneg %p92
      $region42: #{_srr_forward.20} parent=27 // pred_check_branch
        %1364 = sbr.rel (%p1362) target = $region44
      $region43: #{_srr_forward.20} parent=27 // pred_region
        %s1365 = smul.u32 8, %s17
        %p1366 = scmp.lt.s32.totalorder %s1365, 7
        %s1367 = scalar_select %p1366, %s1365, 7
        %s1368 = scalar_lea.vmem %s2, %s1367
      $region44: #{_srr_forward.20} parent=27 // pred_fallthru
        _
    $region28: #{_srr_forward.20} parent=5 // pred_fallthru
      _
    %p1369 = scmp.le.s32.totalorder 2, %s8
    // Predicated region
    $region45: #{_srr_forward.20} parent=5 // pred_check
      %p1370 = pneg %p1369
    $region46: #{_srr_forward.20} parent=5 // pred_check_branch
      %1372 = sbr.rel (%p1370) target = $region48
    $region47: #{_srr_forward.20} parent=5 // pred_region
      %s1373 = ssub.s32 %s8, 2
    $region48: #{_srr_forward.20} parent=5 // pred_fallthru
      _
  $region6: #{_srr_forward.20} parent=0 // loop_footer
    %s12 = sadd.s32 1, %s8
  $region7: #{_srr_forward.20} parent=0 // loop_footer_branch
    %7 = sbr.rel target = $region3
  $region8: #{_srr_forward.20} parent=0 // loop_exit
    _

// kernel: _srr_forward.31
$region0: #{_srr_forward.31}
  #allocation0 [shape = 'u32[]', space=smem, size = 0x4, offset = 0x4, fixed_abs, tag = 'smem constant byte address 0x4 - core index']
  #allocation1 [shape = 'u32[144,128]{1,0:T(1,128)}', space=vmem, size = 0x12000, scoped, tag = 'internal scratch']
  %s0 = inlined_call_operand.vmem [shape: f32[8,1024], index: 0, kind: input, shape index: {}]
  %s1 = inlined_call_operand.vmem [shape: f32[8,1024], index: 1, kind: output, shape index: {}]
  %s2 = sld [smem:[#allocation0]]
  $region14: #{_srr_forward.31} parent=0
    _
  %s4 = ssub.s32 1, %s2
  %s5 = scalar_select 0, %s4, %s2
  // Predicated region
  $region2: #{_srr_forward.31} parent=0 // pred_check
    _
  $region3: #{_srr_forward.31} parent=0 // pred_check_branch
    %7 = sbr.rel (0) target = $region5
  $region4: #{_srr_forward.31} parent=0 // pred_region
    _
  $region5: #{_srr_forward.31} parent=0 // pred_fallthru
    _
  %v8 = vld [vmem:[%s0] sm:$0xff]
  %v9 = vld [vmem:[%s0 + $0x8] sm:$0xff]
  %v10 = vld [vmem:[%s0 + $0x10] sm:$0xff]
  %v11 = vld [vmem:[%s0 + $0x18] sm:$0xff]
  %v12 = vld [vmem:[%s0 + $0x20] sm:$0xff]
  %v13 = vld [vmem:[%s0 + $0x28] sm:$0xff]
  %v14 = vld [vmem:[%s0 + $0x30] sm:$0xff]
  %v15 = vld [vmem:[%s0 + $0x38] sm:$0xff]
  %v16 = vmax.f32 %v8, 0.0
  %v17 = vmax.f32 %v9, 0.0
  %v18 = vmax.f32 %v10, 0.0
  %v19 = vmax.f32 %v11, 0.0
  %v20 = vmax.f32 %v12, 0.0
  %v21 = vmax.f32 %v13, 0.0
  %v22 = vmax.f32 %v14, 0.0
  %v23 = vmax.f32 %v15, 0.0
  %24 = vst [vmem:[%s1] sm:$0xff] %v16
  %25 = vst [vmem:[%s1 + $0x8] sm:$0xff] %v17
  %26 = vst [vmem:[%s1 + $0x10] sm:$0xff] %v18
  %27 = vst [vmem:[%s1 + $0x18] sm:$0xff] %v19
  %28 = vst [vmem:[%s1 + $0x20] sm:$0xff] %v20
  %29 = vst [vmem:[%s1 + $0x28] sm:$0xff] %v21
  %30 = vst [vmem:[%s1 + $0x30] sm:$0xff] %v22
  %31 = vst [vmem:[%s1 + $0x38] sm:$0xff] %v23
  // Predicated region
  $region6: #{_srr_forward.31} parent=0 // pred_check
    _
  $region7: #{_srr_forward.31} parent=0 // pred_check_branch
    %33 = sbr.rel (0) target = $region9
  $region8: #{_srr_forward.31} parent=0 // pred_region
    _
  $region9: #{_srr_forward.31} parent=0 // pred_fallthru
    _
  // Predicated region
  $region10: #{_srr_forward.31} parent=0 // pred_check
    _
  $region11: #{_srr_forward.31} parent=0 // pred_check_branch
    %35 = sbr.rel (0) target = $region13
  $region12: #{_srr_forward.31} parent=0 // pred_region
    _
  $region13: #{_srr_forward.31} parent=0 // pred_fallthru
    _

</llo_original>
